<compile_context>
chip_gen: v7x
topology: tpu7x:2x2x1
jax: 0.10.0
libtpu: 0.0.40
codegen_flags: <defaults>
</compile_context>

<pallas_src>
import jax
import jax.numpy as jnp
from jax import lax
from jax.experimental import pallas as pl
from jax.experimental.pallas import tpu as pltpu  # noqa: F401  (kept for TPU-specific tuning hooks)

# ---- small config consistent with the module ----
RNN_SIZE = 32            # rnn_size == embedding_dim (GRUCell input_size == rnn_size)
EMB_DIM = RNN_SIZE
LAYER_SIZE = 2
VOCAB = 128              # decoder_vocab_size
K = 5                    # top-k
SEQ_LEN = 8
BATCH = 1
GATE_W = 4 * RNN_SIZE    # fused gate slab width: [r | z | n | zero-pad] = 128 lanes


def _ppo_decode_kernel(gru_wi_ref, gru_bi_ref, gru_wh_ref, gru_bh_ref,
                       fcv_w_ref, fcv_b_ref, emb_ref,
                       interesting_ref, mask0_ref, start_ref, init_h_ref,
                       probs_ref, misc_ref, final_mask_ref):
    H = start_ref.shape[-1]
    V = interesting_ref.shape[-1]
    L = probs_ref.shape[0]
    n_layers = init_h_ref.shape[0]

    col = lax.broadcasted_iota(jnp.int32, (1, V), 1)                      # vocab lane index
    mcol = lax.broadcasted_iota(jnp.int32, (1, misc_ref.shape[-1]), 1)    # misc-slab lane index
    interesting = interesting_ref[...]                                    # (1, V)
    emb = emb_ref[...]                                                    # (V, H)
    fcv_w = fcv_w_ref[...]                                                # (H, V+128) fc | value | 0
    fcv_b = fcv_b_ref[...]                                                # (1, V+128)

    # SimpleGRUCell returns the OLD hidden as its new state, so each layer's
    # hidden -- and therefore the hidden-side gate pre-activation -- is
    # constant across time: compute it once, before the decode loop.
    hs, ghs, wis, bis = [], [], [], []
    for l in range(n_layers):
        h = init_h_ref[l]                                                 # (1, H)
        gh = jnp.dot(h, gru_wh_ref[l], preferred_element_type=jnp.float32) + gru_bh_ref[l]
        hs.append(h)
        ghs.append(gh)                                                    # (1, 4H)
        wis.append(gru_wi_ref[l])                                         # (H, 4H)
        bis.append(gru_bi_ref[l])                                         # (1, 4H)

    x = start_ref[...]                                                    # (1, H) decoder-input carry
    history = mask0_ref[...]                                              # (1, V) history-masking carry

    for t in range(L):                                                    # static seq_len -> fully unrolled
        # ---- MultiRNNCell of fused SimpleGRUCells (one matmul per layer) ----
        cur = x
        for l in range(n_layers):
            h, gh = hs[l], ghs[l]
            gi = jnp.dot(cur, wis[l], preferred_element_type=jnp.float32) + bis[l]   # (1, 4H)
            r = jax.nn.sigmoid(gi[:, 0:H] + gh[:, 0:H])
            z = jax.nn.sigmoid(gi[:, H:2 * H] + gh[:, H:2 * H])
            n = jnp.tanh(gi[:, 2 * H:3 * H] + r * gh[:, 2 * H:3 * H])
            cur = (1.0 - z) * n + z * h
        cell_out = cur                                                    # (1, H)

        # ---- fused output (softmax logits) + value head: one (H, V+128) matmul ----
        ov = jnp.dot(cell_out, fcv_w, preferred_element_type=jnp.float32) + fcv_b
        logits = ov[:, :V]                                                # (1, V)
        val = ov[:, V:V + 1]                                              # (1, 1) value (bias folded)
        lmax = jnp.max(logits, axis=-1, keepdims=True)
        e = jnp.exp(logits - lmax)
        probs = e / jnp.sum(e, axis=-1, keepdims=True)                    # (1, V)

        # ---- InteractiveGreedyEmbeddingHelper.next_inputs ----
        masking_outputs = probs * history
        work = masking_outputs
        onehot_topk = jnp.zeros_like(masking_outputs)
        for _ in range(K):        # first-occurrence top-k (matches torch.topk tie order)
            mmax = jnp.max(work, axis=-1, keepdims=True)
            first = jnp.min(jnp.where(work == mmax, col, V), axis=-1, keepdims=True)
            sel = (col == first).astype(jnp.float32)
            onehot_topk = onehot_topk + sel
            work = jnp.where(sel > 0.0, -1e30, work)
        # TODO(synk): swap the max + min-of-index pairs for jnp.argmax (halves the
        # serial XLU reduce chain) once the variadic arg-reduce Mosaic lowering is
        # confirmed on all target generations.

        cur_int_idx = interesting * onehot_topk
        hff = (jnp.sum(cur_int_idx, axis=-1, keepdims=True) > 0.0).astype(jnp.float32)   # (1, 1)
        score = hff * cur_int_idx * probs + (1.0 - hff) * masking_outputs
        smax = jnp.max(score, axis=-1, keepdims=True)
        sel_idx = jnp.min(jnp.where(score == smax, col, V), axis=-1, keepdims=True)       # (1, 1) i32
        onehot_sel = (col == sel_idx).astype(jnp.float32)                                 # (1, V)

        emb_sel = jnp.dot(onehot_sel, emb, preferred_element_type=jnp.float32)            # (1, H)
        x = (2.0 * hff - 1.0) * emb_sel                 # == hff*emb + (hff-1)*emb
        history = history - hff * onehot_sel

        # ---- per-step outputs: lane-dense, VMEM-resident; HBM writeback once at end ----
        probs_ref[pl.ds(t, 1), :] = probs
        misc_row = (jnp.where(mcol == 0, sel_idx.astype(jnp.float32), 0.0)
                    + jnp.where(mcol == 1, val, 0.0)
                    + jnp.where(mcol == 2, hff, 0.0))
        misc_ref[pl.ds(t, 1), :] = misc_row

    # TODO(synk): the reference while-loop can exit early on `finished`; here
    # `finished` only triggers at t == seq_len-1 (== maximum_iterations), so the
    # fixed L-step unrolled loop is semantically identical.
    final_mask_ref[...] = history


def ppo_interactive_forward(params, user_interesting, user_masking, seq_len,
                            init_state=None, s_token=0, s_hit=1.0):
    assert user_interesting.shape == (BATCH, VOCAB) and BATCH == 1
    V, H, L = VOCAB, RNN_SIZE, int(seq_len)

    emb = params["embedding"]                               # (V, H)
    if init_state is None:
        init_h = jnp.zeros((LAYER_SIZE, 1, H), jnp.float32)
    else:
        init_h = jnp.stack(init_state).reshape(LAYER_SIZE, 1, H)

    # helper: start_inputs = embedding([s_token]) * long(s_hit)  (long cast as in reference)
    start_inputs = (emb[s_token][None, :] * float(int(s_hit))).astype(jnp.float32)

    out_shape = (
        jax.ShapeDtypeStruct((L, V), jnp.float32),      # per-step softmax probs (row t = step t)
        jax.ShapeDtypeStruct((L, 128), jnp.float32),    # packed misc: col0=sample_id, col1=value, col2=hit
        jax.ShapeDtypeStruct((1, V), jnp.float32),      # final history masking
    )
    # Single kernel invocation (no grid): all operands are whole-array VMEM blocks
    # (total footprint ~0.1 MiB), outputs written back to HBM once.
    probs_t, misc, final_mask = pl.pallas_call(
        _ppo_decode_kernel,
        out_shape=out_shape,
    )(params["gru_wi"], params["gru_bi"], params["gru_wh"], params["gru_bh"],
      params["fcv_w"], params["fcv_b"], emb,
      user_interesting.astype(jnp.float32), user_masking.astype(jnp.float32),
      start_inputs, init_h)

    # batch=1: reshapes are free; misc column picks are tiny slices.
    rnn_output = probs_t.reshape(1, L, V)                    # (1, L, V)
    sample_ids = misc[:, 0].astype(jnp.int32).reshape(1, L)  # (1, L)  exact small ints in f32
    values = misc[:, 1].reshape(1, L, 1)                     # (1, L, 1)
    hit = misc[:, 2].reshape(1, L, 1)                        # (1, L, 1)
    # SimpleGRUCell returns the old hidden as its new state -> final_state == init_state
    final_state = tuple(init_h[l] for l in range(LAYER_SIZE))
    return rnn_output, sample_ids, values, final_state, final_mask, hit


def init_params(key):
    """Random params in the fused, lane-dense layout the kernel consumes."""
    ks = jax.random.split(key, 8)
    s = 0.1
    H, V, Lyr = RNN_SIZE, VOCAB, LAYER_SIZE

    emb = jax.random.normal(ks[0], (V, EMB_DIM), jnp.float32)
    w_i = s * jax.random.normal(ks[1], (Lyr * 3, H, H), jnp.float32)   # (r,z,n per layer) input weights
    w_h = s * jax.random.normal(ks[2], (Lyr * 3, H, H), jnp.float32)   # hidden weights
    b_i = s * jax.random.normal(ks[3], (Lyr * 3, 1, H), jnp.float32)
    b_h = s * jax.random.normal(ks[4], (Lyr * 3, 1, H), jnp.float32)
    fc_w_t = s * jax.random.normal(ks[5], (H, V), jnp.float32)         # fc weight (transposed)
    fc_b = s * jax.random.normal(ks[6], (1, V), jnp.float32)
    value_w = s * jax.random.normal(ks[7], (1, H), jnp.float32)
    value_b = jnp.zeros((1, 1), jnp.float32)

    # ---- fuse GRU gate weights into lane-dense (H, 4H) slabs: columns [r | z | n | 0] ----
    def slab(w3, b3):
        w = jnp.concatenate([w3[0], w3[1], w3[2], jnp.zeros((H, H), jnp.float32)], axis=-1)
        b = jnp.concatenate([b3[0], b3[1], b3[2], jnp.zeros((1, H), jnp.float32)], axis=-1)
        return w, b

    wi_l, bi_l, wh_l, bh_l = [], [], [], []
    for l in range(Lyr):
        wi, bi = slab(w_i[3 * l:3 * l + 3], b_i[3 * l:3 * l + 3])
        wh, bh = slab(w_h[3 * l:3 * l + 3], b_h[3 * l:3 * l + 3])
        wi_l.append(wi); bi_l.append(bi); wh_l.append(wh); bh_l.append(bh)

    # ---- fuse fc + value head: (H, V+128); value weight/bias live in column V ----
    fcv_w = jnp.zeros((H, V + 128), jnp.float32)
    fcv_w = fcv_w.at[:, :V].set(fc_w_t).at[:, V].set(value_w[0])
    fcv_b = jnp.zeros((1, V + 128), jnp.float32)
    fcv_b = fcv_b.at[:, :V].set(fc_b).at[:, V].set(value_b[0, 0])

    return dict(
        embedding=emb,
        gru_wi=jnp.stack(wi_l),   # (LAYER_SIZE, H, 4H)
        gru_bi=jnp.stack(bi_l),   # (LAYER_SIZE, 1, 4H)
        gru_wh=jnp.stack(wh_l),   # (LAYER_SIZE, H, 4H)
        gru_bh=jnp.stack(bh_l),   # (LAYER_SIZE, 1, 4H)
        fcv_w=fcv_w,              # (H, V+128)
        fcv_b=fcv_b,              # (1, V+128)
    )


if __name__ == "__main__":
    key = jax.random.PRNGKey(0)
    pkey, ikey = jax.random.split(key, 2)
    params = init_params(pkey)

    user_interesting = jax.random.bernoulli(ikey, 0.2, (BATCH, VOCAB)).astype(jnp.float32)
    user_masking = jnp.ones((BATCH, VOCAB), jnp.float32)

    outs = ppo_interactive_forward(params, user_interesting, user_masking, SEQ_LEN,
                                   init_state=None, s_token=0, s_hit=1.0)
    outs = jax.block_until_ready(outs)
    logits, sample_ids, values, final_state, final_history_masking, hit = outs

    assert logits.shape == (BATCH, SEQ_LEN, VOCAB)
    assert sample_ids.shape == (BATCH, SEQ_LEN)
    assert values.shape == (BATCH, SEQ_LEN, 1)
    assert hit.shape == (BATCH, SEQ_LEN, 1)
    assert final_history_masking.shape == (BATCH, VOCAB)
    assert len(final_state) == LAYER_SIZE
    print("KERNEL_OK")
</pallas_src>

<mosaic_0001>
module attributes {stable_mosaic.version = 11 : i64} {
  func.func @_ppo_decode_kernel(%arg0: memref<2x32x128xf32, #tpu.memory_space<vmem>>, %arg1: memref<2x1x128xf32, #tpu.memory_space<vmem>>, %arg2: memref<2x32x128xf32, #tpu.memory_space<vmem>>, %arg3: memref<2x1x128xf32, #tpu.memory_space<vmem>>, %arg4: memref<32x256xf32, #tpu.memory_space<vmem>>, %arg5: memref<1x256xf32, #tpu.memory_space<vmem>>, %arg6: memref<128x32xf32, #tpu.memory_space<vmem>>, %arg7: memref<1x128xf32, #tpu.memory_space<vmem>>, %arg8: memref<1x128xf32, #tpu.memory_space<vmem>>, %arg9: memref<1x32xf32, #tpu.memory_space<vmem>>, %arg10: memref<2x1x32xf32, #tpu.memory_space<vmem>>, %arg11: memref<8x128xf32, #tpu.memory_space<vmem>>, %arg12: memref<8x128xf32, #tpu.memory_space<vmem>>, %arg13: memref<1x128xf32, #tpu.memory_space<vmem>>) attributes {dimension_semantics = [], scalar_prefetch = 0 : i64, scratch_operands = 0 : i64, tpu.core_type = #tpu.core_type<tc>} {
    %0 = tpu.iota {dimensions = array<i32: 1>} : vector<1x128xi32>
    %1 = tpu.iota {dimensions = array<i32: 1>} : vector<1x128xi32>
    %c0 = arith.constant 0 : index
    %c0_0 = arith.constant 0 : index
    %2 = vector.load %arg7[%c0, %c0_0] : memref<1x128xf32, #tpu.memory_space<vmem>>, vector<1x128xf32>
    %c0_1 = arith.constant 0 : index
    %c0_2 = arith.constant 0 : index
    %3 = vector.load %arg6[%c0_1, %c0_2] : memref<128x32xf32, #tpu.memory_space<vmem>>, vector<128x32xf32>
    %c0_3 = arith.constant 0 : index
    %c0_4 = arith.constant 0 : index
    %4 = vector.load %arg4[%c0_3, %c0_4] : memref<32x256xf32, #tpu.memory_space<vmem>>, vector<32x256xf32>
    %c0_5 = arith.constant 0 : index
    %c0_6 = arith.constant 0 : index
    %5 = vector.load %arg5[%c0_5, %c0_6] : memref<1x256xf32, #tpu.memory_space<vmem>>, vector<1x256xf32>
    %c0_7 = arith.constant 0 : index
    %c0_8 = arith.constant 0 : index
    %c0_9 = arith.constant 0 : index
    %6 = vector.load %arg10[%c0_7, %c0_8, %c0_9] : memref<2x1x32xf32, #tpu.memory_space<vmem>>, vector<1x1x32xf32>
    %7 = vector.shape_cast %6 : vector<1x1x32xf32> to vector<1x32xf32>
    %c0_10 = arith.constant 0 : index
    %c0_11 = arith.constant 0 : index
    %c0_12 = arith.constant 0 : index
    %8 = vector.load %arg2[%c0_10, %c0_11, %c0_12] : memref<2x32x128xf32, #tpu.memory_space<vmem>>, vector<1x32x128xf32>
    %9 = vector.shape_cast %8 : vector<1x32x128xf32> to vector<32x128xf32>
    %cst = arith.constant dense<0.000000e+00> : vector<1x128xf32>
    %10 = tpu.matmul %7, %9, %cst {dimension_numbers = #tpu.dot_dimension_numbers<[1], [0], [0], [1], [0, 0, 1, 1], [], []>} : vector<1x32xf32>, vector<32x128xf32>, vector<1x128xf32> -> vector<1x128xf32>
    %c0_13 = arith.constant 0 : index
    %c0_14 = arith.constant 0 : index
    %c0_15 = arith.constant 0 : index
    %11 = vector.load %arg3[%c0_13, %c0_14, %c0_15] : memref<2x1x128xf32, #tpu.memory_space<vmem>>, vector<1x1x128xf32>
    %12 = vector.shape_cast %11 : vector<1x1x128xf32> to vector<1x128xf32>
    %13 = arith.addf %10, %12 : vector<1x128xf32>
    %c0_16 = arith.constant 0 : index
    %c0_17 = arith.constant 0 : index
    %c0_18 = arith.constant 0 : index
    %14 = vector.load %arg0[%c0_16, %c0_17, %c0_18] : memref<2x32x128xf32, #tpu.memory_space<vmem>>, vector<1x32x128xf32>
    %15 = vector.shape_cast %14 : vector<1x32x128xf32> to vector<32x128xf32>
    %c0_19 = arith.constant 0 : index
    %c0_20 = arith.constant 0 : index
    %c0_21 = arith.constant 0 : index
    %16 = vector.load %arg1[%c0_19, %c0_20, %c0_21] : memref<2x1x128xf32, #tpu.memory_space<vmem>>, vector<1x1x128xf32>
    %17 = vector.shape_cast %16 : vector<1x1x128xf32> to vector<1x128xf32>
    %c1 = arith.constant 1 : index
    %c0_22 = arith.constant 0 : index
    %c0_23 = arith.constant 0 : index
    %18 = vector.load %arg10[%c1, %c0_22, %c0_23] : memref<2x1x32xf32, #tpu.memory_space<vmem>>, vector<1x1x32xf32>
    %19 = vector.shape_cast %18 : vector<1x1x32xf32> to vector<1x32xf32>
    %c1_24 = arith.constant 1 : index
    %c0_25 = arith.constant 0 : index
    %c0_26 = arith.constant 0 : index
    %20 = vector.load %arg2[%c1_24, %c0_25, %c0_26] : memref<2x32x128xf32, #tpu.memory_space<vmem>>, vector<1x32x128xf32>
    %21 = vector.shape_cast %20 : vector<1x32x128xf32> to vector<32x128xf32>
    %cst_27 = arith.constant dense<0.000000e+00> : vector<1x128xf32>
    %22 = tpu.matmul %19, %21, %cst_27 {dimension_numbers = #tpu.dot_dimension_numbers<[1], [0], [0], [1], [0, 0, 1, 1], [], []>} : vector<1x32xf32>, vector<32x128xf32>, vector<1x128xf32> -> vector<1x128xf32>
    %c1_28 = arith.constant 1 : index
    %c0_29 = arith.constant 0 : index
    %c0_30 = arith.constant 0 : index
    %23 = vector.load %arg3[%c1_28, %c0_29, %c0_30] : memref<2x1x128xf32, #tpu.memory_space<vmem>>, vector<1x1x128xf32>
    %24 = vector.shape_cast %23 : vector<1x1x128xf32> to vector<1x128xf32>
    %25 = arith.addf %22, %24 : vector<1x128xf32>
    %c1_31 = arith.constant 1 : index
    %c0_32 = arith.constant 0 : index
    %c0_33 = arith.constant 0 : index
    %26 = vector.load %arg0[%c1_31, %c0_32, %c0_33] : memref<2x32x128xf32, #tpu.memory_space<vmem>>, vector<1x32x128xf32>
    %27 = vector.shape_cast %26 : vector<1x32x128xf32> to vector<32x128xf32>
    %c1_34 = arith.constant 1 : index
    %c0_35 = arith.constant 0 : index
    %c0_36 = arith.constant 0 : index
    %28 = vector.load %arg1[%c1_34, %c0_35, %c0_36] : memref<2x1x128xf32, #tpu.memory_space<vmem>>, vector<1x1x128xf32>
    %29 = vector.shape_cast %28 : vector<1x1x128xf32> to vector<1x128xf32>
    %c0_37 = arith.constant 0 : index
    %c0_38 = arith.constant 0 : index
    %30 = vector.load %arg9[%c0_37, %c0_38] : memref<1x32xf32, #tpu.memory_space<vmem>>, vector<1x32xf32>
    %c0_39 = arith.constant 0 : index
    %c0_40 = arith.constant 0 : index
    %31 = vector.load %arg8[%c0_39, %c0_40] : memref<1x128xf32, #tpu.memory_space<vmem>>, vector<1x128xf32>
    %cst_41 = arith.constant dense<0.000000e+00> : vector<1x128xf32>
    %32 = tpu.matmul %30, %15, %cst_41 {dimension_numbers = #tpu.dot_dimension_numbers<[1], [0], [0], [1], [0, 0, 1, 1], [], []>} : vector<1x32xf32>, vector<32x128xf32>, vector<1x128xf32> -> vector<1x128xf32>
    %33 = arith.addf %32, %17 : vector<1x128xf32>
    %34 = vector.extract_strided_slice %33 {offsets = [0, 0], sizes = [1, 32], strides = [1, 1]} : vector<1x128xf32> to vector<1x32xf32>
    %35 = vector.extract_strided_slice %13 {offsets = [0, 0], sizes = [1, 32], strides = [1, 1]} : vector<1x128xf32> to vector<1x32xf32>
    %36 = arith.addf %34, %35 : vector<1x32xf32>
    %37 = arith.negf %36 : vector<1x32xf32>
    %38 = math.exp %37 : vector<1x32xf32>
    %cst_42 = arith.constant 1.000000e+00 : f32
    %39 = vector.broadcast %cst_42 : f32 to vector<1x32xf32>
    %40 = arith.addf %39, %38 : vector<1x32xf32>
    %41 = arith.divf %39, %40 : vector<1x32xf32>
    %42 = vector.extract_strided_slice %33 {offsets = [0, 32], sizes = [1, 32], strides = [1, 1]} : vector<1x128xf32> to vector<1x32xf32>
    %43 = vector.extract_strided_slice %13 {offsets = [0, 32], sizes = [1, 32], strides = [1, 1]} : vector<1x128xf32> to vector<1x32xf32>
    %44 = arith.addf %42, %43 : vector<1x32xf32>
    %45 = arith.negf %44 : vector<1x32xf32>
    %46 = math.exp %45 : vector<1x32xf32>
    %cst_43 = arith.constant 1.000000e+00 : f32
    %47 = vector.broadcast %cst_43 : f32 to vector<1x32xf32>
    %48 = arith.addf %47, %46 : vector<1x32xf32>
    %49 = arith.divf %47, %48 : vector<1x32xf32>
    %50 = vector.extract_strided_slice %33 {offsets = [0, 64], sizes = [1, 32], strides = [1, 1]} : vector<1x128xf32> to vector<1x32xf32>
    %51 = vector.extract_strided_slice %13 {offsets = [0, 64], sizes = [1, 32], strides = [1, 1]} : vector<1x128xf32> to vector<1x32xf32>
    %52 = arith.mulf %41, %51 : vector<1x32xf32>
    %53 = arith.addf %50, %52 : vector<1x32xf32>
    %54 = math.tanh %53 : vector<1x32xf32>
    %cst_44 = arith.constant 1.000000e+00 : f32
    %55 = vector.broadcast %cst_44 : f32 to vector<1x32xf32>
    %56 = arith.subf %55, %49 : vector<1x32xf32>
    %57 = arith.mulf %56, %54 : vector<1x32xf32>
    %58 = arith.mulf %49, %7 : vector<1x32xf32>
    %59 = arith.addf %57, %58 : vector<1x32xf32>
    %cst_45 = arith.constant dense<0.000000e+00> : vector<1x128xf32>
    %60 = tpu.matmul %59, %27, %cst_45 {dimension_numbers = #tpu.dot_dimension_numbers<[1], [0], [0], [1], [0, 0, 1, 1], [], []>} : vector<1x32xf32>, vector<32x128xf32>, vector<1x128xf32> -> vector<1x128xf32>
    %61 = arith.addf %60, %29 : vector<1x128xf32>
    %62 = vector.extract_strided_slice %61 {offsets = [0, 0], sizes = [1, 32], strides = [1, 1]} : vector<1x128xf32> to vector<1x32xf32>
    %63 = vector.extract_strided_slice %25 {offsets = [0, 0], sizes = [1, 32], strides = [1, 1]} : vector<1x128xf32> to vector<1x32xf32>
    %64 = arith.addf %62, %63 : vector<1x32xf32>
    %65 = arith.negf %64 : vector<1x32xf32>
    %66 = math.exp %65 : vector<1x32xf32>
    %cst_46 = arith.constant 1.000000e+00 : f32
    %67 = vector.broadcast %cst_46 : f32 to vector<1x32xf32>
    %68 = arith.addf %67, %66 : vector<1x32xf32>
    %69 = arith.divf %67, %68 : vector<1x32xf32>
    %70 = vector.extract_strided_slice %61 {offsets = [0, 32], sizes = [1, 32], strides = [1, 1]} : vector<1x128xf32> to vector<1x32xf32>
    %71 = vector.extract_strided_slice %25 {offsets = [0, 32], sizes = [1, 32], strides = [1, 1]} : vector<1x128xf32> to vector<1x32xf32>
    %72 = arith.addf %70, %71 : vector<1x32xf32>
    %73 = arith.negf %72 : vector<1x32xf32>
    %74 = math.exp %73 : vector<1x32xf32>
    %cst_47 = arith.constant 1.000000e+00 : f32
    %75 = vector.broadcast %cst_47 : f32 to vector<1x32xf32>
    %76 = arith.addf %75, %74 : vector<1x32xf32>
    %77 = arith.divf %75, %76 : vector<1x32xf32>
    %78 = vector.extract_strided_slice %61 {offsets = [0, 64], sizes = [1, 32], strides = [1, 1]} : vector<1x128xf32> to vector<1x32xf32>
    %79 = vector.extract_strided_slice %25 {offsets = [0, 64], sizes = [1, 32], strides = [1, 1]} : vector<1x128xf32> to vector<1x32xf32>
    %80 = arith.mulf %69, %79 : vector<1x32xf32>
    %81 = arith.addf %78, %80 : vector<1x32xf32>
    %82 = math.tanh %81 : vector<1x32xf32>
    %cst_48 = arith.constant 1.000000e+00 : f32
    %83 = vector.broadcast %cst_48 : f32 to vector<1x32xf32>
    %84 = arith.subf %83, %77 : vector<1x32xf32>
    %85 = arith.mulf %84, %82 : vector<1x32xf32>
    %86 = arith.mulf %77, %19 : vector<1x32xf32>
    %87 = arith.addf %85, %86 : vector<1x32xf32>
    %cst_49 = arith.constant dense<0.000000e+00> : vector<1x256xf32>
    %88 = tpu.matmul %87, %4, %cst_49 {dimension_numbers = #tpu.dot_dimension_numbers<[1], [0], [0], [1], [0, 0, 1, 1], [], []>} : vector<1x32xf32>, vector<32x256xf32>, vector<1x256xf32> -> vector<1x256xf32>
    %89 = arith.addf %88, %5 : vector<1x256xf32>
    %90 = vector.extract_strided_slice %89 {offsets = [0, 0], sizes = [1, 128], strides = [1, 1]} : vector<1x256xf32> to vector<1x128xf32>
    %91 = vector.extract_strided_slice %89 {offsets = [0, 128], sizes = [1, 1], strides = [1, 1]} : vector<1x256xf32> to vector<1x1xf32>
    %cst_50 = arith.constant dense<0xFF800000> : vector<1xf32>
    %92 = vector.multi_reduction <maximumf>, %90, %cst_50 [1] : vector<1x128xf32> to vector<1xf32>
    %93 = vector.shape_cast %92 : vector<1xf32> to vector<1x1xf32>
    %94 = vector.broadcast %93 : vector<1x1xf32> to vector<1x128xf32>
    %95 = arith.subf %90, %94 : vector<1x128xf32>
    %96 = math.exp %95 : vector<1x128xf32>
    %cst_51 = arith.constant dense<0.000000e+00> : vector<1xf32>
    %97 = vector.multi_reduction <add>, %96, %cst_51 [1] : vector<1x128xf32> to vector<1xf32>
    %98 = vector.shape_cast %97 : vector<1xf32> to vector<1x1xf32>
    %99 = vector.broadcast %98 : vector<1x1xf32> to vector<1x128xf32>
    %100 = arith.divf %96, %99 : vector<1x128xf32>
    %101 = arith.mulf %100, %31 : vector<1x128xf32>
    %cst_52 = arith.constant 0.000000e+00 : f32
    %102 = vector.broadcast %cst_52 : f32 to vector<1x128xf32>
    %cst_53 = arith.constant dense<0xFF800000> : vector<1xf32>
    %103 = vector.multi_reduction <maximumf>, %101, %cst_53 [1] : vector<1x128xf32> to vector<1xf32>
    %104 = vector.shape_cast %103 : vector<1xf32> to vector<1x1xf32>
    %105 = vector.broadcast %104 : vector<1x1xf32> to vector<1x128xf32>
    %106 = arith.cmpf oeq, %101, %105 : vector<1x128xf32>
    %c128_i32 = arith.constant 128 : i32
    %107 = vector.broadcast %c128_i32 : i32 to vector<1x128xi32>
    %108 = arith.select %106, %0, %107 : vector<1x128xi1>, vector<1x128xi32>
    %cst_54 = arith.constant dense<2147483647> : vector<1xi32>
    %109 = vector.multi_reduction <minsi>, %108, %cst_54 [1] : vector<1x128xi32> to vector<1xi32>
    %110 = vector.shape_cast %109 : vector<1xi32> to vector<1x1xi32>
    %111 = vector.broadcast %110 : vector<1x1xi32> to vector<1x128xi32>
    %112 = arith.cmpi eq, %0, %111 : vector<1x128xi32>
    %113 = arith.extui %112 : vector<1x128xi1> to vector<1x128xi32>
    %114 = arith.sitofp %113 : vector<1x128xi32> to vector<1x128xf32>
    %115 = arith.addf %102, %114 : vector<1x128xf32>
    %cst_55 = arith.constant 0.000000e+00 : f32
    %116 = vector.broadcast %cst_55 : f32 to vector<1x128xf32>
    %117 = arith.cmpf ogt, %114, %116 : vector<1x128xf32>
    %cst_56 = arith.constant -1.000000e+30 : f32
    %118 = vector.broadcast %cst_56 : f32 to vector<1x128xf32>
    %119 = arith.select %117, %118, %101 : vector<1x128xi1>, vector<1x128xf32>
    %cst_57 = arith.constant dense<0xFF800000> : vector<1xf32>
    %120 = vector.multi_reduction <maximumf>, %119, %cst_57 [1] : vector<1x128xf32> to vector<1xf32>
    %121 = vector.shape_cast %120 : vector<1xf32> to vector<1x1xf32>
    %122 = vector.broadcast %121 : vector<1x1xf32> to vector<1x128xf32>
    %123 = arith.cmpf oeq, %119, %122 : vector<1x128xf32>
    %c128_i32_58 = arith.constant 128 : i32
    %124 = vector.broadcast %c128_i32_58 : i32 to vector<1x128xi32>
    %125 = arith.select %123, %0, %124 : vector<1x128xi1>, vector<1x128xi32>
    %cst_59 = arith.constant dense<2147483647> : vector<1xi32>
    %126 = vector.multi_reduction <minsi>, %125, %cst_59 [1] : vector<1x128xi32> to vector<1xi32>
    %127 = vector.shape_cast %126 : vector<1xi32> to vector<1x1xi32>
    %128 = vector.broadcast %127 : vector<1x1xi32> to vector<1x128xi32>
    %129 = arith.cmpi eq, %0, %128 : vector<1x128xi32>
    %130 = arith.extui %129 : vector<1x128xi1> to vector<1x128xi32>
    %131 = arith.sitofp %130 : vector<1x128xi32> to vector<1x128xf32>
    %132 = arith.addf %115, %131 : vector<1x128xf32>
    %cst_60 = arith.constant 0.000000e+00 : f32
    %133 = vector.broadcast %cst_60 : f32 to vector<1x128xf32>
    %134 = arith.cmpf ogt, %131, %133 : vector<1x128xf32>
    %cst_61 = arith.constant -1.000000e+30 : f32
    %135 = vector.broadcast %cst_61 : f32 to vector<1x128xf32>
    %136 = arith.select %134, %135, %119 : vector<1x128xi1>, vector<1x128xf32>
    %cst_62 = arith.constant dense<0xFF800000> : vector<1xf32>
    %137 = vector.multi_reduction <maximumf>, %136, %cst_62 [1] : vector<1x128xf32> to vector<1xf32>
    %138 = vector.shape_cast %137 : vector<1xf32> to vector<1x1xf32>
    %139 = vector.broadcast %138 : vector<1x1xf32> to vector<1x128xf32>
    %140 = arith.cmpf oeq, %136, %139 : vector<1x128xf32>
    %c128_i32_63 = arith.constant 128 : i32
    %141 = vector.broadcast %c128_i32_63 : i32 to vector<1x128xi32>
    %142 = arith.select %140, %0, %141 : vector<1x128xi1>, vector<1x128xi32>
    %cst_64 = arith.constant dense<2147483647> : vector<1xi32>
    %143 = vector.multi_reduction <minsi>, %142, %cst_64 [1] : vector<1x128xi32> to vector<1xi32>
    %144 = vector.shape_cast %143 : vector<1xi32> to vector<1x1xi32>
    %145 = vector.broadcast %144 : vector<1x1xi32> to vector<1x128xi32>
    %146 = arith.cmpi eq, %0, %145 : vector<1x128xi32>
    %147 = arith.extui %146 : vector<1x128xi1> to vector<1x128xi32>
    %148 = arith.sitofp %147 : vector<1x128xi32> to vector<1x128xf32>
    %149 = arith.addf %132, %148 : vector<1x128xf32>
    %cst_65 = arith.constant 0.000000e+00 : f32
    %150 = vector.broadcast %cst_65 : f32 to vector<1x128xf32>
    %151 = arith.cmpf ogt, %148, %150 : vector<1x128xf32>
    %cst_66 = arith.constant -1.000000e+30 : f32
    %152 = vector.broadcast %cst_66 : f32 to vector<1x128xf32>
    %153 = arith.select %151, %152, %136 : vector<1x128xi1>, vector<1x128xf32>
    %cst_67 = arith.constant dense<0xFF800000> : vector<1xf32>
    %154 = vector.multi_reduction <maximumf>, %153, %cst_67 [1] : vector<1x128xf32> to vector<1xf32>
    %155 = vector.shape_cast %154 : vector<1xf32> to vector<1x1xf32>
    %156 = vector.broadcast %155 : vector<1x1xf32> to vector<1x128xf32>
    %157 = arith.cmpf oeq, %153, %156 : vector<1x128xf32>
    %c128_i32_68 = arith.constant 128 : i32
    %158 = vector.broadcast %c128_i32_68 : i32 to vector<1x128xi32>
    %159 = arith.select %157, %0, %158 : vector<1x128xi1>, vector<1x128xi32>
    %cst_69 = arith.constant dense<2147483647> : vector<1xi32>
    %160 = vector.multi_reduction <minsi>, %159, %cst_69 [1] : vector<1x128xi32> to vector<1xi32>
    %161 = vector.shape_cast %160 : vector<1xi32> to vector<1x1xi32>
    %162 = vector.broadcast %161 : vector<1x1xi32> to vector<1x128xi32>
    %163 = arith.cmpi eq, %0, %162 : vector<1x128xi32>
    %164 = arith.extui %163 : vector<1x128xi1> to vector<1x128xi32>
    %165 = arith.sitofp %164 : vector<1x128xi32> to vector<1x128xf32>
    %166 = arith.addf %149, %165 : vector<1x128xf32>
    %cst_70 = arith.constant 0.000000e+00 : f32
    %167 = vector.broadcast %cst_70 : f32 to vector<1x128xf32>
    %168 = arith.cmpf ogt, %165, %167 : vector<1x128xf32>
    %cst_71 = arith.constant -1.000000e+30 : f32
    %169 = vector.broadcast %cst_71 : f32 to vector<1x128xf32>
    %170 = arith.select %168, %169, %153 : vector<1x128xi1>, vector<1x128xf32>
    %cst_72 = arith.constant dense<0xFF800000> : vector<1xf32>
    %171 = vector.multi_reduction <maximumf>, %170, %cst_72 [1] : vector<1x128xf32> to vector<1xf32>
    %172 = vector.shape_cast %171 : vector<1xf32> to vector<1x1xf32>
    %173 = vector.broadcast %172 : vector<1x1xf32> to vector<1x128xf32>
    %174 = arith.cmpf oeq, %170, %173 : vector<1x128xf32>
    %c128_i32_73 = arith.constant 128 : i32
    %175 = vector.broadcast %c128_i32_73 : i32 to vector<1x128xi32>
    %176 = arith.select %174, %0, %175 : vector<1x128xi1>, vector<1x128xi32>
    %cst_74 = arith.constant dense<2147483647> : vector<1xi32>
    %177 = vector.multi_reduction <minsi>, %176, %cst_74 [1] : vector<1x128xi32> to vector<1xi32>
    %178 = vector.shape_cast %177 : vector<1xi32> to vector<1x1xi32>
    %179 = vector.broadcast %178 : vector<1x1xi32> to vector<1x128xi32>
    %180 = arith.cmpi eq, %0, %179 : vector<1x128xi32>
    %181 = arith.extui %180 : vector<1x128xi1> to vector<1x128xi32>
    %182 = arith.sitofp %181 : vector<1x128xi32> to vector<1x128xf32>
    %183 = arith.addf %166, %182 : vector<1x128xf32>
    %184 = arith.mulf %2, %183 : vector<1x128xf32>
    %cst_75 = arith.constant dense<0.000000e+00> : vector<1xf32>
    %185 = vector.multi_reduction <add>, %184, %cst_75 [1] : vector<1x128xf32> to vector<1xf32>
    %186 = vector.shape_cast %185 : vector<1xf32> to vector<1x1xf32>
    %cst_76 = arith.constant 0.000000e+00 : f32
    %187 = vector.broadcast %cst_76 : f32 to vector<1x1xf32>
    %188 = arith.cmpf ogt, %186, %187 : vector<1x1xf32>
    %189 = arith.extui %188 : vector<1x1xi1> to vector<1x1xi32>
    %190 = arith.sitofp %189 : vector<1x1xi32> to vector<1x1xf32>
    %191 = vector.broadcast %190 : vector<1x1xf32> to vector<1x128xf32>
    %192 = arith.mulf %191, %184 : vector<1x128xf32>
    %193 = arith.mulf %192, %100 : vector<1x128xf32>
    %cst_77 = arith.constant 1.000000e+00 : f32
    %194 = vector.broadcast %cst_77 : f32 to vector<1x1xf32>
    %195 = arith.subf %194, %190 : vector<1x1xf32>
    %196 = vector.broadcast %195 : vector<1x1xf32> to vector<1x128xf32>
    %197 = arith.mulf %196, %101 : vector<1x128xf32>
    %198 = arith.addf %193, %197 : vector<1x128xf32>
    %cst_78 = arith.constant dense<0xFF800000> : vector<1xf32>
    %199 = vector.multi_reduction <maximumf>, %198, %cst_78 [1] : vector<1x128xf32> to vector<1xf32>
    %200 = vector.shape_cast %199 : vector<1xf32> to vector<1x1xf32>
    %201 = vector.broadcast %200 : vector<1x1xf32> to vector<1x128xf32>
    %202 = arith.cmpf oeq, %198, %201 : vector<1x128xf32>
    %c128_i32_79 = arith.constant 128 : i32
    %203 = vector.broadcast %c128_i32_79 : i32 to vector<1x128xi32>
    %204 = arith.select %202, %0, %203 : vector<1x128xi1>, vector<1x128xi32>
    %cst_80 = arith.constant dense<2147483647> : vector<1xi32>
    %205 = vector.multi_reduction <minsi>, %204, %cst_80 [1] : vector<1x128xi32> to vector<1xi32>
    %206 = vector.shape_cast %205 : vector<1xi32> to vector<1x1xi32>
    %207 = vector.broadcast %206 : vector<1x1xi32> to vector<1x128xi32>
    %208 = arith.cmpi eq, %0, %207 : vector<1x128xi32>
    %209 = arith.extui %208 : vector<1x128xi1> to vector<1x128xi32>
    %210 = arith.sitofp %209 : vector<1x128xi32> to vector<1x128xf32>
    %cst_81 = arith.constant dense<0.000000e+00> : vector<1x32xf32>
    %211 = tpu.matmul %210, %3, %cst_81 {dimension_numbers = #tpu.dot_dimension_numbers<[1], [0], [0], [1], [0, 0, 1, 1], [], []>} : vector<1x128xf32>, vector<128x32xf32>, vector<1x32xf32> -> vector<1x32xf32>
    %cst_82 = arith.constant 2.000000e+00 : f32
    %212 = vector.broadcast %cst_82 : f32 to vector<1x1xf32>
    %213 = arith.mulf %212, %190 : vector<1x1xf32>
    %cst_83 = arith.constant 1.000000e+00 : f32
    %214 = vector.broadcast %cst_83 : f32 to vector<1x1xf32>
    %215 = arith.subf %213, %214 : vector<1x1xf32>
    %216 = vector.broadcast %215 : vector<1x1xf32> to vector<1x32xf32>
    %217 = arith.mulf %216, %211 : vector<1x32xf32>
    %218 = vector.broadcast %190 : vector<1x1xf32> to vector<1x128xf32>
    %219 = arith.mulf %218, %210 : vector<1x128xf32>
    %220 = arith.subf %31, %219 : vector<1x128xf32>
    %c0_84 = arith.constant 0 : index
    %c0_85 = arith.constant 0 : index
    %221 = vector.load %arg11[%c0_84, %c0_85] : memref<8x128xf32, #tpu.memory_space<vmem>>, vector<1x128xf32>
    tpu.vector_store %arg11[%c0_84, %c0_85], %100 {strides = array<i32>} : memref<8x128xf32, #tpu.memory_space<vmem>>, vector<1x128xf32>,
    %c0_i32 = arith.constant 0 : i32
    %222 = vector.broadcast %c0_i32 : i32 to vector<1x128xi32>
    %223 = arith.cmpi eq, %1, %222 : vector<1x128xi32>
    %224 = arith.sitofp %206 : vector<1x1xi32> to vector<1x1xf32>
    %cst_86 = arith.constant 0.000000e+00 : f32
    %225 = vector.shape_cast %224 : vector<1x1xf32> to vector<1x1xf32>
    %226 = vector.broadcast %225 : vector<1x1xf32> to vector<1x128xf32>
    %227 = vector.broadcast %cst_86 : f32 to vector<1x128xf32>
    %228 = arith.select %223, %226, %227 : vector<1x128xi1>, vector<1x128xf32>
    %c1_i32 = arith.constant 1 : i32
    %229 = vector.broadcast %c1_i32 : i32 to vector<1x128xi32>
    %230 = arith.cmpi eq, %1, %229 : vector<1x128xi32>
    %cst_87 = arith.constant 0.000000e+00 : f32
    %231 = vector.shape_cast %91 : vector<1x1xf32> to vector<1x1xf32>
    %232 = vector.broadcast %231 : vector<1x1xf32> to vector<1x128xf32>
    %233 = vector.broadcast %cst_87 : f32 to vector<1x128xf32>
    %234 = arith.select %230, %232, %233 : vector<1x128xi1>, vector<1x128xf32>
    %235 = arith.addf %228, %234 : vector<1x128xf32>
    %c2_i32 = arith.constant 2 : i32
    %236 = vector.broadcast %c2_i32 : i32 to vector<1x128xi32>
    %237 = arith.cmpi eq, %1, %236 : vector<1x128xi32>
    %cst_88 = arith.constant 0.000000e+00 : f32
    %238 = vector.shape_cast %190 : vector<1x1xf32> to vector<1x1xf32>
    %239 = vector.broadcast %238 : vector<1x1xf32> to vector<1x128xf32>
    %240 = vector.broadcast %cst_88 : f32 to vector<1x128xf32>
    %241 = arith.select %237, %239, %240 : vector<1x128xi1>, vector<1x128xf32>
    %242 = arith.addf %235, %241 : vector<1x128xf32>
    %c0_89 = arith.constant 0 : index
    %c0_90 = arith.constant 0 : index
    %243 = vector.load %arg12[%c0_89, %c0_90] : memref<8x128xf32, #tpu.memory_space<vmem>>, vector<1x128xf32>
    tpu.vector_store %arg12[%c0_89, %c0_90], %242 {strides = array<i32>} : memref<8x128xf32, #tpu.memory_space<vmem>>, vector<1x128xf32>,
    %cst_91 = arith.constant dense<0.000000e+00> : vector<1x128xf32>
    %244 = tpu.matmul %217, %15, %cst_91 {dimension_numbers = #tpu.dot_dimension_numbers<[1], [0], [0], [1], [0, 0, 1, 1], [], []>} : vector<1x32xf32>, vector<32x128xf32>, vector<1x128xf32> -> vector<1x128xf32>
    %245 = arith.addf %244, %17 : vector<1x128xf32>
    %246 = vector.extract_strided_slice %245 {offsets = [0, 0], sizes = [1, 32], strides = [1, 1]} : vector<1x128xf32> to vector<1x32xf32>
    %247 = vector.extract_strided_slice %13 {offsets = [0, 0], sizes = [1, 32], strides = [1, 1]} : vector<1x128xf32> to vector<1x32xf32>
    %248 = arith.addf %246, %247 : vector<1x32xf32>
    %249 = arith.negf %248 : vector<1x32xf32>
    %250 = math.exp %249 : vector<1x32xf32>
    %cst_92 = arith.constant 1.000000e+00 : f32
    %251 = vector.broadcast %cst_92 : f32 to vector<1x32xf32>
    %252 = arith.addf %251, %250 : vector<1x32xf32>
    %253 = arith.divf %251, %252 : vector<1x32xf32>
    %254 = vector.extract_strided_slice %245 {offsets = [0, 32], sizes = [1, 32], strides = [1, 1]} : vector<1x128xf32> to vector<1x32xf32>
    %255 = vector.extract_strided_slice %13 {offsets = [0, 32], sizes = [1, 32], strides = [1, 1]} : vector<1x128xf32> to vector<1x32xf32>
    %256 = arith.addf %254, %255 : vector<1x32xf32>
    %257 = arith.negf %256 : vector<1x32xf32>
    %258 = math.exp %257 : vector<1x32xf32>
    %cst_93 = arith.constant 1.000000e+00 : f32
    %259 = vector.broadcast %cst_93 : f32 to vector<1x32xf32>
    %260 = arith.addf %259, %258 : vector<1x32xf32>
    %261 = arith.divf %259, %260 : vector<1x32xf32>
    %262 = vector.extract_strided_slice %245 {offsets = [0, 64], sizes = [1, 32], strides = [1, 1]} : vector<1x128xf32> to vector<1x32xf32>
    %263 = vector.extract_strided_slice %13 {offsets = [0, 64], sizes = [1, 32], strides = [1, 1]} : vector<1x128xf32> to vector<1x32xf32>
    %264 = arith.mulf %253, %263 : vector<1x32xf32>
    %265 = arith.addf %262, %264 : vector<1x32xf32>
    %266 = math.tanh %265 : vector<1x32xf32>
    %cst_94 = arith.constant 1.000000e+00 : f32
    %267 = vector.broadcast %cst_94 : f32 to vector<1x32xf32>
    %268 = arith.subf %267, %261 : vector<1x32xf32>
    %269 = arith.mulf %268, %266 : vector<1x32xf32>
    %270 = arith.mulf %261, %7 : vector<1x32xf32>
    %271 = arith.addf %269, %270 : vector<1x32xf32>
    %cst_95 = arith.constant dense<0.000000e+00> : vector<1x128xf32>
    %272 = tpu.matmul %271, %27, %cst_95 {dimension_numbers = #tpu.dot_dimension_numbers<[1], [0], [0], [1], [0, 0, 1, 1], [], []>} : vector<1x32xf32>, vector<32x128xf32>, vector<1x128xf32> -> vector<1x128xf32>
    %273 = arith.addf %272, %29 : vector<1x128xf32>
    %274 = vector.extract_strided_slice %273 {offsets = [0, 0], sizes = [1, 32], strides = [1, 1]} : vector<1x128xf32> to vector<1x32xf32>
    %275 = vector.extract_strided_slice %25 {offsets = [0, 0], sizes = [1, 32], strides = [1, 1]} : vector<1x128xf32> to vector<1x32xf32>
    %276 = arith.addf %274, %275 : vector<1x32xf32>
    %277 = arith.negf %276 : vector<1x32xf32>
    %278 = math.exp %277 : vector<1x32xf32>
    %cst_96 = arith.constant 1.000000e+00 : f32
    %279 = vector.broadcast %cst_96 : f32 to vector<1x32xf32>
    %280 = arith.addf %279, %278 : vector<1x32xf32>
    %281 = arith.divf %279, %280 : vector<1x32xf32>
    %282 = vector.extract_strided_slice %273 {offsets = [0, 32], sizes = [1, 32], strides = [1, 1]} : vector<1x128xf32> to vector<1x32xf32>
    %283 = vector.extract_strided_slice %25 {offsets = [0, 32], sizes = [1, 32], strides = [1, 1]} : vector<1x128xf32> to vector<1x32xf32>
    %284 = arith.addf %282, %283 : vector<1x32xf32>
    %285 = arith.negf %284 : vector<1x32xf32>
    %286 = math.exp %285 : vector<1x32xf32>
    %cst_97 = arith.constant 1.000000e+00 : f32
    %287 = vector.broadcast %cst_97 : f32 to vector<1x32xf32>
    %288 = arith.addf %287, %286 : vector<1x32xf32>
    %289 = arith.divf %287, %288 : vector<1x32xf32>
    %290 = vector.extract_strided_slice %273 {offsets = [0, 64], sizes = [1, 32], strides = [1, 1]} : vector<1x128xf32> to vector<1x32xf32>
    %291 = vector.extract_strided_slice %25 {offsets = [0, 64], sizes = [1, 32], strides = [1, 1]} : vector<1x128xf32> to vector<1x32xf32>
    %292 = arith.mulf %281, %291 : vector<1x32xf32>
    %293 = arith.addf %290, %292 : vector<1x32xf32>
    %294 = math.tanh %293 : vector<1x32xf32>
    %cst_98 = arith.constant 1.000000e+00 : f32
    %295 = vector.broadcast %cst_98 : f32 to vector<1x32xf32>
    %296 = arith.subf %295, %289 : vector<1x32xf32>
    %297 = arith.mulf %296, %294 : vector<1x32xf32>
    %298 = arith.mulf %289, %19 : vector<1x32xf32>
    %299 = arith.addf %297, %298 : vector<1x32xf32>
    %cst_99 = arith.constant dense<0.000000e+00> : vector<1x256xf32>
    %300 = tpu.matmul %299, %4, %cst_99 {dimension_numbers = #tpu.dot_dimension_numbers<[1], [0], [0], [1], [0, 0, 1, 1], [], []>} : vector<1x32xf32>, vector<32x256xf32>, vector<1x256xf32> -> vector<1x256xf32>
    %301 = arith.addf %300, %5 : vector<1x256xf32>
    %302 = vector.extract_strided_slice %301 {offsets = [0, 0], sizes = [1, 128], strides = [1, 1]} : vector<1x256xf32> to vector<1x128xf32>
    %303 = vector.extract_strided_slice %301 {offsets = [0, 128], sizes = [1, 1], strides = [1, 1]} : vector<1x256xf32> to vector<1x1xf32>
    %cst_100 = arith.constant dense<0xFF800000> : vector<1xf32>
    %304 = vector.multi_reduction <maximumf>, %302, %cst_100 [1] : vector<1x128xf32> to vector<1xf32>
    %305 = vector.shape_cast %304 : vector<1xf32> to vector<1x1xf32>
    %306 = vector.broadcast %305 : vector<1x1xf32> to vector<1x128xf32>
    %307 = arith.subf %302, %306 : vector<1x128xf32>
    %308 = math.exp %307 : vector<1x128xf32>
    %cst_101 = arith.constant dense<0.000000e+00> : vector<1xf32>
    %309 = vector.multi_reduction <add>, %308, %cst_101 [1] : vector<1x128xf32> to vector<1xf32>
    %310 = vector.shape_cast %309 : vector<1xf32> to vector<1x1xf32>
    %311 = vector.broadcast %310 : vector<1x1xf32> to vector<1x128xf32>
    %312 = arith.divf %308, %311 : vector<1x128xf32>
    %313 = arith.mulf %312, %220 : vector<1x128xf32>
    %cst_102 = arith.constant 0.000000e+00 : f32
    %314 = vector.broadcast %cst_102 : f32 to vector<1x128xf32>
    %cst_103 = arith.constant dense<0xFF800000> : vector<1xf32>
    %315 = vector.multi_reduction <maximumf>, %313, %cst_103 [1] : vector<1x128xf32> to vector<1xf32>
    %316 = vector.shape_cast %315 : vector<1xf32> to vector<1x1xf32>
    %317 = vector.broadcast %316 : vector<1x1xf32> to vector<1x128xf32>
    %318 = arith.cmpf oeq, %313, %317 : vector<1x128xf32>
    %c128_i32_104 = arith.constant 128 : i32
    %319 = vector.broadcast %c128_i32_104 : i32 to vector<1x128xi32>
    %320 = arith.select %318, %0, %319 : vector<1x128xi1>, vector<1x128xi32>
    %cst_105 = arith.constant dense<2147483647> : vector<1xi32>
    %321 = vector.multi_reduction <minsi>, %320, %cst_105 [1] : vector<1x128xi32> to vector<1xi32>
    %322 = vector.shape_cast %321 : vector<1xi32> to vector<1x1xi32>
    %323 = vector.broadcast %322 : vector<1x1xi32> to vector<1x128xi32>
    %324 = arith.cmpi eq, %0, %323 : vector<1x128xi32>
    %325 = arith.extui %324 : vector<1x128xi1> to vector<1x128xi32>
    %326 = arith.sitofp %325 : vector<1x128xi32> to vector<1x128xf32>
    %327 = arith.addf %314, %326 : vector<1x128xf32>
    %cst_106 = arith.constant 0.000000e+00 : f32
    %328 = vector.broadcast %cst_106 : f32 to vector<1x128xf32>
    %329 = arith.cmpf ogt, %326, %328 : vector<1x128xf32>
    %cst_107 = arith.constant -1.000000e+30 : f32
    %330 = vector.broadcast %cst_107 : f32 to vector<1x128xf32>
    %331 = arith.select %329, %330, %313 : vector<1x128xi1>, vector<1x128xf32>
    %cst_108 = arith.constant dense<0xFF800000> : vector<1xf32>
    %332 = vector.multi_reduction <maximumf>, %331, %cst_108 [1] : vector<1x128xf32> to vector<1xf32>
    %333 = vector.shape_cast %332 : vector<1xf32> to vector<1x1xf32>
    %334 = vector.broadcast %333 : vector<1x1xf32> to vector<1x128xf32>
    %335 = arith.cmpf oeq, %331, %334 : vector<1x128xf32>
    %c128_i32_109 = arith.constant 128 : i32
    %336 = vector.broadcast %c128_i32_109 : i32 to vector<1x128xi32>
    %337 = arith.select %335, %0, %336 : vector<1x128xi1>, vector<1x128xi32>
    %cst_110 = arith.constant dense<2147483647> : vector<1xi32>
    %338 = vector.multi_reduction <minsi>, %337, %cst_110 [1] : vector<1x128xi32> to vector<1xi32>
    %339 = vector.shape_cast %338 : vector<1xi32> to vector<1x1xi32>
    %340 = vector.broadcast %339 : vector<1x1xi32> to vector<1x128xi32>
    %341 = arith.cmpi eq, %0, %340 : vector<1x128xi32>
    %342 = arith.extui %341 : vector<1x128xi1> to vector<1x128xi32>
    %343 = arith.sitofp %342 : vector<1x128xi32> to vector<1x128xf32>
    %344 = arith.addf %327, %343 : vector<1x128xf32>
    %cst_111 = arith.constant 0.000000e+00 : f32
    %345 = vector.broadcast %cst_111 : f32 to vector<1x128xf32>
    %346 = arith.cmpf ogt, %343, %345 : vector<1x128xf32>
    %cst_112 = arith.constant -1.000000e+30 : f32
    %347 = vector.broadcast %cst_112 : f32 to vector<1x128xf32>
    %348 = arith.select %346, %347, %331 : vector<1x128xi1>, vector<1x128xf32>
    %cst_113 = arith.constant dense<0xFF800000> : vector<1xf32>
    %349 = vector.multi_reduction <maximumf>, %348, %cst_113 [1] : vector<1x128xf32> to vector<1xf32>
    %350 = vector.shape_cast %349 : vector<1xf32> to vector<1x1xf32>
    %351 = vector.broadcast %350 : vector<1x1xf32> to vector<1x128xf32>
    %352 = arith.cmpf oeq, %348, %351 : vector<1x128xf32>
    %c128_i32_114 = arith.constant 128 : i32
    %353 = vector.broadcast %c128_i32_114 : i32 to vector<1x128xi32>
    %354 = arith.select %352, %0, %353 : vector<1x128xi1>, vector<1x128xi32>
    %cst_115 = arith.constant dense<2147483647> : vector<1xi32>
    %355 = vector.multi_reduction <minsi>, %354, %cst_115 [1] : vector<1x128xi32> to vector<1xi32>
    %356 = vector.shape_cast %355 : vector<1xi32> to vector<1x1xi32>
    %357 = vector.broadcast %356 : vector<1x1xi32> to vector<1x128xi32>
    %358 = arith.cmpi eq, %0, %357 : vector<1x128xi32>
    %359 = arith.extui %358 : vector<1x128xi1> to vector<1x128xi32>
    %360 = arith.sitofp %359 : vector<1x128xi32> to vector<1x128xf32>
    %361 = arith.addf %344, %360 : vector<1x128xf32>
    %cst_116 = arith.constant 0.000000e+00 : f32
    %362 = vector.broadcast %cst_116 : f32 to vector<1x128xf32>
    %363 = arith.cmpf ogt, %360, %362 : vector<1x128xf32>
    %cst_117 = arith.constant -1.000000e+30 : f32
    %364 = vector.broadcast %cst_117 : f32 to vector<1x128xf32>
    %365 = arith.select %363, %364, %348 : vector<1x128xi1>, vector<1x128xf32>
    %cst_118 = arith.constant dense<0xFF800000> : vector<1xf32>
    %366 = vector.multi_reduction <maximumf>, %365, %cst_118 [1] : vector<1x128xf32> to vector<1xf32>
    %367 = vector.shape_cast %366 : vector<1xf32> to vector<1x1xf32>
    %368 = vector.broadcast %367 : vector<1x1xf32> to vector<1x128xf32>
    %369 = arith.cmpf oeq, %365, %368 : vector<1x128xf32>
    %c128_i32_119 = arith.constant 128 : i32
    %370 = vector.broadcast %c128_i32_119 : i32 to vector<1x128xi32>
    %371 = arith.select %369, %0, %370 : vector<1x128xi1>, vector<1x128xi32>
    %cst_120 = arith.constant dense<2147483647> : vector<1xi32>
    %372 = vector.multi_reduction <minsi>, %371, %cst_120 [1] : vector<1x128xi32> to vector<1xi32>
    %373 = vector.shape_cast %372 : vector<1xi32> to vector<1x1xi32>
    %374 = vector.broadcast %373 : vector<1x1xi32> to vector<1x128xi32>
    %375 = arith.cmpi eq, %0, %374 : vector<1x128xi32>
    %376 = arith.extui %375 : vector<1x128xi1> to vector<1x128xi32>
    %377 = arith.sitofp %376 : vector<1x128xi32> to vector<1x128xf32>
    %378 = arith.addf %361, %377 : vector<1x128xf32>
    %cst_121 = arith.constant 0.000000e+00 : f32
    %379 = vector.broadcast %cst_121 : f32 to vector<1x128xf32>
    %380 = arith.cmpf ogt, %377, %379 : vector<1x128xf32>
    %cst_122 = arith.constant -1.000000e+30 : f32
    %381 = vector.broadcast %cst_122 : f32 to vector<1x128xf32>
    %382 = arith.select %380, %381, %365 : vector<1x128xi1>, vector<1x128xf32>
    %cst_123 = arith.constant dense<0xFF800000> : vector<1xf32>
    %383 = vector.multi_reduction <maximumf>, %382, %cst_123 [1] : vector<1x128xf32> to vector<1xf32>
    %384 = vector.shape_cast %383 : vector<1xf32> to vector<1x1xf32>
    %385 = vector.broadcast %384 : vector<1x1xf32> to vector<1x128xf32>
    %386 = arith.cmpf oeq, %382, %385 : vector<1x128xf32>
    %c128_i32_124 = arith.constant 128 : i32
    %387 = vector.broadcast %c128_i32_124 : i32 to vector<1x128xi32>
    %388 = arith.select %386, %0, %387 : vector<1x128xi1>, vector<1x128xi32>
    %cst_125 = arith.constant dense<2147483647> : vector<1xi32>
    %389 = vector.multi_reduction <minsi>, %388, %cst_125 [1] : vector<1x128xi32> to vector<1xi32>
    %390 = vector.shape_cast %389 : vector<1xi32> to vector<1x1xi32>
    %391 = vector.broadcast %390 : vector<1x1xi32> to vector<1x128xi32>
    %392 = arith.cmpi eq, %0, %391 : vector<1x128xi32>
    %393 = arith.extui %392 : vector<1x128xi1> to vector<1x128xi32>
    %394 = arith.sitofp %393 : vector<1x128xi32> to vector<1x128xf32>
    %395 = arith.addf %378, %394 : vector<1x128xf32>
    %396 = arith.mulf %2, %395 : vector<1x128xf32>
    %cst_126 = arith.constant dense<0.000000e+00> : vector<1xf32>
    %397 = vector.multi_reduction <add>, %396, %cst_126 [1] : vector<1x128xf32> to vector<1xf32>
    %398 = vector.shape_cast %397 : vector<1xf32> to vector<1x1xf32>
    %cst_127 = arith.constant 0.000000e+00 : f32
    %399 = vector.broadcast %cst_127 : f32 to vector<1x1xf32>
    %400 = arith.cmpf ogt, %398, %399 : vector<1x1xf32>
    %401 = arith.extui %400 : vector<1x1xi1> to vector<1x1xi32>
    %402 = arith.sitofp %401 : vector<1x1xi32> to vector<1x1xf32>
    %403 = vector.broadcast %402 : vector<1x1xf32> to vector<1x128xf32>
    %404 = arith.mulf %403, %396 : vector<1x128xf32>
    %405 = arith.mulf %404, %312 : vector<1x128xf32>
    %cst_128 = arith.constant 1.000000e+00 : f32
    %406 = vector.broadcast %cst_128 : f32 to vector<1x1xf32>
    %407 = arith.subf %406, %402 : vector<1x1xf32>
    %408 = vector.broadcast %407 : vector<1x1xf32> to vector<1x128xf32>
    %409 = arith.mulf %408, %313 : vector<1x128xf32>
    %410 = arith.addf %405, %409 : vector<1x128xf32>
    %cst_129 = arith.constant dense<0xFF800000> : vector<1xf32>
    %411 = vector.multi_reduction <maximumf>, %410, %cst_129 [1] : vector<1x128xf32> to vector<1xf32>
    %412 = vector.shape_cast %411 : vector<1xf32> to vector<1x1xf32>
    %413 = vector.broadcast %412 : vector<1x1xf32> to vector<1x128xf32>
    %414 = arith.cmpf oeq, %410, %413 : vector<1x128xf32>
    %c128_i32_130 = arith.constant 128 : i32
    %415 = vector.broadcast %c128_i32_130 : i32 to vector<1x128xi32>
    %416 = arith.select %414, %0, %415 : vector<1x128xi1>, vector<1x128xi32>
    %cst_131 = arith.constant dense<2147483647> : vector<1xi32>
    %417 = vector.multi_reduction <minsi>, %416, %cst_131 [1] : vector<1x128xi32> to vector<1xi32>
    %418 = vector.shape_cast %417 : vector<1xi32> to vector<1x1xi32>
    %419 = vector.broadcast %418 : vector<1x1xi32> to vector<1x128xi32>
    %420 = arith.cmpi eq, %0, %419 : vector<1x128xi32>
    %421 = arith.extui %420 : vector<1x128xi1> to vector<1x128xi32>
    %422 = arith.sitofp %421 : vector<1x128xi32> to vector<1x128xf32>
    %cst_132 = arith.constant dense<0.000000e+00> : vector<1x32xf32>
    %423 = tpu.matmul %422, %3, %cst_132 {dimension_numbers = #tpu.dot_dimension_numbers<[1], [0], [0], [1], [0, 0, 1, 1], [], []>} : vector<1x128xf32>, vector<128x32xf32>, vector<1x32xf32> -> vector<1x32xf32>
    %cst_133 = arith.constant 2.000000e+00 : f32
    %424 = vector.broadcast %cst_133 : f32 to vector<1x1xf32>
    %425 = arith.mulf %424, %402 : vector<1x1xf32>
    %cst_134 = arith.constant 1.000000e+00 : f32
    %426 = vector.broadcast %cst_134 : f32 to vector<1x1xf32>
    %427 = arith.subf %425, %426 : vector<1x1xf32>
    %428 = vector.broadcast %427 : vector<1x1xf32> to vector<1x32xf32>
    %429 = arith.mulf %428, %423 : vector<1x32xf32>
    %430 = vector.broadcast %402 : vector<1x1xf32> to vector<1x128xf32>
    %431 = arith.mulf %430, %422 : vector<1x128xf32>
    %432 = arith.subf %220, %431 : vector<1x128xf32>
    %c1_135 = arith.constant 1 : index
    %c0_136 = arith.constant 0 : index
    %433 = vector.load %arg11[%c1_135, %c0_136] : memref<8x128xf32, #tpu.memory_space<vmem>>, vector<1x128xf32>
    tpu.vector_store %arg11[%c1_135, %c0_136], %312 {strides = array<i32>} : memref<8x128xf32, #tpu.memory_space<vmem>>, vector<1x128xf32>,
    %c0_i32_137 = arith.constant 0 : i32
    %434 = vector.broadcast %c0_i32_137 : i32 to vector<1x128xi32>
    %435 = arith.cmpi eq, %1, %434 : vector<1x128xi32>
    %436 = arith.sitofp %418 : vector<1x1xi32> to vector<1x1xf32>
    %cst_138 = arith.constant 0.000000e+00 : f32
    %437 = vector.shape_cast %436 : vector<1x1xf32> to vector<1x1xf32>
    %438 = vector.broadcast %437 : vector<1x1xf32> to vector<1x128xf32>
    %439 = vector.broadcast %cst_138 : f32 to vector<1x128xf32>
    %440 = arith.select %435, %438, %439 : vector<1x128xi1>, vector<1x128xf32>
    %c1_i32_139 = arith.constant 1 : i32
    %441 = vector.broadcast %c1_i32_139 : i32 to vector<1x128xi32>
    %442 = arith.cmpi eq, %1, %441 : vector<1x128xi32>
    %cst_140 = arith.constant 0.000000e+00 : f32
    %443 = vector.shape_cast %303 : vector<1x1xf32> to vector<1x1xf32>
    %444 = vector.broadcast %443 : vector<1x1xf32> to vector<1x128xf32>
    %445 = vector.broadcast %cst_140 : f32 to vector<1x128xf32>
    %446 = arith.select %442, %444, %445 : vector<1x128xi1>, vector<1x128xf32>
    %447 = arith.addf %440, %446 : vector<1x128xf32>
    %c2_i32_141 = arith.constant 2 : i32
    %448 = vector.broadcast %c2_i32_141 : i32 to vector<1x128xi32>
    %449 = arith.cmpi eq, %1, %448 : vector<1x128xi32>
    %cst_142 = arith.constant 0.000000e+00 : f32
    %450 = vector.shape_cast %402 : vector<1x1xf32> to vector<1x1xf32>
    %451 = vector.broadcast %450 : vector<1x1xf32> to vector<1x128xf32>
    %452 = vector.broadcast %cst_142 : f32 to vector<1x128xf32>
    %453 = arith.select %449, %451, %452 : vector<1x128xi1>, vector<1x128xf32>
    %454 = arith.addf %447, %453 : vector<1x128xf32>
    %c1_143 = arith.constant 1 : index
    %c0_144 = arith.constant 0 : index
    %455 = vector.load %arg12[%c1_143, %c0_144] : memref<8x128xf32, #tpu.memory_space<vmem>>, vector<1x128xf32>
    tpu.vector_store %arg12[%c1_143, %c0_144], %454 {strides = array<i32>} : memref<8x128xf32, #tpu.memory_space<vmem>>, vector<1x128xf32>,
    %cst_145 = arith.constant dense<0.000000e+00> : vector<1x128xf32>
    %456 = tpu.matmul %429, %15, %cst_145 {dimension_numbers = #tpu.dot_dimension_numbers<[1], [0], [0], [1], [0, 0, 1, 1], [], []>} : vector<1x32xf32>, vector<32x128xf32>, vector<1x128xf32> -> vector<1x128xf32>
    %457 = arith.addf %456, %17 : vector<1x128xf32>
    %458 = vector.extract_strided_slice %457 {offsets = [0, 0], sizes = [1, 32], strides = [1, 1]} : vector<1x128xf32> to vector<1x32xf32>
    %459 = vector.extract_strided_slice %13 {offsets = [0, 0], sizes = [1, 32], strides = [1, 1]} : vector<1x128xf32> to vector<1x32xf32>
    %460 = arith.addf %458, %459 : vector<1x32xf32>
    %461 = arith.negf %460 : vector<1x32xf32>
    %462 = math.exp %461 : vector<1x32xf32>
    %cst_146 = arith.constant 1.000000e+00 : f32
    %463 = vector.broadcast %cst_146 : f32 to vector<1x32xf32>
    %464 = arith.addf %463, %462 : vector<1x32xf32>
    %465 = arith.divf %463, %464 : vector<1x32xf32>
    %466 = vector.extract_strided_slice %457 {offsets = [0, 32], sizes = [1, 32], strides = [1, 1]} : vector<1x128xf32> to vector<1x32xf32>
    %467 = vector.extract_strided_slice %13 {offsets = [0, 32], sizes = [1, 32], strides = [1, 1]} : vector<1x128xf32> to vector<1x32xf32>
    %468 = arith.addf %466, %467 : vector<1x32xf32>
    %469 = arith.negf %468 : vector<1x32xf32>
    %470 = math.exp %469 : vector<1x32xf32>
    %cst_147 = arith.constant 1.000000e+00 : f32
    %471 = vector.broadcast %cst_147 : f32 to vector<1x32xf32>
    %472 = arith.addf %471, %470 : vector<1x32xf32>
    %473 = arith.divf %471, %472 : vector<1x32xf32>
    %474 = vector.extract_strided_slice %457 {offsets = [0, 64], sizes = [1, 32], strides = [1, 1]} : vector<1x128xf32> to vector<1x32xf32>
    %475 = vector.extract_strided_slice %13 {offsets = [0, 64], sizes = [1, 32], strides = [1, 1]} : vector<1x128xf32> to vector<1x32xf32>
    %476 = arith.mulf %465, %475 : vector<1x32xf32>
    %477 = arith.addf %474, %476 : vector<1x32xf32>
    %478 = math.tanh %477 : vector<1x32xf32>
    %cst_148 = arith.constant 1.000000e+00 : f32
    %479 = vector.broadcast %cst_148 : f32 to vector<1x32xf32>
    %480 = arith.subf %479, %473 : vector<1x32xf32>
    %481 = arith.mulf %480, %478 : vector<1x32xf32>
    %482 = arith.mulf %473, %7 : vector<1x32xf32>
    %483 = arith.addf %481, %482 : vector<1x32xf32>
    %cst_149 = arith.constant dense<0.000000e+00> : vector<1x128xf32>
    %484 = tpu.matmul %483, %27, %cst_149 {dimension_numbers = #tpu.dot_dimension_numbers<[1], [0], [0], [1], [0, 0, 1, 1], [], []>} : vector<1x32xf32>, vector<32x128xf32>, vector<1x128xf32> -> vector<1x128xf32>
    %485 = arith.addf %484, %29 : vector<1x128xf32>
    %486 = vector.extract_strided_slice %485 {offsets = [0, 0], sizes = [1, 32], strides = [1, 1]} : vector<1x128xf32> to vector<1x32xf32>
    %487 = vector.extract_strided_slice %25 {offsets = [0, 0], sizes = [1, 32], strides = [1, 1]} : vector<1x128xf32> to vector<1x32xf32>
    %488 = arith.addf %486, %487 : vector<1x32xf32>
    %489 = arith.negf %488 : vector<1x32xf32>
    %490 = math.exp %489 : vector<1x32xf32>
    %cst_150 = arith.constant 1.000000e+00 : f32
    %491 = vector.broadcast %cst_150 : f32 to vector<1x32xf32>
    %492 = arith.addf %491, %490 : vector<1x32xf32>
    %493 = arith.divf %491, %492 : vector<1x32xf32>
    %494 = vector.extract_strided_slice %485 {offsets = [0, 32], sizes = [1, 32], strides = [1, 1]} : vector<1x128xf32> to vector<1x32xf32>
    %495 = vector.extract_strided_slice %25 {offsets = [0, 32], sizes = [1, 32], strides = [1, 1]} : vector<1x128xf32> to vector<1x32xf32>
    %496 = arith.addf %494, %495 : vector<1x32xf32>
    %497 = arith.negf %496 : vector<1x32xf32>
    %498 = math.exp %497 : vector<1x32xf32>
    %cst_151 = arith.constant 1.000000e+00 : f32
    %499 = vector.broadcast %cst_151 : f32 to vector<1x32xf32>
    %500 = arith.addf %499, %498 : vector<1x32xf32>
    %501 = arith.divf %499, %500 : vector<1x32xf32>
    %502 = vector.extract_strided_slice %485 {offsets = [0, 64], sizes = [1, 32], strides = [1, 1]} : vector<1x128xf32> to vector<1x32xf32>
    %503 = vector.extract_strided_slice %25 {offsets = [0, 64], sizes = [1, 32], strides = [1, 1]} : vector<1x128xf32> to vector<1x32xf32>
    %504 = arith.mulf %493, %503 : vector<1x32xf32>
    %505 = arith.addf %502, %504 : vector<1x32xf32>
    %506 = math.tanh %505 : vector<1x32xf32>
    %cst_152 = arith.constant 1.000000e+00 : f32
    %507 = vector.broadcast %cst_152 : f32 to vector<1x32xf32>
    %508 = arith.subf %507, %501 : vector<1x32xf32>
    %509 = arith.mulf %508, %506 : vector<1x32xf32>
    %510 = arith.mulf %501, %19 : vector<1x32xf32>
    %511 = arith.addf %509, %510 : vector<1x32xf32>
    %cst_153 = arith.constant dense<0.000000e+00> : vector<1x256xf32>
    %512 = tpu.matmul %511, %4, %cst_153 {dimension_numbers = #tpu.dot_dimension_numbers<[1], [0], [0], [1], [0, 0, 1, 1], [], []>} : vector<1x32xf32>, vector<32x256xf32>, vector<1x256xf32> -> vector<1x256xf32>
    %513 = arith.addf %512, %5 : vector<1x256xf32>
    %514 = vector.extract_strided_slice %513 {offsets = [0, 0], sizes = [1, 128], strides = [1, 1]} : vector<1x256xf32> to vector<1x128xf32>
    %515 = vector.extract_strided_slice %513 {offsets = [0, 128], sizes = [1, 1], strides = [1, 1]} : vector<1x256xf32> to vector<1x1xf32>
    %cst_154 = arith.constant dense<0xFF800000> : vector<1xf32>
    %516 = vector.multi_reduction <maximumf>, %514, %cst_154 [1] : vector<1x128xf32> to vector<1xf32>
    %517 = vector.shape_cast %516 : vector<1xf32> to vector<1x1xf32>
    %518 = vector.broadcast %517 : vector<1x1xf32> to vector<1x128xf32>
    %519 = arith.subf %514, %518 : vector<1x128xf32>
    %520 = math.exp %519 : vector<1x128xf32>
    %cst_155 = arith.constant dense<0.000000e+00> : vector<1xf32>
    %521 = vector.multi_reduction <add>, %520, %cst_155 [1] : vector<1x128xf32> to vector<1xf32>
    %522 = vector.shape_cast %521 : vector<1xf32> to vector<1x1xf32>
    %523 = vector.broadcast %522 : vector<1x1xf32> to vector<1x128xf32>
    %524 = arith.divf %520, %523 : vector<1x128xf32>
    %525 = arith.mulf %524, %432 : vector<1x128xf32>
    %cst_156 = arith.constant 0.000000e+00 : f32
    %526 = vector.broadcast %cst_156 : f32 to vector<1x128xf32>
    %cst_157 = arith.constant dense<0xFF800000> : vector<1xf32>
    %527 = vector.multi_reduction <maximumf>, %525, %cst_157 [1] : vector<1x128xf32> to vector<1xf32>
    %528 = vector.shape_cast %527 : vector<1xf32> to vector<1x1xf32>
    %529 = vector.broadcast %528 : vector<1x1xf32> to vector<1x128xf32>
    %530 = arith.cmpf oeq, %525, %529 : vector<1x128xf32>
    %c128_i32_158 = arith.constant 128 : i32
    %531 = vector.broadcast %c128_i32_158 : i32 to vector<1x128xi32>
    %532 = arith.select %530, %0, %531 : vector<1x128xi1>, vector<1x128xi32>
    %cst_159 = arith.constant dense<2147483647> : vector<1xi32>
    %533 = vector.multi_reduction <minsi>, %532, %cst_159 [1] : vector<1x128xi32> to vector<1xi32>
    %534 = vector.shape_cast %533 : vector<1xi32> to vector<1x1xi32>
    %535 = vector.broadcast %534 : vector<1x1xi32> to vector<1x128xi32>
    %536 = arith.cmpi eq, %0, %535 : vector<1x128xi32>
    %537 = arith.extui %536 : vector<1x128xi1> to vector<1x128xi32>
    %538 = arith.sitofp %537 : vector<1x128xi32> to vector<1x128xf32>
    %539 = arith.addf %526, %538 : vector<1x128xf32>
    %cst_160 = arith.constant 0.000000e+00 : f32
    %540 = vector.broadcast %cst_160 : f32 to vector<1x128xf32>
    %541 = arith.cmpf ogt, %538, %540 : vector<1x128xf32>
    %cst_161 = arith.constant -1.000000e+30 : f32
    %542 = vector.broadcast %cst_161 : f32 to vector<1x128xf32>
    %543 = arith.select %541, %542, %525 : vector<1x128xi1>, vector<1x128xf32>
    %cst_162 = arith.constant dense<0xFF800000> : vector<1xf32>
    %544 = vector.multi_reduction <maximumf>, %543, %cst_162 [1] : vector<1x128xf32> to vector<1xf32>
    %545 = vector.shape_cast %544 : vector<1xf32> to vector<1x1xf32>
    %546 = vector.broadcast %545 : vector<1x1xf32> to vector<1x128xf32>
    %547 = arith.cmpf oeq, %543, %546 : vector<1x128xf32>
    %c128_i32_163 = arith.constant 128 : i32
    %548 = vector.broadcast %c128_i32_163 : i32 to vector<1x128xi32>
    %549 = arith.select %547, %0, %548 : vector<1x128xi1>, vector<1x128xi32>
    %cst_164 = arith.constant dense<2147483647> : vector<1xi32>
    %550 = vector.multi_reduction <minsi>, %549, %cst_164 [1] : vector<1x128xi32> to vector<1xi32>
    %551 = vector.shape_cast %550 : vector<1xi32> to vector<1x1xi32>
    %552 = vector.broadcast %551 : vector<1x1xi32> to vector<1x128xi32>
    %553 = arith.cmpi eq, %0, %552 : vector<1x128xi32>
    %554 = arith.extui %553 : vector<1x128xi1> to vector<1x128xi32>
    %555 = arith.sitofp %554 : vector<1x128xi32> to vector<1x128xf32>
    %556 = arith.addf %539, %555 : vector<1x128xf32>
    %cst_165 = arith.constant 0.000000e+00 : f32
    %557 = vector.broadcast %cst_165 : f32 to vector<1x128xf32>
    %558 = arith.cmpf ogt, %555, %557 : vector<1x128xf32>
    %cst_166 = arith.constant -1.000000e+30 : f32
    %559 = vector.broadcast %cst_166 : f32 to vector<1x128xf32>
    %560 = arith.select %558, %559, %543 : vector<1x128xi1>, vector<1x128xf32>
    %cst_167 = arith.constant dense<0xFF800000> : vector<1xf32>
    %561 = vector.multi_reduction <maximumf>, %560, %cst_167 [1] : vector<1x128xf32> to vector<1xf32>
    %562 = vector.shape_cast %561 : vector<1xf32> to vector<1x1xf32>
    %563 = vector.broadcast %562 : vector<1x1xf32> to vector<1x128xf32>
    %564 = arith.cmpf oeq, %560, %563 : vector<1x128xf32>
    %c128_i32_168 = arith.constant 128 : i32
    %565 = vector.broadcast %c128_i32_168 : i32 to vector<1x128xi32>
    %566 = arith.select %564, %0, %565 : vector<1x128xi1>, vector<1x128xi32>
    %cst_169 = arith.constant dense<2147483647> : vector<1xi32>
    %567 = vector.multi_reduction <minsi>, %566, %cst_169 [1] : vector<1x128xi32> to vector<1xi32>
    %568 = vector.shape_cast %567 : vector<1xi32> to vector<1x1xi32>
    %569 = vector.broadcast %568 : vector<1x1xi32> to vector<1x128xi32>
    %570 = arith.cmpi eq, %0, %569 : vector<1x128xi32>
    %571 = arith.extui %570 : vector<1x128xi1> to vector<1x128xi32>
    %572 = arith.sitofp %571 : vector<1x128xi32> to vector<1x128xf32>
    %573 = arith.addf %556, %572 : vector<1x128xf32>
    %cst_170 = arith.constant 0.000000e+00 : f32
    %574 = vector.broadcast %cst_170 : f32 to vector<1x128xf32>
    %575 = arith.cmpf ogt, %572, %574 : vector<1x128xf32>
    %cst_171 = arith.constant -1.000000e+30 : f32
    %576 = vector.broadcast %cst_171 : f32 to vector<1x128xf32>
    %577 = arith.select %575, %576, %560 : vector<1x128xi1>, vector<1x128xf32>
    %cst_172 = arith.constant dense<0xFF800000> : vector<1xf32>
    %578 = vector.multi_reduction <maximumf>, %577, %cst_172 [1] : vector<1x128xf32> to vector<1xf32>
    %579 = vector.shape_cast %578 : vector<1xf32> to vector<1x1xf32>
    %580 = vector.broadcast %579 : vector<1x1xf32> to vector<1x128xf32>
    %581 = arith.cmpf oeq, %577, %580 : vector<1x128xf32>
    %c128_i32_173 = arith.constant 128 : i32
    %582 = vector.broadcast %c128_i32_173 : i32 to vector<1x128xi32>
    %583 = arith.select %581, %0, %582 : vector<1x128xi1>, vector<1x128xi32>
    %cst_174 = arith.constant dense<2147483647> : vector<1xi32>
    %584 = vector.multi_reduction <minsi>, %583, %cst_174 [1] : vector<1x128xi32> to vector<1xi32>
    %585 = vector.shape_cast %584 : vector<1xi32> to vector<1x1xi32>
    %586 = vector.broadcast %585 : vector<1x1xi32> to vector<1x128xi32>
    %587 = arith.cmpi eq, %0, %586 : vector<1x128xi32>
    %588 = arith.extui %587 : vector<1x128xi1> to vector<1x128xi32>
    %589 = arith.sitofp %588 : vector<1x128xi32> to vector<1x128xf32>
    %590 = arith.addf %573, %589 : vector<1x128xf32>
    %cst_175 = arith.constant 0.000000e+00 : f32
    %591 = vector.broadcast %cst_175 : f32 to vector<1x128xf32>
    %592 = arith.cmpf ogt, %589, %591 : vector<1x128xf32>
    %cst_176 = arith.constant -1.000000e+30 : f32
    %593 = vector.broadcast %cst_176 : f32 to vector<1x128xf32>
    %594 = arith.select %592, %593, %577 : vector<1x128xi1>, vector<1x128xf32>
    %cst_177 = arith.constant dense<0xFF800000> : vector<1xf32>
    %595 = vector.multi_reduction <maximumf>, %594, %cst_177 [1] : vector<1x128xf32> to vector<1xf32>
    %596 = vector.shape_cast %595 : vector<1xf32> to vector<1x1xf32>
    %597 = vector.broadcast %596 : vector<1x1xf32> to vector<1x128xf32>
    %598 = arith.cmpf oeq, %594, %597 : vector<1x128xf32>
    %c128_i32_178 = arith.constant 128 : i32
    %599 = vector.broadcast %c128_i32_178 : i32 to vector<1x128xi32>
    %600 = arith.select %598, %0, %599 : vector<1x128xi1>, vector<1x128xi32>
    %cst_179 = arith.constant dense<2147483647> : vector<1xi32>
    %601 = vector.multi_reduction <minsi>, %600, %cst_179 [1] : vector<1x128xi32> to vector<1xi32>
    %602 = vector.shape_cast %601 : vector<1xi32> to vector<1x1xi32>
    %603 = vector.broadcast %602 : vector<1x1xi32> to vector<1x128xi32>
    %604 = arith.cmpi eq, %0, %603 : vector<1x128xi32>
    %605 = arith.extui %604 : vector<1x128xi1> to vector<1x128xi32>
    %606 = arith.sitofp %605 : vector<1x128xi32> to vector<1x128xf32>
    %607 = arith.addf %590, %606 : vector<1x128xf32>
    %608 = arith.mulf %2, %607 : vector<1x128xf32>
    %cst_180 = arith.constant dense<0.000000e+00> : vector<1xf32>
    %609 = vector.multi_reduction <add>, %608, %cst_180 [1] : vector<1x128xf32> to vector<1xf32>
    %610 = vector.shape_cast %609 : vector<1xf32> to vector<1x1xf32>
    %cst_181 = arith.constant 0.000000e+00 : f32
    %611 = vector.broadcast %cst_181 : f32 to vector<1x1xf32>
    %612 = arith.cmpf ogt, %610, %611 : vector<1x1xf32>
    %613 = arith.extui %612 : vector<1x1xi1> to vector<1x1xi32>
    %614 = arith.sitofp %613 : vector<1x1xi32> to vector<1x1xf32>
    %615 = vector.broadcast %614 : vector<1x1xf32> to vector<1x128xf32>
    %616 = arith.mulf %615, %608 : vector<1x128xf32>
    %617 = arith.mulf %616, %524 : vector<1x128xf32>
    %cst_182 = arith.constant 1.000000e+00 : f32
    %618 = vector.broadcast %cst_182 : f32 to vector<1x1xf32>
    %619 = arith.subf %618, %614 : vector<1x1xf32>
    %620 = vector.broadcast %619 : vector<1x1xf32> to vector<1x128xf32>
    %621 = arith.mulf %620, %525 : vector<1x128xf32>
    %622 = arith.addf %617, %621 : vector<1x128xf32>
    %cst_183 = arith.constant dense<0xFF800000> : vector<1xf32>
    %623 = vector.multi_reduction <maximumf>, %622, %cst_183 [1] : vector<1x128xf32> to vector<1xf32>
    %624 = vector.shape_cast %623 : vector<1xf32> to vector<1x1xf32>
    %625 = vector.broadcast %624 : vector<1x1xf32> to vector<1x128xf32>
    %626 = arith.cmpf oeq, %622, %625 : vector<1x128xf32>
    %c128_i32_184 = arith.constant 128 : i32
    %627 = vector.broadcast %c128_i32_184 : i32 to vector<1x128xi32>
    %628 = arith.select %626, %0, %627 : vector<1x128xi1>, vector<1x128xi32>
    %cst_185 = arith.constant dense<2147483647> : vector<1xi32>
    %629 = vector.multi_reduction <minsi>, %628, %cst_185 [1] : vector<1x128xi32> to vector<1xi32>
    %630 = vector.shape_cast %629 : vector<1xi32> to vector<1x1xi32>
    %631 = vector.broadcast %630 : vector<1x1xi32> to vector<1x128xi32>
    %632 = arith.cmpi eq, %0, %631 : vector<1x128xi32>
    %633 = arith.extui %632 : vector<1x128xi1> to vector<1x128xi32>
    %634 = arith.sitofp %633 : vector<1x128xi32> to vector<1x128xf32>
    %cst_186 = arith.constant dense<0.000000e+00> : vector<1x32xf32>
    %635 = tpu.matmul %634, %3, %cst_186 {dimension_numbers = #tpu.dot_dimension_numbers<[1], [0], [0], [1], [0, 0, 1, 1], [], []>} : vector<1x128xf32>, vector<128x32xf32>, vector<1x32xf32> -> vector<1x32xf32>
    %cst_187 = arith.constant 2.000000e+00 : f32
    %636 = vector.broadcast %cst_187 : f32 to vector<1x1xf32>
    %637 = arith.mulf %636, %614 : vector<1x1xf32>
    %cst_188 = arith.constant 1.000000e+00 : f32
    %638 = vector.broadcast %cst_188 : f32 to vector<1x1xf32>
    %639 = arith.subf %637, %638 : vector<1x1xf32>
    %640 = vector.broadcast %639 : vector<1x1xf32> to vector<1x32xf32>
    %641 = arith.mulf %640, %635 : vector<1x32xf32>
    %642 = vector.broadcast %614 : vector<1x1xf32> to vector<1x128xf32>
    %643 = arith.mulf %642, %634 : vector<1x128xf32>
    %644 = arith.subf %432, %643 : vector<1x128xf32>
    %c2 = arith.constant 2 : index
    %c0_189 = arith.constant 0 : index
    %645 = vector.load %arg11[%c2, %c0_189] : memref<8x128xf32, #tpu.memory_space<vmem>>, vector<1x128xf32>
    tpu.vector_store %arg11[%c2, %c0_189], %524 {strides = array<i32>} : memref<8x128xf32, #tpu.memory_space<vmem>>, vector<1x128xf32>,
    %c0_i32_190 = arith.constant 0 : i32
    %646 = vector.broadcast %c0_i32_190 : i32 to vector<1x128xi32>
    %647 = arith.cmpi eq, %1, %646 : vector<1x128xi32>
    %648 = arith.sitofp %630 : vector<1x1xi32> to vector<1x1xf32>
    %cst_191 = arith.constant 0.000000e+00 : f32
    %649 = vector.shape_cast %648 : vector<1x1xf32> to vector<1x1xf32>
    %650 = vector.broadcast %649 : vector<1x1xf32> to vector<1x128xf32>
    %651 = vector.broadcast %cst_191 : f32 to vector<1x128xf32>
    %652 = arith.select %647, %650, %651 : vector<1x128xi1>, vector<1x128xf32>
    %c1_i32_192 = arith.constant 1 : i32
    %653 = vector.broadcast %c1_i32_192 : i32 to vector<1x128xi32>
    %654 = arith.cmpi eq, %1, %653 : vector<1x128xi32>
    %cst_193 = arith.constant 0.000000e+00 : f32
    %655 = vector.shape_cast %515 : vector<1x1xf32> to vector<1x1xf32>
    %656 = vector.broadcast %655 : vector<1x1xf32> to vector<1x128xf32>
    %657 = vector.broadcast %cst_193 : f32 to vector<1x128xf32>
    %658 = arith.select %654, %656, %657 : vector<1x128xi1>, vector<1x128xf32>
    %659 = arith.addf %652, %658 : vector<1x128xf32>
    %c2_i32_194 = arith.constant 2 : i32
    %660 = vector.broadcast %c2_i32_194 : i32 to vector<1x128xi32>
    %661 = arith.cmpi eq, %1, %660 : vector<1x128xi32>
    %cst_195 = arith.constant 0.000000e+00 : f32
    %662 = vector.shape_cast %614 : vector<1x1xf32> to vector<1x1xf32>
    %663 = vector.broadcast %662 : vector<1x1xf32> to vector<1x128xf32>
    %664 = vector.broadcast %cst_195 : f32 to vector<1x128xf32>
    %665 = arith.select %661, %663, %664 : vector<1x128xi1>, vector<1x128xf32>
    %666 = arith.addf %659, %665 : vector<1x128xf32>
    %c2_196 = arith.constant 2 : index
    %c0_197 = arith.constant 0 : index
    %667 = vector.load %arg12[%c2_196, %c0_197] : memref<8x128xf32, #tpu.memory_space<vmem>>, vector<1x128xf32>
    tpu.vector_store %arg12[%c2_196, %c0_197], %666 {strides = array<i32>} : memref<8x128xf32, #tpu.memory_space<vmem>>, vector<1x128xf32>,
    %cst_198 = arith.constant dense<0.000000e+00> : vector<1x128xf32>
    %668 = tpu.matmul %641, %15, %cst_198 {dimension_numbers = #tpu.dot_dimension_numbers<[1], [0], [0], [1], [0, 0, 1, 1], [], []>} : vector<1x32xf32>, vector<32x128xf32>, vector<1x128xf32> -> vector<1x128xf32>
    %669 = arith.addf %668, %17 : vector<1x128xf32>
    %670 = vector.extract_strided_slice %669 {offsets = [0, 0], sizes = [1, 32], strides = [1, 1]} : vector<1x128xf32> to vector<1x32xf32>
    %671 = vector.extract_strided_slice %13 {offsets = [0, 0], sizes = [1, 32], strides = [1, 1]} : vector<1x128xf32> to vector<1x32xf32>
    %672 = arith.addf %670, %671 : vector<1x32xf32>
    %673 = arith.negf %672 : vector<1x32xf32>
    %674 = math.exp %673 : vector<1x32xf32>
    %cst_199 = arith.constant 1.000000e+00 : f32
    %675 = vector.broadcast %cst_199 : f32 to vector<1x32xf32>
    %676 = arith.addf %675, %674 : vector<1x32xf32>
    %677 = arith.divf %675, %676 : vector<1x32xf32>
    %678 = vector.extract_strided_slice %669 {offsets = [0, 32], sizes = [1, 32], strides = [1, 1]} : vector<1x128xf32> to vector<1x32xf32>
    %679 = vector.extract_strided_slice %13 {offsets = [0, 32], sizes = [1, 32], strides = [1, 1]} : vector<1x128xf32> to vector<1x32xf32>
    %680 = arith.addf %678, %679 : vector<1x32xf32>
    %681 = arith.negf %680 : vector<1x32xf32>
    %682 = math.exp %681 : vector<1x32xf32>
    %cst_200 = arith.constant 1.000000e+00 : f32
    %683 = vector.broadcast %cst_200 : f32 to vector<1x32xf32>
    %684 = arith.addf %683, %682 : vector<1x32xf32>
    %685 = arith.divf %683, %684 : vector<1x32xf32>
    %686 = vector.extract_strided_slice %669 {offsets = [0, 64], sizes = [1, 32], strides = [1, 1]} : vector<1x128xf32> to vector<1x32xf32>
    %687 = vector.extract_strided_slice %13 {offsets = [0, 64], sizes = [1, 32], strides = [1, 1]} : vector<1x128xf32> to vector<1x32xf32>
    %688 = arith.mulf %677, %687 : vector<1x32xf32>
    %689 = arith.addf %686, %688 : vector<1x32xf32>
    %690 = math.tanh %689 : vector<1x32xf32>
    %cst_201 = arith.constant 1.000000e+00 : f32
    %691 = vector.broadcast %cst_201 : f32 to vector<1x32xf32>
    %692 = arith.subf %691, %685 : vector<1x32xf32>
    %693 = arith.mulf %692, %690 : vector<1x32xf32>
    %694 = arith.mulf %685, %7 : vector<1x32xf32>
    %695 = arith.addf %693, %694 : vector<1x32xf32>
    %cst_202 = arith.constant dense<0.000000e+00> : vector<1x128xf32>
    %696 = tpu.matmul %695, %27, %cst_202 {dimension_numbers = #tpu.dot_dimension_numbers<[1], [0], [0], [1], [0, 0, 1, 1], [], []>} : vector<1x32xf32>, vector<32x128xf32>, vector<1x128xf32> -> vector<1x128xf32>
    %697 = arith.addf %696, %29 : vector<1x128xf32>
    %698 = vector.extract_strided_slice %697 {offsets = [0, 0], sizes = [1, 32], strides = [1, 1]} : vector<1x128xf32> to vector<1x32xf32>
    %699 = vector.extract_strided_slice %25 {offsets = [0, 0], sizes = [1, 32], strides = [1, 1]} : vector<1x128xf32> to vector<1x32xf32>
    %700 = arith.addf %698, %699 : vector<1x32xf32>
    %701 = arith.negf %700 : vector<1x32xf32>
    %702 = math.exp %701 : vector<1x32xf32>
    %cst_203 = arith.constant 1.000000e+00 : f32
    %703 = vector.broadcast %cst_203 : f32 to vector<1x32xf32>
    %704 = arith.addf %703, %702 : vector<1x32xf32>
    %705 = arith.divf %703, %704 : vector<1x32xf32>
    %706 = vector.extract_strided_slice %697 {offsets = [0, 32], sizes = [1, 32], strides = [1, 1]} : vector<1x128xf32> to vector<1x32xf32>
    %707 = vector.extract_strided_slice %25 {offsets = [0, 32], sizes = [1, 32], strides = [1, 1]} : vector<1x128xf32> to vector<1x32xf32>
    %708 = arith.addf %706, %707 : vector<1x32xf32>
    %709 = arith.negf %708 : vector<1x32xf32>
    %710 = math.exp %709 : vector<1x32xf32>
    %cst_204 = arith.constant 1.000000e+00 : f32
    %711 = vector.broadcast %cst_204 : f32 to vector<1x32xf32>
    %712 = arith.addf %711, %710 : vector<1x32xf32>
    %713 = arith.divf %711, %712 : vector<1x32xf32>
    %714 = vector.extract_strided_slice %697 {offsets = [0, 64], sizes = [1, 32], strides = [1, 1]} : vector<1x128xf32> to vector<1x32xf32>
    %715 = vector.extract_strided_slice %25 {offsets = [0, 64], sizes = [1, 32], strides = [1, 1]} : vector<1x128xf32> to vector<1x32xf32>
    %716 = arith.mulf %705, %715 : vector<1x32xf32>
    %717 = arith.addf %714, %716 : vector<1x32xf32>
    %718 = math.tanh %717 : vector<1x32xf32>
    %cst_205 = arith.constant 1.000000e+00 : f32
    %719 = vector.broadcast %cst_205 : f32 to vector<1x32xf32>
    %720 = arith.subf %719, %713 : vector<1x32xf32>
    %721 = arith.mulf %720, %718 : vector<1x32xf32>
    %722 = arith.mulf %713, %19 : vector<1x32xf32>
    %723 = arith.addf %721, %722 : vector<1x32xf32>
    %cst_206 = arith.constant dense<0.000000e+00> : vector<1x256xf32>
    %724 = tpu.matmul %723, %4, %cst_206 {dimension_numbers = #tpu.dot_dimension_numbers<[1], [0], [0], [1], [0, 0, 1, 1], [], []>} : vector<1x32xf32>, vector<32x256xf32>, vector<1x256xf32> -> vector<1x256xf32>
    %725 = arith.addf %724, %5 : vector<1x256xf32>
    %726 = vector.extract_strided_slice %725 {offsets = [0, 0], sizes = [1, 128], strides = [1, 1]} : vector<1x256xf32> to vector<1x128xf32>
    %727 = vector.extract_strided_slice %725 {offsets = [0, 128], sizes = [1, 1], strides = [1, 1]} : vector<1x256xf32> to vector<1x1xf32>
    %cst_207 = arith.constant dense<0xFF800000> : vector<1xf32>
    %728 = vector.multi_reduction <maximumf>, %726, %cst_207 [1] : vector<1x128xf32> to vector<1xf32>
    %729 = vector.shape_cast %728 : vector<1xf32> to vector<1x1xf32>
    %730 = vector.broadcast %729 : vector<1x1xf32> to vector<1x128xf32>
    %731 = arith.subf %726, %730 : vector<1x128xf32>
    %732 = math.exp %731 : vector<1x128xf32>
    %cst_208 = arith.constant dense<0.000000e+00> : vector<1xf32>
    %733 = vector.multi_reduction <add>, %732, %cst_208 [1] : vector<1x128xf32> to vector<1xf32>
    %734 = vector.shape_cast %733 : vector<1xf32> to vector<1x1xf32>
    %735 = vector.broadcast %734 : vector<1x1xf32> to vector<1x128xf32>
    %736 = arith.divf %732, %735 : vector<1x128xf32>
    %737 = arith.mulf %736, %644 : vector<1x128xf32>
    %cst_209 = arith.constant 0.000000e+00 : f32
    %738 = vector.broadcast %cst_209 : f32 to vector<1x128xf32>
    %cst_210 = arith.constant dense<0xFF800000> : vector<1xf32>
    %739 = vector.multi_reduction <maximumf>, %737, %cst_210 [1] : vector<1x128xf32> to vector<1xf32>
    %740 = vector.shape_cast %739 : vector<1xf32> to vector<1x1xf32>
    %741 = vector.broadcast %740 : vector<1x1xf32> to vector<1x128xf32>
    %742 = arith.cmpf oeq, %737, %741 : vector<1x128xf32>
    %c128_i32_211 = arith.constant 128 : i32
    %743 = vector.broadcast %c128_i32_211 : i32 to vector<1x128xi32>
    %744 = arith.select %742, %0, %743 : vector<1x128xi1>, vector<1x128xi32>
    %cst_212 = arith.constant dense<2147483647> : vector<1xi32>
    %745 = vector.multi_reduction <minsi>, %744, %cst_212 [1] : vector<1x128xi32> to vector<1xi32>
    %746 = vector.shape_cast %745 : vector<1xi32> to vector<1x1xi32>
    %747 = vector.broadcast %746 : vector<1x1xi32> to vector<1x128xi32>
    %748 = arith.cmpi eq, %0, %747 : vector<1x128xi32>
    %749 = arith.extui %748 : vector<1x128xi1> to vector<1x128xi32>
    %750 = arith.sitofp %749 : vector<1x128xi32> to vector<1x128xf32>
    %751 = arith.addf %738, %750 : vector<1x128xf32>
    %cst_213 = arith.constant 0.000000e+00 : f32
    %752 = vector.broadcast %cst_213 : f32 to vector<1x128xf32>
    %753 = arith.cmpf ogt, %750, %752 : vector<1x128xf32>
    %cst_214 = arith.constant -1.000000e+30 : f32
    %754 = vector.broadcast %cst_214 : f32 to vector<1x128xf32>
    %755 = arith.select %753, %754, %737 : vector<1x128xi1>, vector<1x128xf32>
    %cst_215 = arith.constant dense<0xFF800000> : vector<1xf32>
    %756 = vector.multi_reduction <maximumf>, %755, %cst_215 [1] : vector<1x128xf32> to vector<1xf32>
    %757 = vector.shape_cast %756 : vector<1xf32> to vector<1x1xf32>
    %758 = vector.broadcast %757 : vector<1x1xf32> to vector<1x128xf32>
    %759 = arith.cmpf oeq, %755, %758 : vector<1x128xf32>
    %c128_i32_216 = arith.constant 128 : i32
    %760 = vector.broadcast %c128_i32_216 : i32 to vector<1x128xi32>
    %761 = arith.select %759, %0, %760 : vector<1x128xi1>, vector<1x128xi32>
    %cst_217 = arith.constant dense<2147483647> : vector<1xi32>
    %762 = vector.multi_reduction <minsi>, %761, %cst_217 [1] : vector<1x128xi32> to vector<1xi32>
    %763 = vector.shape_cast %762 : vector<1xi32> to vector<1x1xi32>
    %764 = vector.broadcast %763 : vector<1x1xi32> to vector<1x128xi32>
    %765 = arith.cmpi eq, %0, %764 : vector<1x128xi32>
    %766 = arith.extui %765 : vector<1x128xi1> to vector<1x128xi32>
    %767 = arith.sitofp %766 : vector<1x128xi32> to vector<1x128xf32>
    %768 = arith.addf %751, %767 : vector<1x128xf32>
    %cst_218 = arith.constant 0.000000e+00 : f32
    %769 = vector.broadcast %cst_218 : f32 to vector<1x128xf32>
    %770 = arith.cmpf ogt, %767, %769 : vector<1x128xf32>
    %cst_219 = arith.constant -1.000000e+30 : f32
    %771 = vector.broadcast %cst_219 : f32 to vector<1x128xf32>
    %772 = arith.select %770, %771, %755 : vector<1x128xi1>, vector<1x128xf32>
    %cst_220 = arith.constant dense<0xFF800000> : vector<1xf32>
    %773 = vector.multi_reduction <maximumf>, %772, %cst_220 [1] : vector<1x128xf32> to vector<1xf32>
    %774 = vector.shape_cast %773 : vector<1xf32> to vector<1x1xf32>
    %775 = vector.broadcast %774 : vector<1x1xf32> to vector<1x128xf32>
    %776 = arith.cmpf oeq, %772, %775 : vector<1x128xf32>
    %c128_i32_221 = arith.constant 128 : i32
    %777 = vector.broadcast %c128_i32_221 : i32 to vector<1x128xi32>
    %778 = arith.select %776, %0, %777 : vector<1x128xi1>, vector<1x128xi32>
    %cst_222 = arith.constant dense<2147483647> : vector<1xi32>
    %779 = vector.multi_reduction <minsi>, %778, %cst_222 [1] : vector<1x128xi32> to vector<1xi32>
    %780 = vector.shape_cast %779 : vector<1xi32> to vector<1x1xi32>
    %781 = vector.broadcast %780 : vector<1x1xi32> to vector<1x128xi32>
    %782 = arith.cmpi eq, %0, %781 : vector<1x128xi32>
    %783 = arith.extui %782 : vector<1x128xi1> to vector<1x128xi32>
    %784 = arith.sitofp %783 : vector<1x128xi32> to vector<1x128xf32>
    %785 = arith.addf %768, %784 : vector<1x128xf32>
    %cst_223 = arith.constant 0.000000e+00 : f32
    %786 = vector.broadcast %cst_223 : f32 to vector<1x128xf32>
    %787 = arith.cmpf ogt, %784, %786 : vector<1x128xf32>
    %cst_224 = arith.constant -1.000000e+30 : f32
    %788 = vector.broadcast %cst_224 : f32 to vector<1x128xf32>
    %789 = arith.select %787, %788, %772 : vector<1x128xi1>, vector<1x128xf32>
    %cst_225 = arith.constant dense<0xFF800000> : vector<1xf32>
    %790 = vector.multi_reduction <maximumf>, %789, %cst_225 [1] : vector<1x128xf32> to vector<1xf32>
    %791 = vector.shape_cast %790 : vector<1xf32> to vector<1x1xf32>
    %792 = vector.broadcast %791 : vector<1x1xf32> to vector<1x128xf32>
    %793 = arith.cmpf oeq, %789, %792 : vector<1x128xf32>
    %c128_i32_226 = arith.constant 128 : i32
    %794 = vector.broadcast %c128_i32_226 : i32 to vector<1x128xi32>
    %795 = arith.select %793, %0, %794 : vector<1x128xi1>, vector<1x128xi32>
    %cst_227 = arith.constant dense<2147483647> : vector<1xi32>
    %796 = vector.multi_reduction <minsi>, %795, %cst_227 [1] : vector<1x128xi32> to vector<1xi32>
    %797 = vector.shape_cast %796 : vector<1xi32> to vector<1x1xi32>
    %798 = vector.broadcast %797 : vector<1x1xi32> to vector<1x128xi32>
    %799 = arith.cmpi eq, %0, %798 : vector<1x128xi32>
    %800 = arith.extui %799 : vector<1x128xi1> to vector<1x128xi32>
    %801 = arith.sitofp %800 : vector<1x128xi32> to vector<1x128xf32>
    %802 = arith.addf %785, %801 : vector<1x128xf32>
    %cst_228 = arith.constant 0.000000e+00 : f32
    %803 = vector.broadcast %cst_228 : f32 to vector<1x128xf32>
    %804 = arith.cmpf ogt, %801, %803 : vector<1x128xf32>
    %cst_229 = arith.constant -1.000000e+30 : f32
    %805 = vector.broadcast %cst_229 : f32 to vector<1x128xf32>
    %806 = arith.select %804, %805, %789 : vector<1x128xi1>, vector<1x128xf32>
    %cst_230 = arith.constant dense<0xFF800000> : vector<1xf32>
    %807 = vector.multi_reduction <maximumf>, %806, %cst_230 [1] : vector<1x128xf32> to vector<1xf32>
    %808 = vector.shape_cast %807 : vector<1xf32> to vector<1x1xf32>
    %809 = vector.broadcast %808 : vector<1x1xf32> to vector<1x128xf32>
    %810 = arith.cmpf oeq, %806, %809 : vector<1x128xf32>
    %c128_i32_231 = arith.constant 128 : i32
    %811 = vector.broadcast %c128_i32_231 : i32 to vector<1x128xi32>
    %812 = arith.select %810, %0, %811 : vector<1x128xi1>, vector<1x128xi32>
    %cst_232 = arith.constant dense<2147483647> : vector<1xi32>
    %813 = vector.multi_reduction <minsi>, %812, %cst_232 [1] : vector<1x128xi32> to vector<1xi32>
    %814 = vector.shape_cast %813 : vector<1xi32> to vector<1x1xi32>
    %815 = vector.broadcast %814 : vector<1x1xi32> to vector<1x128xi32>
    %816 = arith.cmpi eq, %0, %815 : vector<1x128xi32>
    %817 = arith.extui %816 : vector<1x128xi1> to vector<1x128xi32>
    %818 = arith.sitofp %817 : vector<1x128xi32> to vector<1x128xf32>
    %819 = arith.addf %802, %818 : vector<1x128xf32>
    %820 = arith.mulf %2, %819 : vector<1x128xf32>
    %cst_233 = arith.constant dense<0.000000e+00> : vector<1xf32>
    %821 = vector.multi_reduction <add>, %820, %cst_233 [1] : vector<1x128xf32> to vector<1xf32>
    %822 = vector.shape_cast %821 : vector<1xf32> to vector<1x1xf32>
    %cst_234 = arith.constant 0.000000e+00 : f32
    %823 = vector.broadcast %cst_234 : f32 to vector<1x1xf32>
    %824 = arith.cmpf ogt, %822, %823 : vector<1x1xf32>
    %825 = arith.extui %824 : vector<1x1xi1> to vector<1x1xi32>
    %826 = arith.sitofp %825 : vector<1x1xi32> to vector<1x1xf32>
    %827 = vector.broadcast %826 : vector<1x1xf32> to vector<1x128xf32>
    %828 = arith.mulf %827, %820 : vector<1x128xf32>
    %829 = arith.mulf %828, %736 : vector<1x128xf32>
    %cst_235 = arith.constant 1.000000e+00 : f32
    %830 = vector.broadcast %cst_235 : f32 to vector<1x1xf32>
    %831 = arith.subf %830, %826 : vector<1x1xf32>
    %832 = vector.broadcast %831 : vector<1x1xf32> to vector<1x128xf32>
    %833 = arith.mulf %832, %737 : vector<1x128xf32>
    %834 = arith.addf %829, %833 : vector<1x128xf32>
    %cst_236 = arith.constant dense<0xFF800000> : vector<1xf32>
    %835 = vector.multi_reduction <maximumf>, %834, %cst_236 [1] : vector<1x128xf32> to vector<1xf32>
    %836 = vector.shape_cast %835 : vector<1xf32> to vector<1x1xf32>
    %837 = vector.broadcast %836 : vector<1x1xf32> to vector<1x128xf32>
    %838 = arith.cmpf oeq, %834, %837 : vector<1x128xf32>
    %c128_i32_237 = arith.constant 128 : i32
    %839 = vector.broadcast %c128_i32_237 : i32 to vector<1x128xi32>
    %840 = arith.select %838, %0, %839 : vector<1x128xi1>, vector<1x128xi32>
    %cst_238 = arith.constant dense<2147483647> : vector<1xi32>
    %841 = vector.multi_reduction <minsi>, %840, %cst_238 [1] : vector<1x128xi32> to vector<1xi32>
    %842 = vector.shape_cast %841 : vector<1xi32> to vector<1x1xi32>
    %843 = vector.broadcast %842 : vector<1x1xi32> to vector<1x128xi32>
    %844 = arith.cmpi eq, %0, %843 : vector<1x128xi32>
    %845 = arith.extui %844 : vector<1x128xi1> to vector<1x128xi32>
    %846 = arith.sitofp %845 : vector<1x128xi32> to vector<1x128xf32>
    %cst_239 = arith.constant dense<0.000000e+00> : vector<1x32xf32>
    %847 = tpu.matmul %846, %3, %cst_239 {dimension_numbers = #tpu.dot_dimension_numbers<[1], [0], [0], [1], [0, 0, 1, 1], [], []>} : vector<1x128xf32>, vector<128x32xf32>, vector<1x32xf32> -> vector<1x32xf32>
    %cst_240 = arith.constant 2.000000e+00 : f32
    %848 = vector.broadcast %cst_240 : f32 to vector<1x1xf32>
    %849 = arith.mulf %848, %826 : vector<1x1xf32>
    %cst_241 = arith.constant 1.000000e+00 : f32
    %850 = vector.broadcast %cst_241 : f32 to vector<1x1xf32>
    %851 = arith.subf %849, %850 : vector<1x1xf32>
    %852 = vector.broadcast %851 : vector<1x1xf32> to vector<1x32xf32>
    %853 = arith.mulf %852, %847 : vector<1x32xf32>
    %854 = vector.broadcast %826 : vector<1x1xf32> to vector<1x128xf32>
    %855 = arith.mulf %854, %846 : vector<1x128xf32>
    %856 = arith.subf %644, %855 : vector<1x128xf32>
    %c3 = arith.constant 3 : index
    %c0_242 = arith.constant 0 : index
    %857 = vector.load %arg11[%c3, %c0_242] : memref<8x128xf32, #tpu.memory_space<vmem>>, vector<1x128xf32>
    tpu.vector_store %arg11[%c3, %c0_242], %736 {strides = array<i32>} : memref<8x128xf32, #tpu.memory_space<vmem>>, vector<1x128xf32>,
    %c0_i32_243 = arith.constant 0 : i32
    %858 = vector.broadcast %c0_i32_243 : i32 to vector<1x128xi32>
    %859 = arith.cmpi eq, %1, %858 : vector<1x128xi32>
    %860 = arith.sitofp %842 : vector<1x1xi32> to vector<1x1xf32>
    %cst_244 = arith.constant 0.000000e+00 : f32
    %861 = vector.shape_cast %860 : vector<1x1xf32> to vector<1x1xf32>
    %862 = vector.broadcast %861 : vector<1x1xf32> to vector<1x128xf32>
    %863 = vector.broadcast %cst_244 : f32 to vector<1x128xf32>
    %864 = arith.select %859, %862, %863 : vector<1x128xi1>, vector<1x128xf32>
    %c1_i32_245 = arith.constant 1 : i32
    %865 = vector.broadcast %c1_i32_245 : i32 to vector<1x128xi32>
    %866 = arith.cmpi eq, %1, %865 : vector<1x128xi32>
    %cst_246 = arith.constant 0.000000e+00 : f32
    %867 = vector.shape_cast %727 : vector<1x1xf32> to vector<1x1xf32>
    %868 = vector.broadcast %867 : vector<1x1xf32> to vector<1x128xf32>
    %869 = vector.broadcast %cst_246 : f32 to vector<1x128xf32>
    %870 = arith.select %866, %868, %869 : vector<1x128xi1>, vector<1x128xf32>
    %871 = arith.addf %864, %870 : vector<1x128xf32>
    %c2_i32_247 = arith.constant 2 : i32
    %872 = vector.broadcast %c2_i32_247 : i32 to vector<1x128xi32>
    %873 = arith.cmpi eq, %1, %872 : vector<1x128xi32>
    %cst_248 = arith.constant 0.000000e+00 : f32
    %874 = vector.shape_cast %826 : vector<1x1xf32> to vector<1x1xf32>
    %875 = vector.broadcast %874 : vector<1x1xf32> to vector<1x128xf32>
    %876 = vector.broadcast %cst_248 : f32 to vector<1x128xf32>
    %877 = arith.select %873, %875, %876 : vector<1x128xi1>, vector<1x128xf32>
    %878 = arith.addf %871, %877 : vector<1x128xf32>
    %c3_249 = arith.constant 3 : index
    %c0_250 = arith.constant 0 : index
    %879 = vector.load %arg12[%c3_249, %c0_250] : memref<8x128xf32, #tpu.memory_space<vmem>>, vector<1x128xf32>
    tpu.vector_store %arg12[%c3_249, %c0_250], %878 {strides = array<i32>} : memref<8x128xf32, #tpu.memory_space<vmem>>, vector<1x128xf32>,
    %cst_251 = arith.constant dense<0.000000e+00> : vector<1x128xf32>
    %880 = tpu.matmul %853, %15, %cst_251 {dimension_numbers = #tpu.dot_dimension_numbers<[1], [0], [0], [1], [0, 0, 1, 1], [], []>} : vector<1x32xf32>, vector<32x128xf32>, vector<1x128xf32> -> vector<1x128xf32>
    %881 = arith.addf %880, %17 : vector<1x128xf32>
    %882 = vector.extract_strided_slice %881 {offsets = [0, 0], sizes = [1, 32], strides = [1, 1]} : vector<1x128xf32> to vector<1x32xf32>
    %883 = vector.extract_strided_slice %13 {offsets = [0, 0], sizes = [1, 32], strides = [1, 1]} : vector<1x128xf32> to vector<1x32xf32>
    %884 = arith.addf %882, %883 : vector<1x32xf32>
    %885 = arith.negf %884 : vector<1x32xf32>
    %886 = math.exp %885 : vector<1x32xf32>
    %cst_252 = arith.constant 1.000000e+00 : f32
    %887 = vector.broadcast %cst_252 : f32 to vector<1x32xf32>
    %888 = arith.addf %887, %886 : vector<1x32xf32>
    %889 = arith.divf %887, %888 : vector<1x32xf32>
    %890 = vector.extract_strided_slice %881 {offsets = [0, 32], sizes = [1, 32], strides = [1, 1]} : vector<1x128xf32> to vector<1x32xf32>
    %891 = vector.extract_strided_slice %13 {offsets = [0, 32], sizes = [1, 32], strides = [1, 1]} : vector<1x128xf32> to vector<1x32xf32>
    %892 = arith.addf %890, %891 : vector<1x32xf32>
    %893 = arith.negf %892 : vector<1x32xf32>
    %894 = math.exp %893 : vector<1x32xf32>
    %cst_253 = arith.constant 1.000000e+00 : f32
    %895 = vector.broadcast %cst_253 : f32 to vector<1x32xf32>
    %896 = arith.addf %895, %894 : vector<1x32xf32>
    %897 = arith.divf %895, %896 : vector<1x32xf32>
    %898 = vector.extract_strided_slice %881 {offsets = [0, 64], sizes = [1, 32], strides = [1, 1]} : vector<1x128xf32> to vector<1x32xf32>
    %899 = vector.extract_strided_slice %13 {offsets = [0, 64], sizes = [1, 32], strides = [1, 1]} : vector<1x128xf32> to vector<1x32xf32>
    %900 = arith.mulf %889, %899 : vector<1x32xf32>
    %901 = arith.addf %898, %900 : vector<1x32xf32>
    %902 = math.tanh %901 : vector<1x32xf32>
    %cst_254 = arith.constant 1.000000e+00 : f32
    %903 = vector.broadcast %cst_254 : f32 to vector<1x32xf32>
    %904 = arith.subf %903, %897 : vector<1x32xf32>
    %905 = arith.mulf %904, %902 : vector<1x32xf32>
    %906 = arith.mulf %897, %7 : vector<1x32xf32>
    %907 = arith.addf %905, %906 : vector<1x32xf32>
    %cst_255 = arith.constant dense<0.000000e+00> : vector<1x128xf32>
    %908 = tpu.matmul %907, %27, %cst_255 {dimension_numbers = #tpu.dot_dimension_numbers<[1], [0], [0], [1], [0, 0, 1, 1], [], []>} : vector<1x32xf32>, vector<32x128xf32>, vector<1x128xf32> -> vector<1x128xf32>
    %909 = arith.addf %908, %29 : vector<1x128xf32>
    %910 = vector.extract_strided_slice %909 {offsets = [0, 0], sizes = [1, 32], strides = [1, 1]} : vector<1x128xf32> to vector<1x32xf32>
    %911 = vector.extract_strided_slice %25 {offsets = [0, 0], sizes = [1, 32], strides = [1, 1]} : vector<1x128xf32> to vector<1x32xf32>
    %912 = arith.addf %910, %911 : vector<1x32xf32>
    %913 = arith.negf %912 : vector<1x32xf32>
    %914 = math.exp %913 : vector<1x32xf32>
    %cst_256 = arith.constant 1.000000e+00 : f32
    %915 = vector.broadcast %cst_256 : f32 to vector<1x32xf32>
    %916 = arith.addf %915, %914 : vector<1x32xf32>
    %917 = arith.divf %915, %916 : vector<1x32xf32>
    %918 = vector.extract_strided_slice %909 {offsets = [0, 32], sizes = [1, 32], strides = [1, 1]} : vector<1x128xf32> to vector<1x32xf32>
    %919 = vector.extract_strided_slice %25 {offsets = [0, 32], sizes = [1, 32], strides = [1, 1]} : vector<1x128xf32> to vector<1x32xf32>
    %920 = arith.addf %918, %919 : vector<1x32xf32>
    %921 = arith.negf %920 : vector<1x32xf32>
    %922 = math.exp %921 : vector<1x32xf32>
    %cst_257 = arith.constant 1.000000e+00 : f32
    %923 = vector.broadcast %cst_257 : f32 to vector<1x32xf32>
    %924 = arith.addf %923, %922 : vector<1x32xf32>
    %925 = arith.divf %923, %924 : vector<1x32xf32>
    %926 = vector.extract_strided_slice %909 {offsets = [0, 64], sizes = [1, 32], strides = [1, 1]} : vector<1x128xf32> to vector<1x32xf32>
    %927 = vector.extract_strided_slice %25 {offsets = [0, 64], sizes = [1, 32], strides = [1, 1]} : vector<1x128xf32> to vector<1x32xf32>
    %928 = arith.mulf %917, %927 : vector<1x32xf32>
    %929 = arith.addf %926, %928 : vector<1x32xf32>
    %930 = math.tanh %929 : vector<1x32xf32>
    %cst_258 = arith.constant 1.000000e+00 : f32
    %931 = vector.broadcast %cst_258 : f32 to vector<1x32xf32>
    %932 = arith.subf %931, %925 : vector<1x32xf32>
    %933 = arith.mulf %932, %930 : vector<1x32xf32>
    %934 = arith.mulf %925, %19 : vector<1x32xf32>
    %935 = arith.addf %933, %934 : vector<1x32xf32>
    %cst_259 = arith.constant dense<0.000000e+00> : vector<1x256xf32>
    %936 = tpu.matmul %935, %4, %cst_259 {dimension_numbers = #tpu.dot_dimension_numbers<[1], [0], [0], [1], [0, 0, 1, 1], [], []>} : vector<1x32xf32>, vector<32x256xf32>, vector<1x256xf32> -> vector<1x256xf32>
    %937 = arith.addf %936, %5 : vector<1x256xf32>
    %938 = vector.extract_strided_slice %937 {offsets = [0, 0], sizes = [1, 128], strides = [1, 1]} : vector<1x256xf32> to vector<1x128xf32>
    %939 = vector.extract_strided_slice %937 {offsets = [0, 128], sizes = [1, 1], strides = [1, 1]} : vector<1x256xf32> to vector<1x1xf32>
    %cst_260 = arith.constant dense<0xFF800000> : vector<1xf32>
    %940 = vector.multi_reduction <maximumf>, %938, %cst_260 [1] : vector<1x128xf32> to vector<1xf32>
    %941 = vector.shape_cast %940 : vector<1xf32> to vector<1x1xf32>
    %942 = vector.broadcast %941 : vector<1x1xf32> to vector<1x128xf32>
    %943 = arith.subf %938, %942 : vector<1x128xf32>
    %944 = math.exp %943 : vector<1x128xf32>
    %cst_261 = arith.constant dense<0.000000e+00> : vector<1xf32>
    %945 = vector.multi_reduction <add>, %944, %cst_261 [1] : vector<1x128xf32> to vector<1xf32>
    %946 = vector.shape_cast %945 : vector<1xf32> to vector<1x1xf32>
    %947 = vector.broadcast %946 : vector<1x1xf32> to vector<1x128xf32>
    %948 = arith.divf %944, %947 : vector<1x128xf32>
    %949 = arith.mulf %948, %856 : vector<1x128xf32>
    %cst_262 = arith.constant 0.000000e+00 : f32
    %950 = vector.broadcast %cst_262 : f32 to vector<1x128xf32>
    %cst_263 = arith.constant dense<0xFF800000> : vector<1xf32>
    %951 = vector.multi_reduction <maximumf>, %949, %cst_263 [1] : vector<1x128xf32> to vector<1xf32>
    %952 = vector.shape_cast %951 : vector<1xf32> to vector<1x1xf32>
    %953 = vector.broadcast %952 : vector<1x1xf32> to vector<1x128xf32>
    %954 = arith.cmpf oeq, %949, %953 : vector<1x128xf32>
    %c128_i32_264 = arith.constant 128 : i32
    %955 = vector.broadcast %c128_i32_264 : i32 to vector<1x128xi32>
    %956 = arith.select %954, %0, %955 : vector<1x128xi1>, vector<1x128xi32>
    %cst_265 = arith.constant dense<2147483647> : vector<1xi32>
    %957 = vector.multi_reduction <minsi>, %956, %cst_265 [1] : vector<1x128xi32> to vector<1xi32>
    %958 = vector.shape_cast %957 : vector<1xi32> to vector<1x1xi32>
    %959 = vector.broadcast %958 : vector<1x1xi32> to vector<1x128xi32>
    %960 = arith.cmpi eq, %0, %959 : vector<1x128xi32>
    %961 = arith.extui %960 : vector<1x128xi1> to vector<1x128xi32>
    %962 = arith.sitofp %961 : vector<1x128xi32> to vector<1x128xf32>
    %963 = arith.addf %950, %962 : vector<1x128xf32>
    %cst_266 = arith.constant 0.000000e+00 : f32
    %964 = vector.broadcast %cst_266 : f32 to vector<1x128xf32>
    %965 = arith.cmpf ogt, %962, %964 : vector<1x128xf32>
    %cst_267 = arith.constant -1.000000e+30 : f32
    %966 = vector.broadcast %cst_267 : f32 to vector<1x128xf32>
    %967 = arith.select %965, %966, %949 : vector<1x128xi1>, vector<1x128xf32>
    %cst_268 = arith.constant dense<0xFF800000> : vector<1xf32>
    %968 = vector.multi_reduction <maximumf>, %967, %cst_268 [1] : vector<1x128xf32> to vector<1xf32>
    %969 = vector.shape_cast %968 : vector<1xf32> to vector<1x1xf32>
    %970 = vector.broadcast %969 : vector<1x1xf32> to vector<1x128xf32>
    %971 = arith.cmpf oeq, %967, %970 : vector<1x128xf32>
    %c128_i32_269 = arith.constant 128 : i32
    %972 = vector.broadcast %c128_i32_269 : i32 to vector<1x128xi32>
    %973 = arith.select %971, %0, %972 : vector<1x128xi1>, vector<1x128xi32>
    %cst_270 = arith.constant dense<2147483647> : vector<1xi32>
    %974 = vector.multi_reduction <minsi>, %973, %cst_270 [1] : vector<1x128xi32> to vector<1xi32>
    %975 = vector.shape_cast %974 : vector<1xi32> to vector<1x1xi32>
    %976 = vector.broadcast %975 : vector<1x1xi32> to vector<1x128xi32>
    %977 = arith.cmpi eq, %0, %976 : vector<1x128xi32>
    %978 = arith.extui %977 : vector<1x128xi1> to vector<1x128xi32>
    %979 = arith.sitofp %978 : vector<1x128xi32> to vector<1x128xf32>
    %980 = arith.addf %963, %979 : vector<1x128xf32>
    %cst_271 = arith.constant 0.000000e+00 : f32
    %981 = vector.broadcast %cst_271 : f32 to vector<1x128xf32>
    %982 = arith.cmpf ogt, %979, %981 : vector<1x128xf32>
    %cst_272 = arith.constant -1.000000e+30 : f32
    %983 = vector.broadcast %cst_272 : f32 to vector<1x128xf32>
    %984 = arith.select %982, %983, %967 : vector<1x128xi1>, vector<1x128xf32>
    %cst_273 = arith.constant dense<0xFF800000> : vector<1xf32>
    %985 = vector.multi_reduction <maximumf>, %984, %cst_273 [1] : vector<1x128xf32> to vector<1xf32>
    %986 = vector.shape_cast %985 : vector<1xf32> to vector<1x1xf32>
    %987 = vector.broadcast %986 : vector<1x1xf32> to vector<1x128xf32>
    %988 = arith.cmpf oeq, %984, %987 : vector<1x128xf32>
    %c128_i32_274 = arith.constant 128 : i32
    %989 = vector.broadcast %c128_i32_274 : i32 to vector<1x128xi32>
    %990 = arith.select %988, %0, %989 : vector<1x128xi1>, vector<1x128xi32>
    %cst_275 = arith.constant dense<2147483647> : vector<1xi32>
    %991 = vector.multi_reduction <minsi>, %990, %cst_275 [1] : vector<1x128xi32> to vector<1xi32>
    %992 = vector.shape_cast %991 : vector<1xi32> to vector<1x1xi32>
    %993 = vector.broadcast %992 : vector<1x1xi32> to vector<1x128xi32>
    %994 = arith.cmpi eq, %0, %993 : vector<1x128xi32>
    %995 = arith.extui %994 : vector<1x128xi1> to vector<1x128xi32>
    %996 = arith.sitofp %995 : vector<1x128xi32> to vector<1x128xf32>
    %997 = arith.addf %980, %996 : vector<1x128xf32>
    %cst_276 = arith.constant 0.000000e+00 : f32
    %998 = vector.broadcast %cst_276 : f32 to vector<1x128xf32>
    %999 = arith.cmpf ogt, %996, %998 : vector<1x128xf32>
    %cst_277 = arith.constant -1.000000e+30 : f32
    %1000 = vector.broadcast %cst_277 : f32 to vector<1x128xf32>
    %1001 = arith.select %999, %1000, %984 : vector<1x128xi1>, vector<1x128xf32>
    %cst_278 = arith.constant dense<0xFF800000> : vector<1xf32>
    %1002 = vector.multi_reduction <maximumf>, %1001, %cst_278 [1] : vector<1x128xf32> to vector<1xf32>
    %1003 = vector.shape_cast %1002 : vector<1xf32> to vector<1x1xf32>
    %1004 = vector.broadcast %1003 : vector<1x1xf32> to vector<1x128xf32>
    %1005 = arith.cmpf oeq, %1001, %1004 : vector<1x128xf32>
    %c128_i32_279 = arith.constant 128 : i32
    %1006 = vector.broadcast %c128_i32_279 : i32 to vector<1x128xi32>
    %1007 = arith.select %1005, %0, %1006 : vector<1x128xi1>, vector<1x128xi32>
    %cst_280 = arith.constant dense<2147483647> : vector<1xi32>
    %1008 = vector.multi_reduction <minsi>, %1007, %cst_280 [1] : vector<1x128xi32> to vector<1xi32>
    %1009 = vector.shape_cast %1008 : vector<1xi32> to vector<1x1xi32>
    %1010 = vector.broadcast %1009 : vector<1x1xi32> to vector<1x128xi32>
    %1011 = arith.cmpi eq, %0, %1010 : vector<1x128xi32>
    %1012 = arith.extui %1011 : vector<1x128xi1> to vector<1x128xi32>
    %1013 = arith.sitofp %1012 : vector<1x128xi32> to vector<1x128xf32>
    %1014 = arith.addf %997, %1013 : vector<1x128xf32>
    %cst_281 = arith.constant 0.000000e+00 : f32
    %1015 = vector.broadcast %cst_281 : f32 to vector<1x128xf32>
    %1016 = arith.cmpf ogt, %1013, %1015 : vector<1x128xf32>
    %cst_282 = arith.constant -1.000000e+30 : f32
    %1017 = vector.broadcast %cst_282 : f32 to vector<1x128xf32>
    %1018 = arith.select %1016, %1017, %1001 : vector<1x128xi1>, vector<1x128xf32>
    %cst_283 = arith.constant dense<0xFF800000> : vector<1xf32>
    %1019 = vector.multi_reduction <maximumf>, %1018, %cst_283 [1] : vector<1x128xf32> to vector<1xf32>
    %1020 = vector.shape_cast %1019 : vector<1xf32> to vector<1x1xf32>
    %1021 = vector.broadcast %1020 : vector<1x1xf32> to vector<1x128xf32>
    %1022 = arith.cmpf oeq, %1018, %1021 : vector<1x128xf32>
    %c128_i32_284 = arith.constant 128 : i32
    %1023 = vector.broadcast %c128_i32_284 : i32 to vector<1x128xi32>
    %1024 = arith.select %1022, %0, %1023 : vector<1x128xi1>, vector<1x128xi32>
    %cst_285 = arith.constant dense<2147483647> : vector<1xi32>
    %1025 = vector.multi_reduction <minsi>, %1024, %cst_285 [1] : vector<1x128xi32> to vector<1xi32>
    %1026 = vector.shape_cast %1025 : vector<1xi32> to vector<1x1xi32>
    %1027 = vector.broadcast %1026 : vector<1x1xi32> to vector<1x128xi32>
    %1028 = arith.cmpi eq, %0, %1027 : vector<1x128xi32>
    %1029 = arith.extui %1028 : vector<1x128xi1> to vector<1x128xi32>
    %1030 = arith.sitofp %1029 : vector<1x128xi32> to vector<1x128xf32>
    %1031 = arith.addf %1014, %1030 : vector<1x128xf32>
    %1032 = arith.mulf %2, %1031 : vector<1x128xf32>
    %cst_286 = arith.constant dense<0.000000e+00> : vector<1xf32>
    %1033 = vector.multi_reduction <add>, %1032, %cst_286 [1] : vector<1x128xf32> to vector<1xf32>
    %1034 = vector.shape_cast %1033 : vector<1xf32> to vector<1x1xf32>
    %cst_287 = arith.constant 0.000000e+00 : f32
    %1035 = vector.broadcast %cst_287 : f32 to vector<1x1xf32>
    %1036 = arith.cmpf ogt, %1034, %1035 : vector<1x1xf32>
    %1037 = arith.extui %1036 : vector<1x1xi1> to vector<1x1xi32>
    %1038 = arith.sitofp %1037 : vector<1x1xi32> to vector<1x1xf32>
    %1039 = vector.broadcast %1038 : vector<1x1xf32> to vector<1x128xf32>
    %1040 = arith.mulf %1039, %1032 : vector<1x128xf32>
    %1041 = arith.mulf %1040, %948 : vector<1x128xf32>
    %cst_288 = arith.constant 1.000000e+00 : f32
    %1042 = vector.broadcast %cst_288 : f32 to vector<1x1xf32>
    %1043 = arith.subf %1042, %1038 : vector<1x1xf32>
    %1044 = vector.broadcast %1043 : vector<1x1xf32> to vector<1x128xf32>
    %1045 = arith.mulf %1044, %949 : vector<1x128xf32>
    %1046 = arith.addf %1041, %1045 : vector<1x128xf32>
    %cst_289 = arith.constant dense<0xFF800000> : vector<1xf32>
    %1047 = vector.multi_reduction <maximumf>, %1046, %cst_289 [1] : vector<1x128xf32> to vector<1xf32>
    %1048 = vector.shape_cast %1047 : vector<1xf32> to vector<1x1xf32>
    %1049 = vector.broadcast %1048 : vector<1x1xf32> to vector<1x128xf32>
    %1050 = arith.cmpf oeq, %1046, %1049 : vector<1x128xf32>
    %c128_i32_290 = arith.constant 128 : i32
    %1051 = vector.broadcast %c128_i32_290 : i32 to vector<1x128xi32>
    %1052 = arith.select %1050, %0, %1051 : vector<1x128xi1>, vector<1x128xi32>
    %cst_291 = arith.constant dense<2147483647> : vector<1xi32>
    %1053 = vector.multi_reduction <minsi>, %1052, %cst_291 [1] : vector<1x128xi32> to vector<1xi32>
    %1054 = vector.shape_cast %1053 : vector<1xi32> to vector<1x1xi32>
    %1055 = vector.broadcast %1054 : vector<1x1xi32> to vector<1x128xi32>
    %1056 = arith.cmpi eq, %0, %1055 : vector<1x128xi32>
    %1057 = arith.extui %1056 : vector<1x128xi1> to vector<1x128xi32>
    %1058 = arith.sitofp %1057 : vector<1x128xi32> to vector<1x128xf32>
    %cst_292 = arith.constant dense<0.000000e+00> : vector<1x32xf32>
    %1059 = tpu.matmul %1058, %3, %cst_292 {dimension_numbers = #tpu.dot_dimension_numbers<[1], [0], [0], [1], [0, 0, 1, 1], [], []>} : vector<1x128xf32>, vector<128x32xf32>, vector<1x32xf32> -> vector<1x32xf32>
    %cst_293 = arith.constant 2.000000e+00 : f32
    %1060 = vector.broadcast %cst_293 : f32 to vector<1x1xf32>
    %1061 = arith.mulf %1060, %1038 : vector<1x1xf32>
    %cst_294 = arith.constant 1.000000e+00 : f32
    %1062 = vector.broadcast %cst_294 : f32 to vector<1x1xf32>
    %1063 = arith.subf %1061, %1062 : vector<1x1xf32>
    %1064 = vector.broadcast %1063 : vector<1x1xf32> to vector<1x32xf32>
    %1065 = arith.mulf %1064, %1059 : vector<1x32xf32>
    %1066 = vector.broadcast %1038 : vector<1x1xf32> to vector<1x128xf32>
    %1067 = arith.mulf %1066, %1058 : vector<1x128xf32>
    %1068 = arith.subf %856, %1067 : vector<1x128xf32>
    %c4 = arith.constant 4 : index
    %c0_295 = arith.constant 0 : index
    %1069 = vector.load %arg11[%c4, %c0_295] : memref<8x128xf32, #tpu.memory_space<vmem>>, vector<1x128xf32>
    tpu.vector_store %arg11[%c4, %c0_295], %948 {strides = array<i32>} : memref<8x128xf32, #tpu.memory_space<vmem>>, vector<1x128xf32>,
    %c0_i32_296 = arith.constant 0 : i32
    %1070 = vector.broadcast %c0_i32_296 : i32 to vector<1x128xi32>
    %1071 = arith.cmpi eq, %1, %1070 : vector<1x128xi32>
    %1072 = arith.sitofp %1054 : vector<1x1xi32> to vector<1x1xf32>
    %cst_297 = arith.constant 0.000000e+00 : f32
    %1073 = vector.shape_cast %1072 : vector<1x1xf32> to vector<1x1xf32>
    %1074 = vector.broadcast %1073 : vector<1x1xf32> to vector<1x128xf32>
    %1075 = vector.broadcast %cst_297 : f32 to vector<1x128xf32>
    %1076 = arith.select %1071, %1074, %1075 : vector<1x128xi1>, vector<1x128xf32>
    %c1_i32_298 = arith.constant 1 : i32
    %1077 = vector.broadcast %c1_i32_298 : i32 to vector<1x128xi32>
    %1078 = arith.cmpi eq, %1, %1077 : vector<1x128xi32>
    %cst_299 = arith.constant 0.000000e+00 : f32
    %1079 = vector.shape_cast %939 : vector<1x1xf32> to vector<1x1xf32>
    %1080 = vector.broadcast %1079 : vector<1x1xf32> to vector<1x128xf32>
    %1081 = vector.broadcast %cst_299 : f32 to vector<1x128xf32>
    %1082 = arith.select %1078, %1080, %1081 : vector<1x128xi1>, vector<1x128xf32>
    %1083 = arith.addf %1076, %1082 : vector<1x128xf32>
    %c2_i32_300 = arith.constant 2 : i32
    %1084 = vector.broadcast %c2_i32_300 : i32 to vector<1x128xi32>
    %1085 = arith.cmpi eq, %1, %1084 : vector<1x128xi32>
    %cst_301 = arith.constant 0.000000e+00 : f32
    %1086 = vector.shape_cast %1038 : vector<1x1xf32> to vector<1x1xf32>
    %1087 = vector.broadcast %1086 : vector<1x1xf32> to vector<1x128xf32>
    %1088 = vector.broadcast %cst_301 : f32 to vector<1x128xf32>
    %1089 = arith.select %1085, %1087, %1088 : vector<1x128xi1>, vector<1x128xf32>
    %1090 = arith.addf %1083, %1089 : vector<1x128xf32>
    %c4_302 = arith.constant 4 : index
    %c0_303 = arith.constant 0 : index
    %1091 = vector.load %arg12[%c4_302, %c0_303] : memref<8x128xf32, #tpu.memory_space<vmem>>, vector<1x128xf32>
    tpu.vector_store %arg12[%c4_302, %c0_303], %1090 {strides = array<i32>} : memref<8x128xf32, #tpu.memory_space<vmem>>, vector<1x128xf32>,
    %cst_304 = arith.constant dense<0.000000e+00> : vector<1x128xf32>
    %1092 = tpu.matmul %1065, %15, %cst_304 {dimension_numbers = #tpu.dot_dimension_numbers<[1], [0], [0], [1], [0, 0, 1, 1], [], []>} : vector<1x32xf32>, vector<32x128xf32>, vector<1x128xf32> -> vector<1x128xf32>
    %1093 = arith.addf %1092, %17 : vector<1x128xf32>
    %1094 = vector.extract_strided_slice %1093 {offsets = [0, 0], sizes = [1, 32], strides = [1, 1]} : vector<1x128xf32> to vector<1x32xf32>
    %1095 = vector.extract_strided_slice %13 {offsets = [0, 0], sizes = [1, 32], strides = [1, 1]} : vector<1x128xf32> to vector<1x32xf32>
    %1096 = arith.addf %1094, %1095 : vector<1x32xf32>
    %1097 = arith.negf %1096 : vector<1x32xf32>
    %1098 = math.exp %1097 : vector<1x32xf32>
    %cst_305 = arith.constant 1.000000e+00 : f32
    %1099 = vector.broadcast %cst_305 : f32 to vector<1x32xf32>
    %1100 = arith.addf %1099, %1098 : vector<1x32xf32>
    %1101 = arith.divf %1099, %1100 : vector<1x32xf32>
    %1102 = vector.extract_strided_slice %1093 {offsets = [0, 32], sizes = [1, 32], strides = [1, 1]} : vector<1x128xf32> to vector<1x32xf32>
    %1103 = vector.extract_strided_slice %13 {offsets = [0, 32], sizes = [1, 32], strides = [1, 1]} : vector<1x128xf32> to vector<1x32xf32>
    %1104 = arith.addf %1102, %1103 : vector<1x32xf32>
    %1105 = arith.negf %1104 : vector<1x32xf32>
    %1106 = math.exp %1105 : vector<1x32xf32>
    %cst_306 = arith.constant 1.000000e+00 : f32
    %1107 = vector.broadcast %cst_306 : f32 to vector<1x32xf32>
    %1108 = arith.addf %1107, %1106 : vector<1x32xf32>
    %1109 = arith.divf %1107, %1108 : vector<1x32xf32>
    %1110 = vector.extract_strided_slice %1093 {offsets = [0, 64], sizes = [1, 32], strides = [1, 1]} : vector<1x128xf32> to vector<1x32xf32>
    %1111 = vector.extract_strided_slice %13 {offsets = [0, 64], sizes = [1, 32], strides = [1, 1]} : vector<1x128xf32> to vector<1x32xf32>
    %1112 = arith.mulf %1101, %1111 : vector<1x32xf32>
    %1113 = arith.addf %1110, %1112 : vector<1x32xf32>
    %1114 = math.tanh %1113 : vector<1x32xf32>
    %cst_307 = arith.constant 1.000000e+00 : f32
    %1115 = vector.broadcast %cst_307 : f32 to vector<1x32xf32>
    %1116 = arith.subf %1115, %1109 : vector<1x32xf32>
    %1117 = arith.mulf %1116, %1114 : vector<1x32xf32>
    %1118 = arith.mulf %1109, %7 : vector<1x32xf32>
    %1119 = arith.addf %1117, %1118 : vector<1x32xf32>
    %cst_308 = arith.constant dense<0.000000e+00> : vector<1x128xf32>
    %1120 = tpu.matmul %1119, %27, %cst_308 {dimension_numbers = #tpu.dot_dimension_numbers<[1], [0], [0], [1], [0, 0, 1, 1], [], []>} : vector<1x32xf32>, vector<32x128xf32>, vector<1x128xf32> -> vector<1x128xf32>
    %1121 = arith.addf %1120, %29 : vector<1x128xf32>
    %1122 = vector.extract_strided_slice %1121 {offsets = [0, 0], sizes = [1, 32], strides = [1, 1]} : vector<1x128xf32> to vector<1x32xf32>
    %1123 = vector.extract_strided_slice %25 {offsets = [0, 0], sizes = [1, 32], strides = [1, 1]} : vector<1x128xf32> to vector<1x32xf32>
    %1124 = arith.addf %1122, %1123 : vector<1x32xf32>
    %1125 = arith.negf %1124 : vector<1x32xf32>
    %1126 = math.exp %1125 : vector<1x32xf32>
    %cst_309 = arith.constant 1.000000e+00 : f32
    %1127 = vector.broadcast %cst_309 : f32 to vector<1x32xf32>
    %1128 = arith.addf %1127, %1126 : vector<1x32xf32>
    %1129 = arith.divf %1127, %1128 : vector<1x32xf32>
    %1130 = vector.extract_strided_slice %1121 {offsets = [0, 32], sizes = [1, 32], strides = [1, 1]} : vector<1x128xf32> to vector<1x32xf32>
    %1131 = vector.extract_strided_slice %25 {offsets = [0, 32], sizes = [1, 32], strides = [1, 1]} : vector<1x128xf32> to vector<1x32xf32>
    %1132 = arith.addf %1130, %1131 : vector<1x32xf32>
    %1133 = arith.negf %1132 : vector<1x32xf32>
    %1134 = math.exp %1133 : vector<1x32xf32>
    %cst_310 = arith.constant 1.000000e+00 : f32
    %1135 = vector.broadcast %cst_310 : f32 to vector<1x32xf32>
    %1136 = arith.addf %1135, %1134 : vector<1x32xf32>
    %1137 = arith.divf %1135, %1136 : vector<1x32xf32>
    %1138 = vector.extract_strided_slice %1121 {offsets = [0, 64], sizes = [1, 32], strides = [1, 1]} : vector<1x128xf32> to vector<1x32xf32>
    %1139 = vector.extract_strided_slice %25 {offsets = [0, 64], sizes = [1, 32], strides = [1, 1]} : vector<1x128xf32> to vector<1x32xf32>
    %1140 = arith.mulf %1129, %1139 : vector<1x32xf32>
    %1141 = arith.addf %1138, %1140 : vector<1x32xf32>
    %1142 = math.tanh %1141 : vector<1x32xf32>
    %cst_311 = arith.constant 1.000000e+00 : f32
    %1143 = vector.broadcast %cst_311 : f32 to vector<1x32xf32>
    %1144 = arith.subf %1143, %1137 : vector<1x32xf32>
    %1145 = arith.mulf %1144, %1142 : vector<1x32xf32>
    %1146 = arith.mulf %1137, %19 : vector<1x32xf32>
    %1147 = arith.addf %1145, %1146 : vector<1x32xf32>
    %cst_312 = arith.constant dense<0.000000e+00> : vector<1x256xf32>
    %1148 = tpu.matmul %1147, %4, %cst_312 {dimension_numbers = #tpu.dot_dimension_numbers<[1], [0], [0], [1], [0, 0, 1, 1], [], []>} : vector<1x32xf32>, vector<32x256xf32>, vector<1x256xf32> -> vector<1x256xf32>
    %1149 = arith.addf %1148, %5 : vector<1x256xf32>
    %1150 = vector.extract_strided_slice %1149 {offsets = [0, 0], sizes = [1, 128], strides = [1, 1]} : vector<1x256xf32> to vector<1x128xf32>
    %1151 = vector.extract_strided_slice %1149 {offsets = [0, 128], sizes = [1, 1], strides = [1, 1]} : vector<1x256xf32> to vector<1x1xf32>
    %cst_313 = arith.constant dense<0xFF800000> : vector<1xf32>
    %1152 = vector.multi_reduction <maximumf>, %1150, %cst_313 [1] : vector<1x128xf32> to vector<1xf32>
    %1153 = vector.shape_cast %1152 : vector<1xf32> to vector<1x1xf32>
    %1154 = vector.broadcast %1153 : vector<1x1xf32> to vector<1x128xf32>
    %1155 = arith.subf %1150, %1154 : vector<1x128xf32>
    %1156 = math.exp %1155 : vector<1x128xf32>
    %cst_314 = arith.constant dense<0.000000e+00> : vector<1xf32>
    %1157 = vector.multi_reduction <add>, %1156, %cst_314 [1] : vector<1x128xf32> to vector<1xf32>
    %1158 = vector.shape_cast %1157 : vector<1xf32> to vector<1x1xf32>
    %1159 = vector.broadcast %1158 : vector<1x1xf32> to vector<1x128xf32>
    %1160 = arith.divf %1156, %1159 : vector<1x128xf32>
    %1161 = arith.mulf %1160, %1068 : vector<1x128xf32>
    %cst_315 = arith.constant 0.000000e+00 : f32
    %1162 = vector.broadcast %cst_315 : f32 to vector<1x128xf32>
    %cst_316 = arith.constant dense<0xFF800000> : vector<1xf32>
    %1163 = vector.multi_reduction <maximumf>, %1161, %cst_316 [1] : vector<1x128xf32> to vector<1xf32>
    %1164 = vector.shape_cast %1163 : vector<1xf32> to vector<1x1xf32>
    %1165 = vector.broadcast %1164 : vector<1x1xf32> to vector<1x128xf32>
    %1166 = arith.cmpf oeq, %1161, %1165 : vector<1x128xf32>
    %c128_i32_317 = arith.constant 128 : i32
    %1167 = vector.broadcast %c128_i32_317 : i32 to vector<1x128xi32>
    %1168 = arith.select %1166, %0, %1167 : vector<1x128xi1>, vector<1x128xi32>
    %cst_318 = arith.constant dense<2147483647> : vector<1xi32>
    %1169 = vector.multi_reduction <minsi>, %1168, %cst_318 [1] : vector<1x128xi32> to vector<1xi32>
    %1170 = vector.shape_cast %1169 : vector<1xi32> to vector<1x1xi32>
    %1171 = vector.broadcast %1170 : vector<1x1xi32> to vector<1x128xi32>
    %1172 = arith.cmpi eq, %0, %1171 : vector<1x128xi32>
    %1173 = arith.extui %1172 : vector<1x128xi1> to vector<1x128xi32>
    %1174 = arith.sitofp %1173 : vector<1x128xi32> to vector<1x128xf32>
    %1175 = arith.addf %1162, %1174 : vector<1x128xf32>
    %cst_319 = arith.constant 0.000000e+00 : f32
    %1176 = vector.broadcast %cst_319 : f32 to vector<1x128xf32>
    %1177 = arith.cmpf ogt, %1174, %1176 : vector<1x128xf32>
    %cst_320 = arith.constant -1.000000e+30 : f32
    %1178 = vector.broadcast %cst_320 : f32 to vector<1x128xf32>
    %1179 = arith.select %1177, %1178, %1161 : vector<1x128xi1>, vector<1x128xf32>
    %cst_321 = arith.constant dense<0xFF800000> : vector<1xf32>
    %1180 = vector.multi_reduction <maximumf>, %1179, %cst_321 [1] : vector<1x128xf32> to vector<1xf32>
    %1181 = vector.shape_cast %1180 : vector<1xf32> to vector<1x1xf32>
    %1182 = vector.broadcast %1181 : vector<1x1xf32> to vector<1x128xf32>
    %1183 = arith.cmpf oeq, %1179, %1182 : vector<1x128xf32>
    %c128_i32_322 = arith.constant 128 : i32
    %1184 = vector.broadcast %c128_i32_322 : i32 to vector<1x128xi32>
    %1185 = arith.select %1183, %0, %1184 : vector<1x128xi1>, vector<1x128xi32>
    %cst_323 = arith.constant dense<2147483647> : vector<1xi32>
    %1186 = vector.multi_reduction <minsi>, %1185, %cst_323 [1] : vector<1x128xi32> to vector<1xi32>
    %1187 = vector.shape_cast %1186 : vector<1xi32> to vector<1x1xi32>
    %1188 = vector.broadcast %1187 : vector<1x1xi32> to vector<1x128xi32>
    %1189 = arith.cmpi eq, %0, %1188 : vector<1x128xi32>
    %1190 = arith.extui %1189 : vector<1x128xi1> to vector<1x128xi32>
    %1191 = arith.sitofp %1190 : vector<1x128xi32> to vector<1x128xf32>
    %1192 = arith.addf %1175, %1191 : vector<1x128xf32>
    %cst_324 = arith.constant 0.000000e+00 : f32
    %1193 = vector.broadcast %cst_324 : f32 to vector<1x128xf32>
    %1194 = arith.cmpf ogt, %1191, %1193 : vector<1x128xf32>
    %cst_325 = arith.constant -1.000000e+30 : f32
    %1195 = vector.broadcast %cst_325 : f32 to vector<1x128xf32>
    %1196 = arith.select %1194, %1195, %1179 : vector<1x128xi1>, vector<1x128xf32>
    %cst_326 = arith.constant dense<0xFF800000> : vector<1xf32>
    %1197 = vector.multi_reduction <maximumf>, %1196, %cst_326 [1] : vector<1x128xf32> to vector<1xf32>
    %1198 = vector.shape_cast %1197 : vector<1xf32> to vector<1x1xf32>
    %1199 = vector.broadcast %1198 : vector<1x1xf32> to vector<1x128xf32>
    %1200 = arith.cmpf oeq, %1196, %1199 : vector<1x128xf32>
    %c128_i32_327 = arith.constant 128 : i32
    %1201 = vector.broadcast %c128_i32_327 : i32 to vector<1x128xi32>
    %1202 = arith.select %1200, %0, %1201 : vector<1x128xi1>, vector<1x128xi32>
    %cst_328 = arith.constant dense<2147483647> : vector<1xi32>
    %1203 = vector.multi_reduction <minsi>, %1202, %cst_328 [1] : vector<1x128xi32> to vector<1xi32>
    %1204 = vector.shape_cast %1203 : vector<1xi32> to vector<1x1xi32>
    %1205 = vector.broadcast %1204 : vector<1x1xi32> to vector<1x128xi32>
    %1206 = arith.cmpi eq, %0, %1205 : vector<1x128xi32>
    %1207 = arith.extui %1206 : vector<1x128xi1> to vector<1x128xi32>
    %1208 = arith.sitofp %1207 : vector<1x128xi32> to vector<1x128xf32>
    %1209 = arith.addf %1192, %1208 : vector<1x128xf32>
    %cst_329 = arith.constant 0.000000e+00 : f32
    %1210 = vector.broadcast %cst_329 : f32 to vector<1x128xf32>
    %1211 = arith.cmpf ogt, %1208, %1210 : vector<1x128xf32>
    %cst_330 = arith.constant -1.000000e+30 : f32
    %1212 = vector.broadcast %cst_330 : f32 to vector<1x128xf32>
    %1213 = arith.select %1211, %1212, %1196 : vector<1x128xi1>, vector<1x128xf32>
    %cst_331 = arith.constant dense<0xFF800000> : vector<1xf32>
    %1214 = vector.multi_reduction <maximumf>, %1213, %cst_331 [1] : vector<1x128xf32> to vector<1xf32>
    %1215 = vector.shape_cast %1214 : vector<1xf32> to vector<1x1xf32>
    %1216 = vector.broadcast %1215 : vector<1x1xf32> to vector<1x128xf32>
    %1217 = arith.cmpf oeq, %1213, %1216 : vector<1x128xf32>
    %c128_i32_332 = arith.constant 128 : i32
    %1218 = vector.broadcast %c128_i32_332 : i32 to vector<1x128xi32>
    %1219 = arith.select %1217, %0, %1218 : vector<1x128xi1>, vector<1x128xi32>
    %cst_333 = arith.constant dense<2147483647> : vector<1xi32>
    %1220 = vector.multi_reduction <minsi>, %1219, %cst_333 [1] : vector<1x128xi32> to vector<1xi32>
    %1221 = vector.shape_cast %1220 : vector<1xi32> to vector<1x1xi32>
    %1222 = vector.broadcast %1221 : vector<1x1xi32> to vector<1x128xi32>
    %1223 = arith.cmpi eq, %0, %1222 : vector<1x128xi32>
    %1224 = arith.extui %1223 : vector<1x128xi1> to vector<1x128xi32>
    %1225 = arith.sitofp %1224 : vector<1x128xi32> to vector<1x128xf32>
    %1226 = arith.addf %1209, %1225 : vector<1x128xf32>
    %cst_334 = arith.constant 0.000000e+00 : f32
    %1227 = vector.broadcast %cst_334 : f32 to vector<1x128xf32>
    %1228 = arith.cmpf ogt, %1225, %1227 : vector<1x128xf32>
    %cst_335 = arith.constant -1.000000e+30 : f32
    %1229 = vector.broadcast %cst_335 : f32 to vector<1x128xf32>
    %1230 = arith.select %1228, %1229, %1213 : vector<1x128xi1>, vector<1x128xf32>
    %cst_336 = arith.constant dense<0xFF800000> : vector<1xf32>
    %1231 = vector.multi_reduction <maximumf>, %1230, %cst_336 [1] : vector<1x128xf32> to vector<1xf32>
    %1232 = vector.shape_cast %1231 : vector<1xf32> to vector<1x1xf32>
    %1233 = vector.broadcast %1232 : vector<1x1xf32> to vector<1x128xf32>
    %1234 = arith.cmpf oeq, %1230, %1233 : vector<1x128xf32>
    %c128_i32_337 = arith.constant 128 : i32
    %1235 = vector.broadcast %c128_i32_337 : i32 to vector<1x128xi32>
    %1236 = arith.select %1234, %0, %1235 : vector<1x128xi1>, vector<1x128xi32>
    %cst_338 = arith.constant dense<2147483647> : vector<1xi32>
    %1237 = vector.multi_reduction <minsi>, %1236, %cst_338 [1] : vector<1x128xi32> to vector<1xi32>
    %1238 = vector.shape_cast %1237 : vector<1xi32> to vector<1x1xi32>
    %1239 = vector.broadcast %1238 : vector<1x1xi32> to vector<1x128xi32>
    %1240 = arith.cmpi eq, %0, %1239 : vector<1x128xi32>
    %1241 = arith.extui %1240 : vector<1x128xi1> to vector<1x128xi32>
    %1242 = arith.sitofp %1241 : vector<1x128xi32> to vector<1x128xf32>
    %1243 = arith.addf %1226, %1242 : vector<1x128xf32>
    %1244 = arith.mulf %2, %1243 : vector<1x128xf32>
    %cst_339 = arith.constant dense<0.000000e+00> : vector<1xf32>
    %1245 = vector.multi_reduction <add>, %1244, %cst_339 [1] : vector<1x128xf32> to vector<1xf32>
    %1246 = vector.shape_cast %1245 : vector<1xf32> to vector<1x1xf32>
    %cst_340 = arith.constant 0.000000e+00 : f32
    %1247 = vector.broadcast %cst_340 : f32 to vector<1x1xf32>
    %1248 = arith.cmpf ogt, %1246, %1247 : vector<1x1xf32>
    %1249 = arith.extui %1248 : vector<1x1xi1> to vector<1x1xi32>
    %1250 = arith.sitofp %1249 : vector<1x1xi32> to vector<1x1xf32>
    %1251 = vector.broadcast %1250 : vector<1x1xf32> to vector<1x128xf32>
    %1252 = arith.mulf %1251, %1244 : vector<1x128xf32>
    %1253 = arith.mulf %1252, %1160 : vector<1x128xf32>
    %cst_341 = arith.constant 1.000000e+00 : f32
    %1254 = vector.broadcast %cst_341 : f32 to vector<1x1xf32>
    %1255 = arith.subf %1254, %1250 : vector<1x1xf32>
    %1256 = vector.broadcast %1255 : vector<1x1xf32> to vector<1x128xf32>
    %1257 = arith.mulf %1256, %1161 : vector<1x128xf32>
    %1258 = arith.addf %1253, %1257 : vector<1x128xf32>
    %cst_342 = arith.constant dense<0xFF800000> : vector<1xf32>
    %1259 = vector.multi_reduction <maximumf>, %1258, %cst_342 [1] : vector<1x128xf32> to vector<1xf32>
    %1260 = vector.shape_cast %1259 : vector<1xf32> to vector<1x1xf32>
    %1261 = vector.broadcast %1260 : vector<1x1xf32> to vector<1x128xf32>
    %1262 = arith.cmpf oeq, %1258, %1261 : vector<1x128xf32>
    %c128_i32_343 = arith.constant 128 : i32
    %1263 = vector.broadcast %c128_i32_343 : i32 to vector<1x128xi32>
    %1264 = arith.select %1262, %0, %1263 : vector<1x128xi1>, vector<1x128xi32>
    %cst_344 = arith.constant dense<2147483647> : vector<1xi32>
    %1265 = vector.multi_reduction <minsi>, %1264, %cst_344 [1] : vector<1x128xi32> to vector<1xi32>
    %1266 = vector.shape_cast %1265 : vector<1xi32> to vector<1x1xi32>
    %1267 = vector.broadcast %1266 : vector<1x1xi32> to vector<1x128xi32>
    %1268 = arith.cmpi eq, %0, %1267 : vector<1x128xi32>
    %1269 = arith.extui %1268 : vector<1x128xi1> to vector<1x128xi32>
    %1270 = arith.sitofp %1269 : vector<1x128xi32> to vector<1x128xf32>
    %cst_345 = arith.constant dense<0.000000e+00> : vector<1x32xf32>
    %1271 = tpu.matmul %1270, %3, %cst_345 {dimension_numbers = #tpu.dot_dimension_numbers<[1], [0], [0], [1], [0, 0, 1, 1], [], []>} : vector<1x128xf32>, vector<128x32xf32>, vector<1x32xf32> -> vector<1x32xf32>
    %cst_346 = arith.constant 2.000000e+00 : f32
    %1272 = vector.broadcast %cst_346 : f32 to vector<1x1xf32>
    %1273 = arith.mulf %1272, %1250 : vector<1x1xf32>
    %cst_347 = arith.constant 1.000000e+00 : f32
    %1274 = vector.broadcast %cst_347 : f32 to vector<1x1xf32>
    %1275 = arith.subf %1273, %1274 : vector<1x1xf32>
    %1276 = vector.broadcast %1275 : vector<1x1xf32> to vector<1x32xf32>
    %1277 = arith.mulf %1276, %1271 : vector<1x32xf32>
    %1278 = vector.broadcast %1250 : vector<1x1xf32> to vector<1x128xf32>
    %1279 = arith.mulf %1278, %1270 : vector<1x128xf32>
    %1280 = arith.subf %1068, %1279 : vector<1x128xf32>
    %c5 = arith.constant 5 : index
    %c0_348 = arith.constant 0 : index
    %1281 = vector.load %arg11[%c5, %c0_348] : memref<8x128xf32, #tpu.memory_space<vmem>>, vector<1x128xf32>
    tpu.vector_store %arg11[%c5, %c0_348], %1160 {strides = array<i32>} : memref<8x128xf32, #tpu.memory_space<vmem>>, vector<1x128xf32>,
    %c0_i32_349 = arith.constant 0 : i32
    %1282 = vector.broadcast %c0_i32_349 : i32 to vector<1x128xi32>
    %1283 = arith.cmpi eq, %1, %1282 : vector<1x128xi32>
    %1284 = arith.sitofp %1266 : vector<1x1xi32> to vector<1x1xf32>
    %cst_350 = arith.constant 0.000000e+00 : f32
    %1285 = vector.shape_cast %1284 : vector<1x1xf32> to vector<1x1xf32>
    %1286 = vector.broadcast %1285 : vector<1x1xf32> to vector<1x128xf32>
    %1287 = vector.broadcast %cst_350 : f32 to vector<1x128xf32>
    %1288 = arith.select %1283, %1286, %1287 : vector<1x128xi1>, vector<1x128xf32>
    %c1_i32_351 = arith.constant 1 : i32
    %1289 = vector.broadcast %c1_i32_351 : i32 to vector<1x128xi32>
    %1290 = arith.cmpi eq, %1, %1289 : vector<1x128xi32>
    %cst_352 = arith.constant 0.000000e+00 : f32
    %1291 = vector.shape_cast %1151 : vector<1x1xf32> to vector<1x1xf32>
    %1292 = vector.broadcast %1291 : vector<1x1xf32> to vector<1x128xf32>
    %1293 = vector.broadcast %cst_352 : f32 to vector<1x128xf32>
    %1294 = arith.select %1290, %1292, %1293 : vector<1x128xi1>, vector<1x128xf32>
    %1295 = arith.addf %1288, %1294 : vector<1x128xf32>
    %c2_i32_353 = arith.constant 2 : i32
    %1296 = vector.broadcast %c2_i32_353 : i32 to vector<1x128xi32>
    %1297 = arith.cmpi eq, %1, %1296 : vector<1x128xi32>
    %cst_354 = arith.constant 0.000000e+00 : f32
    %1298 = vector.shape_cast %1250 : vector<1x1xf32> to vector<1x1xf32>
    %1299 = vector.broadcast %1298 : vector<1x1xf32> to vector<1x128xf32>
    %1300 = vector.broadcast %cst_354 : f32 to vector<1x128xf32>
    %1301 = arith.select %1297, %1299, %1300 : vector<1x128xi1>, vector<1x128xf32>
    %1302 = arith.addf %1295, %1301 : vector<1x128xf32>
    %c5_355 = arith.constant 5 : index
    %c0_356 = arith.constant 0 : index
    %1303 = vector.load %arg12[%c5_355, %c0_356] : memref<8x128xf32, #tpu.memory_space<vmem>>, vector<1x128xf32>
    tpu.vector_store %arg12[%c5_355, %c0_356], %1302 {strides = array<i32>} : memref<8x128xf32, #tpu.memory_space<vmem>>, vector<1x128xf32>,
    %cst_357 = arith.constant dense<0.000000e+00> : vector<1x128xf32>
    %1304 = tpu.matmul %1277, %15, %cst_357 {dimension_numbers = #tpu.dot_dimension_numbers<[1], [0], [0], [1], [0, 0, 1, 1], [], []>} : vector<1x32xf32>, vector<32x128xf32>, vector<1x128xf32> -> vector<1x128xf32>
    %1305 = arith.addf %1304, %17 : vector<1x128xf32>
    %1306 = vector.extract_strided_slice %1305 {offsets = [0, 0], sizes = [1, 32], strides = [1, 1]} : vector<1x128xf32> to vector<1x32xf32>
    %1307 = vector.extract_strided_slice %13 {offsets = [0, 0], sizes = [1, 32], strides = [1, 1]} : vector<1x128xf32> to vector<1x32xf32>
    %1308 = arith.addf %1306, %1307 : vector<1x32xf32>
    %1309 = arith.negf %1308 : vector<1x32xf32>
    %1310 = math.exp %1309 : vector<1x32xf32>
    %cst_358 = arith.constant 1.000000e+00 : f32
    %1311 = vector.broadcast %cst_358 : f32 to vector<1x32xf32>
    %1312 = arith.addf %1311, %1310 : vector<1x32xf32>
    %1313 = arith.divf %1311, %1312 : vector<1x32xf32>
    %1314 = vector.extract_strided_slice %1305 {offsets = [0, 32], sizes = [1, 32], strides = [1, 1]} : vector<1x128xf32> to vector<1x32xf32>
    %1315 = vector.extract_strided_slice %13 {offsets = [0, 32], sizes = [1, 32], strides = [1, 1]} : vector<1x128xf32> to vector<1x32xf32>
    %1316 = arith.addf %1314, %1315 : vector<1x32xf32>
    %1317 = arith.negf %1316 : vector<1x32xf32>
    %1318 = math.exp %1317 : vector<1x32xf32>
    %cst_359 = arith.constant 1.000000e+00 : f32
    %1319 = vector.broadcast %cst_359 : f32 to vector<1x32xf32>
    %1320 = arith.addf %1319, %1318 : vector<1x32xf32>
    %1321 = arith.divf %1319, %1320 : vector<1x32xf32>
    %1322 = vector.extract_strided_slice %1305 {offsets = [0, 64], sizes = [1, 32], strides = [1, 1]} : vector<1x128xf32> to vector<1x32xf32>
    %1323 = vector.extract_strided_slice %13 {offsets = [0, 64], sizes = [1, 32], strides = [1, 1]} : vector<1x128xf32> to vector<1x32xf32>
    %1324 = arith.mulf %1313, %1323 : vector<1x32xf32>
    %1325 = arith.addf %1322, %1324 : vector<1x32xf32>
    %1326 = math.tanh %1325 : vector<1x32xf32>
    %cst_360 = arith.constant 1.000000e+00 : f32
    %1327 = vector.broadcast %cst_360 : f32 to vector<1x32xf32>
    %1328 = arith.subf %1327, %1321 : vector<1x32xf32>
    %1329 = arith.mulf %1328, %1326 : vector<1x32xf32>
    %1330 = arith.mulf %1321, %7 : vector<1x32xf32>
    %1331 = arith.addf %1329, %1330 : vector<1x32xf32>
    %cst_361 = arith.constant dense<0.000000e+00> : vector<1x128xf32>
    %1332 = tpu.matmul %1331, %27, %cst_361 {dimension_numbers = #tpu.dot_dimension_numbers<[1], [0], [0], [1], [0, 0, 1, 1], [], []>} : vector<1x32xf32>, vector<32x128xf32>, vector<1x128xf32> -> vector<1x128xf32>
    %1333 = arith.addf %1332, %29 : vector<1x128xf32>
    %1334 = vector.extract_strided_slice %1333 {offsets = [0, 0], sizes = [1, 32], strides = [1, 1]} : vector<1x128xf32> to vector<1x32xf32>
    %1335 = vector.extract_strided_slice %25 {offsets = [0, 0], sizes = [1, 32], strides = [1, 1]} : vector<1x128xf32> to vector<1x32xf32>
    %1336 = arith.addf %1334, %1335 : vector<1x32xf32>
    %1337 = arith.negf %1336 : vector<1x32xf32>
    %1338 = math.exp %1337 : vector<1x32xf32>
    %cst_362 = arith.constant 1.000000e+00 : f32
    %1339 = vector.broadcast %cst_362 : f32 to vector<1x32xf32>
    %1340 = arith.addf %1339, %1338 : vector<1x32xf32>
    %1341 = arith.divf %1339, %1340 : vector<1x32xf32>
    %1342 = vector.extract_strided_slice %1333 {offsets = [0, 32], sizes = [1, 32], strides = [1, 1]} : vector<1x128xf32> to vector<1x32xf32>
    %1343 = vector.extract_strided_slice %25 {offsets = [0, 32], sizes = [1, 32], strides = [1, 1]} : vector<1x128xf32> to vector<1x32xf32>
    %1344 = arith.addf %1342, %1343 : vector<1x32xf32>
    %1345 = arith.negf %1344 : vector<1x32xf32>
    %1346 = math.exp %1345 : vector<1x32xf32>
    %cst_363 = arith.constant 1.000000e+00 : f32
    %1347 = vector.broadcast %cst_363 : f32 to vector<1x32xf32>
    %1348 = arith.addf %1347, %1346 : vector<1x32xf32>
    %1349 = arith.divf %1347, %1348 : vector<1x32xf32>
    %1350 = vector.extract_strided_slice %1333 {offsets = [0, 64], sizes = [1, 32], strides = [1, 1]} : vector<1x128xf32> to vector<1x32xf32>
    %1351 = vector.extract_strided_slice %25 {offsets = [0, 64], sizes = [1, 32], strides = [1, 1]} : vector<1x128xf32> to vector<1x32xf32>
    %1352 = arith.mulf %1341, %1351 : vector<1x32xf32>
    %1353 = arith.addf %1350, %1352 : vector<1x32xf32>
    %1354 = math.tanh %1353 : vector<1x32xf32>
    %cst_364 = arith.constant 1.000000e+00 : f32
    %1355 = vector.broadcast %cst_364 : f32 to vector<1x32xf32>
    %1356 = arith.subf %1355, %1349 : vector<1x32xf32>
    %1357 = arith.mulf %1356, %1354 : vector<1x32xf32>
    %1358 = arith.mulf %1349, %19 : vector<1x32xf32>
    %1359 = arith.addf %1357, %1358 : vector<1x32xf32>
    %cst_365 = arith.constant dense<0.000000e+00> : vector<1x256xf32>
    %1360 = tpu.matmul %1359, %4, %cst_365 {dimension_numbers = #tpu.dot_dimension_numbers<[1], [0], [0], [1], [0, 0, 1, 1], [], []>} : vector<1x32xf32>, vector<32x256xf32>, vector<1x256xf32> -> vector<1x256xf32>
    %1361 = arith.addf %1360, %5 : vector<1x256xf32>
    %1362 = vector.extract_strided_slice %1361 {offsets = [0, 0], sizes = [1, 128], strides = [1, 1]} : vector<1x256xf32> to vector<1x128xf32>
    %1363 = vector.extract_strided_slice %1361 {offsets = [0, 128], sizes = [1, 1], strides = [1, 1]} : vector<1x256xf32> to vector<1x1xf32>
    %cst_366 = arith.constant dense<0xFF800000> : vector<1xf32>
    %1364 = vector.multi_reduction <maximumf>, %1362, %cst_366 [1] : vector<1x128xf32> to vector<1xf32>
    %1365 = vector.shape_cast %1364 : vector<1xf32> to vector<1x1xf32>
    %1366 = vector.broadcast %1365 : vector<1x1xf32> to vector<1x128xf32>
    %1367 = arith.subf %1362, %1366 : vector<1x128xf32>
    %1368 = math.exp %1367 : vector<1x128xf32>
    %cst_367 = arith.constant dense<0.000000e+00> : vector<1xf32>
    %1369 = vector.multi_reduction <add>, %1368, %cst_367 [1] : vector<1x128xf32> to vector<1xf32>
    %1370 = vector.shape_cast %1369 : vector<1xf32> to vector<1x1xf32>
    %1371 = vector.broadcast %1370 : vector<1x1xf32> to vector<1x128xf32>
    %1372 = arith.divf %1368, %1371 : vector<1x128xf32>
    %1373 = arith.mulf %1372, %1280 : vector<1x128xf32>
    %cst_368 = arith.constant 0.000000e+00 : f32
    %1374 = vector.broadcast %cst_368 : f32 to vector<1x128xf32>
    %cst_369 = arith.constant dense<0xFF800000> : vector<1xf32>
    %1375 = vector.multi_reduction <maximumf>, %1373, %cst_369 [1] : vector<1x128xf32> to vector<1xf32>
    %1376 = vector.shape_cast %1375 : vector<1xf32> to vector<1x1xf32>
    %1377 = vector.broadcast %1376 : vector<1x1xf32> to vector<1x128xf32>
    %1378 = arith.cmpf oeq, %1373, %1377 : vector<1x128xf32>
    %c128_i32_370 = arith.constant 128 : i32
    %1379 = vector.broadcast %c128_i32_370 : i32 to vector<1x128xi32>
    %1380 = arith.select %1378, %0, %1379 : vector<1x128xi1>, vector<1x128xi32>
    %cst_371 = arith.constant dense<2147483647> : vector<1xi32>
    %1381 = vector.multi_reduction <minsi>, %1380, %cst_371 [1] : vector<1x128xi32> to vector<1xi32>
    %1382 = vector.shape_cast %1381 : vector<1xi32> to vector<1x1xi32>
    %1383 = vector.broadcast %1382 : vector<1x1xi32> to vector<1x128xi32>
    %1384 = arith.cmpi eq, %0, %1383 : vector<1x128xi32>
    %1385 = arith.extui %1384 : vector<1x128xi1> to vector<1x128xi32>
    %1386 = arith.sitofp %1385 : vector<1x128xi32> to vector<1x128xf32>
    %1387 = arith.addf %1374, %1386 : vector<1x128xf32>
    %cst_372 = arith.constant 0.000000e+00 : f32
    %1388 = vector.broadcast %cst_372 : f32 to vector<1x128xf32>
    %1389 = arith.cmpf ogt, %1386, %1388 : vector<1x128xf32>
    %cst_373 = arith.constant -1.000000e+30 : f32
    %1390 = vector.broadcast %cst_373 : f32 to vector<1x128xf32>
    %1391 = arith.select %1389, %1390, %1373 : vector<1x128xi1>, vector<1x128xf32>
    %cst_374 = arith.constant dense<0xFF800000> : vector<1xf32>
    %1392 = vector.multi_reduction <maximumf>, %1391, %cst_374 [1] : vector<1x128xf32> to vector<1xf32>
    %1393 = vector.shape_cast %1392 : vector<1xf32> to vector<1x1xf32>
    %1394 = vector.broadcast %1393 : vector<1x1xf32> to vector<1x128xf32>
    %1395 = arith.cmpf oeq, %1391, %1394 : vector<1x128xf32>
    %c128_i32_375 = arith.constant 128 : i32
    %1396 = vector.broadcast %c128_i32_375 : i32 to vector<1x128xi32>
    %1397 = arith.select %1395, %0, %1396 : vector<1x128xi1>, vector<1x128xi32>
    %cst_376 = arith.constant dense<2147483647> : vector<1xi32>
    %1398 = vector.multi_reduction <minsi>, %1397, %cst_376 [1] : vector<1x128xi32> to vector<1xi32>
    %1399 = vector.shape_cast %1398 : vector<1xi32> to vector<1x1xi32>
    %1400 = vector.broadcast %1399 : vector<1x1xi32> to vector<1x128xi32>
    %1401 = arith.cmpi eq, %0, %1400 : vector<1x128xi32>
    %1402 = arith.extui %1401 : vector<1x128xi1> to vector<1x128xi32>
    %1403 = arith.sitofp %1402 : vector<1x128xi32> to vector<1x128xf32>
    %1404 = arith.addf %1387, %1403 : vector<1x128xf32>
    %cst_377 = arith.constant 0.000000e+00 : f32
    %1405 = vector.broadcast %cst_377 : f32 to vector<1x128xf32>
    %1406 = arith.cmpf ogt, %1403, %1405 : vector<1x128xf32>
    %cst_378 = arith.constant -1.000000e+30 : f32
    %1407 = vector.broadcast %cst_378 : f32 to vector<1x128xf32>
    %1408 = arith.select %1406, %1407, %1391 : vector<1x128xi1>, vector<1x128xf32>
    %cst_379 = arith.constant dense<0xFF800000> : vector<1xf32>
    %1409 = vector.multi_reduction <maximumf>, %1408, %cst_379 [1] : vector<1x128xf32> to vector<1xf32>
    %1410 = vector.shape_cast %1409 : vector<1xf32> to vector<1x1xf32>
    %1411 = vector.broadcast %1410 : vector<1x1xf32> to vector<1x128xf32>
    %1412 = arith.cmpf oeq, %1408, %1411 : vector<1x128xf32>
    %c128_i32_380 = arith.constant 128 : i32
    %1413 = vector.broadcast %c128_i32_380 : i32 to vector<1x128xi32>
    %1414 = arith.select %1412, %0, %1413 : vector<1x128xi1>, vector<1x128xi32>
    %cst_381 = arith.constant dense<2147483647> : vector<1xi32>
    %1415 = vector.multi_reduction <minsi>, %1414, %cst_381 [1] : vector<1x128xi32> to vector<1xi32>
    %1416 = vector.shape_cast %1415 : vector<1xi32> to vector<1x1xi32>
    %1417 = vector.broadcast %1416 : vector<1x1xi32> to vector<1x128xi32>
    %1418 = arith.cmpi eq, %0, %1417 : vector<1x128xi32>
    %1419 = arith.extui %1418 : vector<1x128xi1> to vector<1x128xi32>
    %1420 = arith.sitofp %1419 : vector<1x128xi32> to vector<1x128xf32>
    %1421 = arith.addf %1404, %1420 : vector<1x128xf32>
    %cst_382 = arith.constant 0.000000e+00 : f32
    %1422 = vector.broadcast %cst_382 : f32 to vector<1x128xf32>
    %1423 = arith.cmpf ogt, %1420, %1422 : vector<1x128xf32>
    %cst_383 = arith.constant -1.000000e+30 : f32
    %1424 = vector.broadcast %cst_383 : f32 to vector<1x128xf32>
    %1425 = arith.select %1423, %1424, %1408 : vector<1x128xi1>, vector<1x128xf32>
    %cst_384 = arith.constant dense<0xFF800000> : vector<1xf32>
    %1426 = vector.multi_reduction <maximumf>, %1425, %cst_384 [1] : vector<1x128xf32> to vector<1xf32>
    %1427 = vector.shape_cast %1426 : vector<1xf32> to vector<1x1xf32>
    %1428 = vector.broadcast %1427 : vector<1x1xf32> to vector<1x128xf32>
    %1429 = arith.cmpf oeq, %1425, %1428 : vector<1x128xf32>
    %c128_i32_385 = arith.constant 128 : i32
    %1430 = vector.broadcast %c128_i32_385 : i32 to vector<1x128xi32>
    %1431 = arith.select %1429, %0, %1430 : vector<1x128xi1>, vector<1x128xi32>
    %cst_386 = arith.constant dense<2147483647> : vector<1xi32>
    %1432 = vector.multi_reduction <minsi>, %1431, %cst_386 [1] : vector<1x128xi32> to vector<1xi32>
    %1433 = vector.shape_cast %1432 : vector<1xi32> to vector<1x1xi32>
    %1434 = vector.broadcast %1433 : vector<1x1xi32> to vector<1x128xi32>
    %1435 = arith.cmpi eq, %0, %1434 : vector<1x128xi32>
    %1436 = arith.extui %1435 : vector<1x128xi1> to vector<1x128xi32>
    %1437 = arith.sitofp %1436 : vector<1x128xi32> to vector<1x128xf32>
    %1438 = arith.addf %1421, %1437 : vector<1x128xf32>
    %cst_387 = arith.constant 0.000000e+00 : f32
    %1439 = vector.broadcast %cst_387 : f32 to vector<1x128xf32>
    %1440 = arith.cmpf ogt, %1437, %1439 : vector<1x128xf32>
    %cst_388 = arith.constant -1.000000e+30 : f32
    %1441 = vector.broadcast %cst_388 : f32 to vector<1x128xf32>
    %1442 = arith.select %1440, %1441, %1425 : vector<1x128xi1>, vector<1x128xf32>
    %cst_389 = arith.constant dense<0xFF800000> : vector<1xf32>
    %1443 = vector.multi_reduction <maximumf>, %1442, %cst_389 [1] : vector<1x128xf32> to vector<1xf32>
    %1444 = vector.shape_cast %1443 : vector<1xf32> to vector<1x1xf32>
    %1445 = vector.broadcast %1444 : vector<1x1xf32> to vector<1x128xf32>
    %1446 = arith.cmpf oeq, %1442, %1445 : vector<1x128xf32>
    %c128_i32_390 = arith.constant 128 : i32
    %1447 = vector.broadcast %c128_i32_390 : i32 to vector<1x128xi32>
    %1448 = arith.select %1446, %0, %1447 : vector<1x128xi1>, vector<1x128xi32>
    %cst_391 = arith.constant dense<2147483647> : vector<1xi32>
    %1449 = vector.multi_reduction <minsi>, %1448, %cst_391 [1] : vector<1x128xi32> to vector<1xi32>
    %1450 = vector.shape_cast %1449 : vector<1xi32> to vector<1x1xi32>
    %1451 = vector.broadcast %1450 : vector<1x1xi32> to vector<1x128xi32>
    %1452 = arith.cmpi eq, %0, %1451 : vector<1x128xi32>
    %1453 = arith.extui %1452 : vector<1x128xi1> to vector<1x128xi32>
    %1454 = arith.sitofp %1453 : vector<1x128xi32> to vector<1x128xf32>
    %1455 = arith.addf %1438, %1454 : vector<1x128xf32>
    %1456 = arith.mulf %2, %1455 : vector<1x128xf32>
    %cst_392 = arith.constant dense<0.000000e+00> : vector<1xf32>
    %1457 = vector.multi_reduction <add>, %1456, %cst_392 [1] : vector<1x128xf32> to vector<1xf32>
    %1458 = vector.shape_cast %1457 : vector<1xf32> to vector<1x1xf32>
    %cst_393 = arith.constant 0.000000e+00 : f32
    %1459 = vector.broadcast %cst_393 : f32 to vector<1x1xf32>
    %1460 = arith.cmpf ogt, %1458, %1459 : vector<1x1xf32>
    %1461 = arith.extui %1460 : vector<1x1xi1> to vector<1x1xi32>
    %1462 = arith.sitofp %1461 : vector<1x1xi32> to vector<1x1xf32>
    %1463 = vector.broadcast %1462 : vector<1x1xf32> to vector<1x128xf32>
    %1464 = arith.mulf %1463, %1456 : vector<1x128xf32>
    %1465 = arith.mulf %1464, %1372 : vector<1x128xf32>
    %cst_394 = arith.constant 1.000000e+00 : f32
    %1466 = vector.broadcast %cst_394 : f32 to vector<1x1xf32>
    %1467 = arith.subf %1466, %1462 : vector<1x1xf32>
    %1468 = vector.broadcast %1467 : vector<1x1xf32> to vector<1x128xf32>
    %1469 = arith.mulf %1468, %1373 : vector<1x128xf32>
    %1470 = arith.addf %1465, %1469 : vector<1x128xf32>
    %cst_395 = arith.constant dense<0xFF800000> : vector<1xf32>
    %1471 = vector.multi_reduction <maximumf>, %1470, %cst_395 [1] : vector<1x128xf32> to vector<1xf32>
    %1472 = vector.shape_cast %1471 : vector<1xf32> to vector<1x1xf32>
    %1473 = vector.broadcast %1472 : vector<1x1xf32> to vector<1x128xf32>
    %1474 = arith.cmpf oeq, %1470, %1473 : vector<1x128xf32>
    %c128_i32_396 = arith.constant 128 : i32
    %1475 = vector.broadcast %c128_i32_396 : i32 to vector<1x128xi32>
    %1476 = arith.select %1474, %0, %1475 : vector<1x128xi1>, vector<1x128xi32>
    %cst_397 = arith.constant dense<2147483647> : vector<1xi32>
    %1477 = vector.multi_reduction <minsi>, %1476, %cst_397 [1] : vector<1x128xi32> to vector<1xi32>
    %1478 = vector.shape_cast %1477 : vector<1xi32> to vector<1x1xi32>
    %1479 = vector.broadcast %1478 : vector<1x1xi32> to vector<1x128xi32>
    %1480 = arith.cmpi eq, %0, %1479 : vector<1x128xi32>
    %1481 = arith.extui %1480 : vector<1x128xi1> to vector<1x128xi32>
    %1482 = arith.sitofp %1481 : vector<1x128xi32> to vector<1x128xf32>
    %cst_398 = arith.constant dense<0.000000e+00> : vector<1x32xf32>
    %1483 = tpu.matmul %1482, %3, %cst_398 {dimension_numbers = #tpu.dot_dimension_numbers<[1], [0], [0], [1], [0, 0, 1, 1], [], []>} : vector<1x128xf32>, vector<128x32xf32>, vector<1x32xf32> -> vector<1x32xf32>
    %cst_399 = arith.constant 2.000000e+00 : f32
    %1484 = vector.broadcast %cst_399 : f32 to vector<1x1xf32>
    %1485 = arith.mulf %1484, %1462 : vector<1x1xf32>
    %cst_400 = arith.constant 1.000000e+00 : f32
    %1486 = vector.broadcast %cst_400 : f32 to vector<1x1xf32>
    %1487 = arith.subf %1485, %1486 : vector<1x1xf32>
    %1488 = vector.broadcast %1487 : vector<1x1xf32> to vector<1x32xf32>
    %1489 = arith.mulf %1488, %1483 : vector<1x32xf32>
    %1490 = vector.broadcast %1462 : vector<1x1xf32> to vector<1x128xf32>
    %1491 = arith.mulf %1490, %1482 : vector<1x128xf32>
    %1492 = arith.subf %1280, %1491 : vector<1x128xf32>
    %c6 = arith.constant 6 : index
    %c0_401 = arith.constant 0 : index
    %1493 = vector.load %arg11[%c6, %c0_401] : memref<8x128xf32, #tpu.memory_space<vmem>>, vector<1x128xf32>
    tpu.vector_store %arg11[%c6, %c0_401], %1372 {strides = array<i32>} : memref<8x128xf32, #tpu.memory_space<vmem>>, vector<1x128xf32>,
    %c0_i32_402 = arith.constant 0 : i32
    %1494 = vector.broadcast %c0_i32_402 : i32 to vector<1x128xi32>
    %1495 = arith.cmpi eq, %1, %1494 : vector<1x128xi32>
    %1496 = arith.sitofp %1478 : vector<1x1xi32> to vector<1x1xf32>
    %cst_403 = arith.constant 0.000000e+00 : f32
    %1497 = vector.shape_cast %1496 : vector<1x1xf32> to vector<1x1xf32>
    %1498 = vector.broadcast %1497 : vector<1x1xf32> to vector<1x128xf32>
    %1499 = vector.broadcast %cst_403 : f32 to vector<1x128xf32>
    %1500 = arith.select %1495, %1498, %1499 : vector<1x128xi1>, vector<1x128xf32>
    %c1_i32_404 = arith.constant 1 : i32
    %1501 = vector.broadcast %c1_i32_404 : i32 to vector<1x128xi32>
    %1502 = arith.cmpi eq, %1, %1501 : vector<1x128xi32>
    %cst_405 = arith.constant 0.000000e+00 : f32
    %1503 = vector.shape_cast %1363 : vector<1x1xf32> to vector<1x1xf32>
    %1504 = vector.broadcast %1503 : vector<1x1xf32> to vector<1x128xf32>
    %1505 = vector.broadcast %cst_405 : f32 to vector<1x128xf32>
    %1506 = arith.select %1502, %1504, %1505 : vector<1x128xi1>, vector<1x128xf32>
    %1507 = arith.addf %1500, %1506 : vector<1x128xf32>
    %c2_i32_406 = arith.constant 2 : i32
    %1508 = vector.broadcast %c2_i32_406 : i32 to vector<1x128xi32>
    %1509 = arith.cmpi eq, %1, %1508 : vector<1x128xi32>
    %cst_407 = arith.constant 0.000000e+00 : f32
    %1510 = vector.shape_cast %1462 : vector<1x1xf32> to vector<1x1xf32>
    %1511 = vector.broadcast %1510 : vector<1x1xf32> to vector<1x128xf32>
    %1512 = vector.broadcast %cst_407 : f32 to vector<1x128xf32>
    %1513 = arith.select %1509, %1511, %1512 : vector<1x128xi1>, vector<1x128xf32>
    %1514 = arith.addf %1507, %1513 : vector<1x128xf32>
    %c6_408 = arith.constant 6 : index
    %c0_409 = arith.constant 0 : index
    %1515 = vector.load %arg12[%c6_408, %c0_409] : memref<8x128xf32, #tpu.memory_space<vmem>>, vector<1x128xf32>
    tpu.vector_store %arg12[%c6_408, %c0_409], %1514 {strides = array<i32>} : memref<8x128xf32, #tpu.memory_space<vmem>>, vector<1x128xf32>,
    %cst_410 = arith.constant dense<0.000000e+00> : vector<1x128xf32>
    %1516 = tpu.matmul %1489, %15, %cst_410 {dimension_numbers = #tpu.dot_dimension_numbers<[1], [0], [0], [1], [0, 0, 1, 1], [], []>} : vector<1x32xf32>, vector<32x128xf32>, vector<1x128xf32> -> vector<1x128xf32>
    %1517 = arith.addf %1516, %17 : vector<1x128xf32>
    %1518 = vector.extract_strided_slice %1517 {offsets = [0, 0], sizes = [1, 32], strides = [1, 1]} : vector<1x128xf32> to vector<1x32xf32>
    %1519 = vector.extract_strided_slice %13 {offsets = [0, 0], sizes = [1, 32], strides = [1, 1]} : vector<1x128xf32> to vector<1x32xf32>
    %1520 = arith.addf %1518, %1519 : vector<1x32xf32>
    %1521 = arith.negf %1520 : vector<1x32xf32>
    %1522 = math.exp %1521 : vector<1x32xf32>
    %cst_411 = arith.constant 1.000000e+00 : f32
    %1523 = vector.broadcast %cst_411 : f32 to vector<1x32xf32>
    %1524 = arith.addf %1523, %1522 : vector<1x32xf32>
    %1525 = arith.divf %1523, %1524 : vector<1x32xf32>
    %1526 = vector.extract_strided_slice %1517 {offsets = [0, 32], sizes = [1, 32], strides = [1, 1]} : vector<1x128xf32> to vector<1x32xf32>
    %1527 = vector.extract_strided_slice %13 {offsets = [0, 32], sizes = [1, 32], strides = [1, 1]} : vector<1x128xf32> to vector<1x32xf32>
    %1528 = arith.addf %1526, %1527 : vector<1x32xf32>
    %1529 = arith.negf %1528 : vector<1x32xf32>
    %1530 = math.exp %1529 : vector<1x32xf32>
    %cst_412 = arith.constant 1.000000e+00 : f32
    %1531 = vector.broadcast %cst_412 : f32 to vector<1x32xf32>
    %1532 = arith.addf %1531, %1530 : vector<1x32xf32>
    %1533 = arith.divf %1531, %1532 : vector<1x32xf32>
    %1534 = vector.extract_strided_slice %1517 {offsets = [0, 64], sizes = [1, 32], strides = [1, 1]} : vector<1x128xf32> to vector<1x32xf32>
    %1535 = vector.extract_strided_slice %13 {offsets = [0, 64], sizes = [1, 32], strides = [1, 1]} : vector<1x128xf32> to vector<1x32xf32>
    %1536 = arith.mulf %1525, %1535 : vector<1x32xf32>
    %1537 = arith.addf %1534, %1536 : vector<1x32xf32>
    %1538 = math.tanh %1537 : vector<1x32xf32>
    %cst_413 = arith.constant 1.000000e+00 : f32
    %1539 = vector.broadcast %cst_413 : f32 to vector<1x32xf32>
    %1540 = arith.subf %1539, %1533 : vector<1x32xf32>
    %1541 = arith.mulf %1540, %1538 : vector<1x32xf32>
    %1542 = arith.mulf %1533, %7 : vector<1x32xf32>
    %1543 = arith.addf %1541, %1542 : vector<1x32xf32>
    %cst_414 = arith.constant dense<0.000000e+00> : vector<1x128xf32>
    %1544 = tpu.matmul %1543, %27, %cst_414 {dimension_numbers = #tpu.dot_dimension_numbers<[1], [0], [0], [1], [0, 0, 1, 1], [], []>} : vector<1x32xf32>, vector<32x128xf32>, vector<1x128xf32> -> vector<1x128xf32>
    %1545 = arith.addf %1544, %29 : vector<1x128xf32>
    %1546 = vector.extract_strided_slice %1545 {offsets = [0, 0], sizes = [1, 32], strides = [1, 1]} : vector<1x128xf32> to vector<1x32xf32>
    %1547 = vector.extract_strided_slice %25 {offsets = [0, 0], sizes = [1, 32], strides = [1, 1]} : vector<1x128xf32> to vector<1x32xf32>
    %1548 = arith.addf %1546, %1547 : vector<1x32xf32>
    %1549 = arith.negf %1548 : vector<1x32xf32>
    %1550 = math.exp %1549 : vector<1x32xf32>
    %cst_415 = arith.constant 1.000000e+00 : f32
    %1551 = vector.broadcast %cst_415 : f32 to vector<1x32xf32>
    %1552 = arith.addf %1551, %1550 : vector<1x32xf32>
    %1553 = arith.divf %1551, %1552 : vector<1x32xf32>
    %1554 = vector.extract_strided_slice %1545 {offsets = [0, 32], sizes = [1, 32], strides = [1, 1]} : vector<1x128xf32> to vector<1x32xf32>
    %1555 = vector.extract_strided_slice %25 {offsets = [0, 32], sizes = [1, 32], strides = [1, 1]} : vector<1x128xf32> to vector<1x32xf32>
    %1556 = arith.addf %1554, %1555 : vector<1x32xf32>
    %1557 = arith.negf %1556 : vector<1x32xf32>
    %1558 = math.exp %1557 : vector<1x32xf32>
    %cst_416 = arith.constant 1.000000e+00 : f32
    %1559 = vector.broadcast %cst_416 : f32 to vector<1x32xf32>
    %1560 = arith.addf %1559, %1558 : vector<1x32xf32>
    %1561 = arith.divf %1559, %1560 : vector<1x32xf32>
    %1562 = vector.extract_strided_slice %1545 {offsets = [0, 64], sizes = [1, 32], strides = [1, 1]} : vector<1x128xf32> to vector<1x32xf32>
    %1563 = vector.extract_strided_slice %25 {offsets = [0, 64], sizes = [1, 32], strides = [1, 1]} : vector<1x128xf32> to vector<1x32xf32>
    %1564 = arith.mulf %1553, %1563 : vector<1x32xf32>
    %1565 = arith.addf %1562, %1564 : vector<1x32xf32>
    %1566 = math.tanh %1565 : vector<1x32xf32>
    %cst_417 = arith.constant 1.000000e+00 : f32
    %1567 = vector.broadcast %cst_417 : f32 to vector<1x32xf32>
    %1568 = arith.subf %1567, %1561 : vector<1x32xf32>
    %1569 = arith.mulf %1568, %1566 : vector<1x32xf32>
    %1570 = arith.mulf %1561, %19 : vector<1x32xf32>
    %1571 = arith.addf %1569, %1570 : vector<1x32xf32>
    %cst_418 = arith.constant dense<0.000000e+00> : vector<1x256xf32>
    %1572 = tpu.matmul %1571, %4, %cst_418 {dimension_numbers = #tpu.dot_dimension_numbers<[1], [0], [0], [1], [0, 0, 1, 1], [], []>} : vector<1x32xf32>, vector<32x256xf32>, vector<1x256xf32> -> vector<1x256xf32>
    %1573 = arith.addf %1572, %5 : vector<1x256xf32>
    %1574 = vector.extract_strided_slice %1573 {offsets = [0, 0], sizes = [1, 128], strides = [1, 1]} : vector<1x256xf32> to vector<1x128xf32>
    %1575 = vector.extract_strided_slice %1573 {offsets = [0, 128], sizes = [1, 1], strides = [1, 1]} : vector<1x256xf32> to vector<1x1xf32>
    %cst_419 = arith.constant dense<0xFF800000> : vector<1xf32>
    %1576 = vector.multi_reduction <maximumf>, %1574, %cst_419 [1] : vector<1x128xf32> to vector<1xf32>
    %1577 = vector.shape_cast %1576 : vector<1xf32> to vector<1x1xf32>
    %1578 = vector.broadcast %1577 : vector<1x1xf32> to vector<1x128xf32>
    %1579 = arith.subf %1574, %1578 : vector<1x128xf32>
    %1580 = math.exp %1579 : vector<1x128xf32>
    %cst_420 = arith.constant dense<0.000000e+00> : vector<1xf32>
    %1581 = vector.multi_reduction <add>, %1580, %cst_420 [1] : vector<1x128xf32> to vector<1xf32>
    %1582 = vector.shape_cast %1581 : vector<1xf32> to vector<1x1xf32>
    %1583 = vector.broadcast %1582 : vector<1x1xf32> to vector<1x128xf32>
    %1584 = arith.divf %1580, %1583 : vector<1x128xf32>
    %1585 = arith.mulf %1584, %1492 : vector<1x128xf32>
    %cst_421 = arith.constant 0.000000e+00 : f32
    %1586 = vector.broadcast %cst_421 : f32 to vector<1x128xf32>
    %cst_422 = arith.constant dense<0xFF800000> : vector<1xf32>
    %1587 = vector.multi_reduction <maximumf>, %1585, %cst_422 [1] : vector<1x128xf32> to vector<1xf32>
    %1588 = vector.shape_cast %1587 : vector<1xf32> to vector<1x1xf32>
    %1589 = vector.broadcast %1588 : vector<1x1xf32> to vector<1x128xf32>
    %1590 = arith.cmpf oeq, %1585, %1589 : vector<1x128xf32>
    %c128_i32_423 = arith.constant 128 : i32
    %1591 = vector.broadcast %c128_i32_423 : i32 to vector<1x128xi32>
    %1592 = arith.select %1590, %0, %1591 : vector<1x128xi1>, vector<1x128xi32>
    %cst_424 = arith.constant dense<2147483647> : vector<1xi32>
    %1593 = vector.multi_reduction <minsi>, %1592, %cst_424 [1] : vector<1x128xi32> to vector<1xi32>
    %1594 = vector.shape_cast %1593 : vector<1xi32> to vector<1x1xi32>
    %1595 = vector.broadcast %1594 : vector<1x1xi32> to vector<1x128xi32>
    %1596 = arith.cmpi eq, %0, %1595 : vector<1x128xi32>
    %1597 = arith.extui %1596 : vector<1x128xi1> to vector<1x128xi32>
    %1598 = arith.sitofp %1597 : vector<1x128xi32> to vector<1x128xf32>
    %1599 = arith.addf %1586, %1598 : vector<1x128xf32>
    %cst_425 = arith.constant 0.000000e+00 : f32
    %1600 = vector.broadcast %cst_425 : f32 to vector<1x128xf32>
    %1601 = arith.cmpf ogt, %1598, %1600 : vector<1x128xf32>
    %cst_426 = arith.constant -1.000000e+30 : f32
    %1602 = vector.broadcast %cst_426 : f32 to vector<1x128xf32>
    %1603 = arith.select %1601, %1602, %1585 : vector<1x128xi1>, vector<1x128xf32>
    %cst_427 = arith.constant dense<0xFF800000> : vector<1xf32>
    %1604 = vector.multi_reduction <maximumf>, %1603, %cst_427 [1] : vector<1x128xf32> to vector<1xf32>
    %1605 = vector.shape_cast %1604 : vector<1xf32> to vector<1x1xf32>
    %1606 = vector.broadcast %1605 : vector<1x1xf32> to vector<1x128xf32>
    %1607 = arith.cmpf oeq, %1603, %1606 : vector<1x128xf32>
    %c128_i32_428 = arith.constant 128 : i32
    %1608 = vector.broadcast %c128_i32_428 : i32 to vector<1x128xi32>
    %1609 = arith.select %1607, %0, %1608 : vector<1x128xi1>, vector<1x128xi32>
    %cst_429 = arith.constant dense<2147483647> : vector<1xi32>
    %1610 = vector.multi_reduction <minsi>, %1609, %cst_429 [1] : vector<1x128xi32> to vector<1xi32>
    %1611 = vector.shape_cast %1610 : vector<1xi32> to vector<1x1xi32>
    %1612 = vector.broadcast %1611 : vector<1x1xi32> to vector<1x128xi32>
    %1613 = arith.cmpi eq, %0, %1612 : vector<1x128xi32>
    %1614 = arith.extui %1613 : vector<1x128xi1> to vector<1x128xi32>
    %1615 = arith.sitofp %1614 : vector<1x128xi32> to vector<1x128xf32>
    %1616 = arith.addf %1599, %1615 : vector<1x128xf32>
    %cst_430 = arith.constant 0.000000e+00 : f32
    %1617 = vector.broadcast %cst_430 : f32 to vector<1x128xf32>
    %1618 = arith.cmpf ogt, %1615, %1617 : vector<1x128xf32>
    %cst_431 = arith.constant -1.000000e+30 : f32
    %1619 = vector.broadcast %cst_431 : f32 to vector<1x128xf32>
    %1620 = arith.select %1618, %1619, %1603 : vector<1x128xi1>, vector<1x128xf32>
    %cst_432 = arith.constant dense<0xFF800000> : vector<1xf32>
    %1621 = vector.multi_reduction <maximumf>, %1620, %cst_432 [1] : vector<1x128xf32> to vector<1xf32>
    %1622 = vector.shape_cast %1621 : vector<1xf32> to vector<1x1xf32>
    %1623 = vector.broadcast %1622 : vector<1x1xf32> to vector<1x128xf32>
    %1624 = arith.cmpf oeq, %1620, %1623 : vector<1x128xf32>
    %c128_i32_433 = arith.constant 128 : i32
    %1625 = vector.broadcast %c128_i32_433 : i32 to vector<1x128xi32>
    %1626 = arith.select %1624, %0, %1625 : vector<1x128xi1>, vector<1x128xi32>
    %cst_434 = arith.constant dense<2147483647> : vector<1xi32>
    %1627 = vector.multi_reduction <minsi>, %1626, %cst_434 [1] : vector<1x128xi32> to vector<1xi32>
    %1628 = vector.shape_cast %1627 : vector<1xi32> to vector<1x1xi32>
    %1629 = vector.broadcast %1628 : vector<1x1xi32> to vector<1x128xi32>
    %1630 = arith.cmpi eq, %0, %1629 : vector<1x128xi32>
    %1631 = arith.extui %1630 : vector<1x128xi1> to vector<1x128xi32>
    %1632 = arith.sitofp %1631 : vector<1x128xi32> to vector<1x128xf32>
    %1633 = arith.addf %1616, %1632 : vector<1x128xf32>
    %cst_435 = arith.constant 0.000000e+00 : f32
    %1634 = vector.broadcast %cst_435 : f32 to vector<1x128xf32>
    %1635 = arith.cmpf ogt, %1632, %1634 : vector<1x128xf32>
    %cst_436 = arith.constant -1.000000e+30 : f32
    %1636 = vector.broadcast %cst_436 : f32 to vector<1x128xf32>
    %1637 = arith.select %1635, %1636, %1620 : vector<1x128xi1>, vector<1x128xf32>
    %cst_437 = arith.constant dense<0xFF800000> : vector<1xf32>
    %1638 = vector.multi_reduction <maximumf>, %1637, %cst_437 [1] : vector<1x128xf32> to vector<1xf32>
    %1639 = vector.shape_cast %1638 : vector<1xf32> to vector<1x1xf32>
    %1640 = vector.broadcast %1639 : vector<1x1xf32> to vector<1x128xf32>
    %1641 = arith.cmpf oeq, %1637, %1640 : vector<1x128xf32>
    %c128_i32_438 = arith.constant 128 : i32
    %1642 = vector.broadcast %c128_i32_438 : i32 to vector<1x128xi32>
    %1643 = arith.select %1641, %0, %1642 : vector<1x128xi1>, vector<1x128xi32>
    %cst_439 = arith.constant dense<2147483647> : vector<1xi32>
    %1644 = vector.multi_reduction <minsi>, %1643, %cst_439 [1] : vector<1x128xi32> to vector<1xi32>
    %1645 = vector.shape_cast %1644 : vector<1xi32> to vector<1x1xi32>
    %1646 = vector.broadcast %1645 : vector<1x1xi32> to vector<1x128xi32>
    %1647 = arith.cmpi eq, %0, %1646 : vector<1x128xi32>
    %1648 = arith.extui %1647 : vector<1x128xi1> to vector<1x128xi32>
    %1649 = arith.sitofp %1648 : vector<1x128xi32> to vector<1x128xf32>
    %1650 = arith.addf %1633, %1649 : vector<1x128xf32>
    %cst_440 = arith.constant 0.000000e+00 : f32
    %1651 = vector.broadcast %cst_440 : f32 to vector<1x128xf32>
    %1652 = arith.cmpf ogt, %1649, %1651 : vector<1x128xf32>
    %cst_441 = arith.constant -1.000000e+30 : f32
    %1653 = vector.broadcast %cst_441 : f32 to vector<1x128xf32>
    %1654 = arith.select %1652, %1653, %1637 : vector<1x128xi1>, vector<1x128xf32>
    %cst_442 = arith.constant dense<0xFF800000> : vector<1xf32>
    %1655 = vector.multi_reduction <maximumf>, %1654, %cst_442 [1] : vector<1x128xf32> to vector<1xf32>
    %1656 = vector.shape_cast %1655 : vector<1xf32> to vector<1x1xf32>
    %1657 = vector.broadcast %1656 : vector<1x1xf32> to vector<1x128xf32>
    %1658 = arith.cmpf oeq, %1654, %1657 : vector<1x128xf32>
    %c128_i32_443 = arith.constant 128 : i32
    %1659 = vector.broadcast %c128_i32_443 : i32 to vector<1x128xi32>
    %1660 = arith.select %1658, %0, %1659 : vector<1x128xi1>, vector<1x128xi32>
    %cst_444 = arith.constant dense<2147483647> : vector<1xi32>
    %1661 = vector.multi_reduction <minsi>, %1660, %cst_444 [1] : vector<1x128xi32> to vector<1xi32>
    %1662 = vector.shape_cast %1661 : vector<1xi32> to vector<1x1xi32>
    %1663 = vector.broadcast %1662 : vector<1x1xi32> to vector<1x128xi32>
    %1664 = arith.cmpi eq, %0, %1663 : vector<1x128xi32>
    %1665 = arith.extui %1664 : vector<1x128xi1> to vector<1x128xi32>
    %1666 = arith.sitofp %1665 : vector<1x128xi32> to vector<1x128xf32>
    %1667 = arith.addf %1650, %1666 : vector<1x128xf32>
    %1668 = arith.mulf %2, %1667 : vector<1x128xf32>
    %cst_445 = arith.constant dense<0.000000e+00> : vector<1xf32>
    %1669 = vector.multi_reduction <add>, %1668, %cst_445 [1] : vector<1x128xf32> to vector<1xf32>
    %1670 = vector.shape_cast %1669 : vector<1xf32> to vector<1x1xf32>
    %cst_446 = arith.constant 0.000000e+00 : f32
    %1671 = vector.broadcast %cst_446 : f32 to vector<1x1xf32>
    %1672 = arith.cmpf ogt, %1670, %1671 : vector<1x1xf32>
    %1673 = arith.extui %1672 : vector<1x1xi1> to vector<1x1xi32>
    %1674 = arith.sitofp %1673 : vector<1x1xi32> to vector<1x1xf32>
    %1675 = vector.broadcast %1674 : vector<1x1xf32> to vector<1x128xf32>
    %1676 = arith.mulf %1675, %1668 : vector<1x128xf32>
    %1677 = arith.mulf %1676, %1584 : vector<1x128xf32>
    %cst_447 = arith.constant 1.000000e+00 : f32
    %1678 = vector.broadcast %cst_447 : f32 to vector<1x1xf32>
    %1679 = arith.subf %1678, %1674 : vector<1x1xf32>
    %1680 = vector.broadcast %1679 : vector<1x1xf32> to vector<1x128xf32>
    %1681 = arith.mulf %1680, %1585 : vector<1x128xf32>
    %1682 = arith.addf %1677, %1681 : vector<1x128xf32>
    %cst_448 = arith.constant dense<0xFF800000> : vector<1xf32>
    %1683 = vector.multi_reduction <maximumf>, %1682, %cst_448 [1] : vector<1x128xf32> to vector<1xf32>
    %1684 = vector.shape_cast %1683 : vector<1xf32> to vector<1x1xf32>
    %1685 = vector.broadcast %1684 : vector<1x1xf32> to vector<1x128xf32>
    %1686 = arith.cmpf oeq, %1682, %1685 : vector<1x128xf32>
    %c128_i32_449 = arith.constant 128 : i32
    %1687 = vector.broadcast %c128_i32_449 : i32 to vector<1x128xi32>
    %1688 = arith.select %1686, %0, %1687 : vector<1x128xi1>, vector<1x128xi32>
    %cst_450 = arith.constant dense<2147483647> : vector<1xi32>
    %1689 = vector.multi_reduction <minsi>, %1688, %cst_450 [1] : vector<1x128xi32> to vector<1xi32>
    %1690 = vector.shape_cast %1689 : vector<1xi32> to vector<1x1xi32>
    %1691 = vector.broadcast %1690 : vector<1x1xi32> to vector<1x128xi32>
    %1692 = arith.cmpi eq, %0, %1691 : vector<1x128xi32>
    %1693 = arith.extui %1692 : vector<1x128xi1> to vector<1x128xi32>
    %1694 = arith.sitofp %1693 : vector<1x128xi32> to vector<1x128xf32>
    %1695 = vector.broadcast %1674 : vector<1x1xf32> to vector<1x128xf32>
    %1696 = arith.mulf %1695, %1694 : vector<1x128xf32>
    %1697 = arith.subf %1492, %1696 : vector<1x128xf32>
    %c7 = arith.constant 7 : index
    %c0_451 = arith.constant 0 : index
    %1698 = vector.load %arg11[%c7, %c0_451] : memref<8x128xf32, #tpu.memory_space<vmem>>, vector<1x128xf32>
    tpu.vector_store %arg11[%c7, %c0_451], %1584 {strides = array<i32>} : memref<8x128xf32, #tpu.memory_space<vmem>>, vector<1x128xf32>,
    %c0_i32_452 = arith.constant 0 : i32
    %1699 = vector.broadcast %c0_i32_452 : i32 to vector<1x128xi32>
    %1700 = arith.cmpi eq, %1, %1699 : vector<1x128xi32>
    %1701 = arith.sitofp %1690 : vector<1x1xi32> to vector<1x1xf32>
    %cst_453 = arith.constant 0.000000e+00 : f32
    %1702 = vector.shape_cast %1701 : vector<1x1xf32> to vector<1x1xf32>
    %1703 = vector.broadcast %1702 : vector<1x1xf32> to vector<1x128xf32>
    %1704 = vector.broadcast %cst_453 : f32 to vector<1x128xf32>
    %1705 = arith.select %1700, %1703, %1704 : vector<1x128xi1>, vector<1x128xf32>
    %c1_i32_454 = arith.constant 1 : i32
    %1706 = vector.broadcast %c1_i32_454 : i32 to vector<1x128xi32>
    %1707 = arith.cmpi eq, %1, %1706 : vector<1x128xi32>
    %cst_455 = arith.constant 0.000000e+00 : f32
    %1708 = vector.shape_cast %1575 : vector<1x1xf32> to vector<1x1xf32>
    %1709 = vector.broadcast %1708 : vector<1x1xf32> to vector<1x128xf32>
    %1710 = vector.broadcast %cst_455 : f32 to vector<1x128xf32>
    %1711 = arith.select %1707, %1709, %1710 : vector<1x128xi1>, vector<1x128xf32>
    %1712 = arith.addf %1705, %1711 : vector<1x128xf32>
    %c2_i32_456 = arith.constant 2 : i32
    %1713 = vector.broadcast %c2_i32_456 : i32 to vector<1x128xi32>
    %1714 = arith.cmpi eq, %1, %1713 : vector<1x128xi32>
    %cst_457 = arith.constant 0.000000e+00 : f32
    %1715 = vector.shape_cast %1674 : vector<1x1xf32> to vector<1x1xf32>
    %1716 = vector.broadcast %1715 : vector<1x1xf32> to vector<1x128xf32>
    %1717 = vector.broadcast %cst_457 : f32 to vector<1x128xf32>
    %1718 = arith.select %1714, %1716, %1717 : vector<1x128xi1>, vector<1x128xf32>
    %1719 = arith.addf %1712, %1718 : vector<1x128xf32>
    %c7_458 = arith.constant 7 : index
    %c0_459 = arith.constant 0 : index
    %1720 = vector.load %arg12[%c7_458, %c0_459] : memref<8x128xf32, #tpu.memory_space<vmem>>, vector<1x128xf32>
    tpu.vector_store %arg12[%c7_458, %c0_459], %1719 {strides = array<i32>} : memref<8x128xf32, #tpu.memory_space<vmem>>, vector<1x128xf32>,
    %c0_460 = arith.constant 0 : index
    %c0_461 = arith.constant 0 : index
    %1721 = vector.load %arg13[%c0_460, %c0_461] : memref<1x128xf32, #tpu.memory_space<vmem>>, vector<1x128xf32>
    tpu.vector_store %arg13[%c0_460, %c0_461], %1697 {strides = array<i32>} : memref<1x128xf32, #tpu.memory_space<vmem>>, vector<1x128xf32>,
    return
  }
}

</mosaic_0001>

<llo_original>
// kernel: tpu_custom_call.1
$region0: #{tpu_custom_call.1}
  #allocation0 [shape = 'u32[]', space=smem, size = 0x4, offset = 0x4, fixed_abs, tag = 'smem constant byte address 0x4 - core index']
  #allocation1 [shape = 'u32[144,128]{1,0:T(1,128)}', space=vmem, size = 0x12000, scoped, tag = 'internal scratch']
  %s0 = inlined_call_operand.vmem [shape: f32[2,32,128], index: 0, kind: input, shape index: {}]
  %s1 = inlined_call_operand.vmem [shape: f32[2,1,128], index: 1, kind: input, shape index: {}]
  %s2 = inlined_call_operand.vmem [shape: f32[2,32,128], index: 2, kind: input, shape index: {}]
  %s3 = inlined_call_operand.vmem [shape: f32[2,1,128], index: 3, kind: input, shape index: {}]
  %s4 = inlined_call_operand.hbm [shape: f32[32,256], index: 4, kind: input, shape index: {}]
  %s5 = inlined_call_operand.vmem [shape: f32[1,256], index: 5, kind: input, shape index: {}]
  %s6 = inlined_call_operand.vmem [shape: f32[128,32], index: 6, kind: input, shape index: {}]
  %s7 = inlined_call_operand.vmem [shape: f32[1,128], index: 7, kind: input, shape index: {}]
  %s8 = inlined_call_operand.vmem [shape: f32[1,128], index: 8, kind: input, shape index: {}]
  %s9 = inlined_call_operand.vmem [shape: f32[1,32], index: 9, kind: input, shape index: {}]
  %s10 = inlined_call_operand.vmem [shape: f32[2,1,32], index: 10, kind: input, shape index: {}]
  %s11 = inlined_call_operand.hbm [shape: f32[8,128], index: 11, kind: output, shape index: {0}]
  %s12 = inlined_call_operand.hbm [shape: f32[8,128], index: 12, kind: output, shape index: {1}]
  %s13 = inlined_call_operand.hbm [shape: f32[1,128], index: 13, kind: output, shape index: {2}]
  %14 = xla_tuple %s11, %s12, %s13
  %s15 = sld [smem:[#allocation0]]
  $region74: #{tpu_custom_call.1} parent=0
    _
  %s17 = ssub.s32 1, %s15
  %s18 = scalar_select 0, %s17, %s15
  $region1: #{tpu_custom_call.1} parent=0
    #allocation2 [shape = 'u8[32768]{0}', space=vmem, size = 0x8000, scoped, tag = 'input window, operand 4, single buffered']
    #allocation3 [shape = 's32[1]{0}', space=sflag, size = 0x4, scoped, tag = 'scoped memory for tpu_custom_call.1']
    #allocation4 [shape = 's32[1]{0}', space=sflag, size = 0x4, scoped, tag = 'scoped memory for tpu_custom_call.1']
    #allocation5 [shape = 'u8[4096]{0}', space=vmem, size = 0x1000, scoped, tag = 'output window, operand 0, single buffered']
    #allocation6 [shape = 'u8[4096]{0}', space=vmem, size = 0x1000, scoped, tag = 'output window, operand 1, single buffered']
    #allocation7 [shape = 's32[1]{0}', space=sflag, size = 0x4, scoped, tag = 'scoped memory for tpu_custom_call.1']
    #allocation8 [shape = 'u8[512]{0}', space=vmem, size = 0x400, scoped, tag = 'output window, operand 2, single buffered']
    %19 = vsyncpa [#allocation3], 0
    %20 = vsyncpa [#allocation4], 0
    %21 = vsyncpa [#allocation7], 0
    // Predicated region
    $region2: #{tpu_custom_call.1} parent=1 // pred_check
      _
    $region3: #{tpu_custom_call.1} parent=1 // pred_check_branch
      %23 = sbr.rel (0) target = $region5
    $region4: #{tpu_custom_call.1} parent=1 // pred_region
      _
    $region5: #{tpu_custom_call.1} parent=1 // pred_fallthru
      _
    // Predicated region
    $region6: #{tpu_custom_call.1} parent=1 // pred_check
      _
    $region7: #{tpu_custom_call.1} parent=1 // pred_check_branch
      %25 = sbr.rel (0) target = $region9
    $region8: #{tpu_custom_call.1} parent=1 // pred_region
      _
    $region9: #{tpu_custom_call.1} parent=1 // pred_fallthru
      _
    // Predicated region
    $region10: #{tpu_custom_call.1} parent=1 // pred_check
      _
    $region11: #{tpu_custom_call.1} parent=1 // pred_check_branch
      %27 = sbr.rel (0) target = $region13
    $region12: #{tpu_custom_call.1} parent=1 // pred_region
      _
    $region13: #{tpu_custom_call.1} parent=1 // pred_fallthru
      _
    // Predicated region
    $region14: #{tpu_custom_call.1} parent=1 // pred_check
      _
    $region15: #{tpu_custom_call.1} parent=1 // pred_check_branch
      %29 = sbr.rel (0) target = $region17
    $region16: #{tpu_custom_call.1} parent=1 // pred_region
      _
    $region17: #{tpu_custom_call.1} parent=1 // pred_fallthru
      _
    // Predicated region
    $region18: #{tpu_custom_call.1} parent=1 // pred_check
      _
    $region19: #{tpu_custom_call.1} parent=1 // pred_check_branch
      %31 = sbr.rel (0) target = $region21
    $region20: #{tpu_custom_call.1} parent=1 // pred_region
      %s33 = ssub.s32 1024, 1024
      %34 = vsyncadd [#allocation3], %s33
      %s35 = sshll.u32 [#allocation2], 4
      %s36 = int_to_ptr.vmem [resolvable:$true] %s35
      %41 = dma.hbm_to_vmem [thread:$0]  %s4, 1024, %s36, [#allocation3], 256, 256, 16
    $region21: #{tpu_custom_call.1} parent=1 // pred_fallthru
      _
    // Predicated region
    $region22: #{tpu_custom_call.1} parent=1 // pred_check
      _
    $region23: #{tpu_custom_call.1} parent=1 // pred_check_branch
      %43 = sbr.rel (0) target = $region25
    $region24: #{tpu_custom_call.1} parent=1 // pred_region
      _
    $region25: #{tpu_custom_call.1} parent=1 // pred_fallthru
      _
    // Predicated region
    $region26: #{tpu_custom_call.1} parent=1 // pred_check
      _
    $region27: #{tpu_custom_call.1} parent=1 // pred_check_branch
      %45 = sbr.rel (0) target = $region29
    $region28: #{tpu_custom_call.1} parent=1 // pred_region
      _
    $region29: #{tpu_custom_call.1} parent=1 // pred_fallthru
      _
    // Predicated region
    $region30: #{tpu_custom_call.1} parent=1 // pred_check
      _
    $region31: #{tpu_custom_call.1} parent=1 // pred_check_branch
      %47 = sbr.rel (0) target = $region33
    $region32: #{tpu_custom_call.1} parent=1 // pred_region
      _
    $region33: #{tpu_custom_call.1} parent=1 // pred_fallthru
      _
    // Predicated region
    $region34: #{tpu_custom_call.1} parent=1 // pred_check
      _
    $region35: #{tpu_custom_call.1} parent=1 // pred_check_branch
      %49 = sbr.rel (0) target = $region37
    $region36: #{tpu_custom_call.1} parent=1 // pred_region
      _
    $region37: #{tpu_custom_call.1} parent=1 // pred_fallthru
      _
    // Predicated region
    $region38: #{tpu_custom_call.1} parent=1 // pred_check
      _
    $region39: #{tpu_custom_call.1} parent=1 // pred_check_branch
      %51 = sbr.rel (0) target = $region41
    $region40: #{tpu_custom_call.1} parent=1 // pred_region
      _
    $region41: #{tpu_custom_call.1} parent=1 // pred_fallthru
      _
    // Predicated region
    $region42: #{tpu_custom_call.1} parent=1 // pred_check
      _
    $region43: #{tpu_custom_call.1} parent=1 // pred_check_branch
      %53 = sbr.rel (0) target = $region45
    $region44: #{tpu_custom_call.1} parent=1 // pred_region
      _
    $region45: #{tpu_custom_call.1} parent=1 // pred_fallthru
      _
    // Predicated region
    $region46: #{tpu_custom_call.1} parent=1 // pred_check
      _
    $region47: #{tpu_custom_call.1} parent=1 // pred_check_branch
      %55 = sbr.rel (0) target = $region49
    $region48: #{tpu_custom_call.1} parent=1 // pred_region
      %56 = dma.done [#allocation3], 1024
    $region49: #{tpu_custom_call.1} parent=1 // pred_fallthru
      _
    %v57 = vlaneseq
    %v58 = vand.u32 %v57, 127
    %v59 = vld [vmem:[%s7] sm:$0x1]
    %v60 = vld [vmem:[%s6] sm:$0xff]
    %v61 = vld [vmem:[%s6 + $0x8] sm:$0xff]
    %v62 = vld [vmem:[%s6 + $0x10] sm:$0xff]
    %v63 = vld [vmem:[%s6 + $0x18] sm:$0xff]
    %v64 = vld [vmem:[%s6 + $0x20] sm:$0xff]
    %v65 = vld [vmem:[%s6 + $0x28] sm:$0xff]
    %v66 = vld [vmem:[%s6 + $0x30] sm:$0xff]
    %v67 = vld [vmem:[%s6 + $0x38] sm:$0xff]
    %v68 = vld [vmem:[%s6 + $0x40] sm:$0xff]
    %v69 = vld [vmem:[%s6 + $0x48] sm:$0xff]
    %v70 = vld [vmem:[%s6 + $0x50] sm:$0xff]
    %v71 = vld [vmem:[%s6 + $0x58] sm:$0xff]
    %v72 = vld [vmem:[%s6 + $0x60] sm:$0xff]
    %v73 = vld [vmem:[%s6 + $0x68] sm:$0xff]
    %v74 = vld [vmem:[%s6 + $0x70] sm:$0xff]
    %v75 = vld [vmem:[%s6 + $0x78] sm:$0xff]
    %v76 = vld [vmem:[#allocation2] sm:$0xff]
    %v77 = vld [vmem:[#allocation2 + $0x8] sm:$0xff]
    %v78 = vld [vmem:[#allocation2 + $0x10] sm:$0xff]
    %v79 = vld [vmem:[#allocation2 + $0x18] sm:$0xff]
    %v80 = vld [vmem:[#allocation2 + $0x20] sm:$0xff]
    %v81 = vld [vmem:[#allocation2 + $0x28] sm:$0xff]
    %v82 = vld [vmem:[#allocation2 + $0x30] sm:$0xff]
    %v83 = vld [vmem:[#allocation2 + $0x38] sm:$0xff]
    %v84 = vld [vmem:[%s5] sm:$0x3]
    %v85 = vld [vmem:[%s10] sm:$0x1]
    %v86 = vld [vmem:[%s2] sm:$0xff]
    %v87 = vld [vmem:[%s2 + $0x8] sm:$0xff]
    %v88 = vld [vmem:[%s2 + $0x10] sm:$0xff]
    %v89 = vld [vmem:[%s2 + $0x18] sm:$0xff]
    %v90 = vld [vmem:[%s3] sm:$0x1]
    %vm91 = vcmask 261120
    %v93 = vsel %vm91, %v85, 0
    %95 = vmatprep.subr.mxu0 0.0
    %96 = vmatpush1.msra.mxu0 %v86
    %97 = vmatprep.subr.mxu0 0.0
    %98 = vmatpush1.msra.mxu0 %v87
    %99 = vmatprep.subr.mxu0 0.0
    %100 = vmatpush1.msra.mxu0 %v88
    %101 = vmatprep.subr.mxu0 0.0
    %102 = vmatpush1.msra.mxu0 %v89
    %103 = vmatprep.subr.mxu0 0.0
    %104 = vmatpush1.msra.mxu0 0.0
    %105 = vmatprep.subr.mxu0 0.0
    %106 = vmatpush1.msra.mxu0 0.0
    %107 = vmatprep.subr.mxu0 0.0
    %108 = vmatpush1.msra.mxu0 0.0
    %109 = vmatprep.subr.mxu0 0.0
    %110 = vmatpush1.msra.mxu0 0.0
    %111 = vmatprep.subr.mxu0 0.0
    %112 = vmatpush1.msra.mxu0 0.0
    %113 = vmatprep.subr.mxu0 0.0
    %114 = vmatpush1.msra.mxu0 0.0
    %115 = vmatprep.subr.mxu0 0.0
    %116 = vmatpush1.msra.mxu0 0.0
    %117 = vmatprep.subr.mxu0 0.0
    %118 = vmatpush1.msra.mxu0 0.0
    %119 = vmatprep.subr.mxu0 0.0
    %120 = vmatpush1.msra.mxu0 0.0
    %121 = vmatprep.subr.mxu0 0.0
    %122 = vmatpush1.msra.mxu0 0.0
    %123 = vmatprep.subr.mxu0 0.0
    %124 = vmatpush1.msra.mxu0 0.0
    %125 = vmatprep.subr.mxu0 0.0
    %126 = vmatpush1.msra.mxu0 0.0
    %127 = vmatprep.subr.mxu0 0.0
    %128 = vmatpush1.msra.mxu0 0.0
    %129 = vmatprep.subr.mxu0 0.0
    %130 = vmatpush1.msra.mxu0 0.0
    %131 = vmatprep.subr.mxu0 0.0
    %132 = vmatpush1.msra.mxu0 0.0
    %133 = vmatprep.subr.mxu0 0.0
    %134 = vmatpush1.msra.mxu0 0.0
    %135 = vmatprep.subr.mxu0 0.0
    %136 = vmatpush1.msra.mxu0 0.0
    %137 = vmatprep.subr.mxu0 0.0
    %138 = vmatpush1.msra.mxu0 0.0
    %139 = vmatprep.subr.mxu0 0.0
    %140 = vmatpush1.msra.mxu0 0.0
    %141 = vmatprep.subr.mxu0 0.0
    %142 = vmatpush1.msra.mxu0 0.0
    %143 = vmatprep.subr.mxu0 0.0
    %144 = vmatpush1.msra.mxu0 0.0
    %145 = vmatprep.subr.mxu0 0.0
    %146 = vmatpush1.msra.mxu0 0.0
    %147 = vmatprep.subr.mxu0 0.0
    %148 = vmatpush1.msra.mxu0 0.0
    %149 = vmatprep.subr.mxu0 0.0
    %150 = vmatpush1.msra.mxu0 0.0
    %151 = vmatprep.subr.mxu0 0.0
    %152 = vmatpush1.msra.mxu0 0.0
    %153 = vmatprep.subr.mxu0 0.0
    %154 = vmatpush1.msra.mxu0 0.0
    %155 = vmatprep.subr.mxu0 0.0
    %156 = vmatpush1.msra.mxu0 0.0
    %157 = vmatprep.subr.mxu0 0.0
    %158 = vmatpush1.msra.mxu0 0.0
    %159 = vmatprep.mubr.f32.mxu0 0.0
    %160 = vmatmul.mubr.f32.gmra.mrb[0].mxu0 %v93
    %v161 = vpop.f32.mrb[0].mxu0
    %v162 = vadd.f32 %v90, %v161
    %v163 = vpop.f32.mrb[0].mxu0
    %164 = vdwg.mxu0
    %v165 = vld [vmem:[%s0] sm:$0xff]
    %v166 = vld [vmem:[%s0 + $0x8] sm:$0xff]
    %v167 = vld [vmem:[%s0 + $0x10] sm:$0xff]
    %v168 = vld [vmem:[%s0 + $0x18] sm:$0xff]
    %v169 = vld [vmem:[%s1] sm:$0x1]
    %s170 = scalar_lea.vmem %s10, 1
    %v171 = vld [vmem:[%s170] sm:$0x1]
    %s172 = scalar_lea.vmem %s2, 32
    %v173 = vld [vmem:[%s172] sm:$0xff]
    %v174 = vld [vmem:[%s172 + $0x8] sm:$0xff]
    %v175 = vld [vmem:[%s172 + $0x10] sm:$0xff]
    %v176 = vld [vmem:[%s172 + $0x18] sm:$0xff]
    %s177 = scalar_lea.vmem %s3, 1
    %v178 = vld [vmem:[%s177] sm:$0x1]
    %v180 = vsel %vm91, %v171, 0
    %182 = vmatprep.subr.mxu0 0.0
    %183 = vmatpush1.msra.mxu0 %v173
    %184 = vmatprep.subr.mxu0 0.0
    %185 = vmatpush1.msra.mxu0 %v174
    %186 = vmatprep.subr.mxu0 0.0
    %187 = vmatpush1.msra.mxu0 %v175
    %188 = vmatprep.subr.mxu0 0.0
    %189 = vmatpush1.msra.mxu0 %v176
    %190 = vmatprep.subr.mxu0 0.0
    %191 = vmatpush1.msra.mxu0 0.0
    %192 = vmatprep.subr.mxu0 0.0
    %193 = vmatpush1.msra.mxu0 0.0
    %194 = vmatprep.subr.mxu0 0.0
    %195 = vmatpush1.msra.mxu0 0.0
    %196 = vmatprep.subr.mxu0 0.0
    %197 = vmatpush1.msra.mxu0 0.0
    %198 = vmatprep.subr.mxu0 0.0
    %199 = vmatpush1.msra.mxu0 0.0
    %200 = vmatprep.subr.mxu0 0.0
    %201 = vmatpush1.msra.mxu0 0.0
    %202 = vmatprep.subr.mxu0 0.0
    %203 = vmatpush1.msra.mxu0 0.0
    %204 = vmatprep.subr.mxu0 0.0
    %205 = vmatpush1.msra.mxu0 0.0
    %206 = vmatprep.subr.mxu0 0.0
    %207 = vmatpush1.msra.mxu0 0.0
    %208 = vmatprep.subr.mxu0 0.0
    %209 = vmatpush1.msra.mxu0 0.0
    %210 = vmatprep.subr.mxu0 0.0
    %211 = vmatpush1.msra.mxu0 0.0
    %212 = vmatprep.subr.mxu0 0.0
    %213 = vmatpush1.msra.mxu0 0.0
    %214 = vmatprep.subr.mxu0 0.0
    %215 = vmatpush1.msra.mxu0 0.0
    %216 = vmatprep.subr.mxu0 0.0
    %217 = vmatpush1.msra.mxu0 0.0
    %218 = vmatprep.subr.mxu0 0.0
    %219 = vmatpush1.msra.mxu0 0.0
    %220 = vmatprep.subr.mxu0 0.0
    %221 = vmatpush1.msra.mxu0 0.0
    %222 = vmatprep.subr.mxu0 0.0
    %223 = vmatpush1.msra.mxu0 0.0
    %224 = vmatprep.subr.mxu0 0.0
    %225 = vmatpush1.msra.mxu0 0.0
    %226 = vmatprep.subr.mxu0 0.0
    %227 = vmatpush1.msra.mxu0 0.0
    %228 = vmatprep.subr.mxu0 0.0
    %229 = vmatpush1.msra.mxu0 0.0
    %230 = vmatprep.subr.mxu0 0.0
    %231 = vmatpush1.msra.mxu0 0.0
    %232 = vmatprep.subr.mxu0 0.0
    %233 = vmatpush1.msra.mxu0 0.0
    %234 = vmatprep.subr.mxu0 0.0
    %235 = vmatpush1.msra.mxu0 0.0
    %236 = vmatprep.subr.mxu0 0.0
    %237 = vmatpush1.msra.mxu0 0.0
    %238 = vmatprep.subr.mxu0 0.0
    %239 = vmatpush1.msra.mxu0 0.0
    %240 = vmatprep.subr.mxu0 0.0
    %241 = vmatpush1.msra.mxu0 0.0
    %242 = vmatprep.subr.mxu0 0.0
    %243 = vmatpush1.msra.mxu0 0.0
    %244 = vmatprep.subr.mxu0 0.0
    %245 = vmatpush1.msra.mxu0 0.0
    %246 = vmatprep.mubr.f32.mxu0 0.0
    %247 = vmatmul.mubr.f32.gmra.mrb[0].mxu0 %v180
    %v248 = vpop.f32.mrb[0].mxu0
    %v249 = vadd.f32 %v178, %v248
    %v250 = vpop.f32.mrb[0].mxu0
    %251 = vdwg.mxu0
    %s252 = scalar_lea.vmem %s0, 32
    %v253 = vld [vmem:[%s252] sm:$0xff]
    %v254 = vld [vmem:[%s252 + $0x8] sm:$0xff]
    %v255 = vld [vmem:[%s252 + $0x10] sm:$0xff]
    %v256 = vld [vmem:[%s252 + $0x18] sm:$0xff]
    %s257 = scalar_lea.vmem %s1, 1
    %v258 = vld [vmem:[%s257] sm:$0x1]
    %v259 = vld [vmem:[%s9] sm:$0x1]
    %v260 = vld [vmem:[%s8] sm:$0x1]
    %v262 = vsel %vm91, %v259, 0
    %264 = vmatprep.subr.mxu0 0.0
    %265 = vmatpush1.msra.mxu0 %v165
    %266 = vmatprep.subr.mxu0 0.0
    %267 = vmatpush1.msra.mxu0 %v166
    %268 = vmatprep.subr.mxu0 0.0
    %269 = vmatpush1.msra.mxu0 %v167
    %270 = vmatprep.subr.mxu0 0.0
    %271 = vmatpush1.msra.mxu0 %v168
    %272 = vmatprep.subr.mxu0 0.0
    %273 = vmatpush1.msra.mxu0 0.0
    %274 = vmatprep.subr.mxu0 0.0
    %275 = vmatpush1.msra.mxu0 0.0
    %276 = vmatprep.subr.mxu0 0.0
    %277 = vmatpush1.msra.mxu0 0.0
    %278 = vmatprep.subr.mxu0 0.0
    %279 = vmatpush1.msra.mxu0 0.0
    %280 = vmatprep.subr.mxu0 0.0
    %281 = vmatpush1.msra.mxu0 0.0
    %282 = vmatprep.subr.mxu0 0.0
    %283 = vmatpush1.msra.mxu0 0.0
    %284 = vmatprep.subr.mxu0 0.0
    %285 = vmatpush1.msra.mxu0 0.0
    %286 = vmatprep.subr.mxu0 0.0
    %287 = vmatpush1.msra.mxu0 0.0
    %288 = vmatprep.subr.mxu0 0.0
    %289 = vmatpush1.msra.mxu0 0.0
    %290 = vmatprep.subr.mxu0 0.0
    %291 = vmatpush1.msra.mxu0 0.0
    %292 = vmatprep.subr.mxu0 0.0
    %293 = vmatpush1.msra.mxu0 0.0
    %294 = vmatprep.subr.mxu0 0.0
    %295 = vmatpush1.msra.mxu0 0.0
    %296 = vmatprep.subr.mxu0 0.0
    %297 = vmatpush1.msra.mxu0 0.0
    %298 = vmatprep.subr.mxu0 0.0
    %299 = vmatpush1.msra.mxu0 0.0
    %300 = vmatprep.subr.mxu0 0.0
    %301 = vmatpush1.msra.mxu0 0.0
    %302 = vmatprep.subr.mxu0 0.0
    %303 = vmatpush1.msra.mxu0 0.0
    %304 = vmatprep.subr.mxu0 0.0
    %305 = vmatpush1.msra.mxu0 0.0
    %306 = vmatprep.subr.mxu0 0.0
    %307 = vmatpush1.msra.mxu0 0.0
    %308 = vmatprep.subr.mxu0 0.0
    %309 = vmatpush1.msra.mxu0 0.0
    %310 = vmatprep.subr.mxu0 0.0
    %311 = vmatpush1.msra.mxu0 0.0
    %312 = vmatprep.subr.mxu0 0.0
    %313 = vmatpush1.msra.mxu0 0.0
    %314 = vmatprep.subr.mxu0 0.0
    %315 = vmatpush1.msra.mxu0 0.0
    %316 = vmatprep.subr.mxu0 0.0
    %317 = vmatpush1.msra.mxu0 0.0
    %318 = vmatprep.subr.mxu0 0.0
    %319 = vmatpush1.msra.mxu0 0.0
    %320 = vmatprep.subr.mxu0 0.0
    %321 = vmatpush1.msra.mxu0 0.0
    %322 = vmatprep.subr.mxu0 0.0
    %323 = vmatpush1.msra.mxu0 0.0
    %324 = vmatprep.subr.mxu0 0.0
    %325 = vmatpush1.msra.mxu0 0.0
    %326 = vmatprep.subr.mxu0 0.0
    %327 = vmatpush1.msra.mxu0 0.0
    %328 = vmatprep.mubr.f32.mxu0 0.0
    %329 = vmatmul.mubr.f32.gmra.mrb[0].mxu0 %v262
    %v330 = vpop.f32.mrb[0].mxu0
    %v331 = vadd.f32 %v169, %v330
    %v332 = vpop.f32.mrb[0].mxu0
    %333 = vdwg.mxu0
    %v334 = vadd.f32 %v331, %v162
    %v335 = vxor.u32 %v334, 2147483648
    %v336 = vmul.f32 %v335, 1.442695
    %v337 = vpow.pop %v336
    %v338 = vadd.f32 %v337, 1.0
    %v339 = vrcp.pop %v338
    %v340 = vmul.f32 1.0, %v339
    %342 = vrot.lane.b32.xlu0 %v162, 64
    %v343 = vpop.permute.xlu0 %342
    %v345 = vmul.f32 %v340, %v343
    %347 = vrot.lane.b32.xlu0 %v345, 64
    %v348 = vpop.permute.xlu0 %347
    %v350 = vadd.f32 %v331, %v348
    %v351 = vtanh.pop %v350
    %v352 = vsub.f32 1.0, %v340
    %354 = vrot.lane.b32.xlu0 %v351, 96
    %v355 = vpop.permute.xlu0 %354
    %v357 = vmul.f32 %v352, %v355
    %v358 = vlaneseq
    %v359 = vshrl.u32 %v358, 7
    %v360 = vsub.s32 0, %v359
    %v361 = vrot.slane %v85, %v360
    %362 = vrot.lane.b32.xlu0 %v361, 32
    %v363 = vpop.permute.xlu0 %362
    %v365 = vmul.f32 %v340, %v363
    %v366 = vadd.f32 %v357, %v365
    %368 = vrot.lane.b32.xlu0 %v366, 96
    %v369 = vpop.permute.xlu0 %368
    %v370 = vsel %vm91, %v369, 0
    %372 = vmatprep.subr.mxu0 0.0
    %373 = vmatpush1.msra.mxu0 %v253
    %374 = vmatprep.subr.mxu0 0.0
    %375 = vmatpush1.msra.mxu0 %v254
    %376 = vmatprep.subr.mxu0 0.0
    %377 = vmatpush1.msra.mxu0 %v255
    %378 = vmatprep.subr.mxu0 0.0
    %379 = vmatpush1.msra.mxu0 %v256
    %380 = vmatprep.subr.mxu0 0.0
    %381 = vmatpush1.msra.mxu0 0.0
    %382 = vmatprep.subr.mxu0 0.0
    %383 = vmatpush1.msra.mxu0 0.0
    %384 = vmatprep.subr.mxu0 0.0
    %385 = vmatpush1.msra.mxu0 0.0
    %386 = vmatprep.subr.mxu0 0.0
    %387 = vmatpush1.msra.mxu0 0.0
    %388 = vmatprep.subr.mxu0 0.0
    %389 = vmatpush1.msra.mxu0 0.0
    %390 = vmatprep.subr.mxu0 0.0
    %391 = vmatpush1.msra.mxu0 0.0
    %392 = vmatprep.subr.mxu0 0.0
    %393 = vmatpush1.msra.mxu0 0.0
    %394 = vmatprep.subr.mxu0 0.0
    %395 = vmatpush1.msra.mxu0 0.0
    %396 = vmatprep.subr.mxu0 0.0
    %397 = vmatpush1.msra.mxu0 0.0
    %398 = vmatprep.subr.mxu0 0.0
    %399 = vmatpush1.msra.mxu0 0.0
    %400 = vmatprep.subr.mxu0 0.0
    %401 = vmatpush1.msra.mxu0 0.0
    %402 = vmatprep.subr.mxu0 0.0
    %403 = vmatpush1.msra.mxu0 0.0
    %404 = vmatprep.subr.mxu0 0.0
    %405 = vmatpush1.msra.mxu0 0.0
    %406 = vmatprep.subr.mxu0 0.0
    %407 = vmatpush1.msra.mxu0 0.0
    %408 = vmatprep.subr.mxu0 0.0
    %409 = vmatpush1.msra.mxu0 0.0
    %410 = vmatprep.subr.mxu0 0.0
    %411 = vmatpush1.msra.mxu0 0.0
    %412 = vmatprep.subr.mxu0 0.0
    %413 = vmatpush1.msra.mxu0 0.0
    %414 = vmatprep.subr.mxu0 0.0
    %415 = vmatpush1.msra.mxu0 0.0
    %416 = vmatprep.subr.mxu0 0.0
    %417 = vmatpush1.msra.mxu0 0.0
    %418 = vmatprep.subr.mxu0 0.0
    %419 = vmatpush1.msra.mxu0 0.0
    %420 = vmatprep.subr.mxu0 0.0
    %421 = vmatpush1.msra.mxu0 0.0
    %422 = vmatprep.subr.mxu0 0.0
    %423 = vmatpush1.msra.mxu0 0.0
    %424 = vmatprep.subr.mxu0 0.0
    %425 = vmatpush1.msra.mxu0 0.0
    %426 = vmatprep.subr.mxu0 0.0
    %427 = vmatpush1.msra.mxu0 0.0
    %428 = vmatprep.subr.mxu0 0.0
    %429 = vmatpush1.msra.mxu0 0.0
    %430 = vmatprep.subr.mxu0 0.0
    %431 = vmatpush1.msra.mxu0 0.0
    %432 = vmatprep.subr.mxu0 0.0
    %433 = vmatpush1.msra.mxu0 0.0
    %434 = vmatprep.subr.mxu0 0.0
    %435 = vmatpush1.msra.mxu0 0.0
    %436 = vmatprep.mubr.f32.mxu0 0.0
    %437 = vmatmul.mubr.f32.gmra.mrb[0].mxu0 %v370
    %v438 = vpop.f32.mrb[0].mxu0
    %v439 = vadd.f32 %v258, %v438
    %v440 = vpop.f32.mrb[0].mxu0
    %441 = vdwg.mxu0
    %v442 = vadd.f32 %v439, %v249
    %v443 = vxor.u32 %v442, 2147483648
    %v444 = vmul.f32 %v443, 1.442695
    %v445 = vpow.pop %v444
    %v446 = vadd.f32 %v445, 1.0
    %v447 = vrcp.pop %v446
    %v448 = vmul.f32 1.0, %v447
    %450 = vrot.lane.b32.xlu0 %v249, 64
    %v451 = vpop.permute.xlu0 %450
    %v453 = vmul.f32 %v448, %v451
    %455 = vrot.lane.b32.xlu0 %v453, 64
    %v456 = vpop.permute.xlu0 %455
    %v458 = vadd.f32 %v439, %v456
    %v459 = vtanh.pop %v458
    %v460 = vsub.f32 1.0, %v448
    %462 = vrot.lane.b32.xlu0 %v459, 96
    %v463 = vpop.permute.xlu0 %462
    %v465 = vmul.f32 %v460, %v463
    %v466 = vlaneseq
    %v467 = vshrl.u32 %v466, 7
    %v468 = vsub.s32 0, %v467
    %v469 = vrot.slane %v171, %v468
    %470 = vrot.lane.b32.xlu0 %v469, 32
    %v471 = vpop.permute.xlu0 %470
    %v473 = vmul.f32 %v448, %v471
    %v474 = vadd.f32 %v465, %v473
    %476 = vrot.lane.b32.xlu0 %v474, 96
    %v477 = vpop.permute.xlu0 %476
    %v479 = vlaneseq
    %v480 = vshrl.u32 %v479, 7
    %v481 = vsub.s32 0, %v480
    %v482 = vrot.slane %v84, %v481
    %v483 = vlaneseq
    %v484 = vshrl.u32 %v483, 7
    %v485 = vsub.s32 1, %v484
    %v486 = vrot.slane %v84, %v485
    %v489 = vsel %vm91, %v477, 0
    %491 = vmatprep.subr.mxu0 %v77
    %492 = vmatpush1.msra.mxu0 %v76
    %493 = vmatprep.subr.mxu0 %v79
    %494 = vmatpush1.msra.mxu0 %v78
    %495 = vmatprep.subr.mxu0 %v81
    %496 = vmatpush1.msra.mxu0 %v80
    %497 = vmatprep.subr.mxu0 %v83
    %498 = vmatpush1.msra.mxu0 %v82
    %499 = vmatprep.subr.mxu0 0.0
    %500 = vmatpush1.msra.mxu0 0.0
    %501 = vmatprep.subr.mxu0 0.0
    %502 = vmatpush1.msra.mxu0 0.0
    %503 = vmatprep.subr.mxu0 0.0
    %504 = vmatpush1.msra.mxu0 0.0
    %505 = vmatprep.subr.mxu0 0.0
    %506 = vmatpush1.msra.mxu0 0.0
    %507 = vmatprep.subr.mxu0 0.0
    %508 = vmatpush1.msra.mxu0 0.0
    %509 = vmatprep.subr.mxu0 0.0
    %510 = vmatpush1.msra.mxu0 0.0
    %511 = vmatprep.subr.mxu0 0.0
    %512 = vmatpush1.msra.mxu0 0.0
    %513 = vmatprep.subr.mxu0 0.0
    %514 = vmatpush1.msra.mxu0 0.0
    %515 = vmatprep.subr.mxu0 0.0
    %516 = vmatpush1.msra.mxu0 0.0
    %517 = vmatprep.subr.mxu0 0.0
    %518 = vmatpush1.msra.mxu0 0.0
    %519 = vmatprep.subr.mxu0 0.0
    %520 = vmatpush1.msra.mxu0 0.0
    %521 = vmatprep.subr.mxu0 0.0
    %522 = vmatpush1.msra.mxu0 0.0
    %523 = vmatprep.subr.mxu0 0.0
    %524 = vmatpush1.msra.mxu0 0.0
    %525 = vmatprep.subr.mxu0 0.0
    %526 = vmatpush1.msra.mxu0 0.0
    %527 = vmatprep.subr.mxu0 0.0
    %528 = vmatpush1.msra.mxu0 0.0
    %529 = vmatprep.subr.mxu0 0.0
    %530 = vmatpush1.msra.mxu0 0.0
    %531 = vmatprep.subr.mxu0 0.0
    %532 = vmatpush1.msra.mxu0 0.0
    %533 = vmatprep.subr.mxu0 0.0
    %534 = vmatpush1.msra.mxu0 0.0
    %535 = vmatprep.subr.mxu0 0.0
    %536 = vmatpush1.msra.mxu0 0.0
    %537 = vmatprep.subr.mxu0 0.0
    %538 = vmatpush1.msra.mxu0 0.0
    %539 = vmatprep.subr.mxu0 0.0
    %540 = vmatpush1.msra.mxu0 0.0
    %541 = vmatprep.subr.mxu0 0.0
    %542 = vmatpush1.msra.mxu0 0.0
    %543 = vmatprep.subr.mxu0 0.0
    %544 = vmatpush1.msra.mxu0 0.0
    %545 = vmatprep.subr.mxu0 0.0
    %546 = vmatpush1.msra.mxu0 0.0
    %547 = vmatprep.subr.mxu0 0.0
    %548 = vmatpush1.msra.mxu0 0.0
    %549 = vmatprep.subr.mxu0 0.0
    %550 = vmatpush1.msra.mxu0 0.0
    %551 = vmatprep.subr.mxu0 0.0
    %552 = vmatpush1.msra.mxu0 0.0
    %553 = vmatprep.subr.mxu0 0.0
    %554 = vmatpush1.msra.mxu0 0.0
    %555 = vmatprep.mubr.f32.mxu0 0.0
    %556 = vmatmul.mubr.f32.gmra.mrb[0].mxu0 %v489
    %v557 = vpop.f32.mrb[0].mxu0
    %v558 = vadd.f32 %v482, %v557
    %v559 = vpop.f32.mrb[0].mxu0
    %v560 = vadd.f32 %v486, %v559
    %561 = vdwg.mxu0
    %vm562 = vcmask 1040384
    %v563 = vsel %vm562, %v558, -inf
    %564 = vmax.xlane.f32.xlu0 %v563
    %v565 = vpop.xlane.xlu0 %564
    %v566 = vsub.f32 %v558, %v565
    %v567 = vmul.f32 %v566, 1.442695
    %v568 = vpow.pop %v567
    %v569 = vsel %vm562, %v568, 0.0
    %570 = vadd.xlane.f32.xlu0 %v569
    %v571 = vpop.xlane.xlu0 %570
    %v572 = vrcp.pop %v571
    %v573 = vmul.f32 %v568, %v572
    %v574 = vmul.f32 %v573, %v260
    %v575 = vsel %vm562, %v574, -inf
    %576 = vmax.xlane.f32.xlu0 %v575
    %v577 = vpop.xlane.xlu0 %576
    %vm578 = vcmp.eq.f32.partialorder %v574, %v577
    %v579 = vsel %vm578, %v58, 128
    %v580 = vsel %vm562, %v579, 2147483647
    %v581 = vand.u32 %v580, 65535
    %v582 = vshra.s32 %v580, 16
    %v583 = vcvt.s32.f32 %v581
    %v584 = vcvt.s32.f32 %v582
    %585 = vmin.xlane.f32.xlu0 %v584
    %v586 = vpop.xlane.xlu0 %585
    %vm587 = vcmp.eq.f32.partialorder %v584, %v586
    %v588 = vsel %vm587, %v583, inf
    %589 = vmin.xlane.f32.xlu0 %v588
    %v590 = vpop.xlane.xlu0 %589
    %v591 = vcvt.f32.s32 %v590
    %v592 = vcvt.f32.s32 %v586
    %v593 = vshll.u32 %v592, 16
    %v594 = vadd.s32 %v593, %v591
    %vm595 = vcmp.eq.s32.totalorder %v58, %v594
    %v596 = vsel %vm595, 1, 0
    %v597 = vcvt.s32.f32 %v596
    %v598 = vadd.f32 %v597, 0.0
    %vm599 = vcmp.gt.f32.partialorder %v597, 0.0
    %v600 = vsel %vm599, -1e+30, %v574
    %v601 = vsel %vm562, %v600, -inf
    %602 = vmax.xlane.f32.xlu0 %v601
    %v603 = vpop.xlane.xlu0 %602
    %vm604 = vcmp.eq.f32.partialorder %v600, %v603
    %v605 = vsel %vm604, %v58, 128
    %v606 = vsel %vm562, %v605, 2147483647
    %v607 = vand.u32 %v606, 65535
    %v608 = vshra.s32 %v606, 16
    %v609 = vcvt.s32.f32 %v607
    %v610 = vcvt.s32.f32 %v608
    %611 = vmin.xlane.f32.xlu0 %v610
    %v612 = vpop.xlane.xlu0 %611
    %vm613 = vcmp.eq.f32.partialorder %v610, %v612
    %v614 = vsel %vm613, %v609, inf
    %615 = vmin.xlane.f32.xlu0 %v614
    %v616 = vpop.xlane.xlu0 %615
    %v617 = vcvt.f32.s32 %v616
    %v618 = vcvt.f32.s32 %v612
    %v619 = vshll.u32 %v618, 16
    %v620 = vadd.s32 %v619, %v617
    %vm621 = vcmp.eq.s32.totalorder %v58, %v620
    %v622 = vsel %vm621, 1, 0
    %v623 = vcvt.s32.f32 %v622
    %v624 = vadd.f32 %v598, %v623
    %vm625 = vcmp.gt.f32.partialorder %v623, 0.0
    %v626 = vsel %vm625, -1e+30, %v600
    %v627 = vsel %vm562, %v626, -inf
    %628 = vmax.xlane.f32.xlu0 %v627
    %v629 = vpop.xlane.xlu0 %628
    %vm630 = vcmp.eq.f32.partialorder %v626, %v629
    %v631 = vsel %vm630, %v58, 128
    %v632 = vsel %vm562, %v631, 2147483647
    %v633 = vand.u32 %v632, 65535
    %v634 = vshra.s32 %v632, 16
    %v635 = vcvt.s32.f32 %v633
    %v636 = vcvt.s32.f32 %v634
    %637 = vmin.xlane.f32.xlu0 %v636
    %v638 = vpop.xlane.xlu0 %637
    %vm639 = vcmp.eq.f32.partialorder %v636, %v638
    %v640 = vsel %vm639, %v635, inf
    %641 = vmin.xlane.f32.xlu0 %v640
    %v642 = vpop.xlane.xlu0 %641
    %v643 = vcvt.f32.s32 %v642
    %v644 = vcvt.f32.s32 %v638
    %v645 = vshll.u32 %v644, 16
    %v646 = vadd.s32 %v645, %v643
    %vm647 = vcmp.eq.s32.totalorder %v58, %v646
    %v648 = vsel %vm647, 1, 0
    %v649 = vcvt.s32.f32 %v648
    %v650 = vadd.f32 %v624, %v649
    %vm651 = vcmp.gt.f32.partialorder %v649, 0.0
    %v652 = vsel %vm651, -1e+30, %v626
    %v653 = vsel %vm562, %v652, -inf
    %654 = vmax.xlane.f32.xlu0 %v653
    %v655 = vpop.xlane.xlu0 %654
    %vm656 = vcmp.eq.f32.partialorder %v652, %v655
    %v657 = vsel %vm656, %v58, 128
    %v658 = vsel %vm562, %v657, 2147483647
    %v659 = vand.u32 %v658, 65535
    %v660 = vshra.s32 %v658, 16
    %v661 = vcvt.s32.f32 %v659
    %v662 = vcvt.s32.f32 %v660
    %663 = vmin.xlane.f32.xlu0 %v662
    %v664 = vpop.xlane.xlu0 %663
    %vm665 = vcmp.eq.f32.partialorder %v662, %v664
    %v666 = vsel %vm665, %v661, inf
    %667 = vmin.xlane.f32.xlu0 %v666
    %v668 = vpop.xlane.xlu0 %667
    %v669 = vcvt.f32.s32 %v668
    %v670 = vcvt.f32.s32 %v664
    %v671 = vshll.u32 %v670, 16
    %v672 = vadd.s32 %v671, %v669
    %vm673 = vcmp.eq.s32.totalorder %v58, %v672
    %v674 = vsel %vm673, 1, 0
    %v675 = vcvt.s32.f32 %v674
    %v676 = vadd.f32 %v650, %v675
    %vm677 = vcmp.gt.f32.partialorder %v675, 0.0
    %v678 = vsel %vm677, -1e+30, %v652
    %v679 = vsel %vm562, %v678, -inf
    %680 = vmax.xlane.f32.xlu0 %v679
    %v681 = vpop.xlane.xlu0 %680
    %vm682 = vcmp.eq.f32.partialorder %v678, %v681
    %v683 = vsel %vm682, %v58, 128
    %v684 = vsel %vm562, %v683, 2147483647
    %v685 = vand.u32 %v684, 65535
    %v686 = vshra.s32 %v684, 16
    %v687 = vcvt.s32.f32 %v685
    %v688 = vcvt.s32.f32 %v686
    %689 = vmin.xlane.f32.xlu0 %v688
    %v690 = vpop.xlane.xlu0 %689
    %vm691 = vcmp.eq.f32.partialorder %v688, %v690
    %v692 = vsel %vm691, %v687, inf
    %693 = vmin.xlane.f32.xlu0 %v692
    %v694 = vpop.xlane.xlu0 %693
    %v695 = vcvt.f32.s32 %v694
    %v696 = vcvt.f32.s32 %v690
    %v697 = vshll.u32 %v696, 16
    %v698 = vadd.s32 %v697, %v695
    %vm699 = vcmp.eq.s32.totalorder %v58, %v698
    %v700 = vsel %vm699, 1, 0
    %v701 = vcvt.s32.f32 %v700
    %v702 = vadd.f32 %v676, %v701
    %v703 = vmul.f32 %v59, %v702
    %v704 = vsel %vm562, %v703, 0.0
    %705 = vadd.xlane.f32.xlu0 %v704
    %v706 = vpop.xlane.xlu0 %705
    %vm707 = vcmp.gt.f32.partialorder %v706, 0.0
    %v708 = vsel %vm707, 1, 0
    %v709 = vcvt.s32.f32 %v708
    %v710 = vmul.f32 %v709, %v703
    %v711 = vmul.f32 %v710, %v573
    %v712 = vsub.f32 1.0, %v709
    %v713 = vmul.f32 %v712, %v574
    %v714 = vadd.f32 %v711, %v713
    %v715 = vsel %vm562, %v714, -inf
    %716 = vmax.xlane.f32.xlu0 %v715
    %v717 = vpop.xlane.xlu0 %716
    %vm718 = vcmp.eq.f32.partialorder %v714, %v717
    %v719 = vsel %vm718, %v58, 128
    %v720 = vsel %vm562, %v719, 2147483647
    %v721 = vand.u32 %v720, 65535
    %v722 = vshra.s32 %v720, 16
    %v723 = vcvt.s32.f32 %v721
    %v724 = vcvt.s32.f32 %v722
    %725 = vmin.xlane.f32.xlu0 %v724
    %v726 = vpop.xlane.xlu0 %725
    %vm727 = vcmp.eq.f32.partialorder %v724, %v726
    %v728 = vsel %vm727, %v723, inf
    %729 = vmin.xlane.f32.xlu0 %v728
    %v730 = vpop.xlane.xlu0 %729
    %v731 = vcvt.f32.s32 %v730
    %v732 = vcvt.f32.s32 %v726
    %v733 = vshll.u32 %v732, 16
    %v734 = vadd.s32 %v733, %v731
    %vm735 = vcmp.eq.s32.totalorder %v58, %v734
    %v736 = vsel %vm735, 1, 0
    %v737 = vcvt.s32.f32 %v736
    %738 = vmatprep.subr.mxu0 0.0
    %739 = vmatpush1.msra.mxu0 %v60
    %740 = vmatprep.subr.mxu0 0.0
    %741 = vmatpush1.msra.mxu0 %v61
    %742 = vmatprep.subr.mxu0 0.0
    %743 = vmatpush1.msra.mxu0 %v62
    %744 = vmatprep.subr.mxu0 0.0
    %745 = vmatpush1.msra.mxu0 %v63
    %746 = vmatprep.subr.mxu0 0.0
    %747 = vmatpush1.msra.mxu0 %v64
    %748 = vmatprep.subr.mxu0 0.0
    %749 = vmatpush1.msra.mxu0 %v65
    %750 = vmatprep.subr.mxu0 0.0
    %751 = vmatpush1.msra.mxu0 %v66
    %752 = vmatprep.subr.mxu0 0.0
    %753 = vmatpush1.msra.mxu0 %v67
    %754 = vmatprep.subr.mxu0 0.0
    %755 = vmatpush1.msra.mxu0 %v68
    %756 = vmatprep.subr.mxu0 0.0
    %757 = vmatpush1.msra.mxu0 %v69
    %758 = vmatprep.subr.mxu0 0.0
    %759 = vmatpush1.msra.mxu0 %v70
    %760 = vmatprep.subr.mxu0 0.0
    %761 = vmatpush1.msra.mxu0 %v71
    %762 = vmatprep.subr.mxu0 0.0
    %763 = vmatpush1.msra.mxu0 %v72
    %764 = vmatprep.subr.mxu0 0.0
    %765 = vmatpush1.msra.mxu0 %v73
    %766 = vmatprep.subr.mxu0 0.0
    %767 = vmatpush1.msra.mxu0 %v74
    %768 = vmatprep.subr.mxu0 0.0
    %769 = vmatpush1.msra.mxu0 %v75
    %770 = vmatprep.subr.mxu0 0.0
    %771 = vmatpush1.msra.mxu0 0.0
    %772 = vmatprep.subr.mxu0 0.0
    %773 = vmatpush1.msra.mxu0 0.0
    %774 = vmatprep.subr.mxu0 0.0
    %775 = vmatpush1.msra.mxu0 0.0
    %776 = vmatprep.subr.mxu0 0.0
    %777 = vmatpush1.msra.mxu0 0.0
    %778 = vmatprep.subr.mxu0 0.0
    %779 = vmatpush1.msra.mxu0 0.0
    %780 = vmatprep.subr.mxu0 0.0
    %781 = vmatpush1.msra.mxu0 0.0
    %782 = vmatprep.subr.mxu0 0.0
    %783 = vmatpush1.msra.mxu0 0.0
    %784 = vmatprep.subr.mxu0 0.0
    %785 = vmatpush1.msra.mxu0 0.0
    %786 = vmatprep.subr.mxu0 0.0
    %787 = vmatpush1.msra.mxu0 0.0
    %788 = vmatprep.subr.mxu0 0.0
    %789 = vmatpush1.msra.mxu0 0.0
    %790 = vmatprep.subr.mxu0 0.0
    %791 = vmatpush1.msra.mxu0 0.0
    %792 = vmatprep.subr.mxu0 0.0
    %793 = vmatpush1.msra.mxu0 0.0
    %794 = vmatprep.subr.mxu0 0.0
    %795 = vmatpush1.msra.mxu0 0.0
    %796 = vmatprep.subr.mxu0 0.0
    %797 = vmatpush1.msra.mxu0 0.0
    %798 = vmatprep.subr.mxu0 0.0
    %799 = vmatpush1.msra.mxu0 0.0
    %800 = vmatprep.subr.mxu0 0.0
    %801 = vmatpush1.msra.mxu0 0.0
    %802 = vmatprep.mubr.f32.mxu0 0.0
    %803 = vmatmul.mubr.f32.gmra.mrb[0].mxu0 %v737
    %v804 = vpop.f32.mrb[0].mxu0
    %v805 = vadd.f32 0.0, %v804
    %v806 = vpop.f32.mrb[0].mxu0
    %807 = vdwg.mxu0
    %v808 = vmul.f32 %v709, 2.0
    %v809 = vsub.f32 %v808, 1.0
    %v810 = vmul.f32 %v809, %v805
    %v811 = vmul.f32 %v709, %v737
    %v812 = vsub.f32 %v260, %v811
    %813 = vst [vmem:[#allocation5] sm:$0x1] %v573
    %vm814 = vcmp.eq.s32.totalorder %v58, 0
    %v815 = vcvt.s32.f32 %v734
    %v816 = vsel %vm814, %v815, 0.0
    %vm817 = vcmp.eq.s32.totalorder %v58, 1
    %819 = vset.pattern.permute.xlu0 0
    %820 = vperm.xlu0 %819, %v560
    %v821 = vpop.permute.xlu0 %820
    %v823 = vsel %vm817, %v821, 0.0
    %v824 = vadd.f32 %v816, %v823
    %vm825 = vcmp.eq.s32.totalorder %v58, 2
    %v826 = vsel %vm825, %v709, 0.0
    %v827 = vadd.f32 %v824, %v826
    %828 = vst [vmem:[#allocation6] sm:$0x1] %v827
    %v830 = vsel %vm91, %v810, 0
    %832 = vmatprep.subr.mxu0 0.0
    %833 = vmatpush1.msra.mxu0 %v165
    %834 = vmatprep.subr.mxu0 0.0
    %835 = vmatpush1.msra.mxu0 %v166
    %836 = vmatprep.subr.mxu0 0.0
    %837 = vmatpush1.msra.mxu0 %v167
    %838 = vmatprep.subr.mxu0 0.0
    %839 = vmatpush1.msra.mxu0 %v168
    %840 = vmatprep.subr.mxu0 0.0
    %841 = vmatpush1.msra.mxu0 0.0
    %842 = vmatprep.subr.mxu0 0.0
    %843 = vmatpush1.msra.mxu0 0.0
    %844 = vmatprep.subr.mxu0 0.0
    %845 = vmatpush1.msra.mxu0 0.0
    %846 = vmatprep.subr.mxu0 0.0
    %847 = vmatpush1.msra.mxu0 0.0
    %848 = vmatprep.subr.mxu0 0.0
    %849 = vmatpush1.msra.mxu0 0.0
    %850 = vmatprep.subr.mxu0 0.0
    %851 = vmatpush1.msra.mxu0 0.0
    %852 = vmatprep.subr.mxu0 0.0
    %853 = vmatpush1.msra.mxu0 0.0
    %854 = vmatprep.subr.mxu0 0.0
    %855 = vmatpush1.msra.mxu0 0.0
    %856 = vmatprep.subr.mxu0 0.0
    %857 = vmatpush1.msra.mxu0 0.0
    %858 = vmatprep.subr.mxu0 0.0
    %859 = vmatpush1.msra.mxu0 0.0
    %860 = vmatprep.subr.mxu0 0.0
    %861 = vmatpush1.msra.mxu0 0.0
    %862 = vmatprep.subr.mxu0 0.0
    %863 = vmatpush1.msra.mxu0 0.0
    %864 = vmatprep.subr.mxu0 0.0
    %865 = vmatpush1.msra.mxu0 0.0
    %866 = vmatprep.subr.mxu0 0.0
    %867 = vmatpush1.msra.mxu0 0.0
    %868 = vmatprep.subr.mxu0 0.0
    %869 = vmatpush1.msra.mxu0 0.0
    %870 = vmatprep.subr.mxu0 0.0
    %871 = vmatpush1.msra.mxu0 0.0
    %872 = vmatprep.subr.mxu0 0.0
    %873 = vmatpush1.msra.mxu0 0.0
    %874 = vmatprep.subr.mxu0 0.0
    %875 = vmatpush1.msra.mxu0 0.0
    %876 = vmatprep.subr.mxu0 0.0
    %877 = vmatpush1.msra.mxu0 0.0
    %878 = vmatprep.subr.mxu0 0.0
    %879 = vmatpush1.msra.mxu0 0.0
    %880 = vmatprep.subr.mxu0 0.0
    %881 = vmatpush1.msra.mxu0 0.0
    %882 = vmatprep.subr.mxu0 0.0
    %883 = vmatpush1.msra.mxu0 0.0
    %884 = vmatprep.subr.mxu0 0.0
    %885 = vmatpush1.msra.mxu0 0.0
    %886 = vmatprep.subr.mxu0 0.0
    %887 = vmatpush1.msra.mxu0 0.0
    %888 = vmatprep.subr.mxu0 0.0
    %889 = vmatpush1.msra.mxu0 0.0
    %890 = vmatprep.subr.mxu0 0.0
    %891 = vmatpush1.msra.mxu0 0.0
    %892 = vmatprep.subr.mxu0 0.0
    %893 = vmatpush1.msra.mxu0 0.0
    %894 = vmatprep.subr.mxu0 0.0
    %895 = vmatpush1.msra.mxu0 0.0
    %896 = vmatprep.mubr.f32.mxu0 0.0
    %897 = vmatmul.mubr.f32.gmra.mrb[0].mxu0 %v830
    %v898 = vpop.f32.mrb[0].mxu0
    %v899 = vadd.f32 %v169, %v898
    %v900 = vpop.f32.mrb[0].mxu0
    %901 = vdwg.mxu0
    %v902 = vadd.f32 %v899, %v162
    %v903 = vxor.u32 %v902, 2147483648
    %v904 = vmul.f32 %v903, 1.442695
    %v905 = vpow.pop %v904
    %v906 = vadd.f32 %v905, 1.0
    %v907 = vrcp.pop %v906
    %v908 = vmul.f32 1.0, %v907
    %v909 = vmul.f32 %v908, %v343
    %911 = vrot.lane.b32.xlu0 %v909, 64
    %v912 = vpop.permute.xlu0 %911
    %v914 = vadd.f32 %v899, %v912
    %v915 = vtanh.pop %v914
    %v916 = vsub.f32 1.0, %v908
    %918 = vrot.lane.b32.xlu0 %v915, 96
    %v919 = vpop.permute.xlu0 %918
    %v921 = vmul.f32 %v916, %v919
    %v922 = vmul.f32 %v908, %v363
    %v923 = vadd.f32 %v921, %v922
    %925 = vrot.lane.b32.xlu0 %v923, 96
    %v926 = vpop.permute.xlu0 %925
    %v927 = vsel %vm91, %v926, 0
    %929 = vmatprep.subr.mxu0 0.0
    %930 = vmatpush1.msra.mxu0 %v253
    %931 = vmatprep.subr.mxu0 0.0
    %932 = vmatpush1.msra.mxu0 %v254
    %933 = vmatprep.subr.mxu0 0.0
    %934 = vmatpush1.msra.mxu0 %v255
    %935 = vmatprep.subr.mxu0 0.0
    %936 = vmatpush1.msra.mxu0 %v256
    %937 = vmatprep.subr.mxu0 0.0
    %938 = vmatpush1.msra.mxu0 0.0
    %939 = vmatprep.subr.mxu0 0.0
    %940 = vmatpush1.msra.mxu0 0.0
    %941 = vmatprep.subr.mxu0 0.0
    %942 = vmatpush1.msra.mxu0 0.0
    %943 = vmatprep.subr.mxu0 0.0
    %944 = vmatpush1.msra.mxu0 0.0
    %945 = vmatprep.subr.mxu0 0.0
    %946 = vmatpush1.msra.mxu0 0.0
    %947 = vmatprep.subr.mxu0 0.0
    %948 = vmatpush1.msra.mxu0 0.0
    %949 = vmatprep.subr.mxu0 0.0
    %950 = vmatpush1.msra.mxu0 0.0
    %951 = vmatprep.subr.mxu0 0.0
    %952 = vmatpush1.msra.mxu0 0.0
    %953 = vmatprep.subr.mxu0 0.0
    %954 = vmatpush1.msra.mxu0 0.0
    %955 = vmatprep.subr.mxu0 0.0
    %956 = vmatpush1.msra.mxu0 0.0
    %957 = vmatprep.subr.mxu0 0.0
    %958 = vmatpush1.msra.mxu0 0.0
    %959 = vmatprep.subr.mxu0 0.0
    %960 = vmatpush1.msra.mxu0 0.0
    %961 = vmatprep.subr.mxu0 0.0
    %962 = vmatpush1.msra.mxu0 0.0
    %963 = vmatprep.subr.mxu0 0.0
    %964 = vmatpush1.msra.mxu0 0.0
    %965 = vmatprep.subr.mxu0 0.0
    %966 = vmatpush1.msra.mxu0 0.0
    %967 = vmatprep.subr.mxu0 0.0
    %968 = vmatpush1.msra.mxu0 0.0
    %969 = vmatprep.subr.mxu0 0.0
    %970 = vmatpush1.msra.mxu0 0.0
    %971 = vmatprep.subr.mxu0 0.0
    %972 = vmatpush1.msra.mxu0 0.0
    %973 = vmatprep.subr.mxu0 0.0
    %974 = vmatpush1.msra.mxu0 0.0
    %975 = vmatprep.subr.mxu0 0.0
    %976 = vmatpush1.msra.mxu0 0.0
    %977 = vmatprep.subr.mxu0 0.0
    %978 = vmatpush1.msra.mxu0 0.0
    %979 = vmatprep.subr.mxu0 0.0
    %980 = vmatpush1.msra.mxu0 0.0
    %981 = vmatprep.subr.mxu0 0.0
    %982 = vmatpush1.msra.mxu0 0.0
    %983 = vmatprep.subr.mxu0 0.0
    %984 = vmatpush1.msra.mxu0 0.0
    %985 = vmatprep.subr.mxu0 0.0
    %986 = vmatpush1.msra.mxu0 0.0
    %987 = vmatprep.subr.mxu0 0.0
    %988 = vmatpush1.msra.mxu0 0.0
    %989 = vmatprep.subr.mxu0 0.0
    %990 = vmatpush1.msra.mxu0 0.0
    %991 = vmatprep.subr.mxu0 0.0
    %992 = vmatpush1.msra.mxu0 0.0
    %993 = vmatprep.mubr.f32.mxu0 0.0
    %994 = vmatmul.mubr.f32.gmra.mrb[0].mxu0 %v927
    %v995 = vpop.f32.mrb[0].mxu0
    %v996 = vadd.f32 %v258, %v995
    %v997 = vpop.f32.mrb[0].mxu0
    %998 = vdwg.mxu0
    %v999 = vadd.f32 %v996, %v249
    %v1000 = vxor.u32 %v999, 2147483648
    %v1001 = vmul.f32 %v1000, 1.442695
    %v1002 = vpow.pop %v1001
    %v1003 = vadd.f32 %v1002, 1.0
    %v1004 = vrcp.pop %v1003
    %v1005 = vmul.f32 1.0, %v1004
    %v1006 = vmul.f32 %v1005, %v451
    %1008 = vrot.lane.b32.xlu0 %v1006, 64
    %v1009 = vpop.permute.xlu0 %1008
    %v1011 = vadd.f32 %v996, %v1009
    %v1012 = vtanh.pop %v1011
    %v1013 = vsub.f32 1.0, %v1005
    %1015 = vrot.lane.b32.xlu0 %v1012, 96
    %v1016 = vpop.permute.xlu0 %1015
    %v1018 = vmul.f32 %v1013, %v1016
    %v1019 = vmul.f32 %v1005, %v471
    %v1020 = vadd.f32 %v1018, %v1019
    %1022 = vrot.lane.b32.xlu0 %v1020, 96
    %v1023 = vpop.permute.xlu0 %1022
    %v1024 = vsel %vm91, %v1023, 0
    %1026 = vmatprep.subr.mxu0 %v77
    %1027 = vmatpush1.msra.mxu0 %v76
    %1028 = vmatprep.subr.mxu0 %v79
    %1029 = vmatpush1.msra.mxu0 %v78
    %1030 = vmatprep.subr.mxu0 %v81
    %1031 = vmatpush1.msra.mxu0 %v80
    %1032 = vmatprep.subr.mxu0 %v83
    %1033 = vmatpush1.msra.mxu0 %v82
    %1034 = vmatprep.subr.mxu0 0.0
    %1035 = vmatpush1.msra.mxu0 0.0
    %1036 = vmatprep.subr.mxu0 0.0
    %1037 = vmatpush1.msra.mxu0 0.0
    %1038 = vmatprep.subr.mxu0 0.0
    %1039 = vmatpush1.msra.mxu0 0.0
    %1040 = vmatprep.subr.mxu0 0.0
    %1041 = vmatpush1.msra.mxu0 0.0
    %1042 = vmatprep.subr.mxu0 0.0
    %1043 = vmatpush1.msra.mxu0 0.0
    %1044 = vmatprep.subr.mxu0 0.0
    %1045 = vmatpush1.msra.mxu0 0.0
    %1046 = vmatprep.subr.mxu0 0.0
    %1047 = vmatpush1.msra.mxu0 0.0
    %1048 = vmatprep.subr.mxu0 0.0
    %1049 = vmatpush1.msra.mxu0 0.0
    %1050 = vmatprep.subr.mxu0 0.0
    %1051 = vmatpush1.msra.mxu0 0.0
    %1052 = vmatprep.subr.mxu0 0.0
    %1053 = vmatpush1.msra.mxu0 0.0
    %1054 = vmatprep.subr.mxu0 0.0
    %1055 = vmatpush1.msra.mxu0 0.0
    %1056 = vmatprep.subr.mxu0 0.0
    %1057 = vmatpush1.msra.mxu0 0.0
    %1058 = vmatprep.subr.mxu0 0.0
    %1059 = vmatpush1.msra.mxu0 0.0
    %1060 = vmatprep.subr.mxu0 0.0
    %1061 = vmatpush1.msra.mxu0 0.0
    %1062 = vmatprep.subr.mxu0 0.0
    %1063 = vmatpush1.msra.mxu0 0.0
    %1064 = vmatprep.subr.mxu0 0.0
    %1065 = vmatpush1.msra.mxu0 0.0
    %1066 = vmatprep.subr.mxu0 0.0
    %1067 = vmatpush1.msra.mxu0 0.0
    %1068 = vmatprep.subr.mxu0 0.0
    %1069 = vmatpush1.msra.mxu0 0.0
    %1070 = vmatprep.subr.mxu0 0.0
    %1071 = vmatpush1.msra.mxu0 0.0
    %1072 = vmatprep.subr.mxu0 0.0
    %1073 = vmatpush1.msra.mxu0 0.0
    %1074 = vmatprep.subr.mxu0 0.0
    %1075 = vmatpush1.msra.mxu0 0.0
    %1076 = vmatprep.subr.mxu0 0.0
    %1077 = vmatpush1.msra.mxu0 0.0
    %1078 = vmatprep.subr.mxu0 0.0
    %1079 = vmatpush1.msra.mxu0 0.0
    %1080 = vmatprep.subr.mxu0 0.0
    %1081 = vmatpush1.msra.mxu0 0.0
    %1082 = vmatprep.subr.mxu0 0.0
    %1083 = vmatpush1.msra.mxu0 0.0
    %1084 = vmatprep.subr.mxu0 0.0
    %1085 = vmatpush1.msra.mxu0 0.0
    %1086 = vmatprep.subr.mxu0 0.0
    %1087 = vmatpush1.msra.mxu0 0.0
    %1088 = vmatprep.subr.mxu0 0.0
    %1089 = vmatpush1.msra.mxu0 0.0
    %1090 = vmatprep.mubr.f32.mxu0 0.0
    %1091 = vmatmul.mubr.f32.gmra.mrb[0].mxu0 %v1024
    %v1092 = vpop.f32.mrb[0].mxu0
    %v1093 = vadd.f32 %v482, %v1092
    %v1094 = vpop.f32.mrb[0].mxu0
    %v1095 = vadd.f32 %v486, %v1094
    %1096 = vdwg.mxu0
    %v1097 = vsel %vm562, %v1093, -inf
    %1098 = vmax.xlane.f32.xlu0 %v1097
    %v1099 = vpop.xlane.xlu0 %1098
    %v1100 = vsub.f32 %v1093, %v1099
    %v1101 = vmul.f32 %v1100, 1.442695
    %v1102 = vpow.pop %v1101
    %v1103 = vsel %vm562, %v1102, 0.0
    %1104 = vadd.xlane.f32.xlu0 %v1103
    %v1105 = vpop.xlane.xlu0 %1104
    %v1106 = vrcp.pop %v1105
    %v1107 = vmul.f32 %v1102, %v1106
    %v1108 = vmul.f32 %v1107, %v812
    %v1109 = vsel %vm562, %v1108, -inf
    %1110 = vmax.xlane.f32.xlu0 %v1109
    %v1111 = vpop.xlane.xlu0 %1110
    %vm1112 = vcmp.eq.f32.partialorder %v1108, %v1111
    %v1113 = vsel %vm1112, %v58, 128
    %v1114 = vsel %vm562, %v1113, 2147483647
    %v1115 = vand.u32 %v1114, 65535
    %v1116 = vshra.s32 %v1114, 16
    %v1117 = vcvt.s32.f32 %v1115
    %v1118 = vcvt.s32.f32 %v1116
    %1119 = vmin.xlane.f32.xlu0 %v1118
    %v1120 = vpop.xlane.xlu0 %1119
    %vm1121 = vcmp.eq.f32.partialorder %v1118, %v1120
    %v1122 = vsel %vm1121, %v1117, inf
    %1123 = vmin.xlane.f32.xlu0 %v1122
    %v1124 = vpop.xlane.xlu0 %1123
    %v1125 = vcvt.f32.s32 %v1124
    %v1126 = vcvt.f32.s32 %v1120
    %v1127 = vshll.u32 %v1126, 16
    %v1128 = vadd.s32 %v1127, %v1125
    %vm1129 = vcmp.eq.s32.totalorder %v58, %v1128
    %v1130 = vsel %vm1129, 1, 0
    %v1131 = vcvt.s32.f32 %v1130
    %v1132 = vadd.f32 %v1131, 0.0
    %vm1133 = vcmp.gt.f32.partialorder %v1131, 0.0
    %v1134 = vsel %vm1133, -1e+30, %v1108
    %v1135 = vsel %vm562, %v1134, -inf
    %1136 = vmax.xlane.f32.xlu0 %v1135
    %v1137 = vpop.xlane.xlu0 %1136
    %vm1138 = vcmp.eq.f32.partialorder %v1134, %v1137
    %v1139 = vsel %vm1138, %v58, 128
    %v1140 = vsel %vm562, %v1139, 2147483647
    %v1141 = vand.u32 %v1140, 65535
    %v1142 = vshra.s32 %v1140, 16
    %v1143 = vcvt.s32.f32 %v1141
    %v1144 = vcvt.s32.f32 %v1142
    %1145 = vmin.xlane.f32.xlu0 %v1144
    %v1146 = vpop.xlane.xlu0 %1145
    %vm1147 = vcmp.eq.f32.partialorder %v1144, %v1146
    %v1148 = vsel %vm1147, %v1143, inf
    %1149 = vmin.xlane.f32.xlu0 %v1148
    %v1150 = vpop.xlane.xlu0 %1149
    %v1151 = vcvt.f32.s32 %v1150
    %v1152 = vcvt.f32.s32 %v1146
    %v1153 = vshll.u32 %v1152, 16
    %v1154 = vadd.s32 %v1153, %v1151
    %vm1155 = vcmp.eq.s32.totalorder %v58, %v1154
    %v1156 = vsel %vm1155, 1, 0
    %v1157 = vcvt.s32.f32 %v1156
    %v1158 = vadd.f32 %v1132, %v1157
    %vm1159 = vcmp.gt.f32.partialorder %v1157, 0.0
    %v1160 = vsel %vm1159, -1e+30, %v1134
    %v1161 = vsel %vm562, %v1160, -inf
    %1162 = vmax.xlane.f32.xlu0 %v1161
    %v1163 = vpop.xlane.xlu0 %1162
    %vm1164 = vcmp.eq.f32.partialorder %v1160, %v1163
    %v1165 = vsel %vm1164, %v58, 128
    %v1166 = vsel %vm562, %v1165, 2147483647
    %v1167 = vand.u32 %v1166, 65535
    %v1168 = vshra.s32 %v1166, 16
    %v1169 = vcvt.s32.f32 %v1167
    %v1170 = vcvt.s32.f32 %v1168
    %1171 = vmin.xlane.f32.xlu0 %v1170
    %v1172 = vpop.xlane.xlu0 %1171
    %vm1173 = vcmp.eq.f32.partialorder %v1170, %v1172
    %v1174 = vsel %vm1173, %v1169, inf
    %1175 = vmin.xlane.f32.xlu0 %v1174
    %v1176 = vpop.xlane.xlu0 %1175
    %v1177 = vcvt.f32.s32 %v1176
    %v1178 = vcvt.f32.s32 %v1172
    %v1179 = vshll.u32 %v1178, 16
    %v1180 = vadd.s32 %v1179, %v1177
    %vm1181 = vcmp.eq.s32.totalorder %v58, %v1180
    %v1182 = vsel %vm1181, 1, 0
    %v1183 = vcvt.s32.f32 %v1182
    %v1184 = vadd.f32 %v1158, %v1183
    %vm1185 = vcmp.gt.f32.partialorder %v1183, 0.0
    %v1186 = vsel %vm1185, -1e+30, %v1160
    %v1187 = vsel %vm562, %v1186, -inf
    %1188 = vmax.xlane.f32.xlu0 %v1187
    %v1189 = vpop.xlane.xlu0 %1188
    %vm1190 = vcmp.eq.f32.partialorder %v1186, %v1189
    %v1191 = vsel %vm1190, %v58, 128
    %v1192 = vsel %vm562, %v1191, 2147483647
    %v1193 = vand.u32 %v1192, 65535
    %v1194 = vshra.s32 %v1192, 16
    %v1195 = vcvt.s32.f32 %v1193
    %v1196 = vcvt.s32.f32 %v1194
    %1197 = vmin.xlane.f32.xlu0 %v1196
    %v1198 = vpop.xlane.xlu0 %1197
    %vm1199 = vcmp.eq.f32.partialorder %v1196, %v1198
    %v1200 = vsel %vm1199, %v1195, inf
    %1201 = vmin.xlane.f32.xlu0 %v1200
    %v1202 = vpop.xlane.xlu0 %1201
    %v1203 = vcvt.f32.s32 %v1202
    %v1204 = vcvt.f32.s32 %v1198
    %v1205 = vshll.u32 %v1204, 16
    %v1206 = vadd.s32 %v1205, %v1203
    %vm1207 = vcmp.eq.s32.totalorder %v58, %v1206
    %v1208 = vsel %vm1207, 1, 0
    %v1209 = vcvt.s32.f32 %v1208
    %v1210 = vadd.f32 %v1184, %v1209
    %vm1211 = vcmp.gt.f32.partialorder %v1209, 0.0
    %v1212 = vsel %vm1211, -1e+30, %v1186
    %v1213 = vsel %vm562, %v1212, -inf
    %1214 = vmax.xlane.f32.xlu0 %v1213
    %v1215 = vpop.xlane.xlu0 %1214
    %vm1216 = vcmp.eq.f32.partialorder %v1212, %v1215
    %v1217 = vsel %vm1216, %v58, 128
    %v1218 = vsel %vm562, %v1217, 2147483647
    %v1219 = vand.u32 %v1218, 65535
    %v1220 = vshra.s32 %v1218, 16
    %v1221 = vcvt.s32.f32 %v1219
    %v1222 = vcvt.s32.f32 %v1220
    %1223 = vmin.xlane.f32.xlu0 %v1222
    %v1224 = vpop.xlane.xlu0 %1223
    %vm1225 = vcmp.eq.f32.partialorder %v1222, %v1224
    %v1226 = vsel %vm1225, %v1221, inf
    %1227 = vmin.xlane.f32.xlu0 %v1226
    %v1228 = vpop.xlane.xlu0 %1227
    %v1229 = vcvt.f32.s32 %v1228
    %v1230 = vcvt.f32.s32 %v1224
    %v1231 = vshll.u32 %v1230, 16
    %v1232 = vadd.s32 %v1231, %v1229
    %vm1233 = vcmp.eq.s32.totalorder %v58, %v1232
    %v1234 = vsel %vm1233, 1, 0
    %v1235 = vcvt.s32.f32 %v1234
    %v1236 = vadd.f32 %v1210, %v1235
    %v1237 = vmul.f32 %v59, %v1236
    %v1238 = vsel %vm562, %v1237, 0.0
    %1239 = vadd.xlane.f32.xlu0 %v1238
    %v1240 = vpop.xlane.xlu0 %1239
    %vm1241 = vcmp.gt.f32.partialorder %v1240, 0.0
    %v1242 = vsel %vm1241, 1, 0
    %v1243 = vcvt.s32.f32 %v1242
    %v1244 = vmul.f32 %v1243, %v1237
    %v1245 = vmul.f32 %v1244, %v1107
    %v1246 = vsub.f32 1.0, %v1243
    %v1247 = vmul.f32 %v1246, %v1108
    %v1248 = vadd.f32 %v1245, %v1247
    %v1249 = vsel %vm562, %v1248, -inf
    %1250 = vmax.xlane.f32.xlu0 %v1249
    %v1251 = vpop.xlane.xlu0 %1250
    %vm1252 = vcmp.eq.f32.partialorder %v1248, %v1251
    %v1253 = vsel %vm1252, %v58, 128
    %v1254 = vsel %vm562, %v1253, 2147483647
    %v1255 = vand.u32 %v1254, 65535
    %v1256 = vshra.s32 %v1254, 16
    %v1257 = vcvt.s32.f32 %v1255
    %v1258 = vcvt.s32.f32 %v1256
    %1259 = vmin.xlane.f32.xlu0 %v1258
    %v1260 = vpop.xlane.xlu0 %1259
    %vm1261 = vcmp.eq.f32.partialorder %v1258, %v1260
    %v1262 = vsel %vm1261, %v1257, inf
    %1263 = vmin.xlane.f32.xlu0 %v1262
    %v1264 = vpop.xlane.xlu0 %1263
    %v1265 = vcvt.f32.s32 %v1264
    %v1266 = vcvt.f32.s32 %v1260
    %v1267 = vshll.u32 %v1266, 16
    %v1268 = vadd.s32 %v1267, %v1265
    %vm1269 = vcmp.eq.s32.totalorder %v58, %v1268
    %v1270 = vsel %vm1269, 1, 0
    %v1271 = vcvt.s32.f32 %v1270
    %1272 = vmatprep.subr.mxu0 0.0
    %1273 = vmatpush1.msra.mxu0 %v60
    %1274 = vmatprep.subr.mxu0 0.0
    %1275 = vmatpush1.msra.mxu0 %v61
    %1276 = vmatprep.subr.mxu0 0.0
    %1277 = vmatpush1.msra.mxu0 %v62
    %1278 = vmatprep.subr.mxu0 0.0
    %1279 = vmatpush1.msra.mxu0 %v63
    %1280 = vmatprep.subr.mxu0 0.0
    %1281 = vmatpush1.msra.mxu0 %v64
    %1282 = vmatprep.subr.mxu0 0.0
    %1283 = vmatpush1.msra.mxu0 %v65
    %1284 = vmatprep.subr.mxu0 0.0
    %1285 = vmatpush1.msra.mxu0 %v66
    %1286 = vmatprep.subr.mxu0 0.0
    %1287 = vmatpush1.msra.mxu0 %v67
    %1288 = vmatprep.subr.mxu0 0.0
    %1289 = vmatpush1.msra.mxu0 %v68
    %1290 = vmatprep.subr.mxu0 0.0
    %1291 = vmatpush1.msra.mxu0 %v69
    %1292 = vmatprep.subr.mxu0 0.0
    %1293 = vmatpush1.msra.mxu0 %v70
    %1294 = vmatprep.subr.mxu0 0.0
    %1295 = vmatpush1.msra.mxu0 %v71
    %1296 = vmatprep.subr.mxu0 0.0
    %1297 = vmatpush1.msra.mxu0 %v72
    %1298 = vmatprep.subr.mxu0 0.0
    %1299 = vmatpush1.msra.mxu0 %v73
    %1300 = vmatprep.subr.mxu0 0.0
    %1301 = vmatpush1.msra.mxu0 %v74
    %1302 = vmatprep.subr.mxu0 0.0
    %1303 = vmatpush1.msra.mxu0 %v75
    %1304 = vmatprep.subr.mxu0 0.0
    %1305 = vmatpush1.msra.mxu0 0.0
    %1306 = vmatprep.subr.mxu0 0.0
    %1307 = vmatpush1.msra.mxu0 0.0
    %1308 = vmatprep.subr.mxu0 0.0
    %1309 = vmatpush1.msra.mxu0 0.0
    %1310 = vmatprep.subr.mxu0 0.0
    %1311 = vmatpush1.msra.mxu0 0.0
    %1312 = vmatprep.subr.mxu0 0.0
    %1313 = vmatpush1.msra.mxu0 0.0
    %1314 = vmatprep.subr.mxu0 0.0
    %1315 = vmatpush1.msra.mxu0 0.0
    %1316 = vmatprep.subr.mxu0 0.0
    %1317 = vmatpush1.msra.mxu0 0.0
    %1318 = vmatprep.subr.mxu0 0.0
    %1319 = vmatpush1.msra.mxu0 0.0
    %1320 = vmatprep.subr.mxu0 0.0
    %1321 = vmatpush1.msra.mxu0 0.0
    %1322 = vmatprep.subr.mxu0 0.0
    %1323 = vmatpush1.msra.mxu0 0.0
    %1324 = vmatprep.subr.mxu0 0.0
    %1325 = vmatpush1.msra.mxu0 0.0
    %1326 = vmatprep.subr.mxu0 0.0
    %1327 = vmatpush1.msra.mxu0 0.0
    %1328 = vmatprep.subr.mxu0 0.0
    %1329 = vmatpush1.msra.mxu0 0.0
    %1330 = vmatprep.subr.mxu0 0.0
    %1331 = vmatpush1.msra.mxu0 0.0
    %1332 = vmatprep.subr.mxu0 0.0
    %1333 = vmatpush1.msra.mxu0 0.0
    %1334 = vmatprep.subr.mxu0 0.0
    %1335 = vmatpush1.msra.mxu0 0.0
    %1336 = vmatprep.mubr.f32.mxu0 0.0
    %1337 = vmatmul.mubr.f32.gmra.mrb[0].mxu0 %v1271
    %v1338 = vpop.f32.mrb[0].mxu0
    %v1339 = vadd.f32 0.0, %v1338
    %v1340 = vpop.f32.mrb[0].mxu0
    %1341 = vdwg.mxu0
    %v1342 = vmul.f32 %v1243, 2.0
    %v1343 = vsub.f32 %v1342, 1.0
    %v1344 = vmul.f32 %v1343, %v1339
    %v1345 = vmul.f32 %v1243, %v1271
    %v1346 = vsub.f32 %v812, %v1345
    %1347 = vst [vmem:[#allocation5 + $0x1] sm:$0x1] %v1107
    %v1348 = vcvt.s32.f32 %v1268
    %v1349 = vsel %vm814, %v1348, 0.0
    %1351 = vset.pattern.permute.xlu0 0
    %1352 = vperm.xlu0 %1351, %v1095
    %v1353 = vpop.permute.xlu0 %1352
    %v1355 = vsel %vm817, %v1353, 0.0
    %v1356 = vadd.f32 %v1349, %v1355
    %v1357 = vsel %vm825, %v1243, 0.0
    %v1358 = vadd.f32 %v1356, %v1357
    %1359 = vst [vmem:[#allocation6 + $0x1] sm:$0x1] %v1358
    %v1361 = vsel %vm91, %v1344, 0
    %1363 = vmatprep.subr.mxu0 0.0
    %1364 = vmatpush1.msra.mxu0 %v165
    %1365 = vmatprep.subr.mxu0 0.0
    %1366 = vmatpush1.msra.mxu0 %v166
    %1367 = vmatprep.subr.mxu0 0.0
    %1368 = vmatpush1.msra.mxu0 %v167
    %1369 = vmatprep.subr.mxu0 0.0
    %1370 = vmatpush1.msra.mxu0 %v168
    %1371 = vmatprep.subr.mxu0 0.0
    %1372 = vmatpush1.msra.mxu0 0.0
    %1373 = vmatprep.subr.mxu0 0.0
    %1374 = vmatpush1.msra.mxu0 0.0
    %1375 = vmatprep.subr.mxu0 0.0
    %1376 = vmatpush1.msra.mxu0 0.0
    %1377 = vmatprep.subr.mxu0 0.0
    %1378 = vmatpush1.msra.mxu0 0.0
    %1379 = vmatprep.subr.mxu0 0.0
    %1380 = vmatpush1.msra.mxu0 0.0
    %1381 = vmatprep.subr.mxu0 0.0
    %1382 = vmatpush1.msra.mxu0 0.0
    %1383 = vmatprep.subr.mxu0 0.0
    %1384 = vmatpush1.msra.mxu0 0.0
    %1385 = vmatprep.subr.mxu0 0.0
    %1386 = vmatpush1.msra.mxu0 0.0
    %1387 = vmatprep.subr.mxu0 0.0
    %1388 = vmatpush1.msra.mxu0 0.0
    %1389 = vmatprep.subr.mxu0 0.0
    %1390 = vmatpush1.msra.mxu0 0.0
    %1391 = vmatprep.subr.mxu0 0.0
    %1392 = vmatpush1.msra.mxu0 0.0
    %1393 = vmatprep.subr.mxu0 0.0
    %1394 = vmatpush1.msra.mxu0 0.0
    %1395 = vmatprep.subr.mxu0 0.0
    %1396 = vmatpush1.msra.mxu0 0.0
    %1397 = vmatprep.subr.mxu0 0.0
    %1398 = vmatpush1.msra.mxu0 0.0
    %1399 = vmatprep.subr.mxu0 0.0
    %1400 = vmatpush1.msra.mxu0 0.0
    %1401 = vmatprep.subr.mxu0 0.0
    %1402 = vmatpush1.msra.mxu0 0.0
    %1403 = vmatprep.subr.mxu0 0.0
    %1404 = vmatpush1.msra.mxu0 0.0
    %1405 = vmatprep.subr.mxu0 0.0
    %1406 = vmatpush1.msra.mxu0 0.0
    %1407 = vmatprep.subr.mxu0 0.0
    %1408 = vmatpush1.msra.mxu0 0.0
    %1409 = vmatprep.subr.mxu0 0.0
    %1410 = vmatpush1.msra.mxu0 0.0
    %1411 = vmatprep.subr.mxu0 0.0
    %1412 = vmatpush1.msra.mxu0 0.0
    %1413 = vmatprep.subr.mxu0 0.0
    %1414 = vmatpush1.msra.mxu0 0.0
    %1415 = vmatprep.subr.mxu0 0.0
    %1416 = vmatpush1.msra.mxu0 0.0
    %1417 = vmatprep.subr.mxu0 0.0
    %1418 = vmatpush1.msra.mxu0 0.0
    %1419 = vmatprep.subr.mxu0 0.0
    %1420 = vmatpush1.msra.mxu0 0.0
    %1421 = vmatprep.subr.mxu0 0.0
    %1422 = vmatpush1.msra.mxu0 0.0
    %1423 = vmatprep.subr.mxu0 0.0
    %1424 = vmatpush1.msra.mxu0 0.0
    %1425 = vmatprep.subr.mxu0 0.0
    %1426 = vmatpush1.msra.mxu0 0.0
    %1427 = vmatprep.mubr.f32.mxu0 0.0
    %1428 = vmatmul.mubr.f32.gmra.mrb[0].mxu0 %v1361
    %v1429 = vpop.f32.mrb[0].mxu0
    %v1430 = vadd.f32 %v169, %v1429
    %v1431 = vpop.f32.mrb[0].mxu0
    %1432 = vdwg.mxu0
    %v1433 = vadd.f32 %v1430, %v162
    %v1434 = vxor.u32 %v1433, 2147483648
    %v1435 = vmul.f32 %v1434, 1.442695
    %v1436 = vpow.pop %v1435
    %v1437 = vadd.f32 %v1436, 1.0
    %v1438 = vrcp.pop %v1437
    %v1439 = vmul.f32 1.0, %v1438
    %v1440 = vmul.f32 %v1439, %v343
    %1442 = vrot.lane.b32.xlu0 %v1440, 64
    %v1443 = vpop.permute.xlu0 %1442
    %v1445 = vadd.f32 %v1430, %v1443
    %v1446 = vtanh.pop %v1445
    %v1447 = vsub.f32 1.0, %v1439
    %1449 = vrot.lane.b32.xlu0 %v1446, 96
    %v1450 = vpop.permute.xlu0 %1449
    %v1452 = vmul.f32 %v1447, %v1450
    %v1453 = vmul.f32 %v1439, %v363
    %v1454 = vadd.f32 %v1452, %v1453
    %1456 = vrot.lane.b32.xlu0 %v1454, 96
    %v1457 = vpop.permute.xlu0 %1456
    %v1458 = vsel %vm91, %v1457, 0
    %1460 = vmatprep.subr.mxu0 0.0
    %1461 = vmatpush1.msra.mxu0 %v253
    %1462 = vmatprep.subr.mxu0 0.0
    %1463 = vmatpush1.msra.mxu0 %v254
    %1464 = vmatprep.subr.mxu0 0.0
    %1465 = vmatpush1.msra.mxu0 %v255
    %1466 = vmatprep.subr.mxu0 0.0
    %1467 = vmatpush1.msra.mxu0 %v256
    %1468 = vmatprep.subr.mxu0 0.0
    %1469 = vmatpush1.msra.mxu0 0.0
    %1470 = vmatprep.subr.mxu0 0.0
    %1471 = vmatpush1.msra.mxu0 0.0
    %1472 = vmatprep.subr.mxu0 0.0
    %1473 = vmatpush1.msra.mxu0 0.0
    %1474 = vmatprep.subr.mxu0 0.0
    %1475 = vmatpush1.msra.mxu0 0.0
    %1476 = vmatprep.subr.mxu0 0.0
    %1477 = vmatpush1.msra.mxu0 0.0
    %1478 = vmatprep.subr.mxu0 0.0
    %1479 = vmatpush1.msra.mxu0 0.0
    %1480 = vmatprep.subr.mxu0 0.0
    %1481 = vmatpush1.msra.mxu0 0.0
    %1482 = vmatprep.subr.mxu0 0.0
    %1483 = vmatpush1.msra.mxu0 0.0
    %1484 = vmatprep.subr.mxu0 0.0
    %1485 = vmatpush1.msra.mxu0 0.0
    %1486 = vmatprep.subr.mxu0 0.0
    %1487 = vmatpush1.msra.mxu0 0.0
    %1488 = vmatprep.subr.mxu0 0.0
    %1489 = vmatpush1.msra.mxu0 0.0
    %1490 = vmatprep.subr.mxu0 0.0
    %1491 = vmatpush1.msra.mxu0 0.0
    %1492 = vmatprep.subr.mxu0 0.0
    %1493 = vmatpush1.msra.mxu0 0.0
    %1494 = vmatprep.subr.mxu0 0.0
    %1495 = vmatpush1.msra.mxu0 0.0
    %1496 = vmatprep.subr.mxu0 0.0
    %1497 = vmatpush1.msra.mxu0 0.0
    %1498 = vmatprep.subr.mxu0 0.0
    %1499 = vmatpush1.msra.mxu0 0.0
    %1500 = vmatprep.subr.mxu0 0.0
    %1501 = vmatpush1.msra.mxu0 0.0
    %1502 = vmatprep.subr.mxu0 0.0
    %1503 = vmatpush1.msra.mxu0 0.0
    %1504 = vmatprep.subr.mxu0 0.0
    %1505 = vmatpush1.msra.mxu0 0.0
    %1506 = vmatprep.subr.mxu0 0.0
    %1507 = vmatpush1.msra.mxu0 0.0
    %1508 = vmatprep.subr.mxu0 0.0
    %1509 = vmatpush1.msra.mxu0 0.0
    %1510 = vmatprep.subr.mxu0 0.0
    %1511 = vmatpush1.msra.mxu0 0.0
    %1512 = vmatprep.subr.mxu0 0.0
    %1513 = vmatpush1.msra.mxu0 0.0
    %1514 = vmatprep.subr.mxu0 0.0
    %1515 = vmatpush1.msra.mxu0 0.0
    %1516 = vmatprep.subr.mxu0 0.0
    %1517 = vmatpush1.msra.mxu0 0.0
    %1518 = vmatprep.subr.mxu0 0.0
    %1519 = vmatpush1.msra.mxu0 0.0
    %1520 = vmatprep.subr.mxu0 0.0
    %1521 = vmatpush1.msra.mxu0 0.0
    %1522 = vmatprep.subr.mxu0 0.0
    %1523 = vmatpush1.msra.mxu0 0.0
    %1524 = vmatprep.mubr.f32.mxu0 0.0
    %1525 = vmatmul.mubr.f32.gmra.mrb[0].mxu0 %v1458
    %v1526 = vpop.f32.mrb[0].mxu0
    %v1527 = vadd.f32 %v258, %v1526
    %v1528 = vpop.f32.mrb[0].mxu0
    %1529 = vdwg.mxu0
    %v1530 = vadd.f32 %v1527, %v249
    %v1531 = vxor.u32 %v1530, 2147483648
    %v1532 = vmul.f32 %v1531, 1.442695
    %v1533 = vpow.pop %v1532
    %v1534 = vadd.f32 %v1533, 1.0
    %v1535 = vrcp.pop %v1534
    %v1536 = vmul.f32 1.0, %v1535
    %v1537 = vmul.f32 %v1536, %v451
    %1539 = vrot.lane.b32.xlu0 %v1537, 64
    %v1540 = vpop.permute.xlu0 %1539
    %v1542 = vadd.f32 %v1527, %v1540
    %v1543 = vtanh.pop %v1542
    %v1544 = vsub.f32 1.0, %v1536
    %1546 = vrot.lane.b32.xlu0 %v1543, 96
    %v1547 = vpop.permute.xlu0 %1546
    %v1549 = vmul.f32 %v1544, %v1547
    %v1550 = vmul.f32 %v1536, %v471
    %v1551 = vadd.f32 %v1549, %v1550
    %1553 = vrot.lane.b32.xlu0 %v1551, 96
    %v1554 = vpop.permute.xlu0 %1553
    %v1555 = vsel %vm91, %v1554, 0
    %1557 = vmatprep.subr.mxu0 %v77
    %1558 = vmatpush1.msra.mxu0 %v76
    %1559 = vmatprep.subr.mxu0 %v79
    %1560 = vmatpush1.msra.mxu0 %v78
    %1561 = vmatprep.subr.mxu0 %v81
    %1562 = vmatpush1.msra.mxu0 %v80
    %1563 = vmatprep.subr.mxu0 %v83
    %1564 = vmatpush1.msra.mxu0 %v82
    %1565 = vmatprep.subr.mxu0 0.0
    %1566 = vmatpush1.msra.mxu0 0.0
    %1567 = vmatprep.subr.mxu0 0.0
    %1568 = vmatpush1.msra.mxu0 0.0
    %1569 = vmatprep.subr.mxu0 0.0
    %1570 = vmatpush1.msra.mxu0 0.0
    %1571 = vmatprep.subr.mxu0 0.0
    %1572 = vmatpush1.msra.mxu0 0.0
    %1573 = vmatprep.subr.mxu0 0.0
    %1574 = vmatpush1.msra.mxu0 0.0
    %1575 = vmatprep.subr.mxu0 0.0
    %1576 = vmatpush1.msra.mxu0 0.0
    %1577 = vmatprep.subr.mxu0 0.0
    %1578 = vmatpush1.msra.mxu0 0.0
    %1579 = vmatprep.subr.mxu0 0.0
    %1580 = vmatpush1.msra.mxu0 0.0
    %1581 = vmatprep.subr.mxu0 0.0
    %1582 = vmatpush1.msra.mxu0 0.0
    %1583 = vmatprep.subr.mxu0 0.0
    %1584 = vmatpush1.msra.mxu0 0.0
    %1585 = vmatprep.subr.mxu0 0.0
    %1586 = vmatpush1.msra.mxu0 0.0
    %1587 = vmatprep.subr.mxu0 0.0
    %1588 = vmatpush1.msra.mxu0 0.0
    %1589 = vmatprep.subr.mxu0 0.0
    %1590 = vmatpush1.msra.mxu0 0.0
    %1591 = vmatprep.subr.mxu0 0.0
    %1592 = vmatpush1.msra.mxu0 0.0
    %1593 = vmatprep.subr.mxu0 0.0
    %1594 = vmatpush1.msra.mxu0 0.0
    %1595 = vmatprep.subr.mxu0 0.0
    %1596 = vmatpush1.msra.mxu0 0.0
    %1597 = vmatprep.subr.mxu0 0.0
    %1598 = vmatpush1.msra.mxu0 0.0
    %1599 = vmatprep.subr.mxu0 0.0
    %1600 = vmatpush1.msra.mxu0 0.0
    %1601 = vmatprep.subr.mxu0 0.0
    %1602 = vmatpush1.msra.mxu0 0.0
    %1603 = vmatprep.subr.mxu0 0.0
    %1604 = vmatpush1.msra.mxu0 0.0
    %1605 = vmatprep.subr.mxu0 0.0
    %1606 = vmatpush1.msra.mxu0 0.0
    %1607 = vmatprep.subr.mxu0 0.0
    %1608 = vmatpush1.msra.mxu0 0.0
    %1609 = vmatprep.subr.mxu0 0.0
    %1610 = vmatpush1.msra.mxu0 0.0
    %1611 = vmatprep.subr.mxu0 0.0
    %1612 = vmatpush1.msra.mxu0 0.0
    %1613 = vmatprep.subr.mxu0 0.0
    %1614 = vmatpush1.msra.mxu0 0.0
    %1615 = vmatprep.subr.mxu0 0.0
    %1616 = vmatpush1.msra.mxu0 0.0
    %1617 = vmatprep.subr.mxu0 0.0
    %1618 = vmatpush1.msra.mxu0 0.0
    %1619 = vmatprep.subr.mxu0 0.0
    %1620 = vmatpush1.msra.mxu0 0.0
    %1621 = vmatprep.mubr.f32.mxu0 0.0
    %1622 = vmatmul.mubr.f32.gmra.mrb[0].mxu0 %v1555
    %v1623 = vpop.f32.mrb[0].mxu0
    %v1624 = vadd.f32 %v482, %v1623
    %v1625 = vpop.f32.mrb[0].mxu0
    %v1626 = vadd.f32 %v486, %v1625
    %1627 = vdwg.mxu0
    %v1628 = vsel %vm562, %v1624, -inf
    %1629 = vmax.xlane.f32.xlu0 %v1628
    %v1630 = vpop.xlane.xlu0 %1629
    %v1631 = vsub.f32 %v1624, %v1630
    %v1632 = vmul.f32 %v1631, 1.442695
    %v1633 = vpow.pop %v1632
    %v1634 = vsel %vm562, %v1633, 0.0
    %1635 = vadd.xlane.f32.xlu0 %v1634
    %v1636 = vpop.xlane.xlu0 %1635
    %v1637 = vrcp.pop %v1636
    %v1638 = vmul.f32 %v1633, %v1637
    %v1639 = vmul.f32 %v1638, %v1346
    %v1640 = vsel %vm562, %v1639, -inf
    %1641 = vmax.xlane.f32.xlu0 %v1640
    %v1642 = vpop.xlane.xlu0 %1641
    %vm1643 = vcmp.eq.f32.partialorder %v1639, %v1642
    %v1644 = vsel %vm1643, %v58, 128
    %v1645 = vsel %vm562, %v1644, 2147483647
    %v1646 = vand.u32 %v1645, 65535
    %v1647 = vshra.s32 %v1645, 16
    %v1648 = vcvt.s32.f32 %v1646
    %v1649 = vcvt.s32.f32 %v1647
    %1650 = vmin.xlane.f32.xlu0 %v1649
    %v1651 = vpop.xlane.xlu0 %1650
    %vm1652 = vcmp.eq.f32.partialorder %v1649, %v1651
    %v1653 = vsel %vm1652, %v1648, inf
    %1654 = vmin.xlane.f32.xlu0 %v1653
    %v1655 = vpop.xlane.xlu0 %1654
    %v1656 = vcvt.f32.s32 %v1655
    %v1657 = vcvt.f32.s32 %v1651
    %v1658 = vshll.u32 %v1657, 16
    %v1659 = vadd.s32 %v1658, %v1656
    %vm1660 = vcmp.eq.s32.totalorder %v58, %v1659
    %v1661 = vsel %vm1660, 1, 0
    %v1662 = vcvt.s32.f32 %v1661
    %v1663 = vadd.f32 %v1662, 0.0
    %vm1664 = vcmp.gt.f32.partialorder %v1662, 0.0
    %v1665 = vsel %vm1664, -1e+30, %v1639
    %v1666 = vsel %vm562, %v1665, -inf
    %1667 = vmax.xlane.f32.xlu0 %v1666
    %v1668 = vpop.xlane.xlu0 %1667
    %vm1669 = vcmp.eq.f32.partialorder %v1665, %v1668
    %v1670 = vsel %vm1669, %v58, 128
    %v1671 = vsel %vm562, %v1670, 2147483647
    %v1672 = vand.u32 %v1671, 65535
    %v1673 = vshra.s32 %v1671, 16
    %v1674 = vcvt.s32.f32 %v1672
    %v1675 = vcvt.s32.f32 %v1673
    %1676 = vmin.xlane.f32.xlu0 %v1675
    %v1677 = vpop.xlane.xlu0 %1676
    %vm1678 = vcmp.eq.f32.partialorder %v1675, %v1677
    %v1679 = vsel %vm1678, %v1674, inf
    %1680 = vmin.xlane.f32.xlu0 %v1679
    %v1681 = vpop.xlane.xlu0 %1680
    %v1682 = vcvt.f32.s32 %v1681
    %v1683 = vcvt.f32.s32 %v1677
    %v1684 = vshll.u32 %v1683, 16
    %v1685 = vadd.s32 %v1684, %v1682
    %vm1686 = vcmp.eq.s32.totalorder %v58, %v1685
    %v1687 = vsel %vm1686, 1, 0
    %v1688 = vcvt.s32.f32 %v1687
    %v1689 = vadd.f32 %v1663, %v1688
    %vm1690 = vcmp.gt.f32.partialorder %v1688, 0.0
    %v1691 = vsel %vm1690, -1e+30, %v1665
    %v1692 = vsel %vm562, %v1691, -inf
    %1693 = vmax.xlane.f32.xlu0 %v1692
    %v1694 = vpop.xlane.xlu0 %1693
    %vm1695 = vcmp.eq.f32.partialorder %v1691, %v1694
    %v1696 = vsel %vm1695, %v58, 128
    %v1697 = vsel %vm562, %v1696, 2147483647
    %v1698 = vand.u32 %v1697, 65535
    %v1699 = vshra.s32 %v1697, 16
    %v1700 = vcvt.s32.f32 %v1698
    %v1701 = vcvt.s32.f32 %v1699
    %1702 = vmin.xlane.f32.xlu0 %v1701
    %v1703 = vpop.xlane.xlu0 %1702
    %vm1704 = vcmp.eq.f32.partialorder %v1701, %v1703
    %v1705 = vsel %vm1704, %v1700, inf
    %1706 = vmin.xlane.f32.xlu0 %v1705
    %v1707 = vpop.xlane.xlu0 %1706
    %v1708 = vcvt.f32.s32 %v1707
    %v1709 = vcvt.f32.s32 %v1703
    %v1710 = vshll.u32 %v1709, 16
    %v1711 = vadd.s32 %v1710, %v1708
    %vm1712 = vcmp.eq.s32.totalorder %v58, %v1711
    %v1713 = vsel %vm1712, 1, 0
    %v1714 = vcvt.s32.f32 %v1713
    %v1715 = vadd.f32 %v1689, %v1714
    %vm1716 = vcmp.gt.f32.partialorder %v1714, 0.0
    %v1717 = vsel %vm1716, -1e+30, %v1691
    %v1718 = vsel %vm562, %v1717, -inf
    %1719 = vmax.xlane.f32.xlu0 %v1718
    %v1720 = vpop.xlane.xlu0 %1719
    %vm1721 = vcmp.eq.f32.partialorder %v1717, %v1720
    %v1722 = vsel %vm1721, %v58, 128
    %v1723 = vsel %vm562, %v1722, 2147483647
    %v1724 = vand.u32 %v1723, 65535
    %v1725 = vshra.s32 %v1723, 16
    %v1726 = vcvt.s32.f32 %v1724
    %v1727 = vcvt.s32.f32 %v1725
    %1728 = vmin.xlane.f32.xlu0 %v1727
    %v1729 = vpop.xlane.xlu0 %1728
    %vm1730 = vcmp.eq.f32.partialorder %v1727, %v1729
    %v1731 = vsel %vm1730, %v1726, inf
    %1732 = vmin.xlane.f32.xlu0 %v1731
    %v1733 = vpop.xlane.xlu0 %1732
    %v1734 = vcvt.f32.s32 %v1733
    %v1735 = vcvt.f32.s32 %v1729
    %v1736 = vshll.u32 %v1735, 16
    %v1737 = vadd.s32 %v1736, %v1734
    %vm1738 = vcmp.eq.s32.totalorder %v58, %v1737
    %v1739 = vsel %vm1738, 1, 0
    %v1740 = vcvt.s32.f32 %v1739
    %v1741 = vadd.f32 %v1715, %v1740
    %vm1742 = vcmp.gt.f32.partialorder %v1740, 0.0
    %v1743 = vsel %vm1742, -1e+30, %v1717
    %v1744 = vsel %vm562, %v1743, -inf
    %1745 = vmax.xlane.f32.xlu0 %v1744
    %v1746 = vpop.xlane.xlu0 %1745
    %vm1747 = vcmp.eq.f32.partialorder %v1743, %v1746
    %v1748 = vsel %vm1747, %v58, 128
    %v1749 = vsel %vm562, %v1748, 2147483647
    %v1750 = vand.u32 %v1749, 65535
    %v1751 = vshra.s32 %v1749, 16
    %v1752 = vcvt.s32.f32 %v1750
    %v1753 = vcvt.s32.f32 %v1751
    %1754 = vmin.xlane.f32.xlu0 %v1753
    %v1755 = vpop.xlane.xlu0 %1754
    %vm1756 = vcmp.eq.f32.partialorder %v1753, %v1755
    %v1757 = vsel %vm1756, %v1752, inf
    %1758 = vmin.xlane.f32.xlu0 %v1757
    %v1759 = vpop.xlane.xlu0 %1758
    %v1760 = vcvt.f32.s32 %v1759
    %v1761 = vcvt.f32.s32 %v1755
    %v1762 = vshll.u32 %v1761, 16
    %v1763 = vadd.s32 %v1762, %v1760
    %vm1764 = vcmp.eq.s32.totalorder %v58, %v1763
    %v1765 = vsel %vm1764, 1, 0
    %v1766 = vcvt.s32.f32 %v1765
    %v1767 = vadd.f32 %v1741, %v1766
    %v1768 = vmul.f32 %v59, %v1767
    %v1769 = vsel %vm562, %v1768, 0.0
    %1770 = vadd.xlane.f32.xlu0 %v1769
    %v1771 = vpop.xlane.xlu0 %1770
    %vm1772 = vcmp.gt.f32.partialorder %v1771, 0.0
    %v1773 = vsel %vm1772, 1, 0
    %v1774 = vcvt.s32.f32 %v1773
    %v1775 = vmul.f32 %v1774, %v1768
    %v1776 = vmul.f32 %v1775, %v1638
    %v1777 = vsub.f32 1.0, %v1774
    %v1778 = vmul.f32 %v1777, %v1639
    %v1779 = vadd.f32 %v1776, %v1778
    %v1780 = vsel %vm562, %v1779, -inf
    %1781 = vmax.xlane.f32.xlu0 %v1780
    %v1782 = vpop.xlane.xlu0 %1781
    %vm1783 = vcmp.eq.f32.partialorder %v1779, %v1782
    %v1784 = vsel %vm1783, %v58, 128
    %v1785 = vsel %vm562, %v1784, 2147483647
    %v1786 = vand.u32 %v1785, 65535
    %v1787 = vshra.s32 %v1785, 16
    %v1788 = vcvt.s32.f32 %v1786
    %v1789 = vcvt.s32.f32 %v1787
    %1790 = vmin.xlane.f32.xlu0 %v1789
    %v1791 = vpop.xlane.xlu0 %1790
    %vm1792 = vcmp.eq.f32.partialorder %v1789, %v1791
    %v1793 = vsel %vm1792, %v1788, inf
    %1794 = vmin.xlane.f32.xlu0 %v1793
    %v1795 = vpop.xlane.xlu0 %1794
    %v1796 = vcvt.f32.s32 %v1795
    %v1797 = vcvt.f32.s32 %v1791
    %v1798 = vshll.u32 %v1797, 16
    %v1799 = vadd.s32 %v1798, %v1796
    %vm1800 = vcmp.eq.s32.totalorder %v58, %v1799
    %v1801 = vsel %vm1800, 1, 0
    %v1802 = vcvt.s32.f32 %v1801
    %1803 = vmatprep.subr.mxu0 0.0
    %1804 = vmatpush1.msra.mxu0 %v60
    %1805 = vmatprep.subr.mxu0 0.0
    %1806 = vmatpush1.msra.mxu0 %v61
    %1807 = vmatprep.subr.mxu0 0.0
    %1808 = vmatpush1.msra.mxu0 %v62
    %1809 = vmatprep.subr.mxu0 0.0
    %1810 = vmatpush1.msra.mxu0 %v63
    %1811 = vmatprep.subr.mxu0 0.0
    %1812 = vmatpush1.msra.mxu0 %v64
    %1813 = vmatprep.subr.mxu0 0.0
    %1814 = vmatpush1.msra.mxu0 %v65
    %1815 = vmatprep.subr.mxu0 0.0
    %1816 = vmatpush1.msra.mxu0 %v66
    %1817 = vmatprep.subr.mxu0 0.0
    %1818 = vmatpush1.msra.mxu0 %v67
    %1819 = vmatprep.subr.mxu0 0.0
    %1820 = vmatpush1.msra.mxu0 %v68
    %1821 = vmatprep.subr.mxu0 0.0
    %1822 = vmatpush1.msra.mxu0 %v69
    %1823 = vmatprep.subr.mxu0 0.0
    %1824 = vmatpush1.msra.mxu0 %v70
    %1825 = vmatprep.subr.mxu0 0.0
    %1826 = vmatpush1.msra.mxu0 %v71
    %1827 = vmatprep.subr.mxu0 0.0
    %1828 = vmatpush1.msra.mxu0 %v72
    %1829 = vmatprep.subr.mxu0 0.0
    %1830 = vmatpush1.msra.mxu0 %v73
    %1831 = vmatprep.subr.mxu0 0.0
    %1832 = vmatpush1.msra.mxu0 %v74
    %1833 = vmatprep.subr.mxu0 0.0
    %1834 = vmatpush1.msra.mxu0 %v75
    %1835 = vmatprep.subr.mxu0 0.0
    %1836 = vmatpush1.msra.mxu0 0.0
    %1837 = vmatprep.subr.mxu0 0.0
    %1838 = vmatpush1.msra.mxu0 0.0
    %1839 = vmatprep.subr.mxu0 0.0
    %1840 = vmatpush1.msra.mxu0 0.0
    %1841 = vmatprep.subr.mxu0 0.0
    %1842 = vmatpush1.msra.mxu0 0.0
    %1843 = vmatprep.subr.mxu0 0.0
    %1844 = vmatpush1.msra.mxu0 0.0
    %1845 = vmatprep.subr.mxu0 0.0
    %1846 = vmatpush1.msra.mxu0 0.0
    %1847 = vmatprep.subr.mxu0 0.0
    %1848 = vmatpush1.msra.mxu0 0.0
    %1849 = vmatprep.subr.mxu0 0.0
    %1850 = vmatpush1.msra.mxu0 0.0
    %1851 = vmatprep.subr.mxu0 0.0
    %1852 = vmatpush1.msra.mxu0 0.0
    %1853 = vmatprep.subr.mxu0 0.0
    %1854 = vmatpush1.msra.mxu0 0.0
    %1855 = vmatprep.subr.mxu0 0.0
    %1856 = vmatpush1.msra.mxu0 0.0
    %1857 = vmatprep.subr.mxu0 0.0
    %1858 = vmatpush1.msra.mxu0 0.0
    %1859 = vmatprep.subr.mxu0 0.0
    %1860 = vmatpush1.msra.mxu0 0.0
    %1861 = vmatprep.subr.mxu0 0.0
    %1862 = vmatpush1.msra.mxu0 0.0
    %1863 = vmatprep.subr.mxu0 0.0
    %1864 = vmatpush1.msra.mxu0 0.0
    %1865 = vmatprep.subr.mxu0 0.0
    %1866 = vmatpush1.msra.mxu0 0.0
    %1867 = vmatprep.mubr.f32.mxu0 0.0
    %1868 = vmatmul.mubr.f32.gmra.mrb[0].mxu0 %v1802
    %v1869 = vpop.f32.mrb[0].mxu0
    %v1870 = vadd.f32 0.0, %v1869
    %v1871 = vpop.f32.mrb[0].mxu0
    %1872 = vdwg.mxu0
    %v1873 = vmul.f32 %v1774, 2.0
    %v1874 = vsub.f32 %v1873, 1.0
    %v1875 = vmul.f32 %v1874, %v1870
    %v1876 = vmul.f32 %v1774, %v1802
    %v1877 = vsub.f32 %v1346, %v1876
    %1878 = vst [vmem:[#allocation5 + $0x2] sm:$0x1] %v1638
    %v1879 = vcvt.s32.f32 %v1799
    %v1880 = vsel %vm814, %v1879, 0.0
    %1882 = vset.pattern.permute.xlu0 0
    %1883 = vperm.xlu0 %1882, %v1626
    %v1884 = vpop.permute.xlu0 %1883
    %v1886 = vsel %vm817, %v1884, 0.0
    %v1887 = vadd.f32 %v1880, %v1886
    %v1888 = vsel %vm825, %v1774, 0.0
    %v1889 = vadd.f32 %v1887, %v1888
    %1890 = vst [vmem:[#allocation6 + $0x2] sm:$0x1] %v1889
    %v1892 = vsel %vm91, %v1875, 0
    %1894 = vmatprep.subr.mxu0 0.0
    %1895 = vmatpush1.msra.mxu0 %v165
    %1896 = vmatprep.subr.mxu0 0.0
    %1897 = vmatpush1.msra.mxu0 %v166
    %1898 = vmatprep.subr.mxu0 0.0
    %1899 = vmatpush1.msra.mxu0 %v167
    %1900 = vmatprep.subr.mxu0 0.0
    %1901 = vmatpush1.msra.mxu0 %v168
    %1902 = vmatprep.subr.mxu0 0.0
    %1903 = vmatpush1.msra.mxu0 0.0
    %1904 = vmatprep.subr.mxu0 0.0
    %1905 = vmatpush1.msra.mxu0 0.0
    %1906 = vmatprep.subr.mxu0 0.0
    %1907 = vmatpush1.msra.mxu0 0.0
    %1908 = vmatprep.subr.mxu0 0.0
    %1909 = vmatpush1.msra.mxu0 0.0
    %1910 = vmatprep.subr.mxu0 0.0
    %1911 = vmatpush1.msra.mxu0 0.0
    %1912 = vmatprep.subr.mxu0 0.0
    %1913 = vmatpush1.msra.mxu0 0.0
    %1914 = vmatprep.subr.mxu0 0.0
    %1915 = vmatpush1.msra.mxu0 0.0
    %1916 = vmatprep.subr.mxu0 0.0
    %1917 = vmatpush1.msra.mxu0 0.0
    %1918 = vmatprep.subr.mxu0 0.0
    %1919 = vmatpush1.msra.mxu0 0.0
    %1920 = vmatprep.subr.mxu0 0.0
    %1921 = vmatpush1.msra.mxu0 0.0
    %1922 = vmatprep.subr.mxu0 0.0
    %1923 = vmatpush1.msra.mxu0 0.0
    %1924 = vmatprep.subr.mxu0 0.0
    %1925 = vmatpush1.msra.mxu0 0.0
    %1926 = vmatprep.subr.mxu0 0.0
    %1927 = vmatpush1.msra.mxu0 0.0
    %1928 = vmatprep.subr.mxu0 0.0
    %1929 = vmatpush1.msra.mxu0 0.0
    %1930 = vmatprep.subr.mxu0 0.0
    %1931 = vmatpush1.msra.mxu0 0.0
    %1932 = vmatprep.subr.mxu0 0.0
    %1933 = vmatpush1.msra.mxu0 0.0
    %1934 = vmatprep.subr.mxu0 0.0
    %1935 = vmatpush1.msra.mxu0 0.0
    %1936 = vmatprep.subr.mxu0 0.0
    %1937 = vmatpush1.msra.mxu0 0.0
    %1938 = vmatprep.subr.mxu0 0.0
    %1939 = vmatpush1.msra.mxu0 0.0
    %1940 = vmatprep.subr.mxu0 0.0
    %1941 = vmatpush1.msra.mxu0 0.0
    %1942 = vmatprep.subr.mxu0 0.0
    %1943 = vmatpush1.msra.mxu0 0.0
    %1944 = vmatprep.subr.mxu0 0.0
    %1945 = vmatpush1.msra.mxu0 0.0
    %1946 = vmatprep.subr.mxu0 0.0
    %1947 = vmatpush1.msra.mxu0 0.0
    %1948 = vmatprep.subr.mxu0 0.0
    %1949 = vmatpush1.msra.mxu0 0.0
    %1950 = vmatprep.subr.mxu0 0.0
    %1951 = vmatpush1.msra.mxu0 0.0
    %1952 = vmatprep.subr.mxu0 0.0
    %1953 = vmatpush1.msra.mxu0 0.0
    %1954 = vmatprep.subr.mxu0 0.0
    %1955 = vmatpush1.msra.mxu0 0.0
    %1956 = vmatprep.subr.mxu0 0.0
    %1957 = vmatpush1.msra.mxu0 0.0
    %1958 = vmatprep.mubr.f32.mxu0 0.0
    %1959 = vmatmul.mubr.f32.gmra.mrb[0].mxu0 %v1892
    %v1960 = vpop.f32.mrb[0].mxu0
    %v1961 = vadd.f32 %v169, %v1960
    %v1962 = vpop.f32.mrb[0].mxu0
    %1963 = vdwg.mxu0
    %v1964 = vadd.f32 %v1961, %v162
    %v1965 = vxor.u32 %v1964, 2147483648
    %v1966 = vmul.f32 %v1965, 1.442695
    %v1967 = vpow.pop %v1966
    %v1968 = vadd.f32 %v1967, 1.0
    %v1969 = vrcp.pop %v1968
    %v1970 = vmul.f32 1.0, %v1969
    %v1971 = vmul.f32 %v1970, %v343
    %1973 = vrot.lane.b32.xlu0 %v1971, 64
    %v1974 = vpop.permute.xlu0 %1973
    %v1976 = vadd.f32 %v1961, %v1974
    %v1977 = vtanh.pop %v1976
    %v1978 = vsub.f32 1.0, %v1970
    %1980 = vrot.lane.b32.xlu0 %v1977, 96
    %v1981 = vpop.permute.xlu0 %1980
    %v1983 = vmul.f32 %v1978, %v1981
    %v1984 = vmul.f32 %v1970, %v363
    %v1985 = vadd.f32 %v1983, %v1984
    %1987 = vrot.lane.b32.xlu0 %v1985, 96
    %v1988 = vpop.permute.xlu0 %1987
    %v1989 = vsel %vm91, %v1988, 0
    %1991 = vmatprep.subr.mxu0 0.0
    %1992 = vmatpush1.msra.mxu0 %v253
    %1993 = vmatprep.subr.mxu0 0.0
    %1994 = vmatpush1.msra.mxu0 %v254
    %1995 = vmatprep.subr.mxu0 0.0
    %1996 = vmatpush1.msra.mxu0 %v255
    %1997 = vmatprep.subr.mxu0 0.0
    %1998 = vmatpush1.msra.mxu0 %v256
    %1999 = vmatprep.subr.mxu0 0.0
    %2000 = vmatpush1.msra.mxu0 0.0
    %2001 = vmatprep.subr.mxu0 0.0
    %2002 = vmatpush1.msra.mxu0 0.0
    %2003 = vmatprep.subr.mxu0 0.0
    %2004 = vmatpush1.msra.mxu0 0.0
    %2005 = vmatprep.subr.mxu0 0.0
    %2006 = vmatpush1.msra.mxu0 0.0
    %2007 = vmatprep.subr.mxu0 0.0
    %2008 = vmatpush1.msra.mxu0 0.0
    %2009 = vmatprep.subr.mxu0 0.0
    %2010 = vmatpush1.msra.mxu0 0.0
    %2011 = vmatprep.subr.mxu0 0.0
    %2012 = vmatpush1.msra.mxu0 0.0
    %2013 = vmatprep.subr.mxu0 0.0
    %2014 = vmatpush1.msra.mxu0 0.0
    %2015 = vmatprep.subr.mxu0 0.0
    %2016 = vmatpush1.msra.mxu0 0.0
    %2017 = vmatprep.subr.mxu0 0.0
    %2018 = vmatpush1.msra.mxu0 0.0
    %2019 = vmatprep.subr.mxu0 0.0
    %2020 = vmatpush1.msra.mxu0 0.0
    %2021 = vmatprep.subr.mxu0 0.0
    %2022 = vmatpush1.msra.mxu0 0.0
    %2023 = vmatprep.subr.mxu0 0.0
    %2024 = vmatpush1.msra.mxu0 0.0
    %2025 = vmatprep.subr.mxu0 0.0
    %2026 = vmatpush1.msra.mxu0 0.0
    %2027 = vmatprep.subr.mxu0 0.0
    %2028 = vmatpush1.msra.mxu0 0.0
    %2029 = vmatprep.subr.mxu0 0.0
    %2030 = vmatpush1.msra.mxu0 0.0
    %2031 = vmatprep.subr.mxu0 0.0
    %2032 = vmatpush1.msra.mxu0 0.0
    %2033 = vmatprep.subr.mxu0 0.0
    %2034 = vmatpush1.msra.mxu0 0.0
    %2035 = vmatprep.subr.mxu0 0.0
    %2036 = vmatpush1.msra.mxu0 0.0
    %2037 = vmatprep.subr.mxu0 0.0
    %2038 = vmatpush1.msra.mxu0 0.0
    %2039 = vmatprep.subr.mxu0 0.0
    %2040 = vmatpush1.msra.mxu0 0.0
    %2041 = vmatprep.subr.mxu0 0.0
    %2042 = vmatpush1.msra.mxu0 0.0
    %2043 = vmatprep.subr.mxu0 0.0
    %2044 = vmatpush1.msra.mxu0 0.0
    %2045 = vmatprep.subr.mxu0 0.0
    %2046 = vmatpush1.msra.mxu0 0.0
    %2047 = vmatprep.subr.mxu0 0.0
    %2048 = vmatpush1.msra.mxu0 0.0
    %2049 = vmatprep.subr.mxu0 0.0
    %2050 = vmatpush1.msra.mxu0 0.0
    %2051 = vmatprep.subr.mxu0 0.0
    %2052 = vmatpush1.msra.mxu0 0.0
    %2053 = vmatprep.subr.mxu0 0.0
    %2054 = vmatpush1.msra.mxu0 0.0
    %2055 = vmatprep.mubr.f32.mxu0 0.0
    %2056 = vmatmul.mubr.f32.gmra.mrb[0].mxu0 %v1989
    %v2057 = vpop.f32.mrb[0].mxu0
    %v2058 = vadd.f32 %v258, %v2057
    %v2059 = vpop.f32.mrb[0].mxu0
    %2060 = vdwg.mxu0
    %v2061 = vadd.f32 %v2058, %v249
    %v2062 = vxor.u32 %v2061, 2147483648
    %v2063 = vmul.f32 %v2062, 1.442695
    %v2064 = vpow.pop %v2063
    %v2065 = vadd.f32 %v2064, 1.0
    %v2066 = vrcp.pop %v2065
    %v2067 = vmul.f32 1.0, %v2066
    %v2068 = vmul.f32 %v2067, %v451
    %2070 = vrot.lane.b32.xlu0 %v2068, 64
    %v2071 = vpop.permute.xlu0 %2070
    %v2073 = vadd.f32 %v2058, %v2071
    %v2074 = vtanh.pop %v2073
    %v2075 = vsub.f32 1.0, %v2067
    %2077 = vrot.lane.b32.xlu0 %v2074, 96
    %v2078 = vpop.permute.xlu0 %2077
    %v2080 = vmul.f32 %v2075, %v2078
    %v2081 = vmul.f32 %v2067, %v471
    %v2082 = vadd.f32 %v2080, %v2081
    %2084 = vrot.lane.b32.xlu0 %v2082, 96
    %v2085 = vpop.permute.xlu0 %2084
    %v2086 = vsel %vm91, %v2085, 0
    %2088 = vmatprep.subr.mxu0 %v77
    %2089 = vmatpush1.msra.mxu0 %v76
    %2090 = vmatprep.subr.mxu0 %v79
    %2091 = vmatpush1.msra.mxu0 %v78
    %2092 = vmatprep.subr.mxu0 %v81
    %2093 = vmatpush1.msra.mxu0 %v80
    %2094 = vmatprep.subr.mxu0 %v83
    %2095 = vmatpush1.msra.mxu0 %v82
    %2096 = vmatprep.subr.mxu0 0.0
    %2097 = vmatpush1.msra.mxu0 0.0
    %2098 = vmatprep.subr.mxu0 0.0
    %2099 = vmatpush1.msra.mxu0 0.0
    %2100 = vmatprep.subr.mxu0 0.0
    %2101 = vmatpush1.msra.mxu0 0.0
    %2102 = vmatprep.subr.mxu0 0.0
    %2103 = vmatpush1.msra.mxu0 0.0
    %2104 = vmatprep.subr.mxu0 0.0
    %2105 = vmatpush1.msra.mxu0 0.0
    %2106 = vmatprep.subr.mxu0 0.0
    %2107 = vmatpush1.msra.mxu0 0.0
    %2108 = vmatprep.subr.mxu0 0.0
    %2109 = vmatpush1.msra.mxu0 0.0
    %2110 = vmatprep.subr.mxu0 0.0
    %2111 = vmatpush1.msra.mxu0 0.0
    %2112 = vmatprep.subr.mxu0 0.0
    %2113 = vmatpush1.msra.mxu0 0.0
    %2114 = vmatprep.subr.mxu0 0.0
    %2115 = vmatpush1.msra.mxu0 0.0
    %2116 = vmatprep.subr.mxu0 0.0
    %2117 = vmatpush1.msra.mxu0 0.0
    %2118 = vmatprep.subr.mxu0 0.0
    %2119 = vmatpush1.msra.mxu0 0.0
    %2120 = vmatprep.subr.mxu0 0.0
    %2121 = vmatpush1.msra.mxu0 0.0
    %2122 = vmatprep.subr.mxu0 0.0
    %2123 = vmatpush1.msra.mxu0 0.0
    %2124 = vmatprep.subr.mxu0 0.0
    %2125 = vmatpush1.msra.mxu0 0.0
    %2126 = vmatprep.subr.mxu0 0.0
    %2127 = vmatpush1.msra.mxu0 0.0
    %2128 = vmatprep.subr.mxu0 0.0
    %2129 = vmatpush1.msra.mxu0 0.0
    %2130 = vmatprep.subr.mxu0 0.0
    %2131 = vmatpush1.msra.mxu0 0.0
    %2132 = vmatprep.subr.mxu0 0.0
    %2133 = vmatpush1.msra.mxu0 0.0
    %2134 = vmatprep.subr.mxu0 0.0
    %2135 = vmatpush1.msra.mxu0 0.0
    %2136 = vmatprep.subr.mxu0 0.0
    %2137 = vmatpush1.msra.mxu0 0.0
    %2138 = vmatprep.subr.mxu0 0.0
    %2139 = vmatpush1.msra.mxu0 0.0
    %2140 = vmatprep.subr.mxu0 0.0
    %2141 = vmatpush1.msra.mxu0 0.0
    %2142 = vmatprep.subr.mxu0 0.0
    %2143 = vmatpush1.msra.mxu0 0.0
    %2144 = vmatprep.subr.mxu0 0.0
    %2145 = vmatpush1.msra.mxu0 0.0
    %2146 = vmatprep.subr.mxu0 0.0
    %2147 = vmatpush1.msra.mxu0 0.0
    %2148 = vmatprep.subr.mxu0 0.0
    %2149 = vmatpush1.msra.mxu0 0.0
    %2150 = vmatprep.subr.mxu0 0.0
    %2151 = vmatpush1.msra.mxu0 0.0
    %2152 = vmatprep.mubr.f32.mxu0 0.0
    %2153 = vmatmul.mubr.f32.gmra.mrb[0].mxu0 %v2086
    %v2154 = vpop.f32.mrb[0].mxu0
    %v2155 = vadd.f32 %v482, %v2154
    %v2156 = vpop.f32.mrb[0].mxu0
    %v2157 = vadd.f32 %v486, %v2156
    %2158 = vdwg.mxu0
    %v2159 = vsel %vm562, %v2155, -inf
    %2160 = vmax.xlane.f32.xlu0 %v2159
    %v2161 = vpop.xlane.xlu0 %2160
    %v2162 = vsub.f32 %v2155, %v2161
    %v2163 = vmul.f32 %v2162, 1.442695
    %v2164 = vpow.pop %v2163
    %v2165 = vsel %vm562, %v2164, 0.0
    %2166 = vadd.xlane.f32.xlu0 %v2165
    %v2167 = vpop.xlane.xlu0 %2166
    %v2168 = vrcp.pop %v2167
    %v2169 = vmul.f32 %v2164, %v2168
    %v2170 = vmul.f32 %v2169, %v1877
    %v2171 = vsel %vm562, %v2170, -inf
    %2172 = vmax.xlane.f32.xlu0 %v2171
    %v2173 = vpop.xlane.xlu0 %2172
    %vm2174 = vcmp.eq.f32.partialorder %v2170, %v2173
    %v2175 = vsel %vm2174, %v58, 128
    %v2176 = vsel %vm562, %v2175, 2147483647
    %v2177 = vand.u32 %v2176, 65535
    %v2178 = vshra.s32 %v2176, 16
    %v2179 = vcvt.s32.f32 %v2177
    %v2180 = vcvt.s32.f32 %v2178
    %2181 = vmin.xlane.f32.xlu0 %v2180
    %v2182 = vpop.xlane.xlu0 %2181
    %vm2183 = vcmp.eq.f32.partialorder %v2180, %v2182
    %v2184 = vsel %vm2183, %v2179, inf
    %2185 = vmin.xlane.f32.xlu0 %v2184
    %v2186 = vpop.xlane.xlu0 %2185
    %v2187 = vcvt.f32.s32 %v2186
    %v2188 = vcvt.f32.s32 %v2182
    %v2189 = vshll.u32 %v2188, 16
    %v2190 = vadd.s32 %v2189, %v2187
    %vm2191 = vcmp.eq.s32.totalorder %v58, %v2190
    %v2192 = vsel %vm2191, 1, 0
    %v2193 = vcvt.s32.f32 %v2192
    %v2194 = vadd.f32 %v2193, 0.0
    %vm2195 = vcmp.gt.f32.partialorder %v2193, 0.0
    %v2196 = vsel %vm2195, -1e+30, %v2170
    %v2197 = vsel %vm562, %v2196, -inf
    %2198 = vmax.xlane.f32.xlu0 %v2197
    %v2199 = vpop.xlane.xlu0 %2198
    %vm2200 = vcmp.eq.f32.partialorder %v2196, %v2199
    %v2201 = vsel %vm2200, %v58, 128
    %v2202 = vsel %vm562, %v2201, 2147483647
    %v2203 = vand.u32 %v2202, 65535
    %v2204 = vshra.s32 %v2202, 16
    %v2205 = vcvt.s32.f32 %v2203
    %v2206 = vcvt.s32.f32 %v2204
    %2207 = vmin.xlane.f32.xlu0 %v2206
    %v2208 = vpop.xlane.xlu0 %2207
    %vm2209 = vcmp.eq.f32.partialorder %v2206, %v2208
    %v2210 = vsel %vm2209, %v2205, inf
    %2211 = vmin.xlane.f32.xlu0 %v2210
    %v2212 = vpop.xlane.xlu0 %2211
    %v2213 = vcvt.f32.s32 %v2212
    %v2214 = vcvt.f32.s32 %v2208
    %v2215 = vshll.u32 %v2214, 16
    %v2216 = vadd.s32 %v2215, %v2213
    %vm2217 = vcmp.eq.s32.totalorder %v58, %v2216
    %v2218 = vsel %vm2217, 1, 0
    %v2219 = vcvt.s32.f32 %v2218
    %v2220 = vadd.f32 %v2194, %v2219
    %vm2221 = vcmp.gt.f32.partialorder %v2219, 0.0
    %v2222 = vsel %vm2221, -1e+30, %v2196
    %v2223 = vsel %vm562, %v2222, -inf
    %2224 = vmax.xlane.f32.xlu0 %v2223
    %v2225 = vpop.xlane.xlu0 %2224
    %vm2226 = vcmp.eq.f32.partialorder %v2222, %v2225
    %v2227 = vsel %vm2226, %v58, 128
    %v2228 = vsel %vm562, %v2227, 2147483647
    %v2229 = vand.u32 %v2228, 65535
    %v2230 = vshra.s32 %v2228, 16
    %v2231 = vcvt.s32.f32 %v2229
    %v2232 = vcvt.s32.f32 %v2230
    %2233 = vmin.xlane.f32.xlu0 %v2232
    %v2234 = vpop.xlane.xlu0 %2233
    %vm2235 = vcmp.eq.f32.partialorder %v2232, %v2234
    %v2236 = vsel %vm2235, %v2231, inf
    %2237 = vmin.xlane.f32.xlu0 %v2236
    %v2238 = vpop.xlane.xlu0 %2237
    %v2239 = vcvt.f32.s32 %v2238
    %v2240 = vcvt.f32.s32 %v2234
    %v2241 = vshll.u32 %v2240, 16
    %v2242 = vadd.s32 %v2241, %v2239
    %vm2243 = vcmp.eq.s32.totalorder %v58, %v2242
    %v2244 = vsel %vm2243, 1, 0
    %v2245 = vcvt.s32.f32 %v2244
    %v2246 = vadd.f32 %v2220, %v2245
    %vm2247 = vcmp.gt.f32.partialorder %v2245, 0.0
    %v2248 = vsel %vm2247, -1e+30, %v2222
    %v2249 = vsel %vm562, %v2248, -inf
    %2250 = vmax.xlane.f32.xlu0 %v2249
    %v2251 = vpop.xlane.xlu0 %2250
    %vm2252 = vcmp.eq.f32.partialorder %v2248, %v2251
    %v2253 = vsel %vm2252, %v58, 128
    %v2254 = vsel %vm562, %v2253, 2147483647
    %v2255 = vand.u32 %v2254, 65535
    %v2256 = vshra.s32 %v2254, 16
    %v2257 = vcvt.s32.f32 %v2255
    %v2258 = vcvt.s32.f32 %v2256
    %2259 = vmin.xlane.f32.xlu0 %v2258
    %v2260 = vpop.xlane.xlu0 %2259
    %vm2261 = vcmp.eq.f32.partialorder %v2258, %v2260
    %v2262 = vsel %vm2261, %v2257, inf
    %2263 = vmin.xlane.f32.xlu0 %v2262
    %v2264 = vpop.xlane.xlu0 %2263
    %v2265 = vcvt.f32.s32 %v2264
    %v2266 = vcvt.f32.s32 %v2260
    %v2267 = vshll.u32 %v2266, 16
    %v2268 = vadd.s32 %v2267, %v2265
    %vm2269 = vcmp.eq.s32.totalorder %v58, %v2268
    %v2270 = vsel %vm2269, 1, 0
    %v2271 = vcvt.s32.f32 %v2270
    %v2272 = vadd.f32 %v2246, %v2271
    %vm2273 = vcmp.gt.f32.partialorder %v2271, 0.0
    %v2274 = vsel %vm2273, -1e+30, %v2248
    %v2275 = vsel %vm562, %v2274, -inf
    %2276 = vmax.xlane.f32.xlu0 %v2275
    %v2277 = vpop.xlane.xlu0 %2276
    %vm2278 = vcmp.eq.f32.partialorder %v2274, %v2277
    %v2279 = vsel %vm2278, %v58, 128
    %v2280 = vsel %vm562, %v2279, 2147483647
    %v2281 = vand.u32 %v2280, 65535
    %v2282 = vshra.s32 %v2280, 16
    %v2283 = vcvt.s32.f32 %v2281
    %v2284 = vcvt.s32.f32 %v2282
    %2285 = vmin.xlane.f32.xlu0 %v2284
    %v2286 = vpop.xlane.xlu0 %2285
    %vm2287 = vcmp.eq.f32.partialorder %v2284, %v2286
    %v2288 = vsel %vm2287, %v2283, inf
    %2289 = vmin.xlane.f32.xlu0 %v2288
    %v2290 = vpop.xlane.xlu0 %2289
    %v2291 = vcvt.f32.s32 %v2290
    %v2292 = vcvt.f32.s32 %v2286
    %v2293 = vshll.u32 %v2292, 16
    %v2294 = vadd.s32 %v2293, %v2291
    %vm2295 = vcmp.eq.s32.totalorder %v58, %v2294
    %v2296 = vsel %vm2295, 1, 0
    %v2297 = vcvt.s32.f32 %v2296
    %v2298 = vadd.f32 %v2272, %v2297
    %v2299 = vmul.f32 %v59, %v2298
    %v2300 = vsel %vm562, %v2299, 0.0
    %2301 = vadd.xlane.f32.xlu0 %v2300
    %v2302 = vpop.xlane.xlu0 %2301
    %vm2303 = vcmp.gt.f32.partialorder %v2302, 0.0
    %v2304 = vsel %vm2303, 1, 0
    %v2305 = vcvt.s32.f32 %v2304
    %v2306 = vmul.f32 %v2305, %v2299
    %v2307 = vmul.f32 %v2306, %v2169
    %v2308 = vsub.f32 1.0, %v2305
    %v2309 = vmul.f32 %v2308, %v2170
    %v2310 = vadd.f32 %v2307, %v2309
    %v2311 = vsel %vm562, %v2310, -inf
    %2312 = vmax.xlane.f32.xlu0 %v2311
    %v2313 = vpop.xlane.xlu0 %2312
    %vm2314 = vcmp.eq.f32.partialorder %v2310, %v2313
    %v2315 = vsel %vm2314, %v58, 128
    %v2316 = vsel %vm562, %v2315, 2147483647
    %v2317 = vand.u32 %v2316, 65535
    %v2318 = vshra.s32 %v2316, 16
    %v2319 = vcvt.s32.f32 %v2317
    %v2320 = vcvt.s32.f32 %v2318
    %2321 = vmin.xlane.f32.xlu0 %v2320
    %v2322 = vpop.xlane.xlu0 %2321
    %vm2323 = vcmp.eq.f32.partialorder %v2320, %v2322
    %v2324 = vsel %vm2323, %v2319, inf
    %2325 = vmin.xlane.f32.xlu0 %v2324
    %v2326 = vpop.xlane.xlu0 %2325
    %v2327 = vcvt.f32.s32 %v2326
    %v2328 = vcvt.f32.s32 %v2322
    %v2329 = vshll.u32 %v2328, 16
    %v2330 = vadd.s32 %v2329, %v2327
    %vm2331 = vcmp.eq.s32.totalorder %v58, %v2330
    %v2332 = vsel %vm2331, 1, 0
    %v2333 = vcvt.s32.f32 %v2332
    %2334 = vmatprep.subr.mxu0 0.0
    %2335 = vmatpush1.msra.mxu0 %v60
    %2336 = vmatprep.subr.mxu0 0.0
    %2337 = vmatpush1.msra.mxu0 %v61
    %2338 = vmatprep.subr.mxu0 0.0
    %2339 = vmatpush1.msra.mxu0 %v62
    %2340 = vmatprep.subr.mxu0 0.0
    %2341 = vmatpush1.msra.mxu0 %v63
    %2342 = vmatprep.subr.mxu0 0.0
    %2343 = vmatpush1.msra.mxu0 %v64
    %2344 = vmatprep.subr.mxu0 0.0
    %2345 = vmatpush1.msra.mxu0 %v65
    %2346 = vmatprep.subr.mxu0 0.0
    %2347 = vmatpush1.msra.mxu0 %v66
    %2348 = vmatprep.subr.mxu0 0.0
    %2349 = vmatpush1.msra.mxu0 %v67
    %2350 = vmatprep.subr.mxu0 0.0
    %2351 = vmatpush1.msra.mxu0 %v68
    %2352 = vmatprep.subr.mxu0 0.0
    %2353 = vmatpush1.msra.mxu0 %v69
    %2354 = vmatprep.subr.mxu0 0.0
    %2355 = vmatpush1.msra.mxu0 %v70
    %2356 = vmatprep.subr.mxu0 0.0
    %2357 = vmatpush1.msra.mxu0 %v71
    %2358 = vmatprep.subr.mxu0 0.0
    %2359 = vmatpush1.msra.mxu0 %v72
    %2360 = vmatprep.subr.mxu0 0.0
    %2361 = vmatpush1.msra.mxu0 %v73
    %2362 = vmatprep.subr.mxu0 0.0
    %2363 = vmatpush1.msra.mxu0 %v74
    %2364 = vmatprep.subr.mxu0 0.0
    %2365 = vmatpush1.msra.mxu0 %v75
    %2366 = vmatprep.subr.mxu0 0.0
    %2367 = vmatpush1.msra.mxu0 0.0
    %2368 = vmatprep.subr.mxu0 0.0
    %2369 = vmatpush1.msra.mxu0 0.0
    %2370 = vmatprep.subr.mxu0 0.0
    %2371 = vmatpush1.msra.mxu0 0.0
    %2372 = vmatprep.subr.mxu0 0.0
    %2373 = vmatpush1.msra.mxu0 0.0
    %2374 = vmatprep.subr.mxu0 0.0
    %2375 = vmatpush1.msra.mxu0 0.0
    %2376 = vmatprep.subr.mxu0 0.0
    %2377 = vmatpush1.msra.mxu0 0.0
    %2378 = vmatprep.subr.mxu0 0.0
    %2379 = vmatpush1.msra.mxu0 0.0
    %2380 = vmatprep.subr.mxu0 0.0
    %2381 = vmatpush1.msra.mxu0 0.0
    %2382 = vmatprep.subr.mxu0 0.0
    %2383 = vmatpush1.msra.mxu0 0.0
    %2384 = vmatprep.subr.mxu0 0.0
    %2385 = vmatpush1.msra.mxu0 0.0
    %2386 = vmatprep.subr.mxu0 0.0
    %2387 = vmatpush1.msra.mxu0 0.0
    %2388 = vmatprep.subr.mxu0 0.0
    %2389 = vmatpush1.msra.mxu0 0.0
    %2390 = vmatprep.subr.mxu0 0.0
    %2391 = vmatpush1.msra.mxu0 0.0
    %2392 = vmatprep.subr.mxu0 0.0
    %2393 = vmatpush1.msra.mxu0 0.0
    %2394 = vmatprep.subr.mxu0 0.0
    %2395 = vmatpush1.msra.mxu0 0.0
    %2396 = vmatprep.subr.mxu0 0.0
    %2397 = vmatpush1.msra.mxu0 0.0
    %2398 = vmatprep.mubr.f32.mxu0 0.0
    %2399 = vmatmul.mubr.f32.gmra.mrb[0].mxu0 %v2333
    %v2400 = vpop.f32.mrb[0].mxu0
    %v2401 = vadd.f32 0.0, %v2400
    %v2402 = vpop.f32.mrb[0].mxu0
    %2403 = vdwg.mxu0
    %v2404 = vmul.f32 %v2305, 2.0
    %v2405 = vsub.f32 %v2404, 1.0
    %v2406 = vmul.f32 %v2405, %v2401
    %v2407 = vmul.f32 %v2305, %v2333
    %v2408 = vsub.f32 %v1877, %v2407
    %2409 = vst [vmem:[#allocation5 + $0x3] sm:$0x1] %v2169
    %v2410 = vcvt.s32.f32 %v2330
    %v2411 = vsel %vm814, %v2410, 0.0
    %2413 = vset.pattern.permute.xlu0 0
    %2414 = vperm.xlu0 %2413, %v2157
    %v2415 = vpop.permute.xlu0 %2414
    %v2417 = vsel %vm817, %v2415, 0.0
    %v2418 = vadd.f32 %v2411, %v2417
    %v2419 = vsel %vm825, %v2305, 0.0
    %v2420 = vadd.f32 %v2418, %v2419
    %2421 = vst [vmem:[#allocation6 + $0x3] sm:$0x1] %v2420
    %v2423 = vsel %vm91, %v2406, 0
    %2425 = vmatprep.subr.mxu0 0.0
    %2426 = vmatpush1.msra.mxu0 %v165
    %2427 = vmatprep.subr.mxu0 0.0
    %2428 = vmatpush1.msra.mxu0 %v166
    %2429 = vmatprep.subr.mxu0 0.0
    %2430 = vmatpush1.msra.mxu0 %v167
    %2431 = vmatprep.subr.mxu0 0.0
    %2432 = vmatpush1.msra.mxu0 %v168
    %2433 = vmatprep.subr.mxu0 0.0
    %2434 = vmatpush1.msra.mxu0 0.0
    %2435 = vmatprep.subr.mxu0 0.0
    %2436 = vmatpush1.msra.mxu0 0.0
    %2437 = vmatprep.subr.mxu0 0.0
    %2438 = vmatpush1.msra.mxu0 0.0
    %2439 = vmatprep.subr.mxu0 0.0
    %2440 = vmatpush1.msra.mxu0 0.0
    %2441 = vmatprep.subr.mxu0 0.0
    %2442 = vmatpush1.msra.mxu0 0.0
    %2443 = vmatprep.subr.mxu0 0.0
    %2444 = vmatpush1.msra.mxu0 0.0
    %2445 = vmatprep.subr.mxu0 0.0
    %2446 = vmatpush1.msra.mxu0 0.0
    %2447 = vmatprep.subr.mxu0 0.0
    %2448 = vmatpush1.msra.mxu0 0.0
    %2449 = vmatprep.subr.mxu0 0.0
    %2450 = vmatpush1.msra.mxu0 0.0
    %2451 = vmatprep.subr.mxu0 0.0
    %2452 = vmatpush1.msra.mxu0 0.0
    %2453 = vmatprep.subr.mxu0 0.0
    %2454 = vmatpush1.msra.mxu0 0.0
    %2455 = vmatprep.subr.mxu0 0.0
    %2456 = vmatpush1.msra.mxu0 0.0
    %2457 = vmatprep.subr.mxu0 0.0
    %2458 = vmatpush1.msra.mxu0 0.0
    %2459 = vmatprep.subr.mxu0 0.0
    %2460 = vmatpush1.msra.mxu0 0.0
    %2461 = vmatprep.subr.mxu0 0.0
    %2462 = vmatpush1.msra.mxu0 0.0
    %2463 = vmatprep.subr.mxu0 0.0
    %2464 = vmatpush1.msra.mxu0 0.0
    %2465 = vmatprep.subr.mxu0 0.0
    %2466 = vmatpush1.msra.mxu0 0.0
    %2467 = vmatprep.subr.mxu0 0.0
    %2468 = vmatpush1.msra.mxu0 0.0
    %2469 = vmatprep.subr.mxu0 0.0
    %2470 = vmatpush1.msra.mxu0 0.0
    %2471 = vmatprep.subr.mxu0 0.0
    %2472 = vmatpush1.msra.mxu0 0.0
    %2473 = vmatprep.subr.mxu0 0.0
    %2474 = vmatpush1.msra.mxu0 0.0
    %2475 = vmatprep.subr.mxu0 0.0
    %2476 = vmatpush1.msra.mxu0 0.0
    %2477 = vmatprep.subr.mxu0 0.0
    %2478 = vmatpush1.msra.mxu0 0.0
    %2479 = vmatprep.subr.mxu0 0.0
    %2480 = vmatpush1.msra.mxu0 0.0
    %2481 = vmatprep.subr.mxu0 0.0
    %2482 = vmatpush1.msra.mxu0 0.0
    %2483 = vmatprep.subr.mxu0 0.0
    %2484 = vmatpush1.msra.mxu0 0.0
    %2485 = vmatprep.subr.mxu0 0.0
    %2486 = vmatpush1.msra.mxu0 0.0
    %2487 = vmatprep.subr.mxu0 0.0
    %2488 = vmatpush1.msra.mxu0 0.0
    %2489 = vmatprep.mubr.f32.mxu0 0.0
    %2490 = vmatmul.mubr.f32.gmra.mrb[0].mxu0 %v2423
    %v2491 = vpop.f32.mrb[0].mxu0
    %v2492 = vadd.f32 %v169, %v2491
    %v2493 = vpop.f32.mrb[0].mxu0
    %2494 = vdwg.mxu0
    %v2495 = vadd.f32 %v2492, %v162
    %v2496 = vxor.u32 %v2495, 2147483648
    %v2497 = vmul.f32 %v2496, 1.442695
    %v2498 = vpow.pop %v2497
    %v2499 = vadd.f32 %v2498, 1.0
    %v2500 = vrcp.pop %v2499
    %v2501 = vmul.f32 1.0, %v2500
    %v2502 = vmul.f32 %v2501, %v343
    %2504 = vrot.lane.b32.xlu0 %v2502, 64
    %v2505 = vpop.permute.xlu0 %2504
    %v2507 = vadd.f32 %v2492, %v2505
    %v2508 = vtanh.pop %v2507
    %v2509 = vsub.f32 1.0, %v2501
    %2511 = vrot.lane.b32.xlu0 %v2508, 96
    %v2512 = vpop.permute.xlu0 %2511
    %v2514 = vmul.f32 %v2509, %v2512
    %v2515 = vmul.f32 %v2501, %v363
    %v2516 = vadd.f32 %v2514, %v2515
    %2518 = vrot.lane.b32.xlu0 %v2516, 96
    %v2519 = vpop.permute.xlu0 %2518
    %v2520 = vsel %vm91, %v2519, 0
    %2522 = vmatprep.subr.mxu0 0.0
    %2523 = vmatpush1.msra.mxu0 %v253
    %2524 = vmatprep.subr.mxu0 0.0
    %2525 = vmatpush1.msra.mxu0 %v254
    %2526 = vmatprep.subr.mxu0 0.0
    %2527 = vmatpush1.msra.mxu0 %v255
    %2528 = vmatprep.subr.mxu0 0.0
    %2529 = vmatpush1.msra.mxu0 %v256
    %2530 = vmatprep.subr.mxu0 0.0
    %2531 = vmatpush1.msra.mxu0 0.0
    %2532 = vmatprep.subr.mxu0 0.0
    %2533 = vmatpush1.msra.mxu0 0.0
    %2534 = vmatprep.subr.mxu0 0.0
    %2535 = vmatpush1.msra.mxu0 0.0
    %2536 = vmatprep.subr.mxu0 0.0
    %2537 = vmatpush1.msra.mxu0 0.0
    %2538 = vmatprep.subr.mxu0 0.0
    %2539 = vmatpush1.msra.mxu0 0.0
    %2540 = vmatprep.subr.mxu0 0.0
    %2541 = vmatpush1.msra.mxu0 0.0
    %2542 = vmatprep.subr.mxu0 0.0
    %2543 = vmatpush1.msra.mxu0 0.0
    %2544 = vmatprep.subr.mxu0 0.0
    %2545 = vmatpush1.msra.mxu0 0.0
    %2546 = vmatprep.subr.mxu0 0.0
    %2547 = vmatpush1.msra.mxu0 0.0
    %2548 = vmatprep.subr.mxu0 0.0
    %2549 = vmatpush1.msra.mxu0 0.0
    %2550 = vmatprep.subr.mxu0 0.0
    %2551 = vmatpush1.msra.mxu0 0.0
    %2552 = vmatprep.subr.mxu0 0.0
    %2553 = vmatpush1.msra.mxu0 0.0
    %2554 = vmatprep.subr.mxu0 0.0
    %2555 = vmatpush1.msra.mxu0 0.0
    %2556 = vmatprep.subr.mxu0 0.0
    %2557 = vmatpush1.msra.mxu0 0.0
    %2558 = vmatprep.subr.mxu0 0.0
    %2559 = vmatpush1.msra.mxu0 0.0
    %2560 = vmatprep.subr.mxu0 0.0
    %2561 = vmatpush1.msra.mxu0 0.0
    %2562 = vmatprep.subr.mxu0 0.0
    %2563 = vmatpush1.msra.mxu0 0.0
    %2564 = vmatprep.subr.mxu0 0.0
    %2565 = vmatpush1.msra.mxu0 0.0
    %2566 = vmatprep.subr.mxu0 0.0
    %2567 = vmatpush1.msra.mxu0 0.0
    %2568 = vmatprep.subr.mxu0 0.0
    %2569 = vmatpush1.msra.mxu0 0.0
    %2570 = vmatprep.subr.mxu0 0.0
    %2571 = vmatpush1.msra.mxu0 0.0
    %2572 = vmatprep.subr.mxu0 0.0
    %2573 = vmatpush1.msra.mxu0 0.0
    %2574 = vmatprep.subr.mxu0 0.0
    %2575 = vmatpush1.msra.mxu0 0.0
    %2576 = vmatprep.subr.mxu0 0.0
    %2577 = vmatpush1.msra.mxu0 0.0
    %2578 = vmatprep.subr.mxu0 0.0
    %2579 = vmatpush1.msra.mxu0 0.0
    %2580 = vmatprep.subr.mxu0 0.0
    %2581 = vmatpush1.msra.mxu0 0.0
    %2582 = vmatprep.subr.mxu0 0.0
    %2583 = vmatpush1.msra.mxu0 0.0
    %2584 = vmatprep.subr.mxu0 0.0
    %2585 = vmatpush1.msra.mxu0 0.0
    %2586 = vmatprep.mubr.f32.mxu0 0.0
    %2587 = vmatmul.mubr.f32.gmra.mrb[0].mxu0 %v2520
    %v2588 = vpop.f32.mrb[0].mxu0
    %v2589 = vadd.f32 %v258, %v2588
    %v2590 = vpop.f32.mrb[0].mxu0
    %2591 = vdwg.mxu0
    %v2592 = vadd.f32 %v2589, %v249
    %v2593 = vxor.u32 %v2592, 2147483648
    %v2594 = vmul.f32 %v2593, 1.442695
    %v2595 = vpow.pop %v2594
    %v2596 = vadd.f32 %v2595, 1.0
    %v2597 = vrcp.pop %v2596
    %v2598 = vmul.f32 1.0, %v2597
    %v2599 = vmul.f32 %v2598, %v451
    %2601 = vrot.lane.b32.xlu0 %v2599, 64
    %v2602 = vpop.permute.xlu0 %2601
    %v2604 = vadd.f32 %v2589, %v2602
    %v2605 = vtanh.pop %v2604
    %v2606 = vsub.f32 1.0, %v2598
    %2608 = vrot.lane.b32.xlu0 %v2605, 96
    %v2609 = vpop.permute.xlu0 %2608
    %v2611 = vmul.f32 %v2606, %v2609
    %v2612 = vmul.f32 %v2598, %v471
    %v2613 = vadd.f32 %v2611, %v2612
    %2615 = vrot.lane.b32.xlu0 %v2613, 96
    %v2616 = vpop.permute.xlu0 %2615
    %v2617 = vsel %vm91, %v2616, 0
    %2619 = vmatprep.subr.mxu0 %v77
    %2620 = vmatpush1.msra.mxu0 %v76
    %2621 = vmatprep.subr.mxu0 %v79
    %2622 = vmatpush1.msra.mxu0 %v78
    %2623 = vmatprep.subr.mxu0 %v81
    %2624 = vmatpush1.msra.mxu0 %v80
    %2625 = vmatprep.subr.mxu0 %v83
    %2626 = vmatpush1.msra.mxu0 %v82
    %2627 = vmatprep.subr.mxu0 0.0
    %2628 = vmatpush1.msra.mxu0 0.0
    %2629 = vmatprep.subr.mxu0 0.0
    %2630 = vmatpush1.msra.mxu0 0.0
    %2631 = vmatprep.subr.mxu0 0.0
    %2632 = vmatpush1.msra.mxu0 0.0
    %2633 = vmatprep.subr.mxu0 0.0
    %2634 = vmatpush1.msra.mxu0 0.0
    %2635 = vmatprep.subr.mxu0 0.0
    %2636 = vmatpush1.msra.mxu0 0.0
    %2637 = vmatprep.subr.mxu0 0.0
    %2638 = vmatpush1.msra.mxu0 0.0
    %2639 = vmatprep.subr.mxu0 0.0
    %2640 = vmatpush1.msra.mxu0 0.0
    %2641 = vmatprep.subr.mxu0 0.0
    %2642 = vmatpush1.msra.mxu0 0.0
    %2643 = vmatprep.subr.mxu0 0.0
    %2644 = vmatpush1.msra.mxu0 0.0
    %2645 = vmatprep.subr.mxu0 0.0
    %2646 = vmatpush1.msra.mxu0 0.0
    %2647 = vmatprep.subr.mxu0 0.0
    %2648 = vmatpush1.msra.mxu0 0.0
    %2649 = vmatprep.subr.mxu0 0.0
    %2650 = vmatpush1.msra.mxu0 0.0
    %2651 = vmatprep.subr.mxu0 0.0
    %2652 = vmatpush1.msra.mxu0 0.0
    %2653 = vmatprep.subr.mxu0 0.0
    %2654 = vmatpush1.msra.mxu0 0.0
    %2655 = vmatprep.subr.mxu0 0.0
    %2656 = vmatpush1.msra.mxu0 0.0
    %2657 = vmatprep.subr.mxu0 0.0
    %2658 = vmatpush1.msra.mxu0 0.0
    %2659 = vmatprep.subr.mxu0 0.0
    %2660 = vmatpush1.msra.mxu0 0.0
    %2661 = vmatprep.subr.mxu0 0.0
    %2662 = vmatpush1.msra.mxu0 0.0
    %2663 = vmatprep.subr.mxu0 0.0
    %2664 = vmatpush1.msra.mxu0 0.0
    %2665 = vmatprep.subr.mxu0 0.0
    %2666 = vmatpush1.msra.mxu0 0.0
    %2667 = vmatprep.subr.mxu0 0.0
    %2668 = vmatpush1.msra.mxu0 0.0
    %2669 = vmatprep.subr.mxu0 0.0
    %2670 = vmatpush1.msra.mxu0 0.0
    %2671 = vmatprep.subr.mxu0 0.0
    %2672 = vmatpush1.msra.mxu0 0.0
    %2673 = vmatprep.subr.mxu0 0.0
    %2674 = vmatpush1.msra.mxu0 0.0
    %2675 = vmatprep.subr.mxu0 0.0
    %2676 = vmatpush1.msra.mxu0 0.0
    %2677 = vmatprep.subr.mxu0 0.0
    %2678 = vmatpush1.msra.mxu0 0.0
    %2679 = vmatprep.subr.mxu0 0.0
    %2680 = vmatpush1.msra.mxu0 0.0
    %2681 = vmatprep.subr.mxu0 0.0
    %2682 = vmatpush1.msra.mxu0 0.0
    %2683 = vmatprep.mubr.f32.mxu0 0.0
    %2684 = vmatmul.mubr.f32.gmra.mrb[0].mxu0 %v2617
    %v2685 = vpop.f32.mrb[0].mxu0
    %v2686 = vadd.f32 %v482, %v2685
    %v2687 = vpop.f32.mrb[0].mxu0
    %v2688 = vadd.f32 %v486, %v2687
    %2689 = vdwg.mxu0
    %v2690 = vsel %vm562, %v2686, -inf
    %2691 = vmax.xlane.f32.xlu0 %v2690
    %v2692 = vpop.xlane.xlu0 %2691
    %v2693 = vsub.f32 %v2686, %v2692
    %v2694 = vmul.f32 %v2693, 1.442695
    %v2695 = vpow.pop %v2694
    %v2696 = vsel %vm562, %v2695, 0.0
    %2697 = vadd.xlane.f32.xlu0 %v2696
    %v2698 = vpop.xlane.xlu0 %2697
    %v2699 = vrcp.pop %v2698
    %v2700 = vmul.f32 %v2695, %v2699
    %v2701 = vmul.f32 %v2700, %v2408
    %v2702 = vsel %vm562, %v2701, -inf
    %2703 = vmax.xlane.f32.xlu0 %v2702
    %v2704 = vpop.xlane.xlu0 %2703
    %vm2705 = vcmp.eq.f32.partialorder %v2701, %v2704
    %v2706 = vsel %vm2705, %v58, 128
    %v2707 = vsel %vm562, %v2706, 2147483647
    %v2708 = vand.u32 %v2707, 65535
    %v2709 = vshra.s32 %v2707, 16
    %v2710 = vcvt.s32.f32 %v2708
    %v2711 = vcvt.s32.f32 %v2709
    %2712 = vmin.xlane.f32.xlu0 %v2711
    %v2713 = vpop.xlane.xlu0 %2712
    %vm2714 = vcmp.eq.f32.partialorder %v2711, %v2713
    %v2715 = vsel %vm2714, %v2710, inf
    %2716 = vmin.xlane.f32.xlu0 %v2715
    %v2717 = vpop.xlane.xlu0 %2716
    %v2718 = vcvt.f32.s32 %v2717
    %v2719 = vcvt.f32.s32 %v2713
    %v2720 = vshll.u32 %v2719, 16
    %v2721 = vadd.s32 %v2720, %v2718
    %vm2722 = vcmp.eq.s32.totalorder %v58, %v2721
    %v2723 = vsel %vm2722, 1, 0
    %v2724 = vcvt.s32.f32 %v2723
    %v2725 = vadd.f32 %v2724, 0.0
    %vm2726 = vcmp.gt.f32.partialorder %v2724, 0.0
    %v2727 = vsel %vm2726, -1e+30, %v2701
    %v2728 = vsel %vm562, %v2727, -inf
    %2729 = vmax.xlane.f32.xlu0 %v2728
    %v2730 = vpop.xlane.xlu0 %2729
    %vm2731 = vcmp.eq.f32.partialorder %v2727, %v2730
    %v2732 = vsel %vm2731, %v58, 128
    %v2733 = vsel %vm562, %v2732, 2147483647
    %v2734 = vand.u32 %v2733, 65535
    %v2735 = vshra.s32 %v2733, 16
    %v2736 = vcvt.s32.f32 %v2734
    %v2737 = vcvt.s32.f32 %v2735
    %2738 = vmin.xlane.f32.xlu0 %v2737
    %v2739 = vpop.xlane.xlu0 %2738
    %vm2740 = vcmp.eq.f32.partialorder %v2737, %v2739
    %v2741 = vsel %vm2740, %v2736, inf
    %2742 = vmin.xlane.f32.xlu0 %v2741
    %v2743 = vpop.xlane.xlu0 %2742
    %v2744 = vcvt.f32.s32 %v2743
    %v2745 = vcvt.f32.s32 %v2739
    %v2746 = vshll.u32 %v2745, 16
    %v2747 = vadd.s32 %v2746, %v2744
    %vm2748 = vcmp.eq.s32.totalorder %v58, %v2747
    %v2749 = vsel %vm2748, 1, 0
    %v2750 = vcvt.s32.f32 %v2749
    %v2751 = vadd.f32 %v2725, %v2750
    %vm2752 = vcmp.gt.f32.partialorder %v2750, 0.0
    %v2753 = vsel %vm2752, -1e+30, %v2727
    %v2754 = vsel %vm562, %v2753, -inf
    %2755 = vmax.xlane.f32.xlu0 %v2754
    %v2756 = vpop.xlane.xlu0 %2755
    %vm2757 = vcmp.eq.f32.partialorder %v2753, %v2756
    %v2758 = vsel %vm2757, %v58, 128
    %v2759 = vsel %vm562, %v2758, 2147483647
    %v2760 = vand.u32 %v2759, 65535
    %v2761 = vshra.s32 %v2759, 16
    %v2762 = vcvt.s32.f32 %v2760
    %v2763 = vcvt.s32.f32 %v2761
    %2764 = vmin.xlane.f32.xlu0 %v2763
    %v2765 = vpop.xlane.xlu0 %2764
    %vm2766 = vcmp.eq.f32.partialorder %v2763, %v2765
    %v2767 = vsel %vm2766, %v2762, inf
    %2768 = vmin.xlane.f32.xlu0 %v2767
    %v2769 = vpop.xlane.xlu0 %2768
    %v2770 = vcvt.f32.s32 %v2769
    %v2771 = vcvt.f32.s32 %v2765
    %v2772 = vshll.u32 %v2771, 16
    %v2773 = vadd.s32 %v2772, %v2770
    %vm2774 = vcmp.eq.s32.totalorder %v58, %v2773
    %v2775 = vsel %vm2774, 1, 0
    %v2776 = vcvt.s32.f32 %v2775
    %v2777 = vadd.f32 %v2751, %v2776
    %vm2778 = vcmp.gt.f32.partialorder %v2776, 0.0
    %v2779 = vsel %vm2778, -1e+30, %v2753
    %v2780 = vsel %vm562, %v2779, -inf
    %2781 = vmax.xlane.f32.xlu0 %v2780
    %v2782 = vpop.xlane.xlu0 %2781
    %vm2783 = vcmp.eq.f32.partialorder %v2779, %v2782
    %v2784 = vsel %vm2783, %v58, 128
    %v2785 = vsel %vm562, %v2784, 2147483647
    %v2786 = vand.u32 %v2785, 65535
    %v2787 = vshra.s32 %v2785, 16
    %v2788 = vcvt.s32.f32 %v2786
    %v2789 = vcvt.s32.f32 %v2787
    %2790 = vmin.xlane.f32.xlu0 %v2789
    %v2791 = vpop.xlane.xlu0 %2790
    %vm2792 = vcmp.eq.f32.partialorder %v2789, %v2791
    %v2793 = vsel %vm2792, %v2788, inf
    %2794 = vmin.xlane.f32.xlu0 %v2793
    %v2795 = vpop.xlane.xlu0 %2794
    %v2796 = vcvt.f32.s32 %v2795
    %v2797 = vcvt.f32.s32 %v2791
    %v2798 = vshll.u32 %v2797, 16
    %v2799 = vadd.s32 %v2798, %v2796
    %vm2800 = vcmp.eq.s32.totalorder %v58, %v2799
    %v2801 = vsel %vm2800, 1, 0
    %v2802 = vcvt.s32.f32 %v2801
    %v2803 = vadd.f32 %v2777, %v2802
    %vm2804 = vcmp.gt.f32.partialorder %v2802, 0.0
    %v2805 = vsel %vm2804, -1e+30, %v2779
    %v2806 = vsel %vm562, %v2805, -inf
    %2807 = vmax.xlane.f32.xlu0 %v2806
    %v2808 = vpop.xlane.xlu0 %2807
    %vm2809 = vcmp.eq.f32.partialorder %v2805, %v2808
    %v2810 = vsel %vm2809, %v58, 128
    %v2811 = vsel %vm562, %v2810, 2147483647
    %v2812 = vand.u32 %v2811, 65535
    %v2813 = vshra.s32 %v2811, 16
    %v2814 = vcvt.s32.f32 %v2812
    %v2815 = vcvt.s32.f32 %v2813
    %2816 = vmin.xlane.f32.xlu0 %v2815
    %v2817 = vpop.xlane.xlu0 %2816
    %vm2818 = vcmp.eq.f32.partialorder %v2815, %v2817
    %v2819 = vsel %vm2818, %v2814, inf
    %2820 = vmin.xlane.f32.xlu0 %v2819
    %v2821 = vpop.xlane.xlu0 %2820
    %v2822 = vcvt.f32.s32 %v2821
    %v2823 = vcvt.f32.s32 %v2817
    %v2824 = vshll.u32 %v2823, 16
    %v2825 = vadd.s32 %v2824, %v2822
    %vm2826 = vcmp.eq.s32.totalorder %v58, %v2825
    %v2827 = vsel %vm2826, 1, 0
    %v2828 = vcvt.s32.f32 %v2827
    %v2829 = vadd.f32 %v2803, %v2828
    %v2830 = vmul.f32 %v59, %v2829
    %v2831 = vsel %vm562, %v2830, 0.0
    %2832 = vadd.xlane.f32.xlu0 %v2831
    %v2833 = vpop.xlane.xlu0 %2832
    %vm2834 = vcmp.gt.f32.partialorder %v2833, 0.0
    %v2835 = vsel %vm2834, 1, 0
    %v2836 = vcvt.s32.f32 %v2835
    %v2837 = vmul.f32 %v2836, %v2830
    %v2838 = vmul.f32 %v2837, %v2700
    %v2839 = vsub.f32 1.0, %v2836
    %v2840 = vmul.f32 %v2839, %v2701
    %v2841 = vadd.f32 %v2838, %v2840
    %v2842 = vsel %vm562, %v2841, -inf
    %2843 = vmax.xlane.f32.xlu0 %v2842
    %v2844 = vpop.xlane.xlu0 %2843
    %vm2845 = vcmp.eq.f32.partialorder %v2841, %v2844
    %v2846 = vsel %vm2845, %v58, 128
    %v2847 = vsel %vm562, %v2846, 2147483647
    %v2848 = vand.u32 %v2847, 65535
    %v2849 = vshra.s32 %v2847, 16
    %v2850 = vcvt.s32.f32 %v2848
    %v2851 = vcvt.s32.f32 %v2849
    %2852 = vmin.xlane.f32.xlu0 %v2851
    %v2853 = vpop.xlane.xlu0 %2852
    %vm2854 = vcmp.eq.f32.partialorder %v2851, %v2853
    %v2855 = vsel %vm2854, %v2850, inf
    %2856 = vmin.xlane.f32.xlu0 %v2855
    %v2857 = vpop.xlane.xlu0 %2856
    %v2858 = vcvt.f32.s32 %v2857
    %v2859 = vcvt.f32.s32 %v2853
    %v2860 = vshll.u32 %v2859, 16
    %v2861 = vadd.s32 %v2860, %v2858
    %vm2862 = vcmp.eq.s32.totalorder %v58, %v2861
    %v2863 = vsel %vm2862, 1, 0
    %v2864 = vcvt.s32.f32 %v2863
    %2865 = vmatprep.subr.mxu0 0.0
    %2866 = vmatpush1.msra.mxu0 %v60
    %2867 = vmatprep.subr.mxu0 0.0
    %2868 = vmatpush1.msra.mxu0 %v61
    %2869 = vmatprep.subr.mxu0 0.0
    %2870 = vmatpush1.msra.mxu0 %v62
    %2871 = vmatprep.subr.mxu0 0.0
    %2872 = vmatpush1.msra.mxu0 %v63
    %2873 = vmatprep.subr.mxu0 0.0
    %2874 = vmatpush1.msra.mxu0 %v64
    %2875 = vmatprep.subr.mxu0 0.0
    %2876 = vmatpush1.msra.mxu0 %v65
    %2877 = vmatprep.subr.mxu0 0.0
    %2878 = vmatpush1.msra.mxu0 %v66
    %2879 = vmatprep.subr.mxu0 0.0
    %2880 = vmatpush1.msra.mxu0 %v67
    %2881 = vmatprep.subr.mxu0 0.0
    %2882 = vmatpush1.msra.mxu0 %v68
    %2883 = vmatprep.subr.mxu0 0.0
    %2884 = vmatpush1.msra.mxu0 %v69
    %2885 = vmatprep.subr.mxu0 0.0
    %2886 = vmatpush1.msra.mxu0 %v70
    %2887 = vmatprep.subr.mxu0 0.0
    %2888 = vmatpush1.msra.mxu0 %v71
    %2889 = vmatprep.subr.mxu0 0.0
    %2890 = vmatpush1.msra.mxu0 %v72
    %2891 = vmatprep.subr.mxu0 0.0
    %2892 = vmatpush1.msra.mxu0 %v73
    %2893 = vmatprep.subr.mxu0 0.0
    %2894 = vmatpush1.msra.mxu0 %v74
    %2895 = vmatprep.subr.mxu0 0.0
    %2896 = vmatpush1.msra.mxu0 %v75
    %2897 = vmatprep.subr.mxu0 0.0
    %2898 = vmatpush1.msra.mxu0 0.0
    %2899 = vmatprep.subr.mxu0 0.0
    %2900 = vmatpush1.msra.mxu0 0.0
    %2901 = vmatprep.subr.mxu0 0.0
    %2902 = vmatpush1.msra.mxu0 0.0
    %2903 = vmatprep.subr.mxu0 0.0
    %2904 = vmatpush1.msra.mxu0 0.0
    %2905 = vmatprep.subr.mxu0 0.0
    %2906 = vmatpush1.msra.mxu0 0.0
    %2907 = vmatprep.subr.mxu0 0.0
    %2908 = vmatpush1.msra.mxu0 0.0
    %2909 = vmatprep.subr.mxu0 0.0
    %2910 = vmatpush1.msra.mxu0 0.0
    %2911 = vmatprep.subr.mxu0 0.0
    %2912 = vmatpush1.msra.mxu0 0.0
    %2913 = vmatprep.subr.mxu0 0.0
    %2914 = vmatpush1.msra.mxu0 0.0
    %2915 = vmatprep.subr.mxu0 0.0
    %2916 = vmatpush1.msra.mxu0 0.0
    %2917 = vmatprep.subr.mxu0 0.0
    %2918 = vmatpush1.msra.mxu0 0.0
    %2919 = vmatprep.subr.mxu0 0.0
    %2920 = vmatpush1.msra.mxu0 0.0
    %2921 = vmatprep.subr.mxu0 0.0
    %2922 = vmatpush1.msra.mxu0 0.0
    %2923 = vmatprep.subr.mxu0 0.0
    %2924 = vmatpush1.msra.mxu0 0.0
    %2925 = vmatprep.subr.mxu0 0.0
    %2926 = vmatpush1.msra.mxu0 0.0
    %2927 = vmatprep.subr.mxu0 0.0
    %2928 = vmatpush1.msra.mxu0 0.0
    %2929 = vmatprep.mubr.f32.mxu0 0.0
    %2930 = vmatmul.mubr.f32.gmra.mrb[0].mxu0 %v2864
    %v2931 = vpop.f32.mrb[0].mxu0
    %v2932 = vadd.f32 0.0, %v2931
    %v2933 = vpop.f32.mrb[0].mxu0
    %2934 = vdwg.mxu0
    %v2935 = vmul.f32 %v2836, 2.0
    %v2936 = vsub.f32 %v2935, 1.0
    %v2937 = vmul.f32 %v2936, %v2932
    %v2938 = vmul.f32 %v2836, %v2864
    %v2939 = vsub.f32 %v2408, %v2938
    %2940 = vst [vmem:[#allocation5 + $0x4] sm:$0x1] %v2700
    %v2941 = vcvt.s32.f32 %v2861
    %v2942 = vsel %vm814, %v2941, 0.0
    %2944 = vset.pattern.permute.xlu0 0
    %2945 = vperm.xlu0 %2944, %v2688
    %v2946 = vpop.permute.xlu0 %2945
    %v2948 = vsel %vm817, %v2946, 0.0
    %v2949 = vadd.f32 %v2942, %v2948
    %v2950 = vsel %vm825, %v2836, 0.0
    %v2951 = vadd.f32 %v2949, %v2950
    %2952 = vst [vmem:[#allocation6 + $0x4] sm:$0x1] %v2951
    %v2954 = vsel %vm91, %v2937, 0
    %2956 = vmatprep.subr.mxu0 0.0
    %2957 = vmatpush1.msra.mxu0 %v165
    %2958 = vmatprep.subr.mxu0 0.0
    %2959 = vmatpush1.msra.mxu0 %v166
    %2960 = vmatprep.subr.mxu0 0.0
    %2961 = vmatpush1.msra.mxu0 %v167
    %2962 = vmatprep.subr.mxu0 0.0
    %2963 = vmatpush1.msra.mxu0 %v168
    %2964 = vmatprep.subr.mxu0 0.0
    %2965 = vmatpush1.msra.mxu0 0.0
    %2966 = vmatprep.subr.mxu0 0.0
    %2967 = vmatpush1.msra.mxu0 0.0
    %2968 = vmatprep.subr.mxu0 0.0
    %2969 = vmatpush1.msra.mxu0 0.0
    %2970 = vmatprep.subr.mxu0 0.0
    %2971 = vmatpush1.msra.mxu0 0.0
    %2972 = vmatprep.subr.mxu0 0.0
    %2973 = vmatpush1.msra.mxu0 0.0
    %2974 = vmatprep.subr.mxu0 0.0
    %2975 = vmatpush1.msra.mxu0 0.0
    %2976 = vmatprep.subr.mxu0 0.0
    %2977 = vmatpush1.msra.mxu0 0.0
    %2978 = vmatprep.subr.mxu0 0.0
    %2979 = vmatpush1.msra.mxu0 0.0
    %2980 = vmatprep.subr.mxu0 0.0
    %2981 = vmatpush1.msra.mxu0 0.0
    %2982 = vmatprep.subr.mxu0 0.0
    %2983 = vmatpush1.msra.mxu0 0.0
    %2984 = vmatprep.subr.mxu0 0.0
    %2985 = vmatpush1.msra.mxu0 0.0
    %2986 = vmatprep.subr.mxu0 0.0
    %2987 = vmatpush1.msra.mxu0 0.0
    %2988 = vmatprep.subr.mxu0 0.0
    %2989 = vmatpush1.msra.mxu0 0.0
    %2990 = vmatprep.subr.mxu0 0.0
    %2991 = vmatpush1.msra.mxu0 0.0
    %2992 = vmatprep.subr.mxu0 0.0
    %2993 = vmatpush1.msra.mxu0 0.0
    %2994 = vmatprep.subr.mxu0 0.0
    %2995 = vmatpush1.msra.mxu0 0.0
    %2996 = vmatprep.subr.mxu0 0.0
    %2997 = vmatpush1.msra.mxu0 0.0
    %2998 = vmatprep.subr.mxu0 0.0
    %2999 = vmatpush1.msra.mxu0 0.0
    %3000 = vmatprep.subr.mxu0 0.0
    %3001 = vmatpush1.msra.mxu0 0.0
    %3002 = vmatprep.subr.mxu0 0.0
    %3003 = vmatpush1.msra.mxu0 0.0
    %3004 = vmatprep.subr.mxu0 0.0
    %3005 = vmatpush1.msra.mxu0 0.0
    %3006 = vmatprep.subr.mxu0 0.0
    %3007 = vmatpush1.msra.mxu0 0.0
    %3008 = vmatprep.subr.mxu0 0.0
    %3009 = vmatpush1.msra.mxu0 0.0
    %3010 = vmatprep.subr.mxu0 0.0
    %3011 = vmatpush1.msra.mxu0 0.0
    %3012 = vmatprep.subr.mxu0 0.0
    %3013 = vmatpush1.msra.mxu0 0.0
    %3014 = vmatprep.subr.mxu0 0.0
    %3015 = vmatpush1.msra.mxu0 0.0
    %3016 = vmatprep.subr.mxu0 0.0
    %3017 = vmatpush1.msra.mxu0 0.0
    %3018 = vmatprep.subr.mxu0 0.0
    %3019 = vmatpush1.msra.mxu0 0.0
    %3020 = vmatprep.mubr.f32.mxu0 0.0
    %3021 = vmatmul.mubr.f32.gmra.mrb[0].mxu0 %v2954
    %v3022 = vpop.f32.mrb[0].mxu0
    %v3023 = vadd.f32 %v169, %v3022
    %v3024 = vpop.f32.mrb[0].mxu0
    %3025 = vdwg.mxu0
    %v3026 = vadd.f32 %v3023, %v162
    %v3027 = vxor.u32 %v3026, 2147483648
    %v3028 = vmul.f32 %v3027, 1.442695
    %v3029 = vpow.pop %v3028
    %v3030 = vadd.f32 %v3029, 1.0
    %v3031 = vrcp.pop %v3030
    %v3032 = vmul.f32 1.0, %v3031
    %v3033 = vmul.f32 %v3032, %v343
    %3035 = vrot.lane.b32.xlu0 %v3033, 64
    %v3036 = vpop.permute.xlu0 %3035
    %v3038 = vadd.f32 %v3023, %v3036
    %v3039 = vtanh.pop %v3038
    %v3040 = vsub.f32 1.0, %v3032
    %3042 = vrot.lane.b32.xlu0 %v3039, 96
    %v3043 = vpop.permute.xlu0 %3042
    %v3045 = vmul.f32 %v3040, %v3043
    %v3046 = vmul.f32 %v3032, %v363
    %v3047 = vadd.f32 %v3045, %v3046
    %3049 = vrot.lane.b32.xlu0 %v3047, 96
    %v3050 = vpop.permute.xlu0 %3049
    %v3051 = vsel %vm91, %v3050, 0
    %3053 = vmatprep.subr.mxu0 0.0
    %3054 = vmatpush1.msra.mxu0 %v253
    %3055 = vmatprep.subr.mxu0 0.0
    %3056 = vmatpush1.msra.mxu0 %v254
    %3057 = vmatprep.subr.mxu0 0.0
    %3058 = vmatpush1.msra.mxu0 %v255
    %3059 = vmatprep.subr.mxu0 0.0
    %3060 = vmatpush1.msra.mxu0 %v256
    %3061 = vmatprep.subr.mxu0 0.0
    %3062 = vmatpush1.msra.mxu0 0.0
    %3063 = vmatprep.subr.mxu0 0.0
    %3064 = vmatpush1.msra.mxu0 0.0
    %3065 = vmatprep.subr.mxu0 0.0
    %3066 = vmatpush1.msra.mxu0 0.0
    %3067 = vmatprep.subr.mxu0 0.0
    %3068 = vmatpush1.msra.mxu0 0.0
    %3069 = vmatprep.subr.mxu0 0.0
    %3070 = vmatpush1.msra.mxu0 0.0
    %3071 = vmatprep.subr.mxu0 0.0
    %3072 = vmatpush1.msra.mxu0 0.0
    %3073 = vmatprep.subr.mxu0 0.0
    %3074 = vmatpush1.msra.mxu0 0.0
    %3075 = vmatprep.subr.mxu0 0.0
    %3076 = vmatpush1.msra.mxu0 0.0
    %3077 = vmatprep.subr.mxu0 0.0
    %3078 = vmatpush1.msra.mxu0 0.0
    %3079 = vmatprep.subr.mxu0 0.0
    %3080 = vmatpush1.msra.mxu0 0.0
    %3081 = vmatprep.subr.mxu0 0.0
    %3082 = vmatpush1.msra.mxu0 0.0
    %3083 = vmatprep.subr.mxu0 0.0
    %3084 = vmatpush1.msra.mxu0 0.0
    %3085 = vmatprep.subr.mxu0 0.0
    %3086 = vmatpush1.msra.mxu0 0.0
    %3087 = vmatprep.subr.mxu0 0.0
    %3088 = vmatpush1.msra.mxu0 0.0
    %3089 = vmatprep.subr.mxu0 0.0
    %3090 = vmatpush1.msra.mxu0 0.0
    %3091 = vmatprep.subr.mxu0 0.0
    %3092 = vmatpush1.msra.mxu0 0.0
    %3093 = vmatprep.subr.mxu0 0.0
    %3094 = vmatpush1.msra.mxu0 0.0
    %3095 = vmatprep.subr.mxu0 0.0
    %3096 = vmatpush1.msra.mxu0 0.0
    %3097 = vmatprep.subr.mxu0 0.0
    %3098 = vmatpush1.msra.mxu0 0.0
    %3099 = vmatprep.subr.mxu0 0.0
    %3100 = vmatpush1.msra.mxu0 0.0
    %3101 = vmatprep.subr.mxu0 0.0
    %3102 = vmatpush1.msra.mxu0 0.0
    %3103 = vmatprep.subr.mxu0 0.0
    %3104 = vmatpush1.msra.mxu0 0.0
    %3105 = vmatprep.subr.mxu0 0.0
    %3106 = vmatpush1.msra.mxu0 0.0
    %3107 = vmatprep.subr.mxu0 0.0
    %3108 = vmatpush1.msra.mxu0 0.0
    %3109 = vmatprep.subr.mxu0 0.0
    %3110 = vmatpush1.msra.mxu0 0.0
    %3111 = vmatprep.subr.mxu0 0.0
    %3112 = vmatpush1.msra.mxu0 0.0
    %3113 = vmatprep.subr.mxu0 0.0
    %3114 = vmatpush1.msra.mxu0 0.0
    %3115 = vmatprep.subr.mxu0 0.0
    %3116 = vmatpush1.msra.mxu0 0.0
    %3117 = vmatprep.mubr.f32.mxu0 0.0
    %3118 = vmatmul.mubr.f32.gmra.mrb[0].mxu0 %v3051
    %v3119 = vpop.f32.mrb[0].mxu0
    %v3120 = vadd.f32 %v258, %v3119
    %v3121 = vpop.f32.mrb[0].mxu0
    %3122 = vdwg.mxu0
    %v3123 = vadd.f32 %v3120, %v249
    %v3124 = vxor.u32 %v3123, 2147483648
    %v3125 = vmul.f32 %v3124, 1.442695
    %v3126 = vpow.pop %v3125
    %v3127 = vadd.f32 %v3126, 1.0
    %v3128 = vrcp.pop %v3127
    %v3129 = vmul.f32 1.0, %v3128
    %v3130 = vmul.f32 %v3129, %v451
    %3132 = vrot.lane.b32.xlu0 %v3130, 64
    %v3133 = vpop.permute.xlu0 %3132
    %v3135 = vadd.f32 %v3120, %v3133
    %v3136 = vtanh.pop %v3135
    %v3137 = vsub.f32 1.0, %v3129
    %3139 = vrot.lane.b32.xlu0 %v3136, 96
    %v3140 = vpop.permute.xlu0 %3139
    %v3142 = vmul.f32 %v3137, %v3140
    %v3143 = vmul.f32 %v3129, %v471
    %v3144 = vadd.f32 %v3142, %v3143
    %3146 = vrot.lane.b32.xlu0 %v3144, 96
    %v3147 = vpop.permute.xlu0 %3146
    %v3148 = vsel %vm91, %v3147, 0
    %3150 = vmatprep.subr.mxu0 %v77
    %3151 = vmatpush1.msra.mxu0 %v76
    %3152 = vmatprep.subr.mxu0 %v79
    %3153 = vmatpush1.msra.mxu0 %v78
    %3154 = vmatprep.subr.mxu0 %v81
    %3155 = vmatpush1.msra.mxu0 %v80
    %3156 = vmatprep.subr.mxu0 %v83
    %3157 = vmatpush1.msra.mxu0 %v82
    %3158 = vmatprep.subr.mxu0 0.0
    %3159 = vmatpush1.msra.mxu0 0.0
    %3160 = vmatprep.subr.mxu0 0.0
    %3161 = vmatpush1.msra.mxu0 0.0
    %3162 = vmatprep.subr.mxu0 0.0
    %3163 = vmatpush1.msra.mxu0 0.0
    %3164 = vmatprep.subr.mxu0 0.0
    %3165 = vmatpush1.msra.mxu0 0.0
    %3166 = vmatprep.subr.mxu0 0.0
    %3167 = vmatpush1.msra.mxu0 0.0
    %3168 = vmatprep.subr.mxu0 0.0
    %3169 = vmatpush1.msra.mxu0 0.0
    %3170 = vmatprep.subr.mxu0 0.0
    %3171 = vmatpush1.msra.mxu0 0.0
    %3172 = vmatprep.subr.mxu0 0.0
    %3173 = vmatpush1.msra.mxu0 0.0
    %3174 = vmatprep.subr.mxu0 0.0
    %3175 = vmatpush1.msra.mxu0 0.0
    %3176 = vmatprep.subr.mxu0 0.0
    %3177 = vmatpush1.msra.mxu0 0.0
    %3178 = vmatprep.subr.mxu0 0.0
    %3179 = vmatpush1.msra.mxu0 0.0
    %3180 = vmatprep.subr.mxu0 0.0
    %3181 = vmatpush1.msra.mxu0 0.0
    %3182 = vmatprep.subr.mxu0 0.0
    %3183 = vmatpush1.msra.mxu0 0.0
    %3184 = vmatprep.subr.mxu0 0.0
    %3185 = vmatpush1.msra.mxu0 0.0
    %3186 = vmatprep.subr.mxu0 0.0
    %3187 = vmatpush1.msra.mxu0 0.0
    %3188 = vmatprep.subr.mxu0 0.0
    %3189 = vmatpush1.msra.mxu0 0.0
    %3190 = vmatprep.subr.mxu0 0.0
    %3191 = vmatpush1.msra.mxu0 0.0
    %3192 = vmatprep.subr.mxu0 0.0
    %3193 = vmatpush1.msra.mxu0 0.0
    %3194 = vmatprep.subr.mxu0 0.0
    %3195 = vmatpush1.msra.mxu0 0.0
    %3196 = vmatprep.subr.mxu0 0.0
    %3197 = vmatpush1.msra.mxu0 0.0
    %3198 = vmatprep.subr.mxu0 0.0
    %3199 = vmatpush1.msra.mxu0 0.0
    %3200 = vmatprep.subr.mxu0 0.0
    %3201 = vmatpush1.msra.mxu0 0.0
    %3202 = vmatprep.subr.mxu0 0.0
    %3203 = vmatpush1.msra.mxu0 0.0
    %3204 = vmatprep.subr.mxu0 0.0
    %3205 = vmatpush1.msra.mxu0 0.0
    %3206 = vmatprep.subr.mxu0 0.0
    %3207 = vmatpush1.msra.mxu0 0.0
    %3208 = vmatprep.subr.mxu0 0.0
    %3209 = vmatpush1.msra.mxu0 0.0
    %3210 = vmatprep.subr.mxu0 0.0
    %3211 = vmatpush1.msra.mxu0 0.0
    %3212 = vmatprep.subr.mxu0 0.0
    %3213 = vmatpush1.msra.mxu0 0.0
    %3214 = vmatprep.mubr.f32.mxu0 0.0
    %3215 = vmatmul.mubr.f32.gmra.mrb[0].mxu0 %v3148
    %v3216 = vpop.f32.mrb[0].mxu0
    %v3217 = vadd.f32 %v482, %v3216
    %v3218 = vpop.f32.mrb[0].mxu0
    %v3219 = vadd.f32 %v486, %v3218
    %3220 = vdwg.mxu0
    %v3221 = vsel %vm562, %v3217, -inf
    %3222 = vmax.xlane.f32.xlu0 %v3221
    %v3223 = vpop.xlane.xlu0 %3222
    %v3224 = vsub.f32 %v3217, %v3223
    %v3225 = vmul.f32 %v3224, 1.442695
    %v3226 = vpow.pop %v3225
    %v3227 = vsel %vm562, %v3226, 0.0
    %3228 = vadd.xlane.f32.xlu0 %v3227
    %v3229 = vpop.xlane.xlu0 %3228
    %v3230 = vrcp.pop %v3229
    %v3231 = vmul.f32 %v3226, %v3230
    %v3232 = vmul.f32 %v3231, %v2939
    %v3233 = vsel %vm562, %v3232, -inf
    %3234 = vmax.xlane.f32.xlu0 %v3233
    %v3235 = vpop.xlane.xlu0 %3234
    %vm3236 = vcmp.eq.f32.partialorder %v3232, %v3235
    %v3237 = vsel %vm3236, %v58, 128
    %v3238 = vsel %vm562, %v3237, 2147483647
    %v3239 = vand.u32 %v3238, 65535
    %v3240 = vshra.s32 %v3238, 16
    %v3241 = vcvt.s32.f32 %v3239
    %v3242 = vcvt.s32.f32 %v3240
    %3243 = vmin.xlane.f32.xlu0 %v3242
    %v3244 = vpop.xlane.xlu0 %3243
    %vm3245 = vcmp.eq.f32.partialorder %v3242, %v3244
    %v3246 = vsel %vm3245, %v3241, inf
    %3247 = vmin.xlane.f32.xlu0 %v3246
    %v3248 = vpop.xlane.xlu0 %3247
    %v3249 = vcvt.f32.s32 %v3248
    %v3250 = vcvt.f32.s32 %v3244
    %v3251 = vshll.u32 %v3250, 16
    %v3252 = vadd.s32 %v3251, %v3249
    %vm3253 = vcmp.eq.s32.totalorder %v58, %v3252
    %v3254 = vsel %vm3253, 1, 0
    %v3255 = vcvt.s32.f32 %v3254
    %v3256 = vadd.f32 %v3255, 0.0
    %vm3257 = vcmp.gt.f32.partialorder %v3255, 0.0
    %v3258 = vsel %vm3257, -1e+30, %v3232
    %v3259 = vsel %vm562, %v3258, -inf
    %3260 = vmax.xlane.f32.xlu0 %v3259
    %v3261 = vpop.xlane.xlu0 %3260
    %vm3262 = vcmp.eq.f32.partialorder %v3258, %v3261
    %v3263 = vsel %vm3262, %v58, 128
    %v3264 = vsel %vm562, %v3263, 2147483647
    %v3265 = vand.u32 %v3264, 65535
    %v3266 = vshra.s32 %v3264, 16
    %v3267 = vcvt.s32.f32 %v3265
    %v3268 = vcvt.s32.f32 %v3266
    %3269 = vmin.xlane.f32.xlu0 %v3268
    %v3270 = vpop.xlane.xlu0 %3269
    %vm3271 = vcmp.eq.f32.partialorder %v3268, %v3270
    %v3272 = vsel %vm3271, %v3267, inf
    %3273 = vmin.xlane.f32.xlu0 %v3272
    %v3274 = vpop.xlane.xlu0 %3273
    %v3275 = vcvt.f32.s32 %v3274
    %v3276 = vcvt.f32.s32 %v3270
    %v3277 = vshll.u32 %v3276, 16
    %v3278 = vadd.s32 %v3277, %v3275
    %vm3279 = vcmp.eq.s32.totalorder %v58, %v3278
    %v3280 = vsel %vm3279, 1, 0
    %v3281 = vcvt.s32.f32 %v3280
    %v3282 = vadd.f32 %v3256, %v3281
    %vm3283 = vcmp.gt.f32.partialorder %v3281, 0.0
    %v3284 = vsel %vm3283, -1e+30, %v3258
    %v3285 = vsel %vm562, %v3284, -inf
    %3286 = vmax.xlane.f32.xlu0 %v3285
    %v3287 = vpop.xlane.xlu0 %3286
    %vm3288 = vcmp.eq.f32.partialorder %v3284, %v3287
    %v3289 = vsel %vm3288, %v58, 128
    %v3290 = vsel %vm562, %v3289, 2147483647
    %v3291 = vand.u32 %v3290, 65535
    %v3292 = vshra.s32 %v3290, 16
    %v3293 = vcvt.s32.f32 %v3291
    %v3294 = vcvt.s32.f32 %v3292
    %3295 = vmin.xlane.f32.xlu0 %v3294
    %v3296 = vpop.xlane.xlu0 %3295
    %vm3297 = vcmp.eq.f32.partialorder %v3294, %v3296
    %v3298 = vsel %vm3297, %v3293, inf
    %3299 = vmin.xlane.f32.xlu0 %v3298
    %v3300 = vpop.xlane.xlu0 %3299
    %v3301 = vcvt.f32.s32 %v3300
    %v3302 = vcvt.f32.s32 %v3296
    %v3303 = vshll.u32 %v3302, 16
    %v3304 = vadd.s32 %v3303, %v3301
    %vm3305 = vcmp.eq.s32.totalorder %v58, %v3304
    %v3306 = vsel %vm3305, 1, 0
    %v3307 = vcvt.s32.f32 %v3306
    %v3308 = vadd.f32 %v3282, %v3307
    %vm3309 = vcmp.gt.f32.partialorder %v3307, 0.0
    %v3310 = vsel %vm3309, -1e+30, %v3284
    %v3311 = vsel %vm562, %v3310, -inf
    %3312 = vmax.xlane.f32.xlu0 %v3311
    %v3313 = vpop.xlane.xlu0 %3312
    %vm3314 = vcmp.eq.f32.partialorder %v3310, %v3313
    %v3315 = vsel %vm3314, %v58, 128
    %v3316 = vsel %vm562, %v3315, 2147483647
    %v3317 = vand.u32 %v3316, 65535
    %v3318 = vshra.s32 %v3316, 16
    %v3319 = vcvt.s32.f32 %v3317
    %v3320 = vcvt.s32.f32 %v3318
    %3321 = vmin.xlane.f32.xlu0 %v3320
    %v3322 = vpop.xlane.xlu0 %3321
    %vm3323 = vcmp.eq.f32.partialorder %v3320, %v3322
    %v3324 = vsel %vm3323, %v3319, inf
    %3325 = vmin.xlane.f32.xlu0 %v3324
    %v3326 = vpop.xlane.xlu0 %3325
    %v3327 = vcvt.f32.s32 %v3326
    %v3328 = vcvt.f32.s32 %v3322
    %v3329 = vshll.u32 %v3328, 16
    %v3330 = vadd.s32 %v3329, %v3327
    %vm3331 = vcmp.eq.s32.totalorder %v58, %v3330
    %v3332 = vsel %vm3331, 1, 0
    %v3333 = vcvt.s32.f32 %v3332
    %v3334 = vadd.f32 %v3308, %v3333
    %vm3335 = vcmp.gt.f32.partialorder %v3333, 0.0
    %v3336 = vsel %vm3335, -1e+30, %v3310
    %v3337 = vsel %vm562, %v3336, -inf
    %3338 = vmax.xlane.f32.xlu0 %v3337
    %v3339 = vpop.xlane.xlu0 %3338
    %vm3340 = vcmp.eq.f32.partialorder %v3336, %v3339
    %v3341 = vsel %vm3340, %v58, 128
    %v3342 = vsel %vm562, %v3341, 2147483647
    %v3343 = vand.u32 %v3342, 65535
    %v3344 = vshra.s32 %v3342, 16
    %v3345 = vcvt.s32.f32 %v3343
    %v3346 = vcvt.s32.f32 %v3344
    %3347 = vmin.xlane.f32.xlu0 %v3346
    %v3348 = vpop.xlane.xlu0 %3347
    %vm3349 = vcmp.eq.f32.partialorder %v3346, %v3348
    %v3350 = vsel %vm3349, %v3345, inf
    %3351 = vmin.xlane.f32.xlu0 %v3350
    %v3352 = vpop.xlane.xlu0 %3351
    %v3353 = vcvt.f32.s32 %v3352
    %v3354 = vcvt.f32.s32 %v3348
    %v3355 = vshll.u32 %v3354, 16
    %v3356 = vadd.s32 %v3355, %v3353
    %vm3357 = vcmp.eq.s32.totalorder %v58, %v3356
    %v3358 = vsel %vm3357, 1, 0
    %v3359 = vcvt.s32.f32 %v3358
    %v3360 = vadd.f32 %v3334, %v3359
    %v3361 = vmul.f32 %v59, %v3360
    %v3362 = vsel %vm562, %v3361, 0.0
    %3363 = vadd.xlane.f32.xlu0 %v3362
    %v3364 = vpop.xlane.xlu0 %3363
    %vm3365 = vcmp.gt.f32.partialorder %v3364, 0.0
    %v3366 = vsel %vm3365, 1, 0
    %v3367 = vcvt.s32.f32 %v3366
    %v3368 = vmul.f32 %v3367, %v3361
    %v3369 = vmul.f32 %v3368, %v3231
    %v3370 = vsub.f32 1.0, %v3367
    %v3371 = vmul.f32 %v3370, %v3232
    %v3372 = vadd.f32 %v3369, %v3371
    %v3373 = vsel %vm562, %v3372, -inf
    %3374 = vmax.xlane.f32.xlu0 %v3373
    %v3375 = vpop.xlane.xlu0 %3374
    %vm3376 = vcmp.eq.f32.partialorder %v3372, %v3375
    %v3377 = vsel %vm3376, %v58, 128
    %v3378 = vsel %vm562, %v3377, 2147483647
    %v3379 = vand.u32 %v3378, 65535
    %v3380 = vshra.s32 %v3378, 16
    %v3381 = vcvt.s32.f32 %v3379
    %v3382 = vcvt.s32.f32 %v3380
    %3383 = vmin.xlane.f32.xlu0 %v3382
    %v3384 = vpop.xlane.xlu0 %3383
    %vm3385 = vcmp.eq.f32.partialorder %v3382, %v3384
    %v3386 = vsel %vm3385, %v3381, inf
    %3387 = vmin.xlane.f32.xlu0 %v3386
    %v3388 = vpop.xlane.xlu0 %3387
    %v3389 = vcvt.f32.s32 %v3388
    %v3390 = vcvt.f32.s32 %v3384
    %v3391 = vshll.u32 %v3390, 16
    %v3392 = vadd.s32 %v3391, %v3389
    %vm3393 = vcmp.eq.s32.totalorder %v58, %v3392
    %v3394 = vsel %vm3393, 1, 0
    %v3395 = vcvt.s32.f32 %v3394
    %3396 = vmatprep.subr.mxu0 0.0
    %3397 = vmatpush1.msra.mxu0 %v60
    %3398 = vmatprep.subr.mxu0 0.0
    %3399 = vmatpush1.msra.mxu0 %v61
    %3400 = vmatprep.subr.mxu0 0.0
    %3401 = vmatpush1.msra.mxu0 %v62
    %3402 = vmatprep.subr.mxu0 0.0
    %3403 = vmatpush1.msra.mxu0 %v63
    %3404 = vmatprep.subr.mxu0 0.0
    %3405 = vmatpush1.msra.mxu0 %v64
    %3406 = vmatprep.subr.mxu0 0.0
    %3407 = vmatpush1.msra.mxu0 %v65
    %3408 = vmatprep.subr.mxu0 0.0
    %3409 = vmatpush1.msra.mxu0 %v66
    %3410 = vmatprep.subr.mxu0 0.0
    %3411 = vmatpush1.msra.mxu0 %v67
    %3412 = vmatprep.subr.mxu0 0.0
    %3413 = vmatpush1.msra.mxu0 %v68
    %3414 = vmatprep.subr.mxu0 0.0
    %3415 = vmatpush1.msra.mxu0 %v69
    %3416 = vmatprep.subr.mxu0 0.0
    %3417 = vmatpush1.msra.mxu0 %v70
    %3418 = vmatprep.subr.mxu0 0.0
    %3419 = vmatpush1.msra.mxu0 %v71
    %3420 = vmatprep.subr.mxu0 0.0
    %3421 = vmatpush1.msra.mxu0 %v72
    %3422 = vmatprep.subr.mxu0 0.0
    %3423 = vmatpush1.msra.mxu0 %v73
    %3424 = vmatprep.subr.mxu0 0.0
    %3425 = vmatpush1.msra.mxu0 %v74
    %3426 = vmatprep.subr.mxu0 0.0
    %3427 = vmatpush1.msra.mxu0 %v75
    %3428 = vmatprep.subr.mxu0 0.0
    %3429 = vmatpush1.msra.mxu0 0.0
    %3430 = vmatprep.subr.mxu0 0.0
    %3431 = vmatpush1.msra.mxu0 0.0
    %3432 = vmatprep.subr.mxu0 0.0
    %3433 = vmatpush1.msra.mxu0 0.0
    %3434 = vmatprep.subr.mxu0 0.0
    %3435 = vmatpush1.msra.mxu0 0.0
    %3436 = vmatprep.subr.mxu0 0.0
    %3437 = vmatpush1.msra.mxu0 0.0
    %3438 = vmatprep.subr.mxu0 0.0
    %3439 = vmatpush1.msra.mxu0 0.0
    %3440 = vmatprep.subr.mxu0 0.0
    %3441 = vmatpush1.msra.mxu0 0.0
    %3442 = vmatprep.subr.mxu0 0.0
    %3443 = vmatpush1.msra.mxu0 0.0
    %3444 = vmatprep.subr.mxu0 0.0
    %3445 = vmatpush1.msra.mxu0 0.0
    %3446 = vmatprep.subr.mxu0 0.0
    %3447 = vmatpush1.msra.mxu0 0.0
    %3448 = vmatprep.subr.mxu0 0.0
    %3449 = vmatpush1.msra.mxu0 0.0
    %3450 = vmatprep.subr.mxu0 0.0
    %3451 = vmatpush1.msra.mxu0 0.0
    %3452 = vmatprep.subr.mxu0 0.0
    %3453 = vmatpush1.msra.mxu0 0.0
    %3454 = vmatprep.subr.mxu0 0.0
    %3455 = vmatpush1.msra.mxu0 0.0
    %3456 = vmatprep.subr.mxu0 0.0
    %3457 = vmatpush1.msra.mxu0 0.0
    %3458 = vmatprep.subr.mxu0 0.0
    %3459 = vmatpush1.msra.mxu0 0.0
    %3460 = vmatprep.mubr.f32.mxu0 0.0
    %3461 = vmatmul.mubr.f32.gmra.mrb[0].mxu0 %v3395
    %v3462 = vpop.f32.mrb[0].mxu0
    %v3463 = vadd.f32 0.0, %v3462
    %v3464 = vpop.f32.mrb[0].mxu0
    %3465 = vdwg.mxu0
    %v3466 = vmul.f32 %v3367, 2.0
    %v3467 = vsub.f32 %v3466, 1.0
    %v3468 = vmul.f32 %v3467, %v3463
    %v3469 = vmul.f32 %v3367, %v3395
    %v3470 = vsub.f32 %v2939, %v3469
    %3471 = vst [vmem:[#allocation5 + $0x5] sm:$0x1] %v3231
    %v3472 = vcvt.s32.f32 %v3392
    %v3473 = vsel %vm814, %v3472, 0.0
    %3475 = vset.pattern.permute.xlu0 0
    %3476 = vperm.xlu0 %3475, %v3219
    %v3477 = vpop.permute.xlu0 %3476
    %v3479 = vsel %vm817, %v3477, 0.0
    %v3480 = vadd.f32 %v3473, %v3479
    %v3481 = vsel %vm825, %v3367, 0.0
    %v3482 = vadd.f32 %v3480, %v3481
    %3483 = vst [vmem:[#allocation6 + $0x5] sm:$0x1] %v3482
    %v3485 = vsel %vm91, %v3468, 0
    %3487 = vmatprep.subr.mxu0 0.0
    %3488 = vmatpush1.msra.mxu0 %v165
    %3489 = vmatprep.subr.mxu0 0.0
    %3490 = vmatpush1.msra.mxu0 %v166
    %3491 = vmatprep.subr.mxu0 0.0
    %3492 = vmatpush1.msra.mxu0 %v167
    %3493 = vmatprep.subr.mxu0 0.0
    %3494 = vmatpush1.msra.mxu0 %v168
    %3495 = vmatprep.subr.mxu0 0.0
    %3496 = vmatpush1.msra.mxu0 0.0
    %3497 = vmatprep.subr.mxu0 0.0
    %3498 = vmatpush1.msra.mxu0 0.0
    %3499 = vmatprep.subr.mxu0 0.0
    %3500 = vmatpush1.msra.mxu0 0.0
    %3501 = vmatprep.subr.mxu0 0.0
    %3502 = vmatpush1.msra.mxu0 0.0
    %3503 = vmatprep.subr.mxu0 0.0
    %3504 = vmatpush1.msra.mxu0 0.0
    %3505 = vmatprep.subr.mxu0 0.0
    %3506 = vmatpush1.msra.mxu0 0.0
    %3507 = vmatprep.subr.mxu0 0.0
    %3508 = vmatpush1.msra.mxu0 0.0
    %3509 = vmatprep.subr.mxu0 0.0
    %3510 = vmatpush1.msra.mxu0 0.0
    %3511 = vmatprep.subr.mxu0 0.0
    %3512 = vmatpush1.msra.mxu0 0.0
    %3513 = vmatprep.subr.mxu0 0.0
    %3514 = vmatpush1.msra.mxu0 0.0
    %3515 = vmatprep.subr.mxu0 0.0
    %3516 = vmatpush1.msra.mxu0 0.0
    %3517 = vmatprep.subr.mxu0 0.0
    %3518 = vmatpush1.msra.mxu0 0.0
    %3519 = vmatprep.subr.mxu0 0.0
    %3520 = vmatpush1.msra.mxu0 0.0
    %3521 = vmatprep.subr.mxu0 0.0
    %3522 = vmatpush1.msra.mxu0 0.0
    %3523 = vmatprep.subr.mxu0 0.0
    %3524 = vmatpush1.msra.mxu0 0.0
    %3525 = vmatprep.subr.mxu0 0.0
    %3526 = vmatpush1.msra.mxu0 0.0
    %3527 = vmatprep.subr.mxu0 0.0
    %3528 = vmatpush1.msra.mxu0 0.0
    %3529 = vmatprep.subr.mxu0 0.0
    %3530 = vmatpush1.msra.mxu0 0.0
    %3531 = vmatprep.subr.mxu0 0.0
    %3532 = vmatpush1.msra.mxu0 0.0
    %3533 = vmatprep.subr.mxu0 0.0
    %3534 = vmatpush1.msra.mxu0 0.0
    %3535 = vmatprep.subr.mxu0 0.0
    %3536 = vmatpush1.msra.mxu0 0.0
    %3537 = vmatprep.subr.mxu0 0.0
    %3538 = vmatpush1.msra.mxu0 0.0
    %3539 = vmatprep.subr.mxu0 0.0
    %3540 = vmatpush1.msra.mxu0 0.0
    %3541 = vmatprep.subr.mxu0 0.0
    %3542 = vmatpush1.msra.mxu0 0.0
    %3543 = vmatprep.subr.mxu0 0.0
    %3544 = vmatpush1.msra.mxu0 0.0
    %3545 = vmatprep.subr.mxu0 0.0
    %3546 = vmatpush1.msra.mxu0 0.0
    %3547 = vmatprep.subr.mxu0 0.0
    %3548 = vmatpush1.msra.mxu0 0.0
    %3549 = vmatprep.subr.mxu0 0.0
    %3550 = vmatpush1.msra.mxu0 0.0
    %3551 = vmatprep.mubr.f32.mxu0 0.0
    %3552 = vmatmul.mubr.f32.gmra.mrb[0].mxu0 %v3485
    %v3553 = vpop.f32.mrb[0].mxu0
    %v3554 = vadd.f32 %v169, %v3553
    %v3555 = vpop.f32.mrb[0].mxu0
    %3556 = vdwg.mxu0
    %v3557 = vadd.f32 %v3554, %v162
    %v3558 = vxor.u32 %v3557, 2147483648
    %v3559 = vmul.f32 %v3558, 1.442695
    %v3560 = vpow.pop %v3559
    %v3561 = vadd.f32 %v3560, 1.0
    %v3562 = vrcp.pop %v3561
    %v3563 = vmul.f32 1.0, %v3562
    %v3564 = vmul.f32 %v3563, %v343
    %3566 = vrot.lane.b32.xlu0 %v3564, 64
    %v3567 = vpop.permute.xlu0 %3566
    %v3569 = vadd.f32 %v3554, %v3567
    %v3570 = vtanh.pop %v3569
    %v3571 = vsub.f32 1.0, %v3563
    %3573 = vrot.lane.b32.xlu0 %v3570, 96
    %v3574 = vpop.permute.xlu0 %3573
    %v3576 = vmul.f32 %v3571, %v3574
    %v3577 = vmul.f32 %v3563, %v363
    %v3578 = vadd.f32 %v3576, %v3577
    %3580 = vrot.lane.b32.xlu0 %v3578, 96
    %v3581 = vpop.permute.xlu0 %3580
    %v3582 = vsel %vm91, %v3581, 0
    %3584 = vmatprep.subr.mxu0 0.0
    %3585 = vmatpush1.msra.mxu0 %v253
    %3586 = vmatprep.subr.mxu0 0.0
    %3587 = vmatpush1.msra.mxu0 %v254
    %3588 = vmatprep.subr.mxu0 0.0
    %3589 = vmatpush1.msra.mxu0 %v255
    %3590 = vmatprep.subr.mxu0 0.0
    %3591 = vmatpush1.msra.mxu0 %v256
    %3592 = vmatprep.subr.mxu0 0.0
    %3593 = vmatpush1.msra.mxu0 0.0
    %3594 = vmatprep.subr.mxu0 0.0
    %3595 = vmatpush1.msra.mxu0 0.0
    %3596 = vmatprep.subr.mxu0 0.0
    %3597 = vmatpush1.msra.mxu0 0.0
    %3598 = vmatprep.subr.mxu0 0.0
    %3599 = vmatpush1.msra.mxu0 0.0
    %3600 = vmatprep.subr.mxu0 0.0
    %3601 = vmatpush1.msra.mxu0 0.0
    %3602 = vmatprep.subr.mxu0 0.0
    %3603 = vmatpush1.msra.mxu0 0.0
    %3604 = vmatprep.subr.mxu0 0.0
    %3605 = vmatpush1.msra.mxu0 0.0
    %3606 = vmatprep.subr.mxu0 0.0
    %3607 = vmatpush1.msra.mxu0 0.0
    %3608 = vmatprep.subr.mxu0 0.0
    %3609 = vmatpush1.msra.mxu0 0.0
    %3610 = vmatprep.subr.mxu0 0.0
    %3611 = vmatpush1.msra.mxu0 0.0
    %3612 = vmatprep.subr.mxu0 0.0
    %3613 = vmatpush1.msra.mxu0 0.0
    %3614 = vmatprep.subr.mxu0 0.0
    %3615 = vmatpush1.msra.mxu0 0.0
    %3616 = vmatprep.subr.mxu0 0.0
    %3617 = vmatpush1.msra.mxu0 0.0
    %3618 = vmatprep.subr.mxu0 0.0
    %3619 = vmatpush1.msra.mxu0 0.0
    %3620 = vmatprep.subr.mxu0 0.0
    %3621 = vmatpush1.msra.mxu0 0.0
    %3622 = vmatprep.subr.mxu0 0.0
    %3623 = vmatpush1.msra.mxu0 0.0
    %3624 = vmatprep.subr.mxu0 0.0
    %3625 = vmatpush1.msra.mxu0 0.0
    %3626 = vmatprep.subr.mxu0 0.0
    %3627 = vmatpush1.msra.mxu0 0.0
    %3628 = vmatprep.subr.mxu0 0.0
    %3629 = vmatpush1.msra.mxu0 0.0
    %3630 = vmatprep.subr.mxu0 0.0
    %3631 = vmatpush1.msra.mxu0 0.0
    %3632 = vmatprep.subr.mxu0 0.0
    %3633 = vmatpush1.msra.mxu0 0.0
    %3634 = vmatprep.subr.mxu0 0.0
    %3635 = vmatpush1.msra.mxu0 0.0
    %3636 = vmatprep.subr.mxu0 0.0
    %3637 = vmatpush1.msra.mxu0 0.0
    %3638 = vmatprep.subr.mxu0 0.0
    %3639 = vmatpush1.msra.mxu0 0.0
    %3640 = vmatprep.subr.mxu0 0.0
    %3641 = vmatpush1.msra.mxu0 0.0
    %3642 = vmatprep.subr.mxu0 0.0
    %3643 = vmatpush1.msra.mxu0 0.0
    %3644 = vmatprep.subr.mxu0 0.0
    %3645 = vmatpush1.msra.mxu0 0.0
    %3646 = vmatprep.subr.mxu0 0.0
    %3647 = vmatpush1.msra.mxu0 0.0
    %3648 = vmatprep.mubr.f32.mxu0 0.0
    %3649 = vmatmul.mubr.f32.gmra.mrb[0].mxu0 %v3582
    %v3650 = vpop.f32.mrb[0].mxu0
    %v3651 = vadd.f32 %v258, %v3650
    %v3652 = vpop.f32.mrb[0].mxu0
    %3653 = vdwg.mxu0
    %v3654 = vadd.f32 %v3651, %v249
    %v3655 = vxor.u32 %v3654, 2147483648
    %v3656 = vmul.f32 %v3655, 1.442695
    %v3657 = vpow.pop %v3656
    %v3658 = vadd.f32 %v3657, 1.0
    %v3659 = vrcp.pop %v3658
    %v3660 = vmul.f32 1.0, %v3659
    %v3661 = vmul.f32 %v3660, %v451
    %3663 = vrot.lane.b32.xlu0 %v3661, 64
    %v3664 = vpop.permute.xlu0 %3663
    %v3666 = vadd.f32 %v3651, %v3664
    %v3667 = vtanh.pop %v3666
    %v3668 = vsub.f32 1.0, %v3660
    %3670 = vrot.lane.b32.xlu0 %v3667, 96
    %v3671 = vpop.permute.xlu0 %3670
    %v3673 = vmul.f32 %v3668, %v3671
    %v3674 = vmul.f32 %v3660, %v471
    %v3675 = vadd.f32 %v3673, %v3674
    %3677 = vrot.lane.b32.xlu0 %v3675, 96
    %v3678 = vpop.permute.xlu0 %3677
    %v3679 = vsel %vm91, %v3678, 0
    %3681 = vmatprep.subr.mxu0 %v77
    %3682 = vmatpush1.msra.mxu0 %v76
    %3683 = vmatprep.subr.mxu0 %v79
    %3684 = vmatpush1.msra.mxu0 %v78
    %3685 = vmatprep.subr.mxu0 %v81
    %3686 = vmatpush1.msra.mxu0 %v80
    %3687 = vmatprep.subr.mxu0 %v83
    %3688 = vmatpush1.msra.mxu0 %v82
    %3689 = vmatprep.subr.mxu0 0.0
    %3690 = vmatpush1.msra.mxu0 0.0
    %3691 = vmatprep.subr.mxu0 0.0
    %3692 = vmatpush1.msra.mxu0 0.0
    %3693 = vmatprep.subr.mxu0 0.0
    %3694 = vmatpush1.msra.mxu0 0.0
    %3695 = vmatprep.subr.mxu0 0.0
    %3696 = vmatpush1.msra.mxu0 0.0
    %3697 = vmatprep.subr.mxu0 0.0
    %3698 = vmatpush1.msra.mxu0 0.0
    %3699 = vmatprep.subr.mxu0 0.0
    %3700 = vmatpush1.msra.mxu0 0.0
    %3701 = vmatprep.subr.mxu0 0.0
    %3702 = vmatpush1.msra.mxu0 0.0
    %3703 = vmatprep.subr.mxu0 0.0
    %3704 = vmatpush1.msra.mxu0 0.0
    %3705 = vmatprep.subr.mxu0 0.0
    %3706 = vmatpush1.msra.mxu0 0.0
    %3707 = vmatprep.subr.mxu0 0.0
    %3708 = vmatpush1.msra.mxu0 0.0
    %3709 = vmatprep.subr.mxu0 0.0
    %3710 = vmatpush1.msra.mxu0 0.0
    %3711 = vmatprep.subr.mxu0 0.0
    %3712 = vmatpush1.msra.mxu0 0.0
    %3713 = vmatprep.subr.mxu0 0.0
    %3714 = vmatpush1.msra.mxu0 0.0
    %3715 = vmatprep.subr.mxu0 0.0
    %3716 = vmatpush1.msra.mxu0 0.0
    %3717 = vmatprep.subr.mxu0 0.0
    %3718 = vmatpush1.msra.mxu0 0.0
    %3719 = vmatprep.subr.mxu0 0.0
    %3720 = vmatpush1.msra.mxu0 0.0
    %3721 = vmatprep.subr.mxu0 0.0
    %3722 = vmatpush1.msra.mxu0 0.0
    %3723 = vmatprep.subr.mxu0 0.0
    %3724 = vmatpush1.msra.mxu0 0.0
    %3725 = vmatprep.subr.mxu0 0.0
    %3726 = vmatpush1.msra.mxu0 0.0
    %3727 = vmatprep.subr.mxu0 0.0
    %3728 = vmatpush1.msra.mxu0 0.0
    %3729 = vmatprep.subr.mxu0 0.0
    %3730 = vmatpush1.msra.mxu0 0.0
    %3731 = vmatprep.subr.mxu0 0.0
    %3732 = vmatpush1.msra.mxu0 0.0
    %3733 = vmatprep.subr.mxu0 0.0
    %3734 = vmatpush1.msra.mxu0 0.0
    %3735 = vmatprep.subr.mxu0 0.0
    %3736 = vmatpush1.msra.mxu0 0.0
    %3737 = vmatprep.subr.mxu0 0.0
    %3738 = vmatpush1.msra.mxu0 0.0
    %3739 = vmatprep.subr.mxu0 0.0
    %3740 = vmatpush1.msra.mxu0 0.0
    %3741 = vmatprep.subr.mxu0 0.0
    %3742 = vmatpush1.msra.mxu0 0.0
    %3743 = vmatprep.subr.mxu0 0.0
    %3744 = vmatpush1.msra.mxu0 0.0
    %3745 = vmatprep.mubr.f32.mxu0 0.0
    %3746 = vmatmul.mubr.f32.gmra.mrb[0].mxu0 %v3679
    %v3747 = vpop.f32.mrb[0].mxu0
    %v3748 = vadd.f32 %v482, %v3747
    %v3749 = vpop.f32.mrb[0].mxu0
    %v3750 = vadd.f32 %v486, %v3749
    %3751 = vdwg.mxu0
    %v3752 = vsel %vm562, %v3748, -inf
    %3753 = vmax.xlane.f32.xlu0 %v3752
    %v3754 = vpop.xlane.xlu0 %3753
    %v3755 = vsub.f32 %v3748, %v3754
    %v3756 = vmul.f32 %v3755, 1.442695
    %v3757 = vpow.pop %v3756
    %v3758 = vsel %vm562, %v3757, 0.0
    %3759 = vadd.xlane.f32.xlu0 %v3758
    %v3760 = vpop.xlane.xlu0 %3759
    %v3761 = vrcp.pop %v3760
    %v3762 = vmul.f32 %v3757, %v3761
    %v3763 = vmul.f32 %v3762, %v3470
    %v3764 = vsel %vm562, %v3763, -inf
    %3765 = vmax.xlane.f32.xlu0 %v3764
    %v3766 = vpop.xlane.xlu0 %3765
    %vm3767 = vcmp.eq.f32.partialorder %v3763, %v3766
    %v3768 = vsel %vm3767, %v58, 128
    %v3769 = vsel %vm562, %v3768, 2147483647
    %v3770 = vand.u32 %v3769, 65535
    %v3771 = vshra.s32 %v3769, 16
    %v3772 = vcvt.s32.f32 %v3770
    %v3773 = vcvt.s32.f32 %v3771
    %3774 = vmin.xlane.f32.xlu0 %v3773
    %v3775 = vpop.xlane.xlu0 %3774
    %vm3776 = vcmp.eq.f32.partialorder %v3773, %v3775
    %v3777 = vsel %vm3776, %v3772, inf
    %3778 = vmin.xlane.f32.xlu0 %v3777
    %v3779 = vpop.xlane.xlu0 %3778
    %v3780 = vcvt.f32.s32 %v3779
    %v3781 = vcvt.f32.s32 %v3775
    %v3782 = vshll.u32 %v3781, 16
    %v3783 = vadd.s32 %v3782, %v3780
    %vm3784 = vcmp.eq.s32.totalorder %v58, %v3783
    %v3785 = vsel %vm3784, 1, 0
    %v3786 = vcvt.s32.f32 %v3785
    %v3787 = vadd.f32 %v3786, 0.0
    %vm3788 = vcmp.gt.f32.partialorder %v3786, 0.0
    %v3789 = vsel %vm3788, -1e+30, %v3763
    %v3790 = vsel %vm562, %v3789, -inf
    %3791 = vmax.xlane.f32.xlu0 %v3790
    %v3792 = vpop.xlane.xlu0 %3791
    %vm3793 = vcmp.eq.f32.partialorder %v3789, %v3792
    %v3794 = vsel %vm3793, %v58, 128
    %v3795 = vsel %vm562, %v3794, 2147483647
    %v3796 = vand.u32 %v3795, 65535
    %v3797 = vshra.s32 %v3795, 16
    %v3798 = vcvt.s32.f32 %v3796
    %v3799 = vcvt.s32.f32 %v3797
    %3800 = vmin.xlane.f32.xlu0 %v3799
    %v3801 = vpop.xlane.xlu0 %3800
    %vm3802 = vcmp.eq.f32.partialorder %v3799, %v3801
    %v3803 = vsel %vm3802, %v3798, inf
    %3804 = vmin.xlane.f32.xlu0 %v3803
    %v3805 = vpop.xlane.xlu0 %3804
    %v3806 = vcvt.f32.s32 %v3805
    %v3807 = vcvt.f32.s32 %v3801
    %v3808 = vshll.u32 %v3807, 16
    %v3809 = vadd.s32 %v3808, %v3806
    %vm3810 = vcmp.eq.s32.totalorder %v58, %v3809
    %v3811 = vsel %vm3810, 1, 0
    %v3812 = vcvt.s32.f32 %v3811
    %v3813 = vadd.f32 %v3787, %v3812
    %vm3814 = vcmp.gt.f32.partialorder %v3812, 0.0
    %v3815 = vsel %vm3814, -1e+30, %v3789
    %v3816 = vsel %vm562, %v3815, -inf
    %3817 = vmax.xlane.f32.xlu0 %v3816
    %v3818 = vpop.xlane.xlu0 %3817
    %vm3819 = vcmp.eq.f32.partialorder %v3815, %v3818
    %v3820 = vsel %vm3819, %v58, 128
    %v3821 = vsel %vm562, %v3820, 2147483647
    %v3822 = vand.u32 %v3821, 65535
    %v3823 = vshra.s32 %v3821, 16
    %v3824 = vcvt.s32.f32 %v3822
    %v3825 = vcvt.s32.f32 %v3823
    %3826 = vmin.xlane.f32.xlu0 %v3825
    %v3827 = vpop.xlane.xlu0 %3826
    %vm3828 = vcmp.eq.f32.partialorder %v3825, %v3827
    %v3829 = vsel %vm3828, %v3824, inf
    %3830 = vmin.xlane.f32.xlu0 %v3829
    %v3831 = vpop.xlane.xlu0 %3830
    %v3832 = vcvt.f32.s32 %v3831
    %v3833 = vcvt.f32.s32 %v3827
    %v3834 = vshll.u32 %v3833, 16
    %v3835 = vadd.s32 %v3834, %v3832
    %vm3836 = vcmp.eq.s32.totalorder %v58, %v3835
    %v3837 = vsel %vm3836, 1, 0
    %v3838 = vcvt.s32.f32 %v3837
    %v3839 = vadd.f32 %v3813, %v3838
    %vm3840 = vcmp.gt.f32.partialorder %v3838, 0.0
    %v3841 = vsel %vm3840, -1e+30, %v3815
    %v3842 = vsel %vm562, %v3841, -inf
    %3843 = vmax.xlane.f32.xlu0 %v3842
    %v3844 = vpop.xlane.xlu0 %3843
    %vm3845 = vcmp.eq.f32.partialorder %v3841, %v3844
    %v3846 = vsel %vm3845, %v58, 128
    %v3847 = vsel %vm562, %v3846, 2147483647
    %v3848 = vand.u32 %v3847, 65535
    %v3849 = vshra.s32 %v3847, 16
    %v3850 = vcvt.s32.f32 %v3848
    %v3851 = vcvt.s32.f32 %v3849
    %3852 = vmin.xlane.f32.xlu0 %v3851
    %v3853 = vpop.xlane.xlu0 %3852
    %vm3854 = vcmp.eq.f32.partialorder %v3851, %v3853
    %v3855 = vsel %vm3854, %v3850, inf
    %3856 = vmin.xlane.f32.xlu0 %v3855
    %v3857 = vpop.xlane.xlu0 %3856
    %v3858 = vcvt.f32.s32 %v3857
    %v3859 = vcvt.f32.s32 %v3853
    %v3860 = vshll.u32 %v3859, 16
    %v3861 = vadd.s32 %v3860, %v3858
    %vm3862 = vcmp.eq.s32.totalorder %v58, %v3861
    %v3863 = vsel %vm3862, 1, 0
    %v3864 = vcvt.s32.f32 %v3863
    %v3865 = vadd.f32 %v3839, %v3864
    %vm3866 = vcmp.gt.f32.partialorder %v3864, 0.0
    %v3867 = vsel %vm3866, -1e+30, %v3841
    %v3868 = vsel %vm562, %v3867, -inf
    %3869 = vmax.xlane.f32.xlu0 %v3868
    %v3870 = vpop.xlane.xlu0 %3869
    %vm3871 = vcmp.eq.f32.partialorder %v3867, %v3870
    %v3872 = vsel %vm3871, %v58, 128
    %v3873 = vsel %vm562, %v3872, 2147483647
    %v3874 = vand.u32 %v3873, 65535
    %v3875 = vshra.s32 %v3873, 16
    %v3876 = vcvt.s32.f32 %v3874
    %v3877 = vcvt.s32.f32 %v3875
    %3878 = vmin.xlane.f32.xlu0 %v3877
    %v3879 = vpop.xlane.xlu0 %3878
    %vm3880 = vcmp.eq.f32.partialorder %v3877, %v3879
    %v3881 = vsel %vm3880, %v3876, inf
    %3882 = vmin.xlane.f32.xlu0 %v3881
    %v3883 = vpop.xlane.xlu0 %3882
    %v3884 = vcvt.f32.s32 %v3883
    %v3885 = vcvt.f32.s32 %v3879
    %v3886 = vshll.u32 %v3885, 16
    %v3887 = vadd.s32 %v3886, %v3884
    %vm3888 = vcmp.eq.s32.totalorder %v58, %v3887
    %v3889 = vsel %vm3888, 1, 0
    %v3890 = vcvt.s32.f32 %v3889
    %v3891 = vadd.f32 %v3865, %v3890
    %v3892 = vmul.f32 %v59, %v3891
    %v3893 = vsel %vm562, %v3892, 0.0
    %3894 = vadd.xlane.f32.xlu0 %v3893
    %v3895 = vpop.xlane.xlu0 %3894
    %vm3896 = vcmp.gt.f32.partialorder %v3895, 0.0
    %v3897 = vsel %vm3896, 1, 0
    %v3898 = vcvt.s32.f32 %v3897
    %v3899 = vmul.f32 %v3898, %v3892
    %v3900 = vmul.f32 %v3899, %v3762
    %v3901 = vsub.f32 1.0, %v3898
    %v3902 = vmul.f32 %v3901, %v3763
    %v3903 = vadd.f32 %v3900, %v3902
    %v3904 = vsel %vm562, %v3903, -inf
    %3905 = vmax.xlane.f32.xlu0 %v3904
    %v3906 = vpop.xlane.xlu0 %3905
    %vm3907 = vcmp.eq.f32.partialorder %v3903, %v3906
    %v3908 = vsel %vm3907, %v58, 128
    %v3909 = vsel %vm562, %v3908, 2147483647
    %v3910 = vand.u32 %v3909, 65535
    %v3911 = vshra.s32 %v3909, 16
    %v3912 = vcvt.s32.f32 %v3910
    %v3913 = vcvt.s32.f32 %v3911
    %3914 = vmin.xlane.f32.xlu0 %v3913
    %v3915 = vpop.xlane.xlu0 %3914
    %vm3916 = vcmp.eq.f32.partialorder %v3913, %v3915
    %v3917 = vsel %vm3916, %v3912, inf
    %3918 = vmin.xlane.f32.xlu0 %v3917
    %v3919 = vpop.xlane.xlu0 %3918
    %v3920 = vcvt.f32.s32 %v3919
    %v3921 = vcvt.f32.s32 %v3915
    %v3922 = vshll.u32 %v3921, 16
    %v3923 = vadd.s32 %v3922, %v3920
    %vm3924 = vcmp.eq.s32.totalorder %v58, %v3923
    %v3925 = vsel %vm3924, 1, 0
    %v3926 = vcvt.s32.f32 %v3925
    %3927 = vmatprep.subr.mxu0 0.0
    %3928 = vmatpush1.msra.mxu0 %v60
    %3929 = vmatprep.subr.mxu0 0.0
    %3930 = vmatpush1.msra.mxu0 %v61
    %3931 = vmatprep.subr.mxu0 0.0
    %3932 = vmatpush1.msra.mxu0 %v62
    %3933 = vmatprep.subr.mxu0 0.0
    %3934 = vmatpush1.msra.mxu0 %v63
    %3935 = vmatprep.subr.mxu0 0.0
    %3936 = vmatpush1.msra.mxu0 %v64
    %3937 = vmatprep.subr.mxu0 0.0
    %3938 = vmatpush1.msra.mxu0 %v65
    %3939 = vmatprep.subr.mxu0 0.0
    %3940 = vmatpush1.msra.mxu0 %v66
    %3941 = vmatprep.subr.mxu0 0.0
    %3942 = vmatpush1.msra.mxu0 %v67
    %3943 = vmatprep.subr.mxu0 0.0
    %3944 = vmatpush1.msra.mxu0 %v68
    %3945 = vmatprep.subr.mxu0 0.0
    %3946 = vmatpush1.msra.mxu0 %v69
    %3947 = vmatprep.subr.mxu0 0.0
    %3948 = vmatpush1.msra.mxu0 %v70
    %3949 = vmatprep.subr.mxu0 0.0
    %3950 = vmatpush1.msra.mxu0 %v71
    %3951 = vmatprep.subr.mxu0 0.0
    %3952 = vmatpush1.msra.mxu0 %v72
    %3953 = vmatprep.subr.mxu0 0.0
    %3954 = vmatpush1.msra.mxu0 %v73
    %3955 = vmatprep.subr.mxu0 0.0
    %3956 = vmatpush1.msra.mxu0 %v74
    %3957 = vmatprep.subr.mxu0 0.0
    %3958 = vmatpush1.msra.mxu0 %v75
    %3959 = vmatprep.subr.mxu0 0.0
    %3960 = vmatpush1.msra.mxu0 0.0
    %3961 = vmatprep.subr.mxu0 0.0
    %3962 = vmatpush1.msra.mxu0 0.0
    %3963 = vmatprep.subr.mxu0 0.0
    %3964 = vmatpush1.msra.mxu0 0.0
    %3965 = vmatprep.subr.mxu0 0.0
    %3966 = vmatpush1.msra.mxu0 0.0
    %3967 = vmatprep.subr.mxu0 0.0
    %3968 = vmatpush1.msra.mxu0 0.0
    %3969 = vmatprep.subr.mxu0 0.0
    %3970 = vmatpush1.msra.mxu0 0.0
    %3971 = vmatprep.subr.mxu0 0.0
    %3972 = vmatpush1.msra.mxu0 0.0
    %3973 = vmatprep.subr.mxu0 0.0
    %3974 = vmatpush1.msra.mxu0 0.0
    %3975 = vmatprep.subr.mxu0 0.0
    %3976 = vmatpush1.msra.mxu0 0.0
    %3977 = vmatprep.subr.mxu0 0.0
    %3978 = vmatpush1.msra.mxu0 0.0
    %3979 = vmatprep.subr.mxu0 0.0
    %3980 = vmatpush1.msra.mxu0 0.0
    %3981 = vmatprep.subr.mxu0 0.0
    %3982 = vmatpush1.msra.mxu0 0.0
    %3983 = vmatprep.subr.mxu0 0.0
    %3984 = vmatpush1.msra.mxu0 0.0
    %3985 = vmatprep.subr.mxu0 0.0
    %3986 = vmatpush1.msra.mxu0 0.0
    %3987 = vmatprep.subr.mxu0 0.0
    %3988 = vmatpush1.msra.mxu0 0.0
    %3989 = vmatprep.subr.mxu0 0.0
    %3990 = vmatpush1.msra.mxu0 0.0
    %3991 = vmatprep.mubr.f32.mxu0 0.0
    %3992 = vmatmul.mubr.f32.gmra.mrb[0].mxu0 %v3926
    %v3993 = vpop.f32.mrb[0].mxu0
    %v3994 = vadd.f32 0.0, %v3993
    %v3995 = vpop.f32.mrb[0].mxu0
    %3996 = vdwg.mxu0
    %v3997 = vmul.f32 %v3898, 2.0
    %v3998 = vsub.f32 %v3997, 1.0
    %v3999 = vmul.f32 %v3998, %v3994
    %v4000 = vmul.f32 %v3898, %v3926
    %v4001 = vsub.f32 %v3470, %v4000
    %4002 = vst [vmem:[#allocation5 + $0x6] sm:$0x1] %v3762
    %v4003 = vcvt.s32.f32 %v3923
    %v4004 = vsel %vm814, %v4003, 0.0
    %4006 = vset.pattern.permute.xlu0 0
    %4007 = vperm.xlu0 %4006, %v3750
    %v4008 = vpop.permute.xlu0 %4007
    %v4010 = vsel %vm817, %v4008, 0.0
    %v4011 = vadd.f32 %v4004, %v4010
    %v4012 = vsel %vm825, %v3898, 0.0
    %v4013 = vadd.f32 %v4011, %v4012
    %4014 = vst [vmem:[#allocation6 + $0x6] sm:$0x1] %v4013
    %v4016 = vsel %vm91, %v3999, 0
    %4018 = vmatprep.subr.mxu0 0.0
    %4019 = vmatpush1.msra.mxu0 %v165
    %4020 = vmatprep.subr.mxu0 0.0
    %4021 = vmatpush1.msra.mxu0 %v166
    %4022 = vmatprep.subr.mxu0 0.0
    %4023 = vmatpush1.msra.mxu0 %v167
    %4024 = vmatprep.subr.mxu0 0.0
    %4025 = vmatpush1.msra.mxu0 %v168
    %4026 = vmatprep.subr.mxu0 0.0
    %4027 = vmatpush1.msra.mxu0 0.0
    %4028 = vmatprep.subr.mxu0 0.0
    %4029 = vmatpush1.msra.mxu0 0.0
    %4030 = vmatprep.subr.mxu0 0.0
    %4031 = vmatpush1.msra.mxu0 0.0
    %4032 = vmatprep.subr.mxu0 0.0
    %4033 = vmatpush1.msra.mxu0 0.0
    %4034 = vmatprep.subr.mxu0 0.0
    %4035 = vmatpush1.msra.mxu0 0.0
    %4036 = vmatprep.subr.mxu0 0.0
    %4037 = vmatpush1.msra.mxu0 0.0
    %4038 = vmatprep.subr.mxu0 0.0
    %4039 = vmatpush1.msra.mxu0 0.0
    %4040 = vmatprep.subr.mxu0 0.0
    %4041 = vmatpush1.msra.mxu0 0.0
    %4042 = vmatprep.subr.mxu0 0.0
    %4043 = vmatpush1.msra.mxu0 0.0
    %4044 = vmatprep.subr.mxu0 0.0
    %4045 = vmatpush1.msra.mxu0 0.0
    %4046 = vmatprep.subr.mxu0 0.0
    %4047 = vmatpush1.msra.mxu0 0.0
    %4048 = vmatprep.subr.mxu0 0.0
    %4049 = vmatpush1.msra.mxu0 0.0
    %4050 = vmatprep.subr.mxu0 0.0
    %4051 = vmatpush1.msra.mxu0 0.0
    %4052 = vmatprep.subr.mxu0 0.0
    %4053 = vmatpush1.msra.mxu0 0.0
    %4054 = vmatprep.subr.mxu0 0.0
    %4055 = vmatpush1.msra.mxu0 0.0
    %4056 = vmatprep.subr.mxu0 0.0
    %4057 = vmatpush1.msra.mxu0 0.0
    %4058 = vmatprep.subr.mxu0 0.0
    %4059 = vmatpush1.msra.mxu0 0.0
    %4060 = vmatprep.subr.mxu0 0.0
    %4061 = vmatpush1.msra.mxu0 0.0
    %4062 = vmatprep.subr.mxu0 0.0
    %4063 = vmatpush1.msra.mxu0 0.0
    %4064 = vmatprep.subr.mxu0 0.0
    %4065 = vmatpush1.msra.mxu0 0.0
    %4066 = vmatprep.subr.mxu0 0.0
    %4067 = vmatpush1.msra.mxu0 0.0
    %4068 = vmatprep.subr.mxu0 0.0
    %4069 = vmatpush1.msra.mxu0 0.0
    %4070 = vmatprep.subr.mxu0 0.0
    %4071 = vmatpush1.msra.mxu0 0.0
    %4072 = vmatprep.subr.mxu0 0.0
    %4073 = vmatpush1.msra.mxu0 0.0
    %4074 = vmatprep.subr.mxu0 0.0
    %4075 = vmatpush1.msra.mxu0 0.0
    %4076 = vmatprep.subr.mxu0 0.0
    %4077 = vmatpush1.msra.mxu0 0.0
    %4078 = vmatprep.subr.mxu0 0.0
    %4079 = vmatpush1.msra.mxu0 0.0
    %4080 = vmatprep.subr.mxu0 0.0
    %4081 = vmatpush1.msra.mxu0 0.0
    %4082 = vmatprep.mubr.f32.mxu0 0.0
    %4083 = vmatmul.mubr.f32.gmra.mrb[0].mxu0 %v4016
    %v4084 = vpop.f32.mrb[0].mxu0
    %v4085 = vadd.f32 %v169, %v4084
    %v4086 = vpop.f32.mrb[0].mxu0
    %4087 = vdwg.mxu0
    %v4088 = vadd.f32 %v4085, %v162
    %v4089 = vxor.u32 %v4088, 2147483648
    %v4090 = vmul.f32 %v4089, 1.442695
    %v4091 = vpow.pop %v4090
    %v4092 = vadd.f32 %v4091, 1.0
    %v4093 = vrcp.pop %v4092
    %v4094 = vmul.f32 1.0, %v4093
    %v4095 = vmul.f32 %v4094, %v343
    %4097 = vrot.lane.b32.xlu0 %v4095, 64
    %v4098 = vpop.permute.xlu0 %4097
    %v4100 = vadd.f32 %v4085, %v4098
    %v4101 = vtanh.pop %v4100
    %v4102 = vsub.f32 1.0, %v4094
    %4104 = vrot.lane.b32.xlu0 %v4101, 96
    %v4105 = vpop.permute.xlu0 %4104
    %v4107 = vmul.f32 %v4102, %v4105
    %v4108 = vmul.f32 %v4094, %v363
    %v4109 = vadd.f32 %v4107, %v4108
    %4111 = vrot.lane.b32.xlu0 %v4109, 96
    %v4112 = vpop.permute.xlu0 %4111
    %v4113 = vsel %vm91, %v4112, 0
    %4115 = vmatprep.subr.mxu0 0.0
    %4116 = vmatpush1.msra.mxu0 %v253
    %4117 = vmatprep.subr.mxu0 0.0
    %4118 = vmatpush1.msra.mxu0 %v254
    %4119 = vmatprep.subr.mxu0 0.0
    %4120 = vmatpush1.msra.mxu0 %v255
    %4121 = vmatprep.subr.mxu0 0.0
    %4122 = vmatpush1.msra.mxu0 %v256
    %4123 = vmatprep.subr.mxu0 0.0
    %4124 = vmatpush1.msra.mxu0 0.0
    %4125 = vmatprep.subr.mxu0 0.0
    %4126 = vmatpush1.msra.mxu0 0.0
    %4127 = vmatprep.subr.mxu0 0.0
    %4128 = vmatpush1.msra.mxu0 0.0
    %4129 = vmatprep.subr.mxu0 0.0
    %4130 = vmatpush1.msra.mxu0 0.0
    %4131 = vmatprep.subr.mxu0 0.0
    %4132 = vmatpush1.msra.mxu0 0.0
    %4133 = vmatprep.subr.mxu0 0.0
    %4134 = vmatpush1.msra.mxu0 0.0
    %4135 = vmatprep.subr.mxu0 0.0
    %4136 = vmatpush1.msra.mxu0 0.0
    %4137 = vmatprep.subr.mxu0 0.0
    %4138 = vmatpush1.msra.mxu0 0.0
    %4139 = vmatprep.subr.mxu0 0.0
    %4140 = vmatpush1.msra.mxu0 0.0
    %4141 = vmatprep.subr.mxu0 0.0
    %4142 = vmatpush1.msra.mxu0 0.0
    %4143 = vmatprep.subr.mxu0 0.0
    %4144 = vmatpush1.msra.mxu0 0.0
    %4145 = vmatprep.subr.mxu0 0.0
    %4146 = vmatpush1.msra.mxu0 0.0
    %4147 = vmatprep.subr.mxu0 0.0
    %4148 = vmatpush1.msra.mxu0 0.0
    %4149 = vmatprep.subr.mxu0 0.0
    %4150 = vmatpush1.msra.mxu0 0.0
    %4151 = vmatprep.subr.mxu0 0.0
    %4152 = vmatpush1.msra.mxu0 0.0
    %4153 = vmatprep.subr.mxu0 0.0
    %4154 = vmatpush1.msra.mxu0 0.0
    %4155 = vmatprep.subr.mxu0 0.0
    %4156 = vmatpush1.msra.mxu0 0.0
    %4157 = vmatprep.subr.mxu0 0.0
    %4158 = vmatpush1.msra.mxu0 0.0
    %4159 = vmatprep.subr.mxu0 0.0
    %4160 = vmatpush1.msra.mxu0 0.0
    %4161 = vmatprep.subr.mxu0 0.0
    %4162 = vmatpush1.msra.mxu0 0.0
    %4163 = vmatprep.subr.mxu0 0.0
    %4164 = vmatpush1.msra.mxu0 0.0
    %4165 = vmatprep.subr.mxu0 0.0
    %4166 = vmatpush1.msra.mxu0 0.0
    %4167 = vmatprep.subr.mxu0 0.0
    %4168 = vmatpush1.msra.mxu0 0.0
    %4169 = vmatprep.subr.mxu0 0.0
    %4170 = vmatpush1.msra.mxu0 0.0
    %4171 = vmatprep.subr.mxu0 0.0
    %4172 = vmatpush1.msra.mxu0 0.0
    %4173 = vmatprep.subr.mxu0 0.0
    %4174 = vmatpush1.msra.mxu0 0.0
    %4175 = vmatprep.subr.mxu0 0.0
    %4176 = vmatpush1.msra.mxu0 0.0
    %4177 = vmatprep.subr.mxu0 0.0
    %4178 = vmatpush1.msra.mxu0 0.0
    %4179 = vmatprep.mubr.f32.mxu0 0.0
    %4180 = vmatmul.mubr.f32.gmra.mrb[0].mxu0 %v4113
    %v4181 = vpop.f32.mrb[0].mxu0
    %v4182 = vadd.f32 %v258, %v4181
    %v4183 = vpop.f32.mrb[0].mxu0
    %4184 = vdwg.mxu0
    %v4185 = vadd.f32 %v4182, %v249
    %v4186 = vxor.u32 %v4185, 2147483648
    %v4187 = vmul.f32 %v4186, 1.442695
    %v4188 = vpow.pop %v4187
    %v4189 = vadd.f32 %v4188, 1.0
    %v4190 = vrcp.pop %v4189
    %v4191 = vmul.f32 1.0, %v4190
    %v4192 = vmul.f32 %v4191, %v451
    %4194 = vrot.lane.b32.xlu0 %v4192, 64
    %v4195 = vpop.permute.xlu0 %4194
    %v4197 = vadd.f32 %v4182, %v4195
    %v4198 = vtanh.pop %v4197
    %v4199 = vsub.f32 1.0, %v4191
    %4201 = vrot.lane.b32.xlu0 %v4198, 96
    %v4202 = vpop.permute.xlu0 %4201
    %v4204 = vmul.f32 %v4199, %v4202
    %v4205 = vmul.f32 %v4191, %v471
    %v4206 = vadd.f32 %v4204, %v4205
    %4208 = vrot.lane.b32.xlu0 %v4206, 96
    %v4209 = vpop.permute.xlu0 %4208
    %v4210 = vsel %vm91, %v4209, 0
    %4212 = vmatprep.subr.mxu0 %v77
    %4213 = vmatpush1.msra.mxu0 %v76
    %4214 = vmatprep.subr.mxu0 %v79
    %4215 = vmatpush1.msra.mxu0 %v78
    %4216 = vmatprep.subr.mxu0 %v81
    %4217 = vmatpush1.msra.mxu0 %v80
    %4218 = vmatprep.subr.mxu0 %v83
    %4219 = vmatpush1.msra.mxu0 %v82
    %4220 = vmatprep.subr.mxu0 0.0
    %4221 = vmatpush1.msra.mxu0 0.0
    %4222 = vmatprep.subr.mxu0 0.0
    %4223 = vmatpush1.msra.mxu0 0.0
    %4224 = vmatprep.subr.mxu0 0.0
    %4225 = vmatpush1.msra.mxu0 0.0
    %4226 = vmatprep.subr.mxu0 0.0
    %4227 = vmatpush1.msra.mxu0 0.0
    %4228 = vmatprep.subr.mxu0 0.0
    %4229 = vmatpush1.msra.mxu0 0.0
    %4230 = vmatprep.subr.mxu0 0.0
    %4231 = vmatpush1.msra.mxu0 0.0
    %4232 = vmatprep.subr.mxu0 0.0
    %4233 = vmatpush1.msra.mxu0 0.0
    %4234 = vmatprep.subr.mxu0 0.0
    %4235 = vmatpush1.msra.mxu0 0.0
    %4236 = vmatprep.subr.mxu0 0.0
    %4237 = vmatpush1.msra.mxu0 0.0
    %4238 = vmatprep.subr.mxu0 0.0
    %4239 = vmatpush1.msra.mxu0 0.0
    %4240 = vmatprep.subr.mxu0 0.0
    %4241 = vmatpush1.msra.mxu0 0.0
    %4242 = vmatprep.subr.mxu0 0.0
    %4243 = vmatpush1.msra.mxu0 0.0
    %4244 = vmatprep.subr.mxu0 0.0
    %4245 = vmatpush1.msra.mxu0 0.0
    %4246 = vmatprep.subr.mxu0 0.0
    %4247 = vmatpush1.msra.mxu0 0.0
    %4248 = vmatprep.subr.mxu0 0.0
    %4249 = vmatpush1.msra.mxu0 0.0
    %4250 = vmatprep.subr.mxu0 0.0
    %4251 = vmatpush1.msra.mxu0 0.0
    %4252 = vmatprep.subr.mxu0 0.0
    %4253 = vmatpush1.msra.mxu0 0.0
    %4254 = vmatprep.subr.mxu0 0.0
    %4255 = vmatpush1.msra.mxu0 0.0
    %4256 = vmatprep.subr.mxu0 0.0
    %4257 = vmatpush1.msra.mxu0 0.0
    %4258 = vmatprep.subr.mxu0 0.0
    %4259 = vmatpush1.msra.mxu0 0.0
    %4260 = vmatprep.subr.mxu0 0.0
    %4261 = vmatpush1.msra.mxu0 0.0
    %4262 = vmatprep.subr.mxu0 0.0
    %4263 = vmatpush1.msra.mxu0 0.0
    %4264 = vmatprep.subr.mxu0 0.0
    %4265 = vmatpush1.msra.mxu0 0.0
    %4266 = vmatprep.subr.mxu0 0.0
    %4267 = vmatpush1.msra.mxu0 0.0
    %4268 = vmatprep.subr.mxu0 0.0
    %4269 = vmatpush1.msra.mxu0 0.0
    %4270 = vmatprep.subr.mxu0 0.0
    %4271 = vmatpush1.msra.mxu0 0.0
    %4272 = vmatprep.subr.mxu0 0.0
    %4273 = vmatpush1.msra.mxu0 0.0
    %4274 = vmatprep.subr.mxu0 0.0
    %4275 = vmatpush1.msra.mxu0 0.0
    %4276 = vmatprep.mubr.f32.mxu0 0.0
    %4277 = vmatmul.mubr.f32.gmra.mrb[0].mxu0 %v4210
    %v4278 = vpop.f32.mrb[0].mxu0
    %v4279 = vadd.f32 %v482, %v4278
    %v4280 = vpop.f32.mrb[0].mxu0
    %v4281 = vadd.f32 %v486, %v4280
    %4282 = vdwg.mxu0
    %v4283 = vsel %vm562, %v4279, -inf
    %4284 = vmax.xlane.f32.xlu0 %v4283
    %v4285 = vpop.xlane.xlu0 %4284
    %v4286 = vsub.f32 %v4279, %v4285
    %v4287 = vmul.f32 %v4286, 1.442695
    %v4288 = vpow.pop %v4287
    %v4289 = vsel %vm562, %v4288, 0.0
    %4290 = vadd.xlane.f32.xlu0 %v4289
    %v4291 = vpop.xlane.xlu0 %4290
    %v4292 = vrcp.pop %v4291
    %v4293 = vmul.f32 %v4288, %v4292
    %v4294 = vmul.f32 %v4293, %v4001
    %v4295 = vsel %vm562, %v4294, -inf
    %4296 = vmax.xlane.f32.xlu0 %v4295
    %v4297 = vpop.xlane.xlu0 %4296
    %vm4298 = vcmp.eq.f32.partialorder %v4294, %v4297
    %v4299 = vsel %vm4298, %v58, 128
    %v4300 = vsel %vm562, %v4299, 2147483647
    %v4301 = vand.u32 %v4300, 65535
    %v4302 = vshra.s32 %v4300, 16
    %v4303 = vcvt.s32.f32 %v4301
    %v4304 = vcvt.s32.f32 %v4302
    %4305 = vmin.xlane.f32.xlu0 %v4304
    %v4306 = vpop.xlane.xlu0 %4305
    %vm4307 = vcmp.eq.f32.partialorder %v4304, %v4306
    %v4308 = vsel %vm4307, %v4303, inf
    %4309 = vmin.xlane.f32.xlu0 %v4308
    %v4310 = vpop.xlane.xlu0 %4309
    %v4311 = vcvt.f32.s32 %v4310
    %v4312 = vcvt.f32.s32 %v4306
    %v4313 = vshll.u32 %v4312, 16
    %v4314 = vadd.s32 %v4313, %v4311
    %vm4315 = vcmp.eq.s32.totalorder %v58, %v4314
    %v4316 = vsel %vm4315, 1, 0
    %v4317 = vcvt.s32.f32 %v4316
    %v4318 = vadd.f32 %v4317, 0.0
    %vm4319 = vcmp.gt.f32.partialorder %v4317, 0.0
    %v4320 = vsel %vm4319, -1e+30, %v4294
    %v4321 = vsel %vm562, %v4320, -inf
    %4322 = vmax.xlane.f32.xlu0 %v4321
    %v4323 = vpop.xlane.xlu0 %4322
    %vm4324 = vcmp.eq.f32.partialorder %v4320, %v4323
    %v4325 = vsel %vm4324, %v58, 128
    %v4326 = vsel %vm562, %v4325, 2147483647
    %v4327 = vand.u32 %v4326, 65535
    %v4328 = vshra.s32 %v4326, 16
    %v4329 = vcvt.s32.f32 %v4327
    %v4330 = vcvt.s32.f32 %v4328
    %4331 = vmin.xlane.f32.xlu0 %v4330
    %v4332 = vpop.xlane.xlu0 %4331
    %vm4333 = vcmp.eq.f32.partialorder %v4330, %v4332
    %v4334 = vsel %vm4333, %v4329, inf
    %4335 = vmin.xlane.f32.xlu0 %v4334
    %v4336 = vpop.xlane.xlu0 %4335
    %v4337 = vcvt.f32.s32 %v4336
    %v4338 = vcvt.f32.s32 %v4332
    %v4339 = vshll.u32 %v4338, 16
    %v4340 = vadd.s32 %v4339, %v4337
    %vm4341 = vcmp.eq.s32.totalorder %v58, %v4340
    %v4342 = vsel %vm4341, 1, 0
    %v4343 = vcvt.s32.f32 %v4342
    %v4344 = vadd.f32 %v4318, %v4343
    %vm4345 = vcmp.gt.f32.partialorder %v4343, 0.0
    %v4346 = vsel %vm4345, -1e+30, %v4320
    %v4347 = vsel %vm562, %v4346, -inf
    %4348 = vmax.xlane.f32.xlu0 %v4347
    %v4349 = vpop.xlane.xlu0 %4348
    %vm4350 = vcmp.eq.f32.partialorder %v4346, %v4349
    %v4351 = vsel %vm4350, %v58, 128
    %v4352 = vsel %vm562, %v4351, 2147483647
    %v4353 = vand.u32 %v4352, 65535
    %v4354 = vshra.s32 %v4352, 16
    %v4355 = vcvt.s32.f32 %v4353
    %v4356 = vcvt.s32.f32 %v4354
    %4357 = vmin.xlane.f32.xlu0 %v4356
    %v4358 = vpop.xlane.xlu0 %4357
    %vm4359 = vcmp.eq.f32.partialorder %v4356, %v4358
    %v4360 = vsel %vm4359, %v4355, inf
    %4361 = vmin.xlane.f32.xlu0 %v4360
    %v4362 = vpop.xlane.xlu0 %4361
    %v4363 = vcvt.f32.s32 %v4362
    %v4364 = vcvt.f32.s32 %v4358
    %v4365 = vshll.u32 %v4364, 16
    %v4366 = vadd.s32 %v4365, %v4363
    %vm4367 = vcmp.eq.s32.totalorder %v58, %v4366
    %v4368 = vsel %vm4367, 1, 0
    %v4369 = vcvt.s32.f32 %v4368
    %v4370 = vadd.f32 %v4344, %v4369
    %vm4371 = vcmp.gt.f32.partialorder %v4369, 0.0
    %v4372 = vsel %vm4371, -1e+30, %v4346
    %v4373 = vsel %vm562, %v4372, -inf
    %4374 = vmax.xlane.f32.xlu0 %v4373
    %v4375 = vpop.xlane.xlu0 %4374
    %vm4376 = vcmp.eq.f32.partialorder %v4372, %v4375
    %v4377 = vsel %vm4376, %v58, 128
    %v4378 = vsel %vm562, %v4377, 2147483647
    %v4379 = vand.u32 %v4378, 65535
    %v4380 = vshra.s32 %v4378, 16
    %v4381 = vcvt.s32.f32 %v4379
    %v4382 = vcvt.s32.f32 %v4380
    %4383 = vmin.xlane.f32.xlu0 %v4382
    %v4384 = vpop.xlane.xlu0 %4383
    %vm4385 = vcmp.eq.f32.partialorder %v4382, %v4384
    %v4386 = vsel %vm4385, %v4381, inf
    %4387 = vmin.xlane.f32.xlu0 %v4386
    %v4388 = vpop.xlane.xlu0 %4387
    %v4389 = vcvt.f32.s32 %v4388
    %v4390 = vcvt.f32.s32 %v4384
    %v4391 = vshll.u32 %v4390, 16
    %v4392 = vadd.s32 %v4391, %v4389
    %vm4393 = vcmp.eq.s32.totalorder %v58, %v4392
    %v4394 = vsel %vm4393, 1, 0
    %v4395 = vcvt.s32.f32 %v4394
    %v4396 = vadd.f32 %v4370, %v4395
    %vm4397 = vcmp.gt.f32.partialorder %v4395, 0.0
    %v4398 = vsel %vm4397, -1e+30, %v4372
    %v4399 = vsel %vm562, %v4398, -inf
    %4400 = vmax.xlane.f32.xlu0 %v4399
    %v4401 = vpop.xlane.xlu0 %4400
    %vm4402 = vcmp.eq.f32.partialorder %v4398, %v4401
    %v4403 = vsel %vm4402, %v58, 128
    %v4404 = vsel %vm562, %v4403, 2147483647
    %v4405 = vand.u32 %v4404, 65535
    %v4406 = vshra.s32 %v4404, 16
    %v4407 = vcvt.s32.f32 %v4405
    %v4408 = vcvt.s32.f32 %v4406
    %4409 = vmin.xlane.f32.xlu0 %v4408
    %v4410 = vpop.xlane.xlu0 %4409
    %vm4411 = vcmp.eq.f32.partialorder %v4408, %v4410
    %v4412 = vsel %vm4411, %v4407, inf
    %4413 = vmin.xlane.f32.xlu0 %v4412
    %v4414 = vpop.xlane.xlu0 %4413
    %v4415 = vcvt.f32.s32 %v4414
    %v4416 = vcvt.f32.s32 %v4410
    %v4417 = vshll.u32 %v4416, 16
    %v4418 = vadd.s32 %v4417, %v4415
    %vm4419 = vcmp.eq.s32.totalorder %v58, %v4418
    %v4420 = vsel %vm4419, 1, 0
    %v4421 = vcvt.s32.f32 %v4420
    %v4422 = vadd.f32 %v4396, %v4421
    %v4423 = vmul.f32 %v59, %v4422
    %v4424 = vsel %vm562, %v4423, 0.0
    %4425 = vadd.xlane.f32.xlu0 %v4424
    %v4426 = vpop.xlane.xlu0 %4425
    %vm4427 = vcmp.gt.f32.partialorder %v4426, 0.0
    %v4428 = vsel %vm4427, 1, 0
    %v4429 = vcvt.s32.f32 %v4428
    %v4430 = vmul.f32 %v4429, %v4423
    %v4431 = vmul.f32 %v4430, %v4293
    %v4432 = vsub.f32 1.0, %v4429
    %v4433 = vmul.f32 %v4432, %v4294
    %v4434 = vadd.f32 %v4431, %v4433
    %v4435 = vsel %vm562, %v4434, -inf
    %4436 = vmax.xlane.f32.xlu0 %v4435
    %v4437 = vpop.xlane.xlu0 %4436
    %vm4438 = vcmp.eq.f32.partialorder %v4434, %v4437
    %v4439 = vsel %vm4438, %v58, 128
    %v4440 = vsel %vm562, %v4439, 2147483647
    %v4441 = vand.u32 %v4440, 65535
    %v4442 = vshra.s32 %v4440, 16
    %v4443 = vcvt.s32.f32 %v4441
    %v4444 = vcvt.s32.f32 %v4442
    %4445 = vmin.xlane.f32.xlu0 %v4444
    %v4446 = vpop.xlane.xlu0 %4445
    %vm4447 = vcmp.eq.f32.partialorder %v4444, %v4446
    %v4448 = vsel %vm4447, %v4443, inf
    %4449 = vmin.xlane.f32.xlu0 %v4448
    %v4450 = vpop.xlane.xlu0 %4449
    %v4451 = vcvt.f32.s32 %v4450
    %v4452 = vcvt.f32.s32 %v4446
    %v4453 = vshll.u32 %v4452, 16
    %v4454 = vadd.s32 %v4453, %v4451
    %vm4455 = vcmp.eq.s32.totalorder %v58, %v4454
    %v4456 = vsel %vm4455, 1, 0
    %v4457 = vcvt.s32.f32 %v4456
    %v4458 = vmul.f32 %v4429, %v4457
    %v4459 = vsub.f32 %v4001, %v4458
    %4460 = vst [vmem:[#allocation5 + $0x7] sm:$0x1] %v4293
    %v4461 = vcvt.s32.f32 %v4454
    %v4462 = vsel %vm814, %v4461, 0.0
    %4464 = vset.pattern.permute.xlu0 0
    %4465 = vperm.xlu0 %4464, %v4281
    %v4466 = vpop.permute.xlu0 %4465
    %v4468 = vsel %vm817, %v4466, 0.0
    %v4469 = vadd.f32 %v4462, %v4468
    %v4470 = vsel %vm825, %v4429, 0.0
    %v4471 = vadd.f32 %v4469, %v4470
    %4472 = vst [vmem:[#allocation6 + $0x7] sm:$0x1] %v4471
    %4473 = vst [vmem:[#allocation8] sm:$0x1] %v4459
    // Predicated region
    $region50: #{tpu_custom_call.1} parent=1 // pred_check
      _
    $region51: #{tpu_custom_call.1} parent=1 // pred_check_branch
      %4475 = sbr.rel (0) target = $region53
    $region52: #{tpu_custom_call.1} parent=1 // pred_region
      %s4477 = ssub.s32 128, 128
      %4478 = vsyncadd [#allocation4], %s4477
      %s4480 = sshll.u32 [#allocation5], 4
      %s4481 = int_to_ptr.vmem [resolvable:$true] %s4480
      %4483 = dma.vmem_to_hbm [thread:$0]  %s4481, 128, %s11, [#allocation4]
    $region53: #{tpu_custom_call.1} parent=1 // pred_fallthru
      _
    // Predicated region
    $region54: #{tpu_custom_call.1} parent=1 // pred_check
      _
    $region55: #{tpu_custom_call.1} parent=1 // pred_check_branch
      %4485 = sbr.rel (0) target = $region57
    $region56: #{tpu_custom_call.1} parent=1 // pred_region
      %s4487 = ssub.s32 128, 128
      %4488 = vsyncadd [#allocation7], %s4487
      %s4490 = sshll.u32 [#allocation6], 4
      %s4491 = int_to_ptr.vmem [resolvable:$true] %s4490
      %4493 = dma.vmem_to_hbm [thread:$0]  %s4491, 128, %s12, [#allocation7]
    $region57: #{tpu_custom_call.1} parent=1 // pred_fallthru
      _
    // Predicated region
    $region58: #{tpu_custom_call.1} parent=1 // pred_check
      _
    $region59: #{tpu_custom_call.1} parent=1 // pred_check_branch
      %4495 = sbr.rel (0) target = $region61
    $region60: #{tpu_custom_call.1} parent=1 // pred_region
      %s4497 = ssub.s32 16, 16
      %4498 = vsyncadd [#allocation7], %s4497
      %s4500 = sshll.u32 [#allocation8], 4
      %s4501 = int_to_ptr.vmem [resolvable:$true] %s4500
      %4503 = dma.vmem_to_hbm [thread:$0]  %s4501, 16, %s13, [#allocation7]
    $region61: #{tpu_custom_call.1} parent=1 // pred_fallthru
      _
    // Predicated region
    $region62: #{tpu_custom_call.1} parent=1 // pred_check
      _
    $region63: #{tpu_custom_call.1} parent=1 // pred_check_branch
      %4505 = sbr.rel (0) target = $region65
    $region64: #{tpu_custom_call.1} parent=1 // pred_region
      %4506 = dma.done [#allocation4], 128
    $region65: #{tpu_custom_call.1} parent=1 // pred_fallthru
      _
    // Predicated region
    $region66: #{tpu_custom_call.1} parent=1 // pred_check
      _
    $region67: #{tpu_custom_call.1} parent=1 // pred_check_branch
      %4508 = sbr.rel (0) target = $region69
    $region68: #{tpu_custom_call.1} parent=1 // pred_region
      %4509 = dma.done [#allocation7], 128
    $region69: #{tpu_custom_call.1} parent=1 // pred_fallthru
      _
    // Predicated region
    $region70: #{tpu_custom_call.1} parent=1 // pred_check
      _
    $region71: #{tpu_custom_call.1} parent=1 // pred_check_branch
      %4511 = sbr.rel (0) target = $region73
    $region72: #{tpu_custom_call.1} parent=1 // pred_region
      %4512 = dma.done [#allocation7], 16
    $region73: #{tpu_custom_call.1} parent=1 // pred_fallthru
      _
    %4513 = vsyncpa [#allocation3], 1
    %4514 = vsyncpa [#allocation4], 1
    %4515 = vsyncpa [#allocation7], 1

</llo_original>
